<compile_context>
chip_gen: v6e
topology: v6e:2x2x1
jax: 0.10.0
libtpu: 0.0.40
codegen_flags: <defaults>
</compile_context>

<pallas_src>
import numpy as np

import jax
import jax.numpy as jnp
from jax.experimental import pallas as pl
from jax.experimental.pallas import tpu as pltpu

CP_GRAN = 16  # channel padding granularity (bf16 sublane packing, v5e-friendly)


def _round_up(x, m):
    return ((x + m - 1) // m) * m


# --------------------------- kernel -----------------------------------------
def _make_conv_prelu_kernel(offsets, cp, tm, halo):
    """Conv3d(+bias+PReLU) over one TM-wide tile of flattened positions.

    offsets: static per-tap column shifts (may be negative: the output-side
    pad shift of the next layer is folded in).  Builds col[K^3*cp, tm] in VMEM
    scratch and does a single deep-contraction matmul.
    """

    def kernel(xl_ref, xc_ref, xr_ref, w_ref, b_ref, m_ref, a_ref, o_ref,
               col_ref):
        # Stack shifted taps directly into the im2col scratch (no concatenate).
        for t, off in enumerate(offsets):
            r0 = t * cp
            if off < 0:
                col_ref[r0:r0 + cp, 0:-off] = xl_ref[:, halo + off:halo]
                if tm + off > 0:
                    col_ref[r0:r0 + cp, -off:tm] = xc_ref[:, 0:tm + off]
            elif off == 0:
                col_ref[r0:r0 + cp, :] = xc_ref[...]
            else:
                if tm - off > 0:
                    col_ref[r0:r0 + cp, 0:tm - off] = xc_ref[:, off:tm]
                col_ref[r0:r0 + cp, tm - off:tm] = xr_ref[:, 0:off]

        # One MXU matmul with a K^3*Cp-deep contraction (f32 accumulation).
        acc = jnp.dot(w_ref[...], col_ref[...],
                      preferred_element_type=jnp.float32)
        acc = acc + b_ref[...]
        alpha = a_ref[0]
        y = jnp.where(acc >= 0.0, acc, alpha * acc)
        # Zero pad-border / tail columns so the output is directly the next
        # layer's zero-padded slab (where(), not *, so junk halo reads on the
        # masked columns can never leak).
        o_ref[...] = jnp.where(m_ref[...] > 0.0, y, 0.0).astype(o_ref.dtype)

    return kernel


# --------------------------- per-layer wrapper -------------------------------
def _conv_prelu_layer(slab, lp, mask, *, dims, ksize, shift_out, out_dtype):
    """One fused Conv3d + bias + PReLU layer on the flat padded slab.

    slab: (Cp, M_pad) bf16, zero at pad-border positions (and tail).
    shift_out=True  -> output is the NEXT layer's slab (shift + border mask).
    shift_out=False -> output is raw "window-start" conv output (pool layer).
    """
    Dp, Hp, Wp, tm, halo, num_tiles = dims
    cp, m_pad = slab.shape
    w2, b2, a1 = lp["w"], lp["b"], lp["a"]
    coutp, k3cp = w2.shape
    assert k3cp == (ksize ** 3) * cp, (k3cp, ksize, cp)

    delta = (Hp * Wp + Wp + 1) if shift_out else 0
    offs = tuple(kd * Hp * Wp + kh * Wp + kw - delta
                 for kd in range(ksize)
                 for kh in range(ksize)
                 for kw in range(ksize))
    assert -min(offs) <= halo and max(offs) <= halo <= tm
    assert tm % halo == 0 and m_pad % tm == 0
    r = tm // halo
    nhb = m_pad // halo

    kernel = _make_conv_prelu_kernel(offs, cp, tm, halo)

    cost = pl.CostEstimate(
        flops=2 * coutp * k3cp * m_pad,
        transcendentals=0,
        bytes_accessed=(num_tiles * ((tm + 2 * halo) * cp * 2
                                     + coutp * k3cp * 2 + tm * 4)
                        + coutp * m_pad * jnp.dtype(out_dtype).itemsize),
    )

    return pl.pallas_call(
        kernel,
        out_shape=jax.ShapeDtypeStruct((coutp, m_pad), out_dtype),
        grid=(num_tiles,),
        in_specs=[
            # left halo (128-lane block; clamped for tile 0 -> only feeds
            # masked columns there)
            pl.BlockSpec((cp, halo), lambda i: (0, jnp.maximum(i * r - 1, 0))),
            # current tile
            pl.BlockSpec((cp, tm), lambda i: (0, i)),
            # right halo (clamped for the last tile -> only feeds masked cols)
            pl.BlockSpec((cp, halo),
                         lambda i: (0, jnp.minimum((i + 1) * r, nhb - 1))),
            pl.BlockSpec((coutp, k3cp), lambda i: (0, 0)),   # packed weights
            pl.BlockSpec((coutp, 1), lambda i: (0, 0)),      # bias
            pl.BlockSpec((1, tm), lambda i: (0, i)),         # border mask
            pl.BlockSpec(memory_space=pltpu.MemorySpace.SMEM),  # PReLU alpha
        ],
        out_specs=pl.BlockSpec((coutp, tm), lambda i: (0, i)),
        scratch_shapes=[pltpu.VMEM((k3cp, tm), jnp.bfloat16)],
        compiler_params=pltpu.CompilerParams(
            dimension_semantics=("parallel",)),
        cost_estimate=cost,
    )(slab, slab, slab, w2, b2, mask, a1)


# --------------------------- parameter packing (hoisted) ---------------------
def pack_params(params):
    """One-time weight/bias prep: tap-major layout, channel padding, bf16."""

    def pack_layer(w, b, a):
        cout, cin, kd, kh, kw = w.shape
        cop = _round_up(cout, CP_GRAN)
        cip = _round_up(cin, CP_GRAN)
        wt = jnp.transpose(w, (0, 2, 3, 4, 1))          # (Cout, kd, kh, kw, Cin)
        wt = jnp.pad(wt, ((0, cop - cout), (0, 0), (0, 0), (0, 0),
                          (0, cip - cin)))
        w2 = wt.reshape(cop, kd * kh * kw * cip).astype(jnp.bfloat16)
        b2 = jnp.pad(b.astype(jnp.float32), (0, cop - cout)).reshape(cop, 1)
        a1 = jnp.reshape(a, (1,)).astype(jnp.float32)
        return {"w": w2, "b": b2, "a": a1}

    return {
        "l1": pack_layer(params["w_in"], params["b_in"], params["a1"]),
        "l2": pack_layer(params["w_b1"], params["b_b1"], params["a2"]),
        "l3": pack_layer(params["w_b2"], params["b_b2"], params["a3"]),
        "l4": pack_layer(params["w_pool"], params["b_pool"], params["a4"]),
    }


# --------------------------- forward -----------------------------------------
def encoder_block_forward(x, packed, *, out_channels):
    """Matches encoder_block.forward (eval semantics, use_dropout=False)."""
    # TODO(synk): nn.Dropout(0.2) in training mode (use_dropout=True) is not
    # reproduced; with use_dropout=False it is an identity, as here.
    N, Cin, D, H, W = x.shape
    Dp, Hp, Wp = D + 2, H + 2, W + 2
    M_full = N * Dp * Hp * Wp
    delta = Hp * Wp + Wp + 1                      # flat shift of (+1,+1,+1)

    halo = _round_up(delta, 128)                  # smallest 128-multiple halo
    tm = max(512, min(2048, _round_up(max(M_full // 2, 1), 512)))
    tm = _round_up(max(tm, halo), halo)           # keep ~2 parallel steps
    num_tiles = -(-M_full // tm)
    m_pad = num_tiles * tm

    cp_in = _round_up(Cin, CP_GRAN)
    assert packed["l1"]["w"].shape[1] == 27 * cp_in

    # Layer-1 input slab: channels-first, zero spatial pad, bf16, flat lanes.
    x_cf = jnp.transpose(x, (1, 0, 2, 3, 4)).astype(jnp.bfloat16)
    x_cf = jnp.pad(x_cf, ((0, cp_in - Cin), (0, 0), (1, 1), (1, 1), (1, 1)))
    slab = jnp.pad(x_cf.reshape(cp_in, M_full), ((0, 0), (0, m_pad - M_full)))

    # Interior mask (baked constant): 1 where the output column is an interior
    # position of the next layer's padded slab, 0 on pad border / tail.
    mi = np.arange(m_pad)
    w_ = mi % Wp
    h_ = (mi // Wp) % Hp
    d_ = (mi // (Wp * Hp)) % Dp
    interior = ((mi < M_full) & (d_ >= 1) & (d_ <= D) &
                (h_ >= 1) & (h_ <= H) & (w_ >= 1) & (w_ <= W))
    mask_interior = jnp.asarray(interior.astype(np.float32)[None, :])
    mask_ones = jnp.ones((1, m_pad), jnp.float32)

    dims = (Dp, Hp, Wp, tm, halo, num_tiles)

    # Three 3x3x3 stride-1 layers: slab -> slab (no XLA glue in between).
    slab = _conv_prelu_layer(slab, packed["l1"], mask_interior, dims=dims,
                             ksize=3, shift_out=True, out_dtype=jnp.bfloat16)
    slab = _conv_prelu_layer(slab, packed["l2"], mask_interior, dims=dims,
                             ksize=3, shift_out=True, out_dtype=jnp.bfloat16)
    slab = _conv_prelu_layer(slab, packed["l3"], mask_interior, dims=dims,
                             ksize=3, shift_out=True, out_dtype=jnp.bfloat16)
    # Pooling conv (2x2x2, stride 2, pad 1): slab -> window-start outputs.
    y = _conv_prelu_layer(slab, packed["l4"], mask_ones, dims=dims,
                          ksize=2, shift_out=False, out_dtype=jnp.float32)

    # Select the stride-2 output positions (small array, XLA strided slice).
    Do, Ho, Wo = D // 2 + 1, H // 2 + 1, W // 2 + 1
    y = y[:out_channels, :M_full].reshape(out_channels, N, Dp, Hp, Wp)
    y = y[:, :, 0:2 * Do - 1:2, 0:2 * Ho - 1:2, 0:2 * Wo - 1:2]
    return jnp.transpose(y, (1, 0, 2, 3, 4))      # C,N,... -> NCDHW


# --------------------------- params / reference ------------------------------
def init_params(key, input_feature, output_feature):
    ks = jax.random.split(key, 8)
    scale = 0.1
    return {
        "w_in":   scale * jax.random.normal(ks[0], (output_feature, input_feature, 3, 3, 3), jnp.float32),
        "b_in":   scale * jax.random.normal(ks[1], (output_feature,), jnp.float32),
        "w_b1":   scale * jax.random.normal(ks[2], (output_feature, output_feature, 3, 3, 3), jnp.float32),
        "b_b1":   scale * jax.random.normal(ks[3], (output_feature,), jnp.float32),
        "w_b2":   scale * jax.random.normal(ks[4], (output_feature, output_feature, 3, 3, 3), jnp.float32),
        "b_b2":   scale * jax.random.normal(ks[5], (output_feature,), jnp.float32),
        "w_pool": scale * jax.random.normal(ks[6], (output_feature, output_feature, 2, 2, 2), jnp.float32),
        "b_pool": scale * jax.random.normal(ks[7], (output_feature,), jnp.float32),
        # nn.PReLU() default init is 0.25 (single shared parameter)
        "a1": jnp.float32(0.25), "a2": jnp.float32(0.25),
        "a3": jnp.float32(0.25), "a4": jnp.float32(0.25),
    }


def _conv_ref(x, w, b, stride, pad):
    y = jax.lax.conv_general_dilated(
        x, w, window_strides=(stride,) * 3, padding=[(pad, pad)] * 3,
        dimension_numbers=("NCDHW", "OIDHW", "NCDHW"))
    return y + b.reshape(1, -1, 1, 1, 1)


def _prelu_ref(x, a):
    return jnp.where(x >= 0, x, a * x)


def reference_forward(x, params):
    y = _prelu_ref(_conv_ref(x, params["w_in"], params["b_in"], 1, 1), params["a1"])
    y = _prelu_ref(_conv_ref(y, params["w_b1"], params["b_b1"], 1, 1), params["a2"])
    y = _prelu_ref(_conv_ref(y, params["w_b2"], params["b_b2"], 1, 1), params["a3"])
    y = _prelu_ref(_conv_ref(y, params["w_pool"], params["b_pool"], 2, 1), params["a4"])
    return y


if __name__ == "__main__":
    input_feature, output_feature = 4, 8
    N, D, H, W = 2, 8, 8, 8

    key = jax.random.PRNGKey(0)
    pkey, xkey = jax.random.split(key)
    params = init_params(pkey, input_feature, output_feature)
    x = jax.random.normal(xkey, (N, input_feature, D, H, W), jnp.float32)

    packed = pack_params(params)                  # one-time weight prep
    fwd = jax.jit(encoder_block_forward, static_argnames=("out_channels",))
    out = jax.block_until_ready(fwd(x, packed, out_channels=output_feature))

    # conv_pooling(k=2, s=2, p=1): spatial 8 -> 5; channels -> output_feature
    expected = (N, output_feature, D // 2 + 1, H // 2 + 1, W // 2 + 1)
    assert out.shape == expected, (out.shape, expected)

    # Validate against an f32 XLA reference (bf16 operands -> loose tolerance).
    ref = jax.block_until_ready(jax.jit(reference_forward)(x, params))
    assert bool(jnp.allclose(out, ref, atol=0.3, rtol=0.05)), \
        float(jnp.max(jnp.abs(out - ref)))

    print("KERNEL_OK")
</pallas_src>

<mosaic_0001>
module attributes {stable_mosaic.version = 11 : i64} {
  func.func @kernel(%arg0: i32, %arg1: memref<16x128xbf16, #tpu.memory_space<vmem>>, %arg2: memref<16x1024xbf16, #tpu.memory_space<vmem>>, %arg3: memref<16x128xbf16, #tpu.memory_space<vmem>>, %arg4: memref<16x432xbf16, #tpu.memory_space<vmem>>, %arg5: memref<16x1xf32, #tpu.memory_space<vmem>>, %arg6: memref<1x1024xf32, #tpu.memory_space<vmem>>, %arg7: memref<1xf32, #tpu.memory_space<smem>>, %arg8: memref<16x1024xbf16, #tpu.memory_space<vmem>>, %arg9: memref<432x1024xbf16, #tpu.memory_space<vmem>>) attributes {dimension_semantics = [#tpu.dimension_semantics<parallel>], iteration_bounds = array<i64: 2>, scalar_prefetch = 0 : i64, scratch_operands = 1 : i64, tpu.core_type = #tpu.core_type<tc>, window_params = [{transform_indices = @transform_0, window_bounds = array<i64: 16, 128>}, {transform_indices = @transform_1, window_bounds = array<i64: 16, 1024>}, {transform_indices = @transform_2, window_bounds = array<i64: 16, 128>}, {pipeline_mode = #tpu.pipeline_mode<synchronous>, transform_indices = @transform_3, window_bounds = array<i64: 16, 432>}, {pipeline_mode = #tpu.pipeline_mode<synchronous>, transform_indices = @transform_4, window_bounds = array<i64: 16, 1>}, {transform_indices = @transform_5, window_bounds = array<i64: 1, 1024>}, {transform_indices = @transform_6, window_bounds = array<i64: 1>}, {transform_indices = @transform_7, window_bounds = array<i64: 16, 1024>}]} {
    %c0 = arith.constant 0 : index
    %c17 = arith.constant 17 : index
    %0 = vector.load %arg1[%c0, %c17] : memref<16x128xbf16, #tpu.memory_space<vmem>>, vector<16x111xbf16>
    %c0_0 = arith.constant 0 : index
    %c0_1 = arith.constant 0 : index
    %1 = vector.load %arg9[%c0_0, %c0_1] : memref<432x1024xbf16, #tpu.memory_space<vmem>>, vector<16x111xbf16>
    tpu.vector_store %arg9[%c0_0, %c0_1], %0 {strides = array<i32>} : memref<432x1024xbf16, #tpu.memory_space<vmem>>, vector<16x111xbf16>,
    %c0_2 = arith.constant 0 : index
    %c0_3 = arith.constant 0 : index
    %2 = vector.load %arg2[%c0_2, %c0_3] : memref<16x1024xbf16, #tpu.memory_space<vmem>>, vector<16x913xbf16>
    %c0_4 = arith.constant 0 : index
    %c111 = arith.constant 111 : index
    %3 = vector.load %arg9[%c0_4, %c111] : memref<432x1024xbf16, #tpu.memory_space<vmem>>, vector<16x913xbf16>
    tpu.vector_store %arg9[%c0_4, %c111], %2 {strides = array<i32>} : memref<432x1024xbf16, #tpu.memory_space<vmem>>, vector<16x913xbf16>,
    %c0_5 = arith.constant 0 : index
    %c18 = arith.constant 18 : index
    %4 = vector.load %arg1[%c0_5, %c18] : memref<16x128xbf16, #tpu.memory_space<vmem>>, vector<16x110xbf16>
    %c16 = arith.constant 16 : index
    %c0_6 = arith.constant 0 : index
    %5 = vector.load %arg9[%c16, %c0_6] : memref<432x1024xbf16, #tpu.memory_space<vmem>>, vector<16x110xbf16>
    tpu.vector_store %arg9[%c16, %c0_6], %4 {strides = array<i32>} : memref<432x1024xbf16, #tpu.memory_space<vmem>>, vector<16x110xbf16>,
    %c0_7 = arith.constant 0 : index
    %c0_8 = arith.constant 0 : index
    %6 = vector.load %arg2[%c0_7, %c0_8] : memref<16x1024xbf16, #tpu.memory_space<vmem>>, vector<16x914xbf16>
    %c16_9 = arith.constant 16 : index
    %c110 = arith.constant 110 : index
    %7 = vector.load %arg9[%c16_9, %c110] : memref<432x1024xbf16, #tpu.memory_space<vmem>>, vector<16x914xbf16>
    tpu.vector_store %arg9[%c16_9, %c110], %6 {strides = array<i32>} : memref<432x1024xbf16, #tpu.memory_space<vmem>>, vector<16x914xbf16>,
    %c0_10 = arith.constant 0 : index
    %c19 = arith.constant 19 : index
    %8 = vector.load %arg1[%c0_10, %c19] : memref<16x128xbf16, #tpu.memory_space<vmem>>, vector<16x109xbf16>
    %c32 = arith.constant 32 : index
    %c0_11 = arith.constant 0 : index
    %9 = vector.load %arg9[%c32, %c0_11] : memref<432x1024xbf16, #tpu.memory_space<vmem>>, vector<16x109xbf16>
    tpu.vector_store %arg9[%c32, %c0_11], %8 {strides = array<i32>} : memref<432x1024xbf16, #tpu.memory_space<vmem>>, vector<16x109xbf16>,
    %c0_12 = arith.constant 0 : index
    %c0_13 = arith.constant 0 : index
    %10 = vector.load %arg2[%c0_12, %c0_13] : memref<16x1024xbf16, #tpu.memory_space<vmem>>, vector<16x915xbf16>
    %c32_14 = arith.constant 32 : index
    %c109 = arith.constant 109 : index
    %11 = vector.load %arg9[%c32_14, %c109] : memref<432x1024xbf16, #tpu.memory_space<vmem>>, vector<16x915xbf16>
    tpu.vector_store %arg9[%c32_14, %c109], %10 {strides = array<i32>} : memref<432x1024xbf16, #tpu.memory_space<vmem>>, vector<16x915xbf16>,
    %c0_15 = arith.constant 0 : index
    %c27 = arith.constant 27 : index
    %12 = vector.load %arg1[%c0_15, %c27] : memref<16x128xbf16, #tpu.memory_space<vmem>>, vector<16x101xbf16>
    %c48 = arith.constant 48 : index
    %c0_16 = arith.constant 0 : index
    %13 = vector.load %arg9[%c48, %c0_16] : memref<432x1024xbf16, #tpu.memory_space<vmem>>, vector<16x101xbf16>
    tpu.vector_store %arg9[%c48, %c0_16], %12 {strides = array<i32>} : memref<432x1024xbf16, #tpu.memory_space<vmem>>, vector<16x101xbf16>,
    %c0_17 = arith.constant 0 : index
    %c0_18 = arith.constant 0 : index
    %14 = vector.load %arg2[%c0_17, %c0_18] : memref<16x1024xbf16, #tpu.memory_space<vmem>>, vector<16x923xbf16>
    %c48_19 = arith.constant 48 : index
    %c101 = arith.constant 101 : index
    %15 = vector.load %arg9[%c48_19, %c101] : memref<432x1024xbf16, #tpu.memory_space<vmem>>, vector<16x923xbf16>
    tpu.vector_store %arg9[%c48_19, %c101], %14 {strides = array<i32>} : memref<432x1024xbf16, #tpu.memory_space<vmem>>, vector<16x923xbf16>,
    %c0_20 = arith.constant 0 : index
    %c28 = arith.constant 28 : index
    %16 = vector.load %arg1[%c0_20, %c28] : memref<16x128xbf16, #tpu.memory_space<vmem>>, vector<16x100xbf16>
    %c64 = arith.constant 64 : index
    %c0_21 = arith.constant 0 : index
    %17 = vector.load %arg9[%c64, %c0_21] : memref<432x1024xbf16, #tpu.memory_space<vmem>>, vector<16x100xbf16>
    tpu.vector_store %arg9[%c64, %c0_21], %16 {strides = array<i32>} : memref<432x1024xbf16, #tpu.memory_space<vmem>>, vector<16x100xbf16>,
    %c0_22 = arith.constant 0 : index
    %c0_23 = arith.constant 0 : index
    %18 = vector.load %arg2[%c0_22, %c0_23] : memref<16x1024xbf16, #tpu.memory_space<vmem>>, vector<16x924xbf16>
    %c64_24 = arith.constant 64 : index
    %c100 = arith.constant 100 : index
    %19 = vector.load %arg9[%c64_24, %c100] : memref<432x1024xbf16, #tpu.memory_space<vmem>>, vector<16x924xbf16>
    tpu.vector_store %arg9[%c64_24, %c100], %18 {strides = array<i32>} : memref<432x1024xbf16, #tpu.memory_space<vmem>>, vector<16x924xbf16>,
    %c0_25 = arith.constant 0 : index
    %c29 = arith.constant 29 : index
    %20 = vector.load %arg1[%c0_25, %c29] : memref<16x128xbf16, #tpu.memory_space<vmem>>, vector<16x99xbf16>
    %c80 = arith.constant 80 : index
    %c0_26 = arith.constant 0 : index
    %21 = vector.load %arg9[%c80, %c0_26] : memref<432x1024xbf16, #tpu.memory_space<vmem>>, vector<16x99xbf16>
    tpu.vector_store %arg9[%c80, %c0_26], %20 {strides = array<i32>} : memref<432x1024xbf16, #tpu.memory_space<vmem>>, vector<16x99xbf16>,
    %c0_27 = arith.constant 0 : index
    %c0_28 = arith.constant 0 : index
    %22 = vector.load %arg2[%c0_27, %c0_28] : memref<16x1024xbf16, #tpu.memory_space<vmem>>, vector<16x925xbf16>
    %c80_29 = arith.constant 80 : index
    %c99 = arith.constant 99 : index
    %23 = vector.load %arg9[%c80_29, %c99] : memref<432x1024xbf16, #tpu.memory_space<vmem>>, vector<16x925xbf16>
    tpu.vector_store %arg9[%c80_29, %c99], %22 {strides = array<i32>} : memref<432x1024xbf16, #tpu.memory_space<vmem>>, vector<16x925xbf16>,
    %c0_30 = arith.constant 0 : index
    %c37 = arith.constant 37 : index
    %24 = vector.load %arg1[%c0_30, %c37] : memref<16x128xbf16, #tpu.memory_space<vmem>>, vector<16x91xbf16>
    %c96 = arith.constant 96 : index
    %c0_31 = arith.constant 0 : index
    %25 = vector.load %arg9[%c96, %c0_31] : memref<432x1024xbf16, #tpu.memory_space<vmem>>, vector<16x91xbf16>
    tpu.vector_store %arg9[%c96, %c0_31], %24 {strides = array<i32>} : memref<432x1024xbf16, #tpu.memory_space<vmem>>, vector<16x91xbf16>,
    %c0_32 = arith.constant 0 : index
    %c0_33 = arith.constant 0 : index
    %26 = vector.load %arg2[%c0_32, %c0_33] : memref<16x1024xbf16, #tpu.memory_space<vmem>>, vector<16x933xbf16>
    %c96_34 = arith.constant 96 : index
    %c91 = arith.constant 91 : index
    %27 = vector.load %arg9[%c96_34, %c91] : memref<432x1024xbf16, #tpu.memory_space<vmem>>, vector<16x933xbf16>
    tpu.vector_store %arg9[%c96_34, %c91], %26 {strides = array<i32>} : memref<432x1024xbf16, #tpu.memory_space<vmem>>, vector<16x933xbf16>,
    %c0_35 = arith.constant 0 : index
    %c38 = arith.constant 38 : index
    %28 = vector.load %arg1[%c0_35, %c38] : memref<16x128xbf16, #tpu.memory_space<vmem>>, vector<16x90xbf16>
    %c112 = arith.constant 112 : index
    %c0_36 = arith.constant 0 : index
    %29 = vector.load %arg9[%c112, %c0_36] : memref<432x1024xbf16, #tpu.memory_space<vmem>>, vector<16x90xbf16>
    tpu.vector_store %arg9[%c112, %c0_36], %28 {strides = array<i32>} : memref<432x1024xbf16, #tpu.memory_space<vmem>>, vector<16x90xbf16>,
    %c0_37 = arith.constant 0 : index
    %c0_38 = arith.constant 0 : index
    %30 = vector.load %arg2[%c0_37, %c0_38] : memref<16x1024xbf16, #tpu.memory_space<vmem>>, vector<16x934xbf16>
    %c112_39 = arith.constant 112 : index
    %c90 = arith.constant 90 : index
    %31 = vector.load %arg9[%c112_39, %c90] : memref<432x1024xbf16, #tpu.memory_space<vmem>>, vector<16x934xbf16>
    tpu.vector_store %arg9[%c112_39, %c90], %30 {strides = array<i32>} : memref<432x1024xbf16, #tpu.memory_space<vmem>>, vector<16x934xbf16>,
    %c0_40 = arith.constant 0 : index
    %c39 = arith.constant 39 : index
    %32 = vector.load %arg1[%c0_40, %c39] : memref<16x128xbf16, #tpu.memory_space<vmem>>, vector<16x89xbf16>
    %c128 = arith.constant 128 : index
    %c0_41 = arith.constant 0 : index
    %33 = vector.load %arg9[%c128, %c0_41] : memref<432x1024xbf16, #tpu.memory_space<vmem>>, vector<16x89xbf16>
    tpu.vector_store %arg9[%c128, %c0_41], %32 {strides = array<i32>} : memref<432x1024xbf16, #tpu.memory_space<vmem>>, vector<16x89xbf16>,
    %c0_42 = arith.constant 0 : index
    %c0_43 = arith.constant 0 : index
    %34 = vector.load %arg2[%c0_42, %c0_43] : memref<16x1024xbf16, #tpu.memory_space<vmem>>, vector<16x935xbf16>
    %c128_44 = arith.constant 128 : index
    %c89 = arith.constant 89 : index
    %35 = vector.load %arg9[%c128_44, %c89] : memref<432x1024xbf16, #tpu.memory_space<vmem>>, vector<16x935xbf16>
    tpu.vector_store %arg9[%c128_44, %c89], %34 {strides = array<i32>} : memref<432x1024xbf16, #tpu.memory_space<vmem>>, vector<16x935xbf16>,
    %c0_45 = arith.constant 0 : index
    %c117 = arith.constant 117 : index
    %36 = vector.load %arg1[%c0_45, %c117] : memref<16x128xbf16, #tpu.memory_space<vmem>>, vector<16x11xbf16>
    %c144 = arith.constant 144 : index
    %c0_46 = arith.constant 0 : index
    %37 = vector.load %arg9[%c144, %c0_46] : memref<432x1024xbf16, #tpu.memory_space<vmem>>, vector<16x11xbf16>
    tpu.vector_store %arg9[%c144, %c0_46], %36 {strides = array<i32>} : memref<432x1024xbf16, #tpu.memory_space<vmem>>, vector<16x11xbf16>,
    %c0_47 = arith.constant 0 : index
    %c0_48 = arith.constant 0 : index
    %38 = vector.load %arg2[%c0_47, %c0_48] : memref<16x1024xbf16, #tpu.memory_space<vmem>>, vector<16x1013xbf16>
    %c144_49 = arith.constant 144 : index
    %c11 = arith.constant 11 : index
    %39 = vector.load %arg9[%c144_49, %c11] : memref<432x1024xbf16, #tpu.memory_space<vmem>>, vector<16x1013xbf16>
    tpu.vector_store %arg9[%c144_49, %c11], %38 {strides = array<i32>} : memref<432x1024xbf16, #tpu.memory_space<vmem>>, vector<16x1013xbf16>,
    %c0_50 = arith.constant 0 : index
    %c118 = arith.constant 118 : index
    %40 = vector.load %arg1[%c0_50, %c118] : memref<16x128xbf16, #tpu.memory_space<vmem>>, vector<16x10xbf16>
    %c160 = arith.constant 160 : index
    %c0_51 = arith.constant 0 : index
    %41 = vector.load %arg9[%c160, %c0_51] : memref<432x1024xbf16, #tpu.memory_space<vmem>>, vector<16x10xbf16>
    tpu.vector_store %arg9[%c160, %c0_51], %40 {strides = array<i32>} : memref<432x1024xbf16, #tpu.memory_space<vmem>>, vector<16x10xbf16>,
    %c0_52 = arith.constant 0 : index
    %c0_53 = arith.constant 0 : index
    %42 = vector.load %arg2[%c0_52, %c0_53] : memref<16x1024xbf16, #tpu.memory_space<vmem>>, vector<16x1014xbf16>
    %c160_54 = arith.constant 160 : index
    %c10 = arith.constant 10 : index
    %43 = vector.load %arg9[%c160_54, %c10] : memref<432x1024xbf16, #tpu.memory_space<vmem>>, vector<16x1014xbf16>
    tpu.vector_store %arg9[%c160_54, %c10], %42 {strides = array<i32>} : memref<432x1024xbf16, #tpu.memory_space<vmem>>, vector<16x1014xbf16>,
    %c0_55 = arith.constant 0 : index
    %c119 = arith.constant 119 : index
    %44 = vector.load %arg1[%c0_55, %c119] : memref<16x128xbf16, #tpu.memory_space<vmem>>, vector<16x9xbf16>
    %c176 = arith.constant 176 : index
    %c0_56 = arith.constant 0 : index
    %45 = vector.load %arg9[%c176, %c0_56] : memref<432x1024xbf16, #tpu.memory_space<vmem>>, vector<16x9xbf16>
    tpu.vector_store %arg9[%c176, %c0_56], %44 {strides = array<i32>} : memref<432x1024xbf16, #tpu.memory_space<vmem>>, vector<16x9xbf16>,
    %c0_57 = arith.constant 0 : index
    %c0_58 = arith.constant 0 : index
    %46 = vector.load %arg2[%c0_57, %c0_58] : memref<16x1024xbf16, #tpu.memory_space<vmem>>, vector<16x1015xbf16>
    %c176_59 = arith.constant 176 : index
    %c9 = arith.constant 9 : index
    %47 = vector.load %arg9[%c176_59, %c9] : memref<432x1024xbf16, #tpu.memory_space<vmem>>, vector<16x1015xbf16>
    tpu.vector_store %arg9[%c176_59, %c9], %46 {strides = array<i32>} : memref<432x1024xbf16, #tpu.memory_space<vmem>>, vector<16x1015xbf16>,
    %c0_60 = arith.constant 0 : index
    %c127 = arith.constant 127 : index
    %48 = vector.load %arg1[%c0_60, %c127] : memref<16x128xbf16, #tpu.memory_space<vmem>>, vector<16x1xbf16>
    %c192 = arith.constant 192 : index
    %c0_61 = arith.constant 0 : index
    %49 = vector.load %arg9[%c192, %c0_61] : memref<432x1024xbf16, #tpu.memory_space<vmem>>, vector<16x1xbf16>
    tpu.vector_store %arg9[%c192, %c0_61], %48 {strides = array<i32>} : memref<432x1024xbf16, #tpu.memory_space<vmem>>, vector<16x1xbf16>,
    %c0_62 = arith.constant 0 : index
    %c0_63 = arith.constant 0 : index
    %50 = vector.load %arg2[%c0_62, %c0_63] : memref<16x1024xbf16, #tpu.memory_space<vmem>>, vector<16x1023xbf16>
    %c192_64 = arith.constant 192 : index
    %c1 = arith.constant 1 : index
    %51 = vector.load %arg9[%c192_64, %c1] : memref<432x1024xbf16, #tpu.memory_space<vmem>>, vector<16x1023xbf16>
    tpu.vector_store %arg9[%c192_64, %c1], %50 {strides = array<i32>} : memref<432x1024xbf16, #tpu.memory_space<vmem>>, vector<16x1023xbf16>,
    %c0_65 = arith.constant 0 : index
    %c0_66 = arith.constant 0 : index
    %52 = vector.load %arg2[%c0_65, %c0_66] : memref<16x1024xbf16, #tpu.memory_space<vmem>>, vector<16x1024xbf16>
    %c208 = arith.constant 208 : index
    %c0_67 = arith.constant 0 : index
    %53 = vector.load %arg9[%c208, %c0_67] : memref<432x1024xbf16, #tpu.memory_space<vmem>>, vector<16x1024xbf16>
    tpu.vector_store %arg9[%c208, %c0_67], %52 {strides = array<i32>} : memref<432x1024xbf16, #tpu.memory_space<vmem>>, vector<16x1024xbf16>,
    %c0_68 = arith.constant 0 : index
    %c1_69 = arith.constant 1 : index
    %54 = vector.load %arg2[%c0_68, %c1_69] : memref<16x1024xbf16, #tpu.memory_space<vmem>>, vector<16x1023xbf16>
    %c224 = arith.constant 224 : index
    %c0_70 = arith.constant 0 : index
    %55 = vector.load %arg9[%c224, %c0_70] : memref<432x1024xbf16, #tpu.memory_space<vmem>>, vector<16x1023xbf16>
    tpu.vector_store %arg9[%c224, %c0_70], %54 {strides = array<i32>} : memref<432x1024xbf16, #tpu.memory_space<vmem>>, vector<16x1023xbf16>,
    %c0_71 = arith.constant 0 : index
    %c0_72 = arith.constant 0 : index
    %56 = vector.load %arg3[%c0_71, %c0_72] : memref<16x128xbf16, #tpu.memory_space<vmem>>, vector<16x1xbf16>
    %c224_73 = arith.constant 224 : index
    %c1023 = arith.constant 1023 : index
    %57 = vector.load %arg9[%c224_73, %c1023] : memref<432x1024xbf16, #tpu.memory_space<vmem>>, vector<16x1xbf16>
    tpu.vector_store %arg9[%c224_73, %c1023], %56 {strides = array<i32>} : memref<432x1024xbf16, #tpu.memory_space<vmem>>, vector<16x1xbf16>,
    %c0_74 = arith.constant 0 : index
    %c9_75 = arith.constant 9 : index
    %58 = vector.load %arg2[%c0_74, %c9_75] : memref<16x1024xbf16, #tpu.memory_space<vmem>>, vector<16x1015xbf16>
    %c240 = arith.constant 240 : index
    %c0_76 = arith.constant 0 : index
    %59 = vector.load %arg9[%c240, %c0_76] : memref<432x1024xbf16, #tpu.memory_space<vmem>>, vector<16x1015xbf16>
    tpu.vector_store %arg9[%c240, %c0_76], %58 {strides = array<i32>} : memref<432x1024xbf16, #tpu.memory_space<vmem>>, vector<16x1015xbf16>,
    %c0_77 = arith.constant 0 : index
    %c0_78 = arith.constant 0 : index
    %60 = vector.load %arg3[%c0_77, %c0_78] : memref<16x128xbf16, #tpu.memory_space<vmem>>, vector<16x9xbf16>
    %c240_79 = arith.constant 240 : index
    %c1015 = arith.constant 1015 : index
    %61 = vector.load %arg9[%c240_79, %c1015] : memref<432x1024xbf16, #tpu.memory_space<vmem>>, vector<16x9xbf16>
    tpu.vector_store %arg9[%c240_79, %c1015], %60 {strides = array<i32>} : memref<432x1024xbf16, #tpu.memory_space<vmem>>, vector<16x9xbf16>,
    %c0_80 = arith.constant 0 : index
    %c10_81 = arith.constant 10 : index
    %62 = vector.load %arg2[%c0_80, %c10_81] : memref<16x1024xbf16, #tpu.memory_space<vmem>>, vector<16x1014xbf16>
    %c256 = arith.constant 256 : index
    %c0_82 = arith.constant 0 : index
    %63 = vector.load %arg9[%c256, %c0_82] : memref<432x1024xbf16, #tpu.memory_space<vmem>>, vector<16x1014xbf16>
    tpu.vector_store %arg9[%c256, %c0_82], %62 {strides = array<i32>} : memref<432x1024xbf16, #tpu.memory_space<vmem>>, vector<16x1014xbf16>,
    %c0_83 = arith.constant 0 : index
    %c0_84 = arith.constant 0 : index
    %64 = vector.load %arg3[%c0_83, %c0_84] : memref<16x128xbf16, #tpu.memory_space<vmem>>, vector<16x10xbf16>
    %c256_85 = arith.constant 256 : index
    %c1014 = arith.constant 1014 : index
    %65 = vector.load %arg9[%c256_85, %c1014] : memref<432x1024xbf16, #tpu.memory_space<vmem>>, vector<16x10xbf16>
    tpu.vector_store %arg9[%c256_85, %c1014], %64 {strides = array<i32>} : memref<432x1024xbf16, #tpu.memory_space<vmem>>, vector<16x10xbf16>,
    %c0_86 = arith.constant 0 : index
    %c11_87 = arith.constant 11 : index
    %66 = vector.load %arg2[%c0_86, %c11_87] : memref<16x1024xbf16, #tpu.memory_space<vmem>>, vector<16x1013xbf16>
    %c272 = arith.constant 272 : index
    %c0_88 = arith.constant 0 : index
    %67 = vector.load %arg9[%c272, %c0_88] : memref<432x1024xbf16, #tpu.memory_space<vmem>>, vector<16x1013xbf16>
    tpu.vector_store %arg9[%c272, %c0_88], %66 {strides = array<i32>} : memref<432x1024xbf16, #tpu.memory_space<vmem>>, vector<16x1013xbf16>,
    %c0_89 = arith.constant 0 : index
    %c0_90 = arith.constant 0 : index
    %68 = vector.load %arg3[%c0_89, %c0_90] : memref<16x128xbf16, #tpu.memory_space<vmem>>, vector<16x11xbf16>
    %c272_91 = arith.constant 272 : index
    %c1013 = arith.constant 1013 : index
    %69 = vector.load %arg9[%c272_91, %c1013] : memref<432x1024xbf16, #tpu.memory_space<vmem>>, vector<16x11xbf16>
    tpu.vector_store %arg9[%c272_91, %c1013], %68 {strides = array<i32>} : memref<432x1024xbf16, #tpu.memory_space<vmem>>, vector<16x11xbf16>,
    %c0_92 = arith.constant 0 : index
    %c89_93 = arith.constant 89 : index
    %70 = vector.load %arg2[%c0_92, %c89_93] : memref<16x1024xbf16, #tpu.memory_space<vmem>>, vector<16x935xbf16>
    %c288 = arith.constant 288 : index
    %c0_94 = arith.constant 0 : index
    %71 = vector.load %arg9[%c288, %c0_94] : memref<432x1024xbf16, #tpu.memory_space<vmem>>, vector<16x935xbf16>
    tpu.vector_store %arg9[%c288, %c0_94], %70 {strides = array<i32>} : memref<432x1024xbf16, #tpu.memory_space<vmem>>, vector<16x935xbf16>,
    %c0_95 = arith.constant 0 : index
    %c0_96 = arith.constant 0 : index
    %72 = vector.load %arg3[%c0_95, %c0_96] : memref<16x128xbf16, #tpu.memory_space<vmem>>, vector<16x89xbf16>
    %c288_97 = arith.constant 288 : index
    %c935 = arith.constant 935 : index
    %73 = vector.load %arg9[%c288_97, %c935] : memref<432x1024xbf16, #tpu.memory_space<vmem>>, vector<16x89xbf16>
    tpu.vector_store %arg9[%c288_97, %c935], %72 {strides = array<i32>} : memref<432x1024xbf16, #tpu.memory_space<vmem>>, vector<16x89xbf16>,
    %c0_98 = arith.constant 0 : index
    %c90_99 = arith.constant 90 : index
    %74 = vector.load %arg2[%c0_98, %c90_99] : memref<16x1024xbf16, #tpu.memory_space<vmem>>, vector<16x934xbf16>
    %c304 = arith.constant 304 : index
    %c0_100 = arith.constant 0 : index
    %75 = vector.load %arg9[%c304, %c0_100] : memref<432x1024xbf16, #tpu.memory_space<vmem>>, vector<16x934xbf16>
    tpu.vector_store %arg9[%c304, %c0_100], %74 {strides = array<i32>} : memref<432x1024xbf16, #tpu.memory_space<vmem>>, vector<16x934xbf16>,
    %c0_101 = arith.constant 0 : index
    %c0_102 = arith.constant 0 : index
    %76 = vector.load %arg3[%c0_101, %c0_102] : memref<16x128xbf16, #tpu.memory_space<vmem>>, vector<16x90xbf16>
    %c304_103 = arith.constant 304 : index
    %c934 = arith.constant 934 : index
    %77 = vector.load %arg9[%c304_103, %c934] : memref<432x1024xbf16, #tpu.memory_space<vmem>>, vector<16x90xbf16>
    tpu.vector_store %arg9[%c304_103, %c934], %76 {strides = array<i32>} : memref<432x1024xbf16, #tpu.memory_space<vmem>>, vector<16x90xbf16>,
    %c0_104 = arith.constant 0 : index
    %c91_105 = arith.constant 91 : index
    %78 = vector.load %arg2[%c0_104, %c91_105] : memref<16x1024xbf16, #tpu.memory_space<vmem>>, vector<16x933xbf16>
    %c320 = arith.constant 320 : index
    %c0_106 = arith.constant 0 : index
    %79 = vector.load %arg9[%c320, %c0_106] : memref<432x1024xbf16, #tpu.memory_space<vmem>>, vector<16x933xbf16>
    tpu.vector_store %arg9[%c320, %c0_106], %78 {strides = array<i32>} : memref<432x1024xbf16, #tpu.memory_space<vmem>>, vector<16x933xbf16>,
    %c0_107 = arith.constant 0 : index
    %c0_108 = arith.constant 0 : index
    %80 = vector.load %arg3[%c0_107, %c0_108] : memref<16x128xbf16, #tpu.memory_space<vmem>>, vector<16x91xbf16>
    %c320_109 = arith.constant 320 : index
    %c933 = arith.constant 933 : index
    %81 = vector.load %arg9[%c320_109, %c933] : memref<432x1024xbf16, #tpu.memory_space<vmem>>, vector<16x91xbf16>
    tpu.vector_store %arg9[%c320_109, %c933], %80 {strides = array<i32>} : memref<432x1024xbf16, #tpu.memory_space<vmem>>, vector<16x91xbf16>,
    %c0_110 = arith.constant 0 : index
    %c99_111 = arith.constant 99 : index
    %82 = vector.load %arg2[%c0_110, %c99_111] : memref<16x1024xbf16, #tpu.memory_space<vmem>>, vector<16x925xbf16>
    %c336 = arith.constant 336 : index
    %c0_112 = arith.constant 0 : index
    %83 = vector.load %arg9[%c336, %c0_112] : memref<432x1024xbf16, #tpu.memory_space<vmem>>, vector<16x925xbf16>
    tpu.vector_store %arg9[%c336, %c0_112], %82 {strides = array<i32>} : memref<432x1024xbf16, #tpu.memory_space<vmem>>, vector<16x925xbf16>,
    %c0_113 = arith.constant 0 : index
    %c0_114 = arith.constant 0 : index
    %84 = vector.load %arg3[%c0_113, %c0_114] : memref<16x128xbf16, #tpu.memory_space<vmem>>, vector<16x99xbf16>
    %c336_115 = arith.constant 336 : index
    %c925 = arith.constant 925 : index
    %85 = vector.load %arg9[%c336_115, %c925] : memref<432x1024xbf16, #tpu.memory_space<vmem>>, vector<16x99xbf16>
    tpu.vector_store %arg9[%c336_115, %c925], %84 {strides = array<i32>} : memref<432x1024xbf16, #tpu.memory_space<vmem>>, vector<16x99xbf16>,
    %c0_116 = arith.constant 0 : index
    %c100_117 = arith.constant 100 : index
    %86 = vector.load %arg2[%c0_116, %c100_117] : memref<16x1024xbf16, #tpu.memory_space<vmem>>, vector<16x924xbf16>
    %c352 = arith.constant 352 : index
    %c0_118 = arith.constant 0 : index
    %87 = vector.load %arg9[%c352, %c0_118] : memref<432x1024xbf16, #tpu.memory_space<vmem>>, vector<16x924xbf16>
    tpu.vector_store %arg9[%c352, %c0_118], %86 {strides = array<i32>} : memref<432x1024xbf16, #tpu.memory_space<vmem>>, vector<16x924xbf16>,
    %c0_119 = arith.constant 0 : index
    %c0_120 = arith.constant 0 : index
    %88 = vector.load %arg3[%c0_119, %c0_120] : memref<16x128xbf16, #tpu.memory_space<vmem>>, vector<16x100xbf16>
    %c352_121 = arith.constant 352 : index
    %c924 = arith.constant 924 : index
    %89 = vector.load %arg9[%c352_121, %c924] : memref<432x1024xbf16, #tpu.memory_space<vmem>>, vector<16x100xbf16>
    tpu.vector_store %arg9[%c352_121, %c924], %88 {strides = array<i32>} : memref<432x1024xbf16, #tpu.memory_space<vmem>>, vector<16x100xbf16>,
    %c0_122 = arith.constant 0 : index
    %c101_123 = arith.constant 101 : index
    %90 = vector.load %arg2[%c0_122, %c101_123] : memref<16x1024xbf16, #tpu.memory_space<vmem>>, vector<16x923xbf16>
    %c368 = arith.constant 368 : index
    %c0_124 = arith.constant 0 : index
    %91 = vector.load %arg9[%c368, %c0_124] : memref<432x1024xbf16, #tpu.memory_space<vmem>>, vector<16x923xbf16>
    tpu.vector_store %arg9[%c368, %c0_124], %90 {strides = array<i32>} : memref<432x1024xbf16, #tpu.memory_space<vmem>>, vector<16x923xbf16>,
    %c0_125 = arith.constant 0 : index
    %c0_126 = arith.constant 0 : index
    %92 = vector.load %arg3[%c0_125, %c0_126] : memref<16x128xbf16, #tpu.memory_space<vmem>>, vector<16x101xbf16>
    %c368_127 = arith.constant 368 : index
    %c923 = arith.constant 923 : index
    %93 = vector.load %arg9[%c368_127, %c923] : memref<432x1024xbf16, #tpu.memory_space<vmem>>, vector<16x101xbf16>
    tpu.vector_store %arg9[%c368_127, %c923], %92 {strides = array<i32>} : memref<432x1024xbf16, #tpu.memory_space<vmem>>, vector<16x101xbf16>,
    %c0_128 = arith.constant 0 : index
    %c109_129 = arith.constant 109 : index
    %94 = vector.load %arg2[%c0_128, %c109_129] : memref<16x1024xbf16, #tpu.memory_space<vmem>>, vector<16x915xbf16>
    %c384 = arith.constant 384 : index
    %c0_130 = arith.constant 0 : index
    %95 = vector.load %arg9[%c384, %c0_130] : memref<432x1024xbf16, #tpu.memory_space<vmem>>, vector<16x915xbf16>
    tpu.vector_store %arg9[%c384, %c0_130], %94 {strides = array<i32>} : memref<432x1024xbf16, #tpu.memory_space<vmem>>, vector<16x915xbf16>,
    %c0_131 = arith.constant 0 : index
    %c0_132 = arith.constant 0 : index
    %96 = vector.load %arg3[%c0_131, %c0_132] : memref<16x128xbf16, #tpu.memory_space<vmem>>, vector<16x109xbf16>
    %c384_133 = arith.constant 384 : index
    %c915 = arith.constant 915 : index
    %97 = vector.load %arg9[%c384_133, %c915] : memref<432x1024xbf16, #tpu.memory_space<vmem>>, vector<16x109xbf16>
    tpu.vector_store %arg9[%c384_133, %c915], %96 {strides = array<i32>} : memref<432x1024xbf16, #tpu.memory_space<vmem>>, vector<16x109xbf16>,
    %c0_134 = arith.constant 0 : index
    %c110_135 = arith.constant 110 : index
    %98 = vector.load %arg2[%c0_134, %c110_135] : memref<16x1024xbf16, #tpu.memory_space<vmem>>, vector<16x914xbf16>
    %c400 = arith.constant 400 : index
    %c0_136 = arith.constant 0 : index
    %99 = vector.load %arg9[%c400, %c0_136] : memref<432x1024xbf16, #tpu.memory_space<vmem>>, vector<16x914xbf16>
    tpu.vector_store %arg9[%c400, %c0_136], %98 {strides = array<i32>} : memref<432x1024xbf16, #tpu.memory_space<vmem>>, vector<16x914xbf16>,
    %c0_137 = arith.constant 0 : index
    %c0_138 = arith.constant 0 : index
    %100 = vector.load %arg3[%c0_137, %c0_138] : memref<16x128xbf16, #tpu.memory_space<vmem>>, vector<16x110xbf16>
    %c400_139 = arith.constant 400 : index
    %c914 = arith.constant 914 : index
    %101 = vector.load %arg9[%c400_139, %c914] : memref<432x1024xbf16, #tpu.memory_space<vmem>>, vector<16x110xbf16>
    tpu.vector_store %arg9[%c400_139, %c914], %100 {strides = array<i32>} : memref<432x1024xbf16, #tpu.memory_space<vmem>>, vector<16x110xbf16>,
    %c0_140 = arith.constant 0 : index
    %c111_141 = arith.constant 111 : index
    %102 = vector.load %arg2[%c0_140, %c111_141] : memref<16x1024xbf16, #tpu.memory_space<vmem>>, vector<16x913xbf16>
    %c416 = arith.constant 416 : index
    %c0_142 = arith.constant 0 : index
    %103 = vector.load %arg9[%c416, %c0_142] : memref<432x1024xbf16, #tpu.memory_space<vmem>>, vector<16x913xbf16>
    tpu.vector_store %arg9[%c416, %c0_142], %102 {strides = array<i32>} : memref<432x1024xbf16, #tpu.memory_space<vmem>>, vector<16x913xbf16>,
    %c0_143 = arith.constant 0 : index
    %c0_144 = arith.constant 0 : index
    %104 = vector.load %arg3[%c0_143, %c0_144] : memref<16x128xbf16, #tpu.memory_space<vmem>>, vector<16x111xbf16>
    %c416_145 = arith.constant 416 : index
    %c913 = arith.constant 913 : index
    %105 = vector.load %arg9[%c416_145, %c913] : memref<432x1024xbf16, #tpu.memory_space<vmem>>, vector<16x111xbf16>
    tpu.vector_store %arg9[%c416_145, %c913], %104 {strides = array<i32>} : memref<432x1024xbf16, #tpu.memory_space<vmem>>, vector<16x111xbf16>,
    %c0_146 = arith.constant 0 : index
    %c0_147 = arith.constant 0 : index
    %106 = vector.load %arg4[%c0_146, %c0_147] : memref<16x432xbf16, #tpu.memory_space<vmem>>, vector<16x432xbf16>
    %c0_148 = arith.constant 0 : index
    %c0_149 = arith.constant 0 : index
    %107 = vector.load %arg9[%c0_148, %c0_149] : memref<432x1024xbf16, #tpu.memory_space<vmem>>, vector<432x1024xbf16>
    %cst = arith.constant dense<0.000000e+00> : vector<16x1024xf32>
    %108 = tpu.matmul %106, %107, %cst {dimension_numbers = #tpu.dot_dimension_numbers<[1], [0], [0], [1], [0, 0, 1, 1], [], []>} : vector<16x432xbf16>, vector<432x1024xbf16>, vector<16x1024xf32> -> vector<16x1024xf32>
    %c0_150 = arith.constant 0 : index
    %c0_151 = arith.constant 0 : index
    %109 = vector.load %arg5[%c0_150, %c0_151] : memref<16x1xf32, #tpu.memory_space<vmem>>, vector<16x1xf32>
    %110 = vector.broadcast %109 : vector<16x1xf32> to vector<16x1024xf32>
    %111 = arith.addf %108, %110 : vector<16x1024xf32>
    %c0_152 = arith.constant 0 : index
    %112 = memref.load %arg7[%c0_152] : memref<1xf32, #tpu.memory_space<smem>>
    %cst_153 = arith.constant 0.000000e+00 : f32
    %113 = vector.broadcast %cst_153 : f32 to vector<16x1024xf32>
    %114 = arith.cmpf oge, %111, %113 : vector<16x1024xf32>
    %115 = vector.broadcast %112 : f32 to vector<16x1024xf32>
    %116 = arith.mulf %115, %111 : vector<16x1024xf32>
    %117 = arith.select %114, %111, %116 : vector<16x1024xi1>, vector<16x1024xf32>
    %c0_154 = arith.constant 0 : index
    %c0_155 = arith.constant 0 : index
    %118 = vector.load %arg6[%c0_154, %c0_155] : memref<1x1024xf32, #tpu.memory_space<vmem>>, vector<1x1024xf32>
    %cst_156 = arith.constant 0.000000e+00 : f32
    %119 = vector.broadcast %cst_156 : f32 to vector<1x1024xf32>
    %120 = arith.cmpf ogt, %118, %119 : vector<1x1024xf32>
    %cst_157 = arith.constant 0.000000e+00 : f32
    %121 = vector.shape_cast %120 : vector<1x1024xi1> to vector<1x1024xi1>
    %122 = vector.broadcast %121 : vector<1x1024xi1> to vector<16x1024xi1>
    %123 = vector.broadcast %cst_157 : f32 to vector<16x1024xf32>
    %124 = arith.select %122, %117, %123 : vector<16x1024xi1>, vector<16x1024xf32>
    %125 = arith.truncf %124 : vector<16x1024xf32> to vector<16x1024xbf16>
    %c0_158 = arith.constant 0 : index
    %c0_159 = arith.constant 0 : index
    %126 = vector.load %arg8[%c0_158, %c0_159] : memref<16x1024xbf16, #tpu.memory_space<vmem>>, vector<16x1024xbf16>
    tpu.vector_store %arg8[%c0_158, %c0_159], %125 {strides = array<i32>} : memref<16x1024xbf16, #tpu.memory_space<vmem>>, vector<16x1024xbf16>,
    return
  }
  func.func @transform_0(%arg0: i32) -> (i32, i32) {
    %c8_i32 = arith.constant 8 : i32
    %0 = arith.muli %arg0, %c8_i32 : i32
    %c1_i32 = arith.constant 1 : i32
    %1 = arith.subi %0, %c1_i32 : i32
    %c0_i32 = arith.constant 0 : i32
    %2 = arith.maxsi %1, %c0_i32 : i32
    %c0_i32_0 = arith.constant 0 : i32
    %c0_i32_1 = arith.constant 0 : i32
    return %c0_i32_0, %2 : i32, i32
  }
  func.func @transform_1(%arg0: i32) -> (i32, i32) {
    %c0_i32 = arith.constant 0 : i32
    %c0_i32_0 = arith.constant 0 : i32
    return %c0_i32, %arg0 : i32, i32
  }
  func.func @transform_2(%arg0: i32) -> (i32, i32) {
    %c1_i32 = arith.constant 1 : i32
    %0 = arith.addi %arg0, %c1_i32 : i32
    %c8_i32 = arith.constant 8 : i32
    %1 = arith.muli %0, %c8_i32 : i32
    %c15_i32 = arith.constant 15 : i32
    %2 = arith.minsi %1, %c15_i32 : i32
    %c0_i32 = arith.constant 0 : i32
    %c0_i32_0 = arith.constant 0 : i32
    return %c0_i32, %2 : i32, i32
  }
  func.func @transform_3(%arg0: i32) -> (i32, i32) {
    %c0_i32 = arith.constant 0 : i32
    %c0_i32_0 = arith.constant 0 : i32
    %c0_i32_1 = arith.constant 0 : i32
    return %c0_i32, %c0_i32_0 : i32, i32
  }
  func.func @transform_4(%arg0: i32) -> (i32, i32) {
    %c0_i32 = arith.constant 0 : i32
    %c0_i32_0 = arith.constant 0 : i32
    %c0_i32_1 = arith.constant 0 : i32
    return %c0_i32, %c0_i32_0 : i32, i32
  }
  func.func @transform_5(%arg0: i32) -> (i32, i32) {
    %c0_i32 = arith.constant 0 : i32
    %c0_i32_0 = arith.constant 0 : i32
    return %c0_i32, %arg0 : i32, i32
  }
  func.func @transform_6(%arg0: i32) -> i32 {
    %c0_i32 = arith.constant 0 : i32
    %c0_i32_0 = arith.constant 0 : i32
    return %c0_i32 : i32
  }
  func.func @transform_7(%arg0: i32) -> (i32, i32) {
    %c0_i32 = arith.constant 0 : i32
    %c0_i32_0 = arith.constant 0 : i32
    return %c0_i32, %arg0 : i32, i32
  }
}

module attributes {stable_mosaic.version = 11 : i64} {
  func.func @kernel(%arg0: i32, %arg1: memref<16x128xbf16, #tpu.memory_space<vmem>>, %arg2: memref<16x1024xbf16, #tpu.memory_space<vmem>>, %arg3: memref<16x128xbf16, #tpu.memory_space<vmem>>, %arg4: memref<16x128xbf16, #tpu.memory_space<vmem>>, %arg5: memref<16x1xf32, #tpu.memory_space<vmem>>, %arg6: memref<1x1024xf32, #tpu.memory_space<vmem>>, %arg7: memref<1xf32, #tpu.memory_space<smem>>, %arg8: memref<16x1024xf32, #tpu.memory_space<vmem>>, %arg9: memref<128x1024xbf16, #tpu.memory_space<vmem>>) attributes {dimension_semantics = [#tpu.dimension_semantics<parallel>], iteration_bounds = array<i64: 2>, scalar_prefetch = 0 : i64, scratch_operands = 1 : i64, tpu.core_type = #tpu.core_type<tc>, window_params = [{transform_indices = @transform_0, window_bounds = array<i64: 16, 128>}, {transform_indices = @transform_1, window_bounds = array<i64: 16, 1024>}, {transform_indices = @transform_2, window_bounds = array<i64: 16, 128>}, {pipeline_mode = #tpu.pipeline_mode<synchronous>, transform_indices = @transform_3, window_bounds = array<i64: 16, 128>}, {pipeline_mode = #tpu.pipeline_mode<synchronous>, transform_indices = @transform_4, window_bounds = array<i64: 16, 1>}, {transform_indices = @transform_5, window_bounds = array<i64: 1, 1024>}, {transform_indices = @transform_6, window_bounds = array<i64: 1>}, {transform_indices = @transform_7, window_bounds = array<i64: 16, 1024>}]} {
    %c0 = arith.constant 0 : index
    %c0_0 = arith.constant 0 : index
    %0 = vector.load %arg2[%c0, %c0_0] : memref<16x1024xbf16, #tpu.memory_space<vmem>>, vector<16x1024xbf16>
    %c0_1 = arith.constant 0 : index
    %c0_2 = arith.constant 0 : index
    %1 = vector.load %arg9[%c0_1, %c0_2] : memref<128x1024xbf16, #tpu.memory_space<vmem>>, vector<16x1024xbf16>
    tpu.vector_store %arg9[%c0_1, %c0_2], %0 {strides = array<i32>} : memref<128x1024xbf16, #tpu.memory_space<vmem>>, vector<16x1024xbf16>,
    %c0_3 = arith.constant 0 : index
    %c1 = arith.constant 1 : index
    %2 = vector.load %arg2[%c0_3, %c1] : memref<16x1024xbf16, #tpu.memory_space<vmem>>, vector<16x1023xbf16>
    %c16 = arith.constant 16 : index
    %c0_4 = arith.constant 0 : index
    %3 = vector.load %arg9[%c16, %c0_4] : memref<128x1024xbf16, #tpu.memory_space<vmem>>, vector<16x1023xbf16>
    tpu.vector_store %arg9[%c16, %c0_4], %2 {strides = array<i32>} : memref<128x1024xbf16, #tpu.memory_space<vmem>>, vector<16x1023xbf16>,
    %c0_5 = arith.constant 0 : index
    %c0_6 = arith.constant 0 : index
    %4 = vector.load %arg3[%c0_5, %c0_6] : memref<16x128xbf16, #tpu.memory_space<vmem>>, vector<16x1xbf16>
    %c16_7 = arith.constant 16 : index
    %c1023 = arith.constant 1023 : index
    %5 = vector.load %arg9[%c16_7, %c1023] : memref<128x1024xbf16, #tpu.memory_space<vmem>>, vector<16x1xbf16>
    tpu.vector_store %arg9[%c16_7, %c1023], %4 {strides = array<i32>} : memref<128x1024xbf16, #tpu.memory_space<vmem>>, vector<16x1xbf16>,
    %c0_8 = arith.constant 0 : index
    %c10 = arith.constant 10 : index
    %6 = vector.load %arg2[%c0_8, %c10] : memref<16x1024xbf16, #tpu.memory_space<vmem>>, vector<16x1014xbf16>
    %c32 = arith.constant 32 : index
    %c0_9 = arith.constant 0 : index
    %7 = vector.load %arg9[%c32, %c0_9] : memref<128x1024xbf16, #tpu.memory_space<vmem>>, vector<16x1014xbf16>
    tpu.vector_store %arg9[%c32, %c0_9], %6 {strides = array<i32>} : memref<128x1024xbf16, #tpu.memory_space<vmem>>, vector<16x1014xbf16>,
    %c0_10 = arith.constant 0 : index
    %c0_11 = arith.constant 0 : index
    %8 = vector.load %arg3[%c0_10, %c0_11] : memref<16x128xbf16, #tpu.memory_space<vmem>>, vector<16x10xbf16>
    %c32_12 = arith.constant 32 : index
    %c1014 = arith.constant 1014 : index
    %9 = vector.load %arg9[%c32_12, %c1014] : memref<128x1024xbf16, #tpu.memory_space<vmem>>, vector<16x10xbf16>
    tpu.vector_store %arg9[%c32_12, %c1014], %8 {strides = array<i32>} : memref<128x1024xbf16, #tpu.memory_space<vmem>>, vector<16x10xbf16>,
    %c0_13 = arith.constant 0 : index
    %c11 = arith.constant 11 : index
    %10 = vector.load %arg2[%c0_13, %c11] : memref<16x1024xbf16, #tpu.memory_space<vmem>>, vector<16x1013xbf16>
    %c48 = arith.constant 48 : index
    %c0_14 = arith.constant 0 : index
    %11 = vector.load %arg9[%c48, %c0_14] : memref<128x1024xbf16, #tpu.memory_space<vmem>>, vector<16x1013xbf16>
    tpu.vector_store %arg9[%c48, %c0_14], %10 {strides = array<i32>} : memref<128x1024xbf16, #tpu.memory_space<vmem>>, vector<16x1013xbf16>,
    %c0_15 = arith.constant 0 : index
    %c0_16 = arith.constant 0 : index
    %12 = vector.load %arg3[%c0_15, %c0_16] : memref<16x128xbf16, #tpu.memory_space<vmem>>, vector<16x11xbf16>
    %c48_17 = arith.constant 48 : index
    %c1013 = arith.constant 1013 : index
    %13 = vector.load %arg9[%c48_17, %c1013] : memref<128x1024xbf16, #tpu.memory_space<vmem>>, vector<16x11xbf16>
    tpu.vector_store %arg9[%c48_17, %c1013], %12 {strides = array<i32>} : memref<128x1024xbf16, #tpu.memory_space<vmem>>, vector<16x11xbf16>,
    %c0_18 = arith.constant 0 : index
    %c100 = arith.constant 100 : index
    %14 = vector.load %arg2[%c0_18, %c100] : memref<16x1024xbf16, #tpu.memory_space<vmem>>, vector<16x924xbf16>
    %c64 = arith.constant 64 : index
    %c0_19 = arith.constant 0 : index
    %15 = vector.load %arg9[%c64, %c0_19] : memref<128x1024xbf16, #tpu.memory_space<vmem>>, vector<16x924xbf16>
    tpu.vector_store %arg9[%c64, %c0_19], %14 {strides = array<i32>} : memref<128x1024xbf16, #tpu.memory_space<vmem>>, vector<16x924xbf16>,
    %c0_20 = arith.constant 0 : index
    %c0_21 = arith.constant 0 : index
    %16 = vector.load %arg3[%c0_20, %c0_21] : memref<16x128xbf16, #tpu.memory_space<vmem>>, vector<16x100xbf16>
    %c64_22 = arith.constant 64 : index
    %c924 = arith.constant 924 : index
    %17 = vector.load %arg9[%c64_22, %c924] : memref<128x1024xbf16, #tpu.memory_space<vmem>>, vector<16x100xbf16>
    tpu.vector_store %arg9[%c64_22, %c924], %16 {strides = array<i32>} : memref<128x1024xbf16, #tpu.memory_space<vmem>>, vector<16x100xbf16>,
    %c0_23 = arith.constant 0 : index
    %c101 = arith.constant 101 : index
    %18 = vector.load %arg2[%c0_23, %c101] : memref<16x1024xbf16, #tpu.memory_space<vmem>>, vector<16x923xbf16>
    %c80 = arith.constant 80 : index
    %c0_24 = arith.constant 0 : index
    %19 = vector.load %arg9[%c80, %c0_24] : memref<128x1024xbf16, #tpu.memory_space<vmem>>, vector<16x923xbf16>
    tpu.vector_store %arg9[%c80, %c0_24], %18 {strides = array<i32>} : memref<128x1024xbf16, #tpu.memory_space<vmem>>, vector<16x923xbf16>,
    %c0_25 = arith.constant 0 : index
    %c0_26 = arith.constant 0 : index
    %20 = vector.load %arg3[%c0_25, %c0_26] : memref<16x128xbf16, #tpu.memory_space<vmem>>, vector<16x101xbf16>
    %c80_27 = arith.constant 80 : index
    %c923 = arith.constant 923 : index
    %21 = vector.load %arg9[%c80_27, %c923] : memref<128x1024xbf16, #tpu.memory_space<vmem>>, vector<16x101xbf16>
    tpu.vector_store %arg9[%c80_27, %c923], %20 {strides = array<i32>} : memref<128x1024xbf16, #tpu.memory_space<vmem>>, vector<16x101xbf16>,
    %c0_28 = arith.constant 0 : index
    %c110 = arith.constant 110 : index
    %22 = vector.load %arg2[%c0_28, %c110] : memref<16x1024xbf16, #tpu.memory_space<vmem>>, vector<16x914xbf16>
    %c96 = arith.constant 96 : index
    %c0_29 = arith.constant 0 : index
    %23 = vector.load %arg9[%c96, %c0_29] : memref<128x1024xbf16, #tpu.memory_space<vmem>>, vector<16x914xbf16>
    tpu.vector_store %arg9[%c96, %c0_29], %22 {strides = array<i32>} : memref<128x1024xbf16, #tpu.memory_space<vmem>>, vector<16x914xbf16>,
    %c0_30 = arith.constant 0 : index
    %c0_31 = arith.constant 0 : index
    %24 = vector.load %arg3[%c0_30, %c0_31] : memref<16x128xbf16, #tpu.memory_space<vmem>>, vector<16x110xbf16>
    %c96_32 = arith.constant 96 : index
    %c914 = arith.constant 914 : index
    %25 = vector.load %arg9[%c96_32, %c914] : memref<128x1024xbf16, #tpu.memory_space<vmem>>, vector<16x110xbf16>
    tpu.vector_store %arg9[%c96_32, %c914], %24 {strides = array<i32>} : memref<128x1024xbf16, #tpu.memory_space<vmem>>, vector<16x110xbf16>,
    %c0_33 = arith.constant 0 : index
    %c111 = arith.constant 111 : index
    %26 = vector.load %arg2[%c0_33, %c111] : memref<16x1024xbf16, #tpu.memory_space<vmem>>, vector<16x913xbf16>
    %c112 = arith.constant 112 : index
    %c0_34 = arith.constant 0 : index
    %27 = vector.load %arg9[%c112, %c0_34] : memref<128x1024xbf16, #tpu.memory_space<vmem>>, vector<16x913xbf16>
    tpu.vector_store %arg9[%c112, %c0_34], %26 {strides = array<i32>} : memref<128x1024xbf16, #tpu.memory_space<vmem>>, vector<16x913xbf16>,
    %c0_35 = arith.constant 0 : index
    %c0_36 = arith.constant 0 : index
    %28 = vector.load %arg3[%c0_35, %c0_36] : memref<16x128xbf16, #tpu.memory_space<vmem>>, vector<16x111xbf16>
    %c112_37 = arith.constant 112 : index
    %c913 = arith.constant 913 : index
    %29 = vector.load %arg9[%c112_37, %c913] : memref<128x1024xbf16, #tpu.memory_space<vmem>>, vector<16x111xbf16>
    tpu.vector_store %arg9[%c112_37, %c913], %28 {strides = array<i32>} : memref<128x1024xbf16, #tpu.memory_space<vmem>>, vector<16x111xbf16>,
    %c0_38 = arith.constant 0 : index
    %c0_39 = arith.constant 0 : index
    %30 = vector.load %arg4[%c0_38, %c0_39] : memref<16x128xbf16, #tpu.memory_space<vmem>>, vector<16x128xbf16>
    %c0_40 = arith.constant 0 : index
    %c0_41 = arith.constant 0 : index
    %31 = vector.load %arg9[%c0_40, %c0_41] : memref<128x1024xbf16, #tpu.memory_space<vmem>>, vector<128x1024xbf16>
    %cst = arith.constant dense<0.000000e+00> : vector<16x1024xf32>
    %32 = tpu.matmul %30, %31, %cst {dimension_numbers = #tpu.dot_dimension_numbers<[1], [0], [0], [1], [0, 0, 1, 1], [], []>} : vector<16x128xbf16>, vector<128x1024xbf16>, vector<16x1024xf32> -> vector<16x1024xf32>
    %c0_42 = arith.constant 0 : index
    %c0_43 = arith.constant 0 : index
    %33 = vector.load %arg5[%c0_42, %c0_43] : memref<16x1xf32, #tpu.memory_space<vmem>>, vector<16x1xf32>
    %34 = vector.broadcast %33 : vector<16x1xf32> to vector<16x1024xf32>
    %35 = arith.addf %32, %34 : vector<16x1024xf32>
    %c0_44 = arith.constant 0 : index
    %36 = memref.load %arg7[%c0_44] : memref<1xf32, #tpu.memory_space<smem>>
    %cst_45 = arith.constant 0.000000e+00 : f32
    %37 = vector.broadcast %cst_45 : f32 to vector<16x1024xf32>
    %38 = arith.cmpf oge, %35, %37 : vector<16x1024xf32>
    %39 = vector.broadcast %36 : f32 to vector<16x1024xf32>
    %40 = arith.mulf %39, %35 : vector<16x1024xf32>
    %41 = arith.select %38, %35, %40 : vector<16x1024xi1>, vector<16x1024xf32>
    %c0_46 = arith.constant 0 : index
    %c0_47 = arith.constant 0 : index
    %42 = vector.load %arg6[%c0_46, %c0_47] : memref<1x1024xf32, #tpu.memory_space<vmem>>, vector<1x1024xf32>
    %cst_48 = arith.constant 0.000000e+00 : f32
    %43 = vector.broadcast %cst_48 : f32 to vector<1x1024xf32>
    %44 = arith.cmpf ogt, %42, %43 : vector<1x1024xf32>
    %cst_49 = arith.constant 0.000000e+00 : f32
    %45 = vector.shape_cast %44 : vector<1x1024xi1> to vector<1x1024xi1>
    %46 = vector.broadcast %45 : vector<1x1024xi1> to vector<16x1024xi1>
    %47 = vector.broadcast %cst_49 : f32 to vector<16x1024xf32>
    %48 = arith.select %46, %41, %47 : vector<16x1024xi1>, vector<16x1024xf32>
    %c0_50 = arith.constant 0 : index
    %c0_51 = arith.constant 0 : index
    %49 = vector.load %arg8[%c0_50, %c0_51] : memref<16x1024xf32, #tpu.memory_space<vmem>>, vector<16x1024xf32>
    tpu.vector_store %arg8[%c0_50, %c0_51], %48 {strides = array<i32>} : memref<16x1024xf32, #tpu.memory_space<vmem>>, vector<16x1024xf32>,
    return
  }
  func.func @transform_0(%arg0: i32) -> (i32, i32) {
    %c8_i32 = arith.constant 8 : i32
    %0 = arith.muli %arg0, %c8_i32 : i32
    %c1_i32 = arith.constant 1 : i32
    %1 = arith.subi %0, %c1_i32 : i32
    %c0_i32 = arith.constant 0 : i32
    %2 = arith.maxsi %1, %c0_i32 : i32
    %c0_i32_0 = arith.constant 0 : i32
    %c0_i32_1 = arith.constant 0 : i32
    return %c0_i32_0, %2 : i32, i32
  }
  func.func @transform_1(%arg0: i32) -> (i32, i32) {
    %c0_i32 = arith.constant 0 : i32
    %c0_i32_0 = arith.constant 0 : i32
    return %c0_i32, %arg0 : i32, i32
  }
  func.func @transform_2(%arg0: i32) -> (i32, i32) {
    %c1_i32 = arith.constant 1 : i32
    %0 = arith.addi %arg0, %c1_i32 : i32
    %c8_i32 = arith.constant 8 : i32
    %1 = arith.muli %0, %c8_i32 : i32
    %c15_i32 = arith.constant 15 : i32
    %2 = arith.minsi %1, %c15_i32 : i32
    %c0_i32 = arith.constant 0 : i32
    %c0_i32_0 = arith.constant 0 : i32
    return %c0_i32, %2 : i32, i32
  }
  func.func @transform_3(%arg0: i32) -> (i32, i32) {
    %c0_i32 = arith.constant 0 : i32
    %c0_i32_0 = arith.constant 0 : i32
    %c0_i32_1 = arith.constant 0 : i32
    return %c0_i32, %c0_i32_0 : i32, i32
  }
  func.func @transform_4(%arg0: i32) -> (i32, i32) {
    %c0_i32 = arith.constant 0 : i32
    %c0_i32_0 = arith.constant 0 : i32
    %c0_i32_1 = arith.constant 0 : i32
    return %c0_i32, %c0_i32_0 : i32, i32
  }
  func.func @transform_5(%arg0: i32) -> (i32, i32) {
    %c0_i32 = arith.constant 0 : i32
    %c0_i32_0 = arith.constant 0 : i32
    return %c0_i32, %arg0 : i32, i32
  }
  func.func @transform_6(%arg0: i32) -> i32 {
    %c0_i32 = arith.constant 0 : i32
    %c0_i32_0 = arith.constant 0 : i32
    return %c0_i32 : i32
  }
  func.func @transform_7(%arg0: i32) -> (i32, i32) {
    %c0_i32 = arith.constant 0 : i32
    %c0_i32_0 = arith.constant 0 : i32
    return %c0_i32, %arg0 : i32, i32
  }
}

</mosaic_0001>

<llo_original>
// kernel: encoder_block_forward.7
$region0: #{encoder_block_forward.7}
  #allocation0 [shape = 'u32[]', space=smem, size = 0x4, offset = 0x4, fixed_abs, tag = 'smem constant byte address 0x4 - core index']
  #allocation1 [shape = 'u32[144,128]{1,0:T(1,128)}', space=vmem, size = 0x12000, scoped, tag = 'internal scratch']
  #allocation2 [shape = 'bf16[128,1024]{1,0:T(8,128)(2,1)}', space=vmem, size = 0x40000, scoped, tag = 'scratch operand']
  #allocation3 [shape = 'f32[1]{0:T(128)S(6)}', space=smem, size = 0x200, scoped, tag = 'scoped memory for encoder_block_forward.7']
  %s0 = inlined_call_operand.vmem [shape: bf16[16,2048], index: 0, kind: input, shape index: {}, may-alias: {0,1,2}]
  %s1 = inlined_call_operand.vmem [shape: bf16[16,2048], index: 1, kind: input, shape index: {}, may-alias: {0,1,2}]
  %s2 = inlined_call_operand.vmem [shape: bf16[16,2048], index: 2, kind: input, shape index: {}, may-alias: {0,1,2}]
  %s3 = inlined_call_operand.vmem [shape: bf16[16,128], index: 3, kind: input, shape index: {}]
  %s4 = inlined_call_operand.vmem [shape: f32[16,1], index: 4, kind: input, shape index: {}]
  %s5 = inlined_call_operand.vmem [shape: f32[1,2048], index: 5, kind: input, shape index: {}]
  %s6 = inlined_call_operand.<no memory space> [shape: f32[1], index: 6, kind: input, shape index: {}]
  %s7 = inlined_call_operand.vmem [shape: f32[16,2048], index: 7, kind: output, shape index: {}]
  %s8 = sld [smem:[#allocation0]]
  $region185: #{encoder_block_forward.7} parent=0
    _
  %s10 = ssub.s32 1, %s8
  %s11 = scalar_select 0, %s10, %s8
  %12 = sst [smem:[#allocation3]] %s6
  $region1: #{encoder_block_forward.7} parent=0
    #allocation4 [shape = 'u8[8192]{0}', space=vmem, size = 0x2000, scoped, tag = 'input window, operand 0']
    #allocation5 [shape = 'u8[65536]{0}', space=vmem, size = 0x10000, scoped, tag = 'input window, operand 1']
    #allocation6 [shape = 'u8[8192]{0}', space=vmem, size = 0x2000, scoped, tag = 'input window, operand 2']
    #allocation7 [shape = 'u8[131072]{0}', space=vmem, size = 0x20000, scoped, tag = 'output window, operand 0']
    loop: start=0, step=1, limit=4
    $region2: #{encoder_block_forward.7} parent=1 // loop_pre_header
      _
    $region3: #{encoder_block_forward.7} parent=1 // loop_header
      %s14 = sphi 0, %s18
      %p15 = scmp.ge.s32.totalorder %s14, 4
      %s32 = sphi 0, %s34
      %s35 = sphi 0, %s32
      %s36 = sphi 0, %s35
      %s52 = sphi 0, %s36
      %s58 = sphi 0, %s60
      %s61 = sphi 0, %s58
      %s62 = sphi 0, %s61
      %s78 = sphi 0, %s62
      %s92 = sphi 0, %s94
      %s95 = sphi 0, %s92
      %s96 = sphi 0, %s95
      %s112 = sphi 0, %s96
      %s116 = sphi 0, %s116
      %s118 = sphi 0, %s116
      %s119 = sphi 0, %s118
      %s133 = sphi 0, %s119
      %s137 = sphi 0, %s137
      %s139 = sphi 0, %s137
      %s140 = sphi 0, %s139
      %s154 = sphi 0, %s140
      %s160 = sphi 0, %s162
      %s163 = sphi 0, %s160
      %s164 = sphi 0, %s163
      %s180 = sphi 0, %s164
      %s184 = sphi 0, %s184
      %s186 = sphi 0, %s184
      %s187 = sphi 0, %s186
      %s201 = sphi 0, %s187
      %s207 = sphi 0, %s209
      %s210 = sphi 0, %s207
      %s211 = sphi 0, %s210
      %s227 = sphi 0, %s211
    $region4: #{encoder_block_forward.7} parent=1 // loop_header_branch
      %17 = sbr.rel (%p15) target = $region8
    $region5: #{encoder_block_forward.7} parent=1 // loop_body
      %s19 = ssub.s32 %s14, 1
      %s20 = ssub.s32 %s14, 2
      %s21 = sadd.s32 %s14, 1
      %s22 = smul.u32 %s14, 8
      %s23 = ssub.s32 %s22, 1
      %p24 = scmp.gt.s32.totalorder %s23, 0
      %s25 = scalar_select %p24, %s23, 0
      %s26 = smul.u32 %s21, 8
      %s27 = ssub.s32 %s26, 1
      %p28 = scmp.gt.s32.totalorder %s27, 0
      %s29 = scalar_select %p28, %s27, 0
      %s30 = ssub.s32 %s25, %s29
      %p31 = scmp.eq.s32.totalorder %s30, 0
      %s33 = sadd.s32 %s32, 1
      %s34 = scalar_select %p31, %s32, %s33
      %p37 = pneg %p31
      %p38 = scmp.eq.s32.totalorder %s14, 1
      %p39 = por %p37, %p38
      %p40 = scmp.ne.s32.totalorder %s32, %s35
      %p41 = scmp.eq.s32.totalorder %s14, 0
      %p42 = por %p40, %p41
      %p43 = scmp.ne.s32.totalorder %s32, %s35
      %p44 = scmp.eq.s32.totalorder %s19, 1
      %p45 = por %p43, %p44
      %p46 = scmp.ne.s32.totalorder %s35, %s36
      %p47 = scmp.eq.s32.totalorder %s19, 0
      %p48 = por %p46, %p47
      %p49 = scmp.ne.s32.totalorder %s35, %s36
      %p50 = scmp.eq.s32.totalorder %s20, 1
      %p51 = por %p49, %p50
      %p53 = scmp.ne.s32.totalorder %s36, %s52
      %p54 = scmp.eq.s32.totalorder %s20, 0
      %p55 = por %p53, %p54
      %s56 = ssub.s32 %s14, %s21
      %p57 = scmp.eq.s32.totalorder %s56, 0
      %s59 = sadd.s32 %s58, 1
      %s60 = scalar_select %p57, %s58, %s59
      %p63 = pneg %p57
      %p64 = scmp.eq.s32.totalorder %s14, 1
      %p65 = por %p63, %p64
      %p66 = scmp.ne.s32.totalorder %s58, %s61
      %p67 = scmp.eq.s32.totalorder %s14, 0
      %p68 = por %p66, %p67
      %p69 = scmp.ne.s32.totalorder %s58, %s61
      %p70 = scmp.eq.s32.totalorder %s19, 1
      %p71 = por %p69, %p70
      %p72 = scmp.ne.s32.totalorder %s61, %s62
      %p73 = scmp.eq.s32.totalorder %s19, 0
      %p74 = por %p72, %p73
      %p75 = scmp.ne.s32.totalorder %s61, %s62
      %p76 = scmp.eq.s32.totalorder %s20, 1
      %p77 = por %p75, %p76
      %p79 = scmp.ne.s32.totalorder %s62, %s78
      %p80 = scmp.eq.s32.totalorder %s20, 0
      %p81 = por %p79, %p80
      %s82 = sadd.s32 %s14, 1
      %s83 = smul.u32 %s82, 8
      %p84 = scmp.lt.s32.totalorder %s83, 15
      %s85 = scalar_select %p84, %s83, 15
      %s86 = sadd.s32 %s21, 1
      %s87 = smul.u32 %s86, 8
      %p88 = scmp.lt.s32.totalorder %s87, 15
      %s89 = scalar_select %p88, %s87, 15
      %s90 = ssub.s32 %s85, %s89
      %p91 = scmp.eq.s32.totalorder %s90, 0
      %s93 = sadd.s32 %s92, 1
      %s94 = scalar_select %p91, %s92, %s93
      %p97 = pneg %p91
      %p98 = scmp.eq.s32.totalorder %s14, 1
      %p99 = por %p97, %p98
      %p100 = scmp.ne.s32.totalorder %s92, %s95
      %p101 = scmp.eq.s32.totalorder %s14, 0
      %p102 = por %p100, %p101
      %p103 = scmp.ne.s32.totalorder %s92, %s95
      %p104 = scmp.eq.s32.totalorder %s19, 1
      %p105 = por %p103, %p104
      %p106 = scmp.ne.s32.totalorder %s95, %s96
      %p107 = scmp.eq.s32.totalorder %s19, 0
      %p108 = por %p106, %p107
      %p109 = scmp.ne.s32.totalorder %s95, %s96
      %p110 = scmp.eq.s32.totalorder %s20, 1
      %p111 = por %p109, %p110
      %p113 = scmp.ne.s32.totalorder %s96, %s112
      %p114 = scmp.eq.s32.totalorder %s20, 0
      %p115 = por %p113, %p114
      %s117 = sadd.s32 %s116, 1
      %p120 = scmp.eq.s32.totalorder %s14, 1
      %p121 = scmp.ne.s32.totalorder %s116, %s118
      %p122 = scmp.eq.s32.totalorder %s14, 0
      %p123 = por %p121, %p122
      %p124 = scmp.ne.s32.totalorder %s116, %s118
      %p125 = scmp.eq.s32.totalorder %s19, 1
      %p126 = por %p124, %p125
      %p127 = scmp.ne.s32.totalorder %s118, %s119
      %p128 = scmp.eq.s32.totalorder %s19, 0
      %p129 = por %p127, %p128
      %p130 = scmp.ne.s32.totalorder %s118, %s119
      %p131 = scmp.eq.s32.totalorder %s20, 1
      %p132 = por %p130, %p131
      %p134 = scmp.ne.s32.totalorder %s119, %s133
      %p135 = scmp.eq.s32.totalorder %s20, 0
      %p136 = por %p134, %p135
      %s138 = sadd.s32 %s137, 1
      %p141 = scmp.eq.s32.totalorder %s14, 1
      %p142 = scmp.ne.s32.totalorder %s137, %s139
      %p143 = scmp.eq.s32.totalorder %s14, 0
      %p144 = por %p142, %p143
      %p145 = scmp.ne.s32.totalorder %s137, %s139
      %p146 = scmp.eq.s32.totalorder %s19, 1
      %p147 = por %p145, %p146
      %p148 = scmp.ne.s32.totalorder %s139, %s140
      %p149 = scmp.eq.s32.totalorder %s19, 0
      %p150 = por %p148, %p149
      %p151 = scmp.ne.s32.totalorder %s139, %s140
      %p152 = scmp.eq.s32.totalorder %s20, 1
      %p153 = por %p151, %p152
      %p155 = scmp.ne.s32.totalorder %s140, %s154
      %p156 = scmp.eq.s32.totalorder %s20, 0
      %p157 = por %p155, %p156
      %s158 = ssub.s32 %s14, %s21
      %p159 = scmp.eq.s32.totalorder %s158, 0
      %s161 = sadd.s32 %s160, 1
      %s162 = scalar_select %p159, %s160, %s161
      %p165 = pneg %p159
      %p166 = scmp.eq.s32.totalorder %s14, 1
      %p167 = por %p165, %p166
      %p168 = scmp.ne.s32.totalorder %s160, %s163
      %p169 = scmp.eq.s32.totalorder %s14, 0
      %p170 = por %p168, %p169
      %p171 = scmp.ne.s32.totalorder %s160, %s163
      %p172 = scmp.eq.s32.totalorder %s19, 1
      %p173 = por %p171, %p172
      %p174 = scmp.ne.s32.totalorder %s163, %s164
      %p175 = scmp.eq.s32.totalorder %s19, 0
      %p176 = por %p174, %p175
      %p177 = scmp.ne.s32.totalorder %s163, %s164
      %p178 = scmp.eq.s32.totalorder %s20, 1
      %p179 = por %p177, %p178
      %p181 = scmp.ne.s32.totalorder %s164, %s180
      %p182 = scmp.eq.s32.totalorder %s20, 0
      %p183 = por %p181, %p182
      %s185 = sadd.s32 %s184, 1
      %p188 = scmp.eq.s32.totalorder %s14, 1
      %p189 = scmp.ne.s32.totalorder %s184, %s186
      %p190 = scmp.eq.s32.totalorder %s14, 0
      %p191 = por %p189, %p190
      %p192 = scmp.ne.s32.totalorder %s184, %s186
      %p193 = scmp.eq.s32.totalorder %s19, 1
      %p194 = por %p192, %p193
      %p195 = scmp.ne.s32.totalorder %s186, %s187
      %p196 = scmp.eq.s32.totalorder %s19, 0
      %p197 = por %p195, %p196
      %p198 = scmp.ne.s32.totalorder %s186, %s187
      %p199 = scmp.eq.s32.totalorder %s20, 1
      %p200 = por %p198, %p199
      %p202 = scmp.ne.s32.totalorder %s187, %s201
      %p203 = scmp.eq.s32.totalorder %s20, 0
      %p204 = por %p202, %p203
      %s205 = ssub.s32 %s14, %s21
      %p206 = scmp.eq.s32.totalorder %s205, 0
      %s208 = sadd.s32 %s207, 1
      %s209 = scalar_select %p206, %s207, %s208
      %p212 = pneg %p206
      %p213 = scmp.eq.s32.totalorder %s14, 1
      %p214 = por %p212, %p213
      %p215 = scmp.ne.s32.totalorder %s207, %s210
      %p216 = scmp.eq.s32.totalorder %s14, 0
      %p217 = por %p215, %p216
      %p218 = scmp.ne.s32.totalorder %s207, %s210
      %p219 = scmp.eq.s32.totalorder %s19, 1
      %p220 = por %p218, %p219
      %p221 = scmp.ne.s32.totalorder %s210, %s211
      %p222 = scmp.eq.s32.totalorder %s19, 0
      %p223 = por %p221, %p222
      %p224 = scmp.ne.s32.totalorder %s210, %s211
      %p225 = scmp.eq.s32.totalorder %s20, 1
      %p226 = por %p224, %p225
      %p228 = scmp.ne.s32.totalorder %s211, %s227
      %p229 = scmp.eq.s32.totalorder %s20, 0
      %p230 = por %p228, %p229
      %p231 = scmp.le.s32.totalorder 1, %s14
      %p232 = scmp.lt.s32.totalorder %s14, 3
      %p233 = pnand %p231, %p232
      %p234 = pneg %p233
      // Predicated region
      $region9: #{encoder_block_forward.7} parent=5 // pred_check
        _
      $region10: #{encoder_block_forward.7} parent=5 // pred_check_branch
        %236 = sbr.rel (%p233) target = $region12
      $region11: #{encoder_block_forward.7} parent=5 // pred_region
        %s237 = ssub.s32 %s14, 1
        // Predicated region
        $region13: #{encoder_block_forward.7} parent=11 // pred_check
          %p238 = pneg %p129
        $region14: #{encoder_block_forward.7} parent=11 // pred_check_branch
          %240 = sbr.rel (%p238) target = $region16
        $region15: #{encoder_block_forward.7} parent=11 // pred_region
          _
        $region16: #{encoder_block_forward.7} parent=11 // pred_fallthru
          _
        // Predicated region
        $region17: #{encoder_block_forward.7} parent=11 // pred_check
          %p241 = pneg %p150
        $region18: #{encoder_block_forward.7} parent=11 // pred_check_branch
          %243 = sbr.rel (%p241) target = $region20
        $region19: #{encoder_block_forward.7} parent=11 // pred_region
          _
        $region20: #{encoder_block_forward.7} parent=11 // pred_fallthru
          _
        // Predicated region
        $region21: #{encoder_block_forward.7} parent=11 // pred_check
          %p244 = pneg %p197
        $region22: #{encoder_block_forward.7} parent=11 // pred_check_branch
          %246 = sbr.rel (%p244) target = $region24
        $region23: #{encoder_block_forward.7} parent=11 // pred_region
          _
        $region24: #{encoder_block_forward.7} parent=11 // pred_fallthru
          _
      $region12: #{encoder_block_forward.7} parent=5 // pred_fallthru
        _
      %p247 = scmp.lt.s32.totalorder %s14, 2
      // Predicated region
      $region25: #{encoder_block_forward.7} parent=5 // pred_check
        %p248 = pneg %p247
      $region26: #{encoder_block_forward.7} parent=5 // pred_check_branch
        %250 = sbr.rel (%p248) target = $region28
      $region27: #{encoder_block_forward.7} parent=5 // pred_region
        // Predicated region
        $region29: #{encoder_block_forward.7} parent=27 // pred_check
          %p251 = pneg %p42
        $region30: #{encoder_block_forward.7} parent=27 // pred_check_branch
          %253 = sbr.rel (%p251) target = $region32
        $region31: #{encoder_block_forward.7} parent=27 // pred_region
          %s254 = sand.u32 %s32, 1
          %s255 = sand.u32 %s32, 1
          %s256 = smul.addr %s255, 8
          %s257 = scalar_lea.vmem [#allocation4], %s256
          %s258 = smul.u32 %s14, 8
          %s259 = ssub.s32 %s258, 1
          %p260 = scmp.gt.s32.totalorder %s259, 0
          %s261 = scalar_select %p260, %s259, 0
          %s262 = smul.addr %s261, 4
          %s263 = scalar_lea.vmem %s0, %s262
          // Predicated region
          $region33: #{encoder_block_forward.7} parent=31 // pred_check
            _
          $region34: #{encoder_block_forward.7} parent=31 // pred_check_branch
            %265 = sbr.rel (0) target = $region36
          $region35: #{encoder_block_forward.7} parent=31 // pred_region
            // Predicated region
            $region37: #{encoder_block_forward.7} parent=35 // pred_check
              _
            $region38: #{encoder_block_forward.7} parent=35 // pred_check_branch
              %267 = sbr.rel target = $region40
            $region39: #{encoder_block_forward.7} parent=35 // pred_region
              // Predicated region
              $region52: #{encoder_block_forward.7} parent=39 // pred_check
                _
              $region53: #{encoder_block_forward.7} parent=39 // pred_check_branch
                %285 = sbr.rel (0) target = $region55
              $region54: #{encoder_block_forward.7} parent=39 // pred_region
                loop: start=0, step=1, limit=1
                $region56: #{encoder_block_forward.7} parent=54 // loop_pre_header
                  _
                $region57: #{encoder_block_forward.7} parent=54 // loop_header
                  %s287 = sphi 0, %s291
                  %p288 = scmp.ge.s32.totalorder %s287, 1
                  %s292 = sphi %s263, %s263
                  %s293 = sphi %s257, %s257
                $region58: #{encoder_block_forward.7} parent=54 // loop_header_branch
                  %290 = sbr.rel (%p288) target = $region62
                $region59: #{encoder_block_forward.7} parent=54 // loop_body
                  _
                $region60: #{encoder_block_forward.7} parent=54 // loop_footer
                  %s291 = sadd.s32 1, %s287
                $region61: #{encoder_block_forward.7} parent=54 // loop_footer_branch
                  %286 = sbr.rel target = $region57
                $region62: #{encoder_block_forward.7} parent=54 // loop_exit
                  _
                %s295 = ssub.s32 16, 1
                loop: start=0, step=1, limit=1
                $region63: #{encoder_block_forward.7} parent=54 // loop_pre_header
                  _
                $region64: #{encoder_block_forward.7} parent=54 // loop_header
                  %s297 = sphi 0, %s301
                  %p298 = scmp.ge.s32.totalorder %s297, 1
                  %s302 = sphi %s263, %s263
                  %s303 = sphi %s257, %s257
                $region65: #{encoder_block_forward.7} parent=54 // loop_header_branch
                  %300 = sbr.rel (%p298) target = $region69
                $region66: #{encoder_block_forward.7} parent=54 // loop_body
                  %v304 = vld [vmem:[%s302] sm:%s295]
                  %305 = vst [vmem:[%s303] sm:%s295] %v304
                  %v306 = vld [vmem:[%s302 + $0x40] sm:%s295]
                  %307 = vst [vmem:[%s303 + $0x4] sm:%s295] %v306
                $region67: #{encoder_block_forward.7} parent=54 // loop_footer
                  %s301 = sadd.s32 1, %s297
                $region68: #{encoder_block_forward.7} parent=54 // loop_footer_branch
                  %296 = sbr.rel target = $region64
                $region69: #{encoder_block_forward.7} parent=54 // loop_exit
                  _
              $region55: #{encoder_block_forward.7} parent=39 // pred_fallthru
                _
            $region40: #{encoder_block_forward.7} parent=35 // pred_fallthru
              _
            // Predicated region
            $region41: #{encoder_block_forward.7} parent=35 // pred_check
              _
            $region42: #{encoder_block_forward.7} parent=35 // pred_check_branch
              %269 = sbr.rel (0) target = $region44
            $region43: #{encoder_block_forward.7} parent=35 // pred_region
              %s271 = ssub.s32 16, 1
              loop: start=0, step=1, limit=1
              $region45: #{encoder_block_forward.7} parent=43 // loop_pre_header
                _
              $region46: #{encoder_block_forward.7} parent=43 // loop_header
                %s273 = sphi 0, %s277
                %p274 = scmp.ge.s32.totalorder %s273, 1
                %s278 = sphi %s263, %s263
                %s279 = sphi %s257, %s257
              $region47: #{encoder_block_forward.7} parent=43 // loop_header_branch
                %276 = sbr.rel (%p274) target = $region51
              $region48: #{encoder_block_forward.7} parent=43 // loop_body
                %v280 = vld [vmem:[%s278] sm:%s271]
                %281 = vst [vmem:[%s279] sm:%s271] %v280
                %v282 = vld [vmem:[%s278 + $0x40] sm:%s271]
                %283 = vst [vmem:[%s279 + $0x4] sm:%s271] %v282
              $region49: #{encoder_block_forward.7} parent=43 // loop_footer
                %s277 = sadd.s32 1, %s273
              $region50: #{encoder_block_forward.7} parent=43 // loop_footer_branch
                %272 = sbr.rel target = $region46
              $region51: #{encoder_block_forward.7} parent=43 // loop_exit
                _
            $region44: #{encoder_block_forward.7} parent=35 // pred_fallthru
              _
          $region36: #{encoder_block_forward.7} parent=31 // pred_fallthru
            _
          %308 = vnop
        $region32: #{encoder_block_forward.7} parent=27 // pred_fallthru
          _
        // Predicated region
        $region70: #{encoder_block_forward.7} parent=27 // pred_check
          %p309 = pneg %p68
        $region71: #{encoder_block_forward.7} parent=27 // pred_check_branch
          %311 = sbr.rel (%p309) target = $region73
        $region72: #{encoder_block_forward.7} parent=27 // pred_region
          %s312 = sand.u32 %s58, 1
          %s313 = sand.u32 %s58, 1
          %s314 = smul.addr %s313, 64
          %s315 = scalar_lea.vmem [#allocation5], %s314
          %s316 = smul.u32 8, %s14
          %s317 = smul.addr %s316, 4
          %s318 = scalar_lea.vmem %s1, %s317
          // Predicated region
          $region74: #{encoder_block_forward.7} parent=72 // pred_check
            _
          $region75: #{encoder_block_forward.7} parent=72 // pred_check_branch
            %320 = sbr.rel (0) target = $region77
          $region76: #{encoder_block_forward.7} parent=72 // pred_region
            // Predicated region
            $region78: #{encoder_block_forward.7} parent=76 // pred_check
              _
            $region79: #{encoder_block_forward.7} parent=76 // pred_check_branch
              %322 = sbr.rel (0) target = $region81
            $region80: #{encoder_block_forward.7} parent=76 // pred_region
              loop: start=0, step=1, limit=1
              $region82: #{encoder_block_forward.7} parent=80 // loop_pre_header
                _
              $region83: #{encoder_block_forward.7} parent=80 // loop_header
                %s324 = sphi 0, %s328
                %p325 = scmp.ge.s32.totalorder %s324, 1
                %s329 = sphi %s318, %s318
                %s330 = sphi %s315, %s315
              $region84: #{encoder_block_forward.7} parent=80 // loop_header_branch
                %327 = sbr.rel (%p325) target = $region88
              $region85: #{encoder_block_forward.7} parent=80 // loop_body
                %v331 = vld [vmem:[%s329] sm:$0xff]
                %332 = vst [vmem:[%s330] sm:$0xff] %v331
                %v333 = vld [vmem:[%s329 + $0x8] sm:$0xff]
                %334 = vst [vmem:[%s330 + $0x8] sm:$0xff] %v333
                %v335 = vld [vmem:[%s329 + $0x10] sm:$0xff]
                %336 = vst [vmem:[%s330 + $0x10] sm:$0xff] %v335
                %v337 = vld [vmem:[%s329 + $0x18] sm:$0xff]
                %338 = vst [vmem:[%s330 + $0x18] sm:$0xff] %v337
                %v339 = vld [vmem:[%s329 + $0x40] sm:$0xff]
                %340 = vst [vmem:[%s330 + $0x20] sm:$0xff] %v339
                %v341 = vld [vmem:[%s329 + $0x48] sm:$0xff]
                %342 = vst [vmem:[%s330 + $0x28] sm:$0xff] %v341
                %v343 = vld [vmem:[%s329 + $0x50] sm:$0xff]
                %344 = vst [vmem:[%s330 + $0x30] sm:$0xff] %v343
                %v345 = vld [vmem:[%s329 + $0x58] sm:$0xff]
                %346 = vst [vmem:[%s330 + $0x38] sm:$0xff] %v345
              $region86: #{encoder_block_forward.7} parent=80 // loop_footer
                %s328 = sadd.s32 1, %s324
              $region87: #{encoder_block_forward.7} parent=80 // loop_footer_branch
                %323 = sbr.rel target = $region83
              $region88: #{encoder_block_forward.7} parent=80 // loop_exit
                _
            $region81: #{encoder_block_forward.7} parent=76 // pred_fallthru
              _
            // Predicated region
            $region89: #{encoder_block_forward.7} parent=76 // pred_check
              _
            $region90: #{encoder_block_forward.7} parent=76 // pred_check_branch
              %348 = sbr.rel target = $region92
            $region91: #{encoder_block_forward.7} parent=76 // pred_region
              _
            $region92: #{encoder_block_forward.7} parent=76 // pred_fallthru
              _
          $region77: #{encoder_block_forward.7} parent=72 // pred_fallthru
            _
          %349 = vnop
        $region73: #{encoder_block_forward.7} parent=27 // pred_fallthru
          _
        // Predicated region
        $region93: #{encoder_block_forward.7} parent=27 // pred_check
          %p350 = pneg %p102
        $region94: #{encoder_block_forward.7} parent=27 // pred_check_branch
          %352 = sbr.rel (%p350) target = $region96
        $region95: #{encoder_block_forward.7} parent=27 // pred_region
          %s353 = sand.u32 %s92, 1
          %s354 = sand.u32 %s92, 1
          %s355 = smul.addr %s354, 8
          %s356 = scalar_lea.vmem [#allocation6], %s355
          %s357 = sadd.s32 %s14, 1
          %s358 = smul.u32 %s357, 8
          %p359 = scmp.lt.s32.totalorder %s358, 15
          %s360 = scalar_select %p359, %s358, 15
          %s361 = smul.addr %s360, 4
          %s362 = scalar_lea.vmem %s2, %s361
          // Predicated region
          $region97: #{encoder_block_forward.7} parent=95 // pred_check
            _
          $region98: #{encoder_block_forward.7} parent=95 // pred_check_branch
            %364 = sbr.rel (0) target = $region100
          $region99: #{encoder_block_forward.7} parent=95 // pred_region
            // Predicated region
            $region101: #{encoder_block_forward.7} parent=99 // pred_check
              _
            $region102: #{encoder_block_forward.7} parent=99 // pred_check_branch
              %366 = sbr.rel target = $region104
            $region103: #{encoder_block_forward.7} parent=99 // pred_region
              // Predicated region
              $region116: #{encoder_block_forward.7} parent=103 // pred_check
                _
              $region117: #{encoder_block_forward.7} parent=103 // pred_check_branch
                %384 = sbr.rel (0) target = $region119
              $region118: #{encoder_block_forward.7} parent=103 // pred_region
                loop: start=0, step=1, limit=1
                $region120: #{encoder_block_forward.7} parent=118 // loop_pre_header
                  _
                $region121: #{encoder_block_forward.7} parent=118 // loop_header
                  %s386 = sphi 0, %s390
                  %p387 = scmp.ge.s32.totalorder %s386, 1
                  %s391 = sphi %s362, %s362
                  %s392 = sphi %s356, %s356
                $region122: #{encoder_block_forward.7} parent=118 // loop_header_branch
                  %389 = sbr.rel (%p387) target = $region126
                $region123: #{encoder_block_forward.7} parent=118 // loop_body
                  _
                $region124: #{encoder_block_forward.7} parent=118 // loop_footer
                  %s390 = sadd.s32 1, %s386
                $region125: #{encoder_block_forward.7} parent=118 // loop_footer_branch
                  %385 = sbr.rel target = $region121
                $region126: #{encoder_block_forward.7} parent=118 // loop_exit
                  _
                %s394 = ssub.s32 16, 1
                loop: start=0, step=1, limit=1
                $region127: #{encoder_block_forward.7} parent=118 // loop_pre_header
                  _
                $region128: #{encoder_block_forward.7} parent=118 // loop_header
                  %s396 = sphi 0, %s400
                  %p397 = scmp.ge.s32.totalorder %s396, 1
                  %s401 = sphi %s362, %s362
                  %s402 = sphi %s356, %s356
                $region129: #{encoder_block_forward.7} parent=118 // loop_header_branch
                  %399 = sbr.rel (%p397) target = $region133
                $region130: #{encoder_block_forward.7} parent=118 // loop_body
                  %v403 = vld [vmem:[%s401] sm:%s394]
                  %404 = vst [vmem:[%s402] sm:%s394] %v403
                  %v405 = vld [vmem:[%s401 + $0x40] sm:%s394]
                  %406 = vst [vmem:[%s402 + $0x4] sm:%s394] %v405
                $region131: #{encoder_block_forward.7} parent=118 // loop_footer
                  %s400 = sadd.s32 1, %s396
                $region132: #{encoder_block_forward.7} parent=118 // loop_footer_branch
                  %395 = sbr.rel target = $region128
                $region133: #{encoder_block_forward.7} parent=118 // loop_exit
                  _
              $region119: #{encoder_block_forward.7} parent=103 // pred_fallthru
                _
            $region104: #{encoder_block_forward.7} parent=99 // pred_fallthru
              _
            // Predicated region
            $region105: #{encoder_block_forward.7} parent=99 // pred_check
              _
            $region106: #{encoder_block_forward.7} parent=99 // pred_check_branch
              %368 = sbr.rel (0) target = $region108
            $region107: #{encoder_block_forward.7} parent=99 // pred_region
              %s370 = ssub.s32 16, 1
              loop: start=0, step=1, limit=1
              $region109: #{encoder_block_forward.7} parent=107 // loop_pre_header
                _
              $region110: #{encoder_block_forward.7} parent=107 // loop_header
                %s372 = sphi 0, %s376
                %p373 = scmp.ge.s32.totalorder %s372, 1
                %s377 = sphi %s362, %s362
                %s378 = sphi %s356, %s356
              $region111: #{encoder_block_forward.7} parent=107 // loop_header_branch
                %375 = sbr.rel (%p373) target = $region115
              $region112: #{encoder_block_forward.7} parent=107 // loop_body
                %v379 = vld [vmem:[%s377] sm:%s370]
                %380 = vst [vmem:[%s378] sm:%s370] %v379
                %v381 = vld [vmem:[%s377 + $0x40] sm:%s370]
                %382 = vst [vmem:[%s378 + $0x4] sm:%s370] %v381
              $region113: #{encoder_block_forward.7} parent=107 // loop_footer
                %s376 = sadd.s32 1, %s372
              $region114: #{encoder_block_forward.7} parent=107 // loop_footer_branch
                %371 = sbr.rel target = $region110
              $region115: #{encoder_block_forward.7} parent=107 // loop_exit
                _
            $region108: #{encoder_block_forward.7} parent=99 // pred_fallthru
              _
          $region100: #{encoder_block_forward.7} parent=95 // pred_fallthru
            _
          %407 = vnop
        $region96: #{encoder_block_forward.7} parent=27 // pred_fallthru
          _
        // Predicated region
        $region134: #{encoder_block_forward.7} parent=27 // pred_check
          %p408 = pneg %p170
        $region135: #{encoder_block_forward.7} parent=27 // pred_check_branch
          %410 = sbr.rel (%p408) target = $region137
        $region136: #{encoder_block_forward.7} parent=27 // pred_region
          %s411 = smul.u32 8, %s14
          %p412 = scmp.lt.s32.totalorder %s411, 15
          %s413 = scalar_select %p412, %s411, 15
          %s414 = scalar_lea.vmem %s5, %s413
          %s415 = smul.u32 8, %s14
        $region137: #{encoder_block_forward.7} parent=27 // pred_fallthru
          _
      $region28: #{encoder_block_forward.7} parent=5 // pred_fallthru
        _
      %p416 = scmp.le.s32.totalorder 1, %s14
      %p417 = scmp.lt.s32.totalorder %s14, 3
      %p418 = pnand %p416, %p417
      %p419 = pneg %p418
      // Predicated region
      $region138: #{encoder_block_forward.7} parent=5 // pred_check
        _
      $region139: #{encoder_block_forward.7} parent=5 // pred_check_branch
        %421 = sbr.rel (%p418) target = $region141
      $region140: #{encoder_block_forward.7} parent=5 // pred_region
        %s422 = ssub.s32 %s14, 1
        %s423 = sand.u32 %s35, 1
        %s424 = sand.u32 %s35, 1
        %s425 = smul.addr %s424, 8
        %s426 = scalar_lea.vmem [#allocation4], %s425
        // Predicated region
        $region142: #{encoder_block_forward.7} parent=140 // pred_check
          %p427 = pneg %p48
        $region143: #{encoder_block_forward.7} parent=140 // pred_check_branch
          %429 = sbr.rel (%p427) target = $region145
        $region144: #{encoder_block_forward.7} parent=140 // pred_region
          _
        $region145: #{encoder_block_forward.7} parent=140 // pred_fallthru
          _
        %s430 = sand.u32 %s61, 1
        %s431 = sand.u32 %s61, 1
        %s432 = smul.addr %s431, 64
        %s433 = scalar_lea.vmem [#allocation5], %s432
        // Predicated region
        $region146: #{encoder_block_forward.7} parent=140 // pred_check
          %p434 = pneg %p74
        $region147: #{encoder_block_forward.7} parent=140 // pred_check_branch
          %436 = sbr.rel (%p434) target = $region149
        $region148: #{encoder_block_forward.7} parent=140 // pred_region
          _
        $region149: #{encoder_block_forward.7} parent=140 // pred_fallthru
          _
        %s437 = sand.u32 %s95, 1
        %s438 = sand.u32 %s95, 1
        %s439 = smul.addr %s438, 8
        %s440 = scalar_lea.vmem [#allocation6], %s439
        // Predicated region
        $region150: #{encoder_block_forward.7} parent=140 // pred_check
          %p441 = pneg %p108
        $region151: #{encoder_block_forward.7} parent=140 // pred_check_branch
          %443 = sbr.rel (%p441) target = $region153
        $region152: #{encoder_block_forward.7} parent=140 // pred_region
          _
        $region153: #{encoder_block_forward.7} parent=140 // pred_fallthru
          _
        %s444 = sand.u32 %s35, 1
        %s445 = sand.u32 %s35, 1
        %s446 = smul.addr %s445, 8
        %s447 = scalar_lea.vmem [#allocation4], %s446
        %p448 = pneg %p48
        %p449 = pneg %p45
        %s450 = sand.u32 %s61, 1
        %s451 = sand.u32 %s61, 1
        %s452 = smul.addr %s451, 64
        %s453 = scalar_lea.vmem [#allocation5], %s452
        %p454 = pneg %p74
        %p455 = pneg %p71
        %s456 = sand.u32 %s95, 1
        %s457 = sand.u32 %s95, 1
        %s458 = smul.addr %s457, 8
        %s459 = scalar_lea.vmem [#allocation6], %s458
        %p460 = pneg %p108
        %p461 = pneg %p105
        %p462 = pneg %p129
        %p463 = pneg %p126
        %p464 = pneg %p150
        %p465 = pneg %p147
        %s466 = smul.u32 8, %s19
        %p467 = scmp.lt.s32.totalorder %s466, 15
        %s468 = scalar_select %p467, %s466, 15
        %s469 = scalar_lea.vmem %s5, %s468
        %p470 = pneg %p176
        %p471 = pneg %p173
        %p472 = pneg %p197
        %p473 = pneg %p194
        %p474 = pneg %p223
        %p475 = pneg %p220
        %s476 = sand.u32 %s210, 1
        %s477 = sand.u32 %s210, 1
        %s478 = smul.addr %s477, 128
        %s479 = scalar_lea.vmem [#allocation7], %s478
        %s480 = smul.u32 %s19, 8
        %s481 = ssub.s32 %s480, 1
        %p482 = scmp.gt.s32.totalorder %s481, 0
        %s483 = scalar_select %p482, %s481, 0
        %s484 = smul.u32 8, %s19
        %s485 = sadd.s32 %s19, 1
        %s486 = smul.u32 %s485, 8
        %p487 = scmp.lt.s32.totalorder %s486, 15
        %s488 = scalar_select %p487, %s486, 15
        %s489 = smul.u32 8, %s19
        %p490 = scmp.lt.s32.totalorder %s489, 15
        %s491 = scalar_select %p490, %s489, 15
        %s492 = scalar_lea.vmem %s5, %s491
        %s493 = smul.u32 8, %s19
        %s494 = smul.u32 8, %s19
        %v496 = vld [vmem:[%s433] sm:$0xff]
        %v497 = vld [vmem:[%s433 + $0x8] sm:$0xff]
        %v498 = vld [vmem:[%s433 + $0x10] sm:$0xff]
        %v499 = vld [vmem:[%s433 + $0x18] sm:$0xff]
        %v500 = vld [vmem:[%s433 + $0x20] sm:$0xff]
        %v501 = vld [vmem:[%s433 + $0x28] sm:$0xff]
        %v502 = vld [vmem:[%s433 + $0x30] sm:$0xff]
        %v503 = vld [vmem:[%s433 + $0x38] sm:$0xff]
        %504 = vst [vmem:[#allocation2] sm:$0xff] %v496
        %505 = vst [vmem:[#allocation2 + $0x8] sm:$0xff] %v497
        %506 = vst [vmem:[#allocation2 + $0x10] sm:$0xff] %v498
        %507 = vst [vmem:[#allocation2 + $0x18] sm:$0xff] %v499
        %508 = vst [vmem:[#allocation2 + $0x20] sm:$0xff] %v500
        %509 = vst [vmem:[#allocation2 + $0x28] sm:$0xff] %v501
        %510 = vst [vmem:[#allocation2 + $0x30] sm:$0xff] %v502
        %511 = vst [vmem:[#allocation2 + $0x38] sm:$0xff] %v503
        %v512 = vld [vmem:[%s433] sm:$0xff]
        %v513 = vld [vmem:[%s433 + $0x8] sm:$0xff]
        %v514 = vld [vmem:[%s433 + $0x10] sm:$0xff]
        %v515 = vld [vmem:[%s433 + $0x18] sm:$0xff]
        %v516 = vld [vmem:[%s433 + $0x20] sm:$0xff]
        %v517 = vld [vmem:[%s433 + $0x28] sm:$0xff]
        %v518 = vld [vmem:[%s433 + $0x30] sm:$0xff]
        %v519 = vld [vmem:[%s433 + $0x38] sm:$0xff]
        %528 = vrot.lane.b32.xlu0 %v512, 127
        %v529 = vpop.permute.xlu0 %528
        %530 = vrot.lane.b32.xlu0 %v513, 127
        %v531 = vpop.permute.xlu0 %530
        %532 = vrot.lane.b32.xlu0 %v514, 127
        %v533 = vpop.permute.xlu0 %532
        %534 = vrot.lane.b32.xlu0 %v515, 127
        %v535 = vpop.permute.xlu0 %534
        %536 = vrot.lane.b32.xlu0 %v516, 127
        %v537 = vpop.permute.xlu0 %536
        %538 = vrot.lane.b32.xlu0 %v517, 127
        %v539 = vpop.permute.xlu0 %538
        %540 = vrot.lane.b32.xlu0 %v518, 127
        %v541 = vpop.permute.xlu0 %540
        %542 = vrot.lane.b32.xlu0 %v519, 127
        %v543 = vpop.permute.xlu0 %542
        %v544 = vrot.slane %v529, 4
        %v545 = vrot.slane %v531, 4
        %v546 = vrot.slane %v533, 4
        %v547 = vrot.slane %v535, 4
        %v548 = vrot.slane %v537, 4
        %v549 = vrot.slane %v539, 4
        %v550 = vrot.slane %v541, 4
        %v551 = vrot.slane %v543, 4
        %vm552 = vcmask 1043456
        %v553 = vsel %vm552, %v544, %v545
        %vm554 = vcmask 1039360
        %v555 = vsel %vm554, %v529, %v553
        %v556 = vsel %vm552, %v545, %v546
        %v557 = vsel %vm554, %v531, %v556
        %v558 = vsel %vm552, %v546, %v547
        %v559 = vsel %vm554, %v533, %v558
        %v560 = vsel %vm554, %v535, %v547
        %v561 = vsel %vm552, %v548, %v549
        %v562 = vsel %vm554, %v537, %v561
        %v563 = vsel %vm552, %v549, %v550
        %v564 = vsel %vm554, %v539, %v563
        %v565 = vsel %vm552, %v550, %v551
        %v566 = vsel %vm554, %v541, %v565
        %v567 = vsel %vm554, %v543, %v551
        %576 = vst [vmem:[#allocation2 + $0x40] sm:$0xff] %v555
        %577 = vst [vmem:[#allocation2 + $0x48] sm:$0xff] %v557
        %578 = vst [vmem:[#allocation2 + $0x50] sm:$0xff] %v559
        %vm579 = vcmask 1043456
        %vm580 = vcmask 1039364
        %vm581 = vmor %vm580, %vm579
        %582 = vst.msk [vmem:[#allocation2 + $0x58] sm:$0xff] %vm581, %v560
        %583 = vst [vmem:[#allocation2 + $0x60] sm:$0xff] %v562
        %584 = vst [vmem:[#allocation2 + $0x68] sm:$0xff] %v564
        %585 = vst [vmem:[#allocation2 + $0x70] sm:$0xff] %v566
        %586 = vst.msk [vmem:[#allocation2 + $0x78] sm:$0xff] %vm581, %v567
        %v587 = vld [vmem:[%s440] sm:$0xf]
        %v588 = vld [vmem:[%s440 + $0x4] sm:$0xf]
        %591 = vrot.lane.b32.xlu0 %v587, 127
        %v592 = vpop.permute.xlu0 %591
        %593 = vrot.lane.b32.xlu0 %v588, 127
        %v594 = vpop.permute.xlu0 %593
        %vm597 = vcmask 1044472
        %598 = vst.msk [vmem:[#allocation2 + $0x5c] sm:$0xf] %vm597, %v592
        %599 = vst.msk [vmem:[#allocation2 + $0x7c] sm:$0xf] %vm597, %v594
        %v600 = vld [vmem:[%s433] sm:$0xff]
        %v601 = vld [vmem:[%s433 + $0x8] sm:$0xff]
        %v602 = vld [vmem:[%s433 + $0x10] sm:$0xff]
        %v603 = vld [vmem:[%s433 + $0x18] sm:$0xff]
        %v604 = vld [vmem:[%s433 + $0x20] sm:$0xff]
        %v605 = vld [vmem:[%s433 + $0x28] sm:$0xff]
        %v606 = vld [vmem:[%s433 + $0x30] sm:$0xff]
        %v607 = vld [vmem:[%s433 + $0x38] sm:$0xff]
        %616 = vrot.lane.b32.xlu0 %v600, 118
        %v617 = vpop.permute.xlu0 %616
        %618 = vrot.lane.b32.xlu0 %v601, 118
        %v619 = vpop.permute.xlu0 %618
        %620 = vrot.lane.b32.xlu0 %v602, 118
        %v621 = vpop.permute.xlu0 %620
        %622 = vrot.lane.b32.xlu0 %v603, 118
        %v623 = vpop.permute.xlu0 %622
        %624 = vrot.lane.b32.xlu0 %v604, 118
        %v625 = vpop.permute.xlu0 %624
        %626 = vrot.lane.b32.xlu0 %v605, 118
        %v627 = vpop.permute.xlu0 %626
        %628 = vrot.lane.b32.xlu0 %v606, 118
        %v629 = vpop.permute.xlu0 %628
        %630 = vrot.lane.b32.xlu0 %v607, 118
        %v631 = vpop.permute.xlu0 %630
        %v632 = vrot.slane %v617, 4
        %v633 = vrot.slane %v619, 4
        %v634 = vrot.slane %v621, 4
        %v635 = vrot.slane %v623, 4
        %v636 = vrot.slane %v625, 4
        %v637 = vrot.slane %v627, 4
        %v638 = vrot.slane %v629, 4
        %v639 = vrot.slane %v631, 4
        %v640 = vsel %vm552, %v632, %v633
        %vm641 = vcmask 965632
        %v642 = vsel %vm641, %v617, %v640
        %v643 = vsel %vm552, %v633, %v634
        %v644 = vsel %vm641, %v619, %v643
        %v645 = vsel %vm552, %v634, %v635
        %v646 = vsel %vm641, %v621, %v645
        %v647 = vsel %vm641, %v623, %v635
        %v648 = vsel %vm552, %v636, %v637
        %v649 = vsel %vm641, %v625, %v648
        %v650 = vsel %vm552, %v637, %v638
        %v651 = vsel %vm641, %v627, %v650
        %v652 = vsel %vm552, %v638, %v639
        %v653 = vsel %vm641, %v629, %v652
        %v654 = vsel %vm641, %v631, %v639
        %663 = vst [vmem:[#allocation2 + $0x80] sm:$0xff] %v642
        %664 = vst [vmem:[#allocation2 + $0x88] sm:$0xff] %v644
        %665 = vst [vmem:[#allocation2 + $0x90] sm:$0xff] %v646
        %vm666 = vcmask 965636
        %vm667 = vmor %vm666, %vm579
        %668 = vst.msk [vmem:[#allocation2 + $0x98] sm:$0xff] %vm667, %v647
        %669 = vst [vmem:[#allocation2 + $0xa0] sm:$0xff] %v649
        %670 = vst [vmem:[#allocation2 + $0xa8] sm:$0xff] %v651
        %671 = vst [vmem:[#allocation2 + $0xb0] sm:$0xff] %v653
        %672 = vst.msk [vmem:[#allocation2 + $0xb8] sm:$0xff] %vm667, %v654
        %v673 = vld [vmem:[%s440] sm:$0xf]
        %v674 = vld [vmem:[%s440 + $0x4] sm:$0xf]
        %677 = vrot.lane.b32.xlu0 %v673, 118
        %v678 = vpop.permute.xlu0 %677
        %679 = vrot.lane.b32.xlu0 %v674, 118
        %v680 = vpop.permute.xlu0 %679
        %vm683 = vcmask 1044400
        %684 = vst.msk [vmem:[#allocation2 + $0x9c] sm:$0xf] %vm683, %v678
        %685 = vst.msk [vmem:[#allocation2 + $0xbc] sm:$0xf] %vm683, %v680
        %v686 = vld [vmem:[%s433] sm:$0xff]
        %v687 = vld [vmem:[%s433 + $0x8] sm:$0xff]
        %v688 = vld [vmem:[%s433 + $0x10] sm:$0xff]
        %v689 = vld [vmem:[%s433 + $0x18] sm:$0xff]
        %v690 = vld [vmem:[%s433 + $0x20] sm:$0xff]
        %v691 = vld [vmem:[%s433 + $0x28] sm:$0xff]
        %v692 = vld [vmem:[%s433 + $0x30] sm:$0xff]
        %v693 = vld [vmem:[%s433 + $0x38] sm:$0xff]
        %702 = vrot.lane.b32.xlu0 %v686, 117
        %v703 = vpop.permute.xlu0 %702
        %704 = vrot.lane.b32.xlu0 %v687, 117
        %v705 = vpop.permute.xlu0 %704
        %706 = vrot.lane.b32.xlu0 %v688, 117
        %v707 = vpop.permute.xlu0 %706
        %708 = vrot.lane.b32.xlu0 %v689, 117
        %v709 = vpop.permute.xlu0 %708
        %710 = vrot.lane.b32.xlu0 %v690, 117
        %v711 = vpop.permute.xlu0 %710
        %712 = vrot.lane.b32.xlu0 %v691, 117
        %v713 = vpop.permute.xlu0 %712
        %714 = vrot.lane.b32.xlu0 %v692, 117
        %v715 = vpop.permute.xlu0 %714
        %716 = vrot.lane.b32.xlu0 %v693, 117
        %v717 = vpop.permute.xlu0 %716
        %v718 = vrot.slane %v703, 4
        %v719 = vrot.slane %v705, 4
        %v720 = vrot.slane %v707, 4
        %v721 = vrot.slane %v709, 4
        %v722 = vrot.slane %v711, 4
        %v723 = vrot.slane %v713, 4
        %v724 = vrot.slane %v715, 4
        %v725 = vrot.slane %v717, 4
        %v726 = vsel %vm552, %v718, %v719
        %vm727 = vcmask 957440
        %v728 = vsel %vm727, %v703, %v726
        %v729 = vsel %vm552, %v719, %v720
        %v730 = vsel %vm727, %v705, %v729
        %v731 = vsel %vm552, %v720, %v721
        %v732 = vsel %vm727, %v707, %v731
        %v733 = vsel %vm727, %v709, %v721
        %v734 = vsel %vm552, %v722, %v723
        %v735 = vsel %vm727, %v711, %v734
        %v736 = vsel %vm552, %v723, %v724
        %v737 = vsel %vm727, %v713, %v736
        %v738 = vsel %vm552, %v724, %v725
        %v739 = vsel %vm727, %v715, %v738
        %v740 = vsel %vm727, %v717, %v725
        %749 = vst [vmem:[#allocation2 + $0xc0] sm:$0xff] %v728
        %750 = vst [vmem:[#allocation2 + $0xc8] sm:$0xff] %v730
        %751 = vst [vmem:[#allocation2 + $0xd0] sm:$0xff] %v732
        %vm752 = vcmask 957444
        %vm753 = vmor %vm752, %vm579
        %754 = vst.msk [vmem:[#allocation2 + $0xd8] sm:$0xff] %vm753, %v733
        %755 = vst [vmem:[#allocation2 + $0xe0] sm:$0xff] %v735
        %756 = vst [vmem:[#allocation2 + $0xe8] sm:$0xff] %v737
        %757 = vst [vmem:[#allocation2 + $0xf0] sm:$0xff] %v739
        %758 = vst.msk [vmem:[#allocation2 + $0xf8] sm:$0xff] %vm753, %v740
        %v759 = vld [vmem:[%s440] sm:$0xf]
        %v760 = vld [vmem:[%s440 + $0x4] sm:$0xf]
        %763 = vrot.lane.b32.xlu0 %v759, 117
        %v764 = vpop.permute.xlu0 %763
        %765 = vrot.lane.b32.xlu0 %v760, 117
        %v766 = vpop.permute.xlu0 %765
        %vm769 = vcmask 1044392
        %770 = vst.msk [vmem:[#allocation2 + $0xdc] sm:$0xf] %vm769, %v764
        %771 = vst.msk [vmem:[#allocation2 + $0xfc] sm:$0xf] %vm769, %v766
        %v772 = vld [vmem:[%s433] sm:$0xff]
        %v773 = vld [vmem:[%s433 + $0x8] sm:$0xff]
        %v774 = vld [vmem:[%s433 + $0x10] sm:$0xff]
        %v775 = vld [vmem:[%s433 + $0x18] sm:$0xff]
        %v776 = vld [vmem:[%s433 + $0x20] sm:$0xff]
        %v777 = vld [vmem:[%s433 + $0x28] sm:$0xff]
        %v778 = vld [vmem:[%s433 + $0x30] sm:$0xff]
        %v779 = vld [vmem:[%s433 + $0x38] sm:$0xff]
        %788 = vrot.lane.b32.xlu0 %v772, 28
        %v789 = vpop.permute.xlu0 %788
        %790 = vrot.lane.b32.xlu0 %v773, 28
        %v791 = vpop.permute.xlu0 %790
        %792 = vrot.lane.b32.xlu0 %v774, 28
        %v793 = vpop.permute.xlu0 %792
        %794 = vrot.lane.b32.xlu0 %v775, 28
        %v795 = vpop.permute.xlu0 %794
        %796 = vrot.lane.b32.xlu0 %v776, 28
        %v797 = vpop.permute.xlu0 %796
        %798 = vrot.lane.b32.xlu0 %v777, 28
        %v799 = vpop.permute.xlu0 %798
        %800 = vrot.lane.b32.xlu0 %v778, 28
        %v801 = vpop.permute.xlu0 %800
        %802 = vrot.lane.b32.xlu0 %v779, 28
        %v803 = vpop.permute.xlu0 %802
        %v804 = vrot.slane %v789, 4
        %v805 = vrot.slane %v791, 4
        %v806 = vrot.slane %v793, 4
        %v807 = vrot.slane %v795, 4
        %v808 = vrot.slane %v797, 4
        %v809 = vrot.slane %v799, 4
        %v810 = vrot.slane %v801, 4
        %v811 = vrot.slane %v803, 4
        %v812 = vsel %vm552, %v804, %v805
        %vm813 = vcmask 228352
        %v814 = vsel %vm813, %v789, %v812
        %v815 = vsel %vm552, %v805, %v806
        %v816 = vsel %vm813, %v791, %v815
        %v817 = vsel %vm552, %v806, %v807
        %v818 = vsel %vm813, %v793, %v817
        %v819 = vsel %vm813, %v795, %v807
        %v820 = vsel %vm552, %v808, %v809
        %v821 = vsel %vm813, %v797, %v820
        %v822 = vsel %vm552, %v809, %v810
        %v823 = vsel %vm813, %v799, %v822
        %v824 = vsel %vm552, %v810, %v811
        %v825 = vsel %vm813, %v801, %v824
        %v826 = vsel %vm813, %v803, %v811
        %835 = vst [vmem:[#allocation2 + $0x100] sm:$0xff] %v814
        %836 = vst [vmem:[#allocation2 + $0x108] sm:$0xff] %v816
        %837 = vst [vmem:[#allocation2 + $0x110] sm:$0xff] %v818
        %vm838 = vcmask 228356
        %vm839 = vmor %vm838, %vm579
        %840 = vst.msk [vmem:[#allocation2 + $0x118] sm:$0xff] %vm839, %v819
        %841 = vst [vmem:[#allocation2 + $0x120] sm:$0xff] %v821
        %842 = vst [vmem:[#allocation2 + $0x128] sm:$0xff] %v823
        %843 = vst [vmem:[#allocation2 + $0x130] sm:$0xff] %v825
        %844 = vst.msk [vmem:[#allocation2 + $0x138] sm:$0xff] %vm839, %v826
        %v845 = vld [vmem:[%s440] sm:$0xf]
        %v846 = vld [vmem:[%s440 + $0x4] sm:$0xf]
        %849 = vrot.lane.b32.xlu0 %v845, 28
        %v850 = vpop.permute.xlu0 %849
        %851 = vrot.lane.b32.xlu0 %v846, 28
        %v852 = vpop.permute.xlu0 %851
        %vm855 = vcmask 1043680
        %856 = vst.msk [vmem:[#allocation2 + $0x11c] sm:$0xf] %vm855, %v850
        %857 = vst.msk [vmem:[#allocation2 + $0x13c] sm:$0xf] %vm855, %v852
        %v858 = vld [vmem:[%s433] sm:$0xff]
        %v859 = vld [vmem:[%s433 + $0x8] sm:$0xff]
        %v860 = vld [vmem:[%s433 + $0x10] sm:$0xff]
        %v861 = vld [vmem:[%s433 + $0x18] sm:$0xff]
        %v862 = vld [vmem:[%s433 + $0x20] sm:$0xff]
        %v863 = vld [vmem:[%s433 + $0x28] sm:$0xff]
        %v864 = vld [vmem:[%s433 + $0x30] sm:$0xff]
        %v865 = vld [vmem:[%s433 + $0x38] sm:$0xff]
        %874 = vrot.lane.b32.xlu0 %v858, 27
        %v875 = vpop.permute.xlu0 %874
        %876 = vrot.lane.b32.xlu0 %v859, 27
        %v877 = vpop.permute.xlu0 %876
        %878 = vrot.lane.b32.xlu0 %v860, 27
        %v879 = vpop.permute.xlu0 %878
        %880 = vrot.lane.b32.xlu0 %v861, 27
        %v881 = vpop.permute.xlu0 %880
        %882 = vrot.lane.b32.xlu0 %v862, 27
        %v883 = vpop.permute.xlu0 %882
        %884 = vrot.lane.b32.xlu0 %v863, 27
        %v885 = vpop.permute.xlu0 %884
        %886 = vrot.lane.b32.xlu0 %v864, 27
        %v887 = vpop.permute.xlu0 %886
        %888 = vrot.lane.b32.xlu0 %v865, 27
        %v889 = vpop.permute.xlu0 %888
        %v890 = vrot.slane %v875, 4
        %v891 = vrot.slane %v877, 4
        %v892 = vrot.slane %v879, 4
        %v893 = vrot.slane %v881, 4
        %v894 = vrot.slane %v883, 4
        %v895 = vrot.slane %v885, 4
        %v896 = vrot.slane %v887, 4
        %v897 = vrot.slane %v889, 4
        %v898 = vsel %vm552, %v890, %v891
        %vm899 = vcmask 220160
        %v900 = vsel %vm899, %v875, %v898
        %v901 = vsel %vm552, %v891, %v892
        %v902 = vsel %vm899, %v877, %v901
        %v903 = vsel %vm552, %v892, %v893
        %v904 = vsel %vm899, %v879, %v903
        %v905 = vsel %vm899, %v881, %v893
        %v906 = vsel %vm552, %v894, %v895
        %v907 = vsel %vm899, %v883, %v906
        %v908 = vsel %vm552, %v895, %v896
        %v909 = vsel %vm899, %v885, %v908
        %v910 = vsel %vm552, %v896, %v897
        %v911 = vsel %vm899, %v887, %v910
        %v912 = vsel %vm899, %v889, %v897
        %921 = vst [vmem:[#allocation2 + $0x140] sm:$0xff] %v900
        %922 = vst [vmem:[#allocation2 + $0x148] sm:$0xff] %v902
        %923 = vst [vmem:[#allocation2 + $0x150] sm:$0xff] %v904
        %vm924 = vcmask 220164
        %vm925 = vmor %vm924, %vm579
        %926 = vst.msk [vmem:[#allocation2 + $0x158] sm:$0xff] %vm925, %v905
        %927 = vst [vmem:[#allocation2 + $0x160] sm:$0xff] %v907
        %928 = vst [vmem:[#allocation2 + $0x168] sm:$0xff] %v909
        %929 = vst [vmem:[#allocation2 + $0x170] sm:$0xff] %v911
        %930 = vst.msk [vmem:[#allocation2 + $0x178] sm:$0xff] %vm925, %v912
        %v931 = vld [vmem:[%s440] sm:$0xf]
        %v932 = vld [vmem:[%s440 + $0x4] sm:$0xf]
        %935 = vrot.lane.b32.xlu0 %v931, 27
        %v936 = vpop.permute.xlu0 %935
        %937 = vrot.lane.b32.xlu0 %v932, 27
        %v938 = vpop.permute.xlu0 %937
        %vm941 = vcmask 1043672
        %942 = vst.msk [vmem:[#allocation2 + $0x15c] sm:$0xf] %vm941, %v936
        %943 = vst.msk [vmem:[#allocation2 + $0x17c] sm:$0xf] %vm941, %v938
        %v944 = vld [vmem:[%s433] sm:$0xff]
        %v945 = vld [vmem:[%s433 + $0x8] sm:$0xff]
        %v946 = vld [vmem:[%s433 + $0x10] sm:$0xff]
        %v947 = vld [vmem:[%s433 + $0x18] sm:$0xff]
        %v948 = vld [vmem:[%s433 + $0x20] sm:$0xff]
        %v949 = vld [vmem:[%s433 + $0x28] sm:$0xff]
        %v950 = vld [vmem:[%s433 + $0x30] sm:$0xff]
        %v951 = vld [vmem:[%s433 + $0x38] sm:$0xff]
        %960 = vrot.lane.b32.xlu0 %v944, 18
        %v961 = vpop.permute.xlu0 %960
        %962 = vrot.lane.b32.xlu0 %v945, 18
        %v963 = vpop.permute.xlu0 %962
        %964 = vrot.lane.b32.xlu0 %v946, 18
        %v965 = vpop.permute.xlu0 %964
        %966 = vrot.lane.b32.xlu0 %v947, 18
        %v967 = vpop.permute.xlu0 %966
        %968 = vrot.lane.b32.xlu0 %v948, 18
        %v969 = vpop.permute.xlu0 %968
        %970 = vrot.lane.b32.xlu0 %v949, 18
        %v971 = vpop.permute.xlu0 %970
        %972 = vrot.lane.b32.xlu0 %v950, 18
        %v973 = vpop.permute.xlu0 %972
        %974 = vrot.lane.b32.xlu0 %v951, 18
        %v975 = vpop.permute.xlu0 %974
        %v976 = vrot.slane %v961, 4
        %v977 = vrot.slane %v963, 4
        %v978 = vrot.slane %v965, 4
        %v979 = vrot.slane %v967, 4
        %v980 = vrot.slane %v969, 4
        %v981 = vrot.slane %v971, 4
        %v982 = vrot.slane %v973, 4
        %v983 = vrot.slane %v975, 4
        %v984 = vsel %vm552, %v976, %v977
        %vm985 = vcmask 146432
        %v986 = vsel %vm985, %v961, %v984
        %v987 = vsel %vm552, %v977, %v978
        %v988 = vsel %vm985, %v963, %v987
        %v989 = vsel %vm552, %v978, %v979
        %v990 = vsel %vm985, %v965, %v989
        %v991 = vsel %vm985, %v967, %v979
        %v992 = vsel %vm552, %v980, %v981
        %v993 = vsel %vm985, %v969, %v992
        %v994 = vsel %vm552, %v981, %v982
        %v995 = vsel %vm985, %v971, %v994
        %v996 = vsel %vm552, %v982, %v983
        %v997 = vsel %vm985, %v973, %v996
        %v998 = vsel %vm985, %v975, %v983
        %1007 = vst [vmem:[#allocation2 + $0x180] sm:$0xff] %v986
        %1008 = vst [vmem:[#allocation2 + $0x188] sm:$0xff] %v988
        %1009 = vst [vmem:[#allocation2 + $0x190] sm:$0xff] %v990
        %vm1010 = vcmask 146436
        %vm1011 = vmor %vm1010, %vm579
        %1012 = vst.msk [vmem:[#allocation2 + $0x198] sm:$0xff] %vm1011, %v991
        %1013 = vst [vmem:[#allocation2 + $0x1a0] sm:$0xff] %v993
        %1014 = vst [vmem:[#allocation2 + $0x1a8] sm:$0xff] %v995
        %1015 = vst [vmem:[#allocation2 + $0x1b0] sm:$0xff] %v997
        %1016 = vst.msk [vmem:[#allocation2 + $0x1b8] sm:$0xff] %vm1011, %v998
        %v1017 = vld [vmem:[%s440] sm:$0xf]
        %v1018 = vld [vmem:[%s440 + $0x4] sm:$0xf]
        %1021 = vrot.lane.b32.xlu0 %v1017, 18
        %v1022 = vpop.permute.xlu0 %1021
        %1023 = vrot.lane.b32.xlu0 %v1018, 18
        %v1024 = vpop.permute.xlu0 %1023
        %vm1027 = vcmask 1043600
        %1028 = vst.msk [vmem:[#allocation2 + $0x19c] sm:$0xf] %vm1027, %v1022
        %1029 = vst.msk [vmem:[#allocation2 + $0x1bc] sm:$0xf] %vm1027, %v1024
        %v1030 = vld [vmem:[%s433] sm:$0xff]
        %v1031 = vld [vmem:[%s433 + $0x8] sm:$0xff]
        %v1032 = vld [vmem:[%s433 + $0x10] sm:$0xff]
        %v1033 = vld [vmem:[%s433 + $0x18] sm:$0xff]
        %v1034 = vld [vmem:[%s433 + $0x20] sm:$0xff]
        %v1035 = vld [vmem:[%s433 + $0x28] sm:$0xff]
        %v1036 = vld [vmem:[%s433 + $0x30] sm:$0xff]
        %v1037 = vld [vmem:[%s433 + $0x38] sm:$0xff]
        %1046 = vrot.lane.b32.xlu0 %v1030, 17
        %v1047 = vpop.permute.xlu0 %1046
        %1048 = vrot.lane.b32.xlu0 %v1031, 17
        %v1049 = vpop.permute.xlu0 %1048
        %1050 = vrot.lane.b32.xlu0 %v1032, 17
        %v1051 = vpop.permute.xlu0 %1050
        %1052 = vrot.lane.b32.xlu0 %v1033, 17
        %v1053 = vpop.permute.xlu0 %1052
        %1054 = vrot.lane.b32.xlu0 %v1034, 17
        %v1055 = vpop.permute.xlu0 %1054
        %1056 = vrot.lane.b32.xlu0 %v1035, 17
        %v1057 = vpop.permute.xlu0 %1056
        %1058 = vrot.lane.b32.xlu0 %v1036, 17
        %v1059 = vpop.permute.xlu0 %1058
        %1060 = vrot.lane.b32.xlu0 %v1037, 17
        %v1061 = vpop.permute.xlu0 %1060
        %v1062 = vrot.slane %v1047, 4
        %v1063 = vrot.slane %v1049, 4
        %v1064 = vrot.slane %v1051, 4
        %v1065 = vrot.slane %v1053, 4
        %v1066 = vrot.slane %v1055, 4
        %v1067 = vrot.slane %v1057, 4
        %v1068 = vrot.slane %v1059, 4
        %v1069 = vrot.slane %v1061, 4
        %v1070 = vsel %vm552, %v1062, %v1063
        %vm1071 = vcmask 138240
        %v1072 = vsel %vm1071, %v1047, %v1070
        %v1073 = vsel %vm552, %v1063, %v1064
        %v1074 = vsel %vm1071, %v1049, %v1073
        %v1075 = vsel %vm552, %v1064, %v1065
        %v1076 = vsel %vm1071, %v1051, %v1075
        %v1077 = vsel %vm1071, %v1053, %v1065
        %v1078 = vsel %vm552, %v1066, %v1067
        %v1079 = vsel %vm1071, %v1055, %v1078
        %v1080 = vsel %vm552, %v1067, %v1068
        %v1081 = vsel %vm1071, %v1057, %v1080
        %v1082 = vsel %vm552, %v1068, %v1069
        %v1083 = vsel %vm1071, %v1059, %v1082
        %v1084 = vsel %vm1071, %v1061, %v1069
        %1093 = vst [vmem:[#allocation2 + $0x1c0] sm:$0xff] %v1072
        %1094 = vst [vmem:[#allocation2 + $0x1c8] sm:$0xff] %v1074
        %1095 = vst [vmem:[#allocation2 + $0x1d0] sm:$0xff] %v1076
        %vm1096 = vcmask 138244
        %vm1097 = vmor %vm1096, %vm579
        %1098 = vst.msk [vmem:[#allocation2 + $0x1d8] sm:$0xff] %vm1097, %v1077
        %1099 = vst [vmem:[#allocation2 + $0x1e0] sm:$0xff] %v1079
        %1100 = vst [vmem:[#allocation2 + $0x1e8] sm:$0xff] %v1081
        %1101 = vst [vmem:[#allocation2 + $0x1f0] sm:$0xff] %v1083
        %1102 = vst.msk [vmem:[#allocation2 + $0x1f8] sm:$0xff] %vm1097, %v1084
        %v1103 = vld [vmem:[%s440] sm:$0xf]
        %v1104 = vld [vmem:[%s440 + $0x4] sm:$0xf]
        %1107 = vrot.lane.b32.xlu0 %v1103, 17
        %v1108 = vpop.permute.xlu0 %1107
        %1109 = vrot.lane.b32.xlu0 %v1104, 17
        %v1110 = vpop.permute.xlu0 %1109
        %vm1113 = vcmask 1043592
        %1114 = vst.msk [vmem:[#allocation2 + $0x1dc] sm:$0xf] %vm1113, %v1108
        %1115 = vst.msk [vmem:[#allocation2 + $0x1fc] sm:$0xf] %vm1113, %v1110
        %v1116 = vld [vmem:[%s3] sm:$0xf]
        %v1117 = vld [vmem:[%s3 + $0x4] sm:$0xf]
        %v1118 = vld [vmem:[#allocation2] sm:$0xff]
        %v1119 = vld [vmem:[#allocation2 + $0x8] sm:$0xff]
        %v1120 = vld [vmem:[#allocation2 + $0x10] sm:$0xff]
        %v1121 = vld [vmem:[#allocation2 + $0x18] sm:$0xff]
        %v1122 = vld [vmem:[#allocation2 + $0x20] sm:$0xff]
        %v1123 = vld [vmem:[#allocation2 + $0x28] sm:$0xff]
        %v1124 = vld [vmem:[#allocation2 + $0x30] sm:$0xff]
        %v1125 = vld [vmem:[#allocation2 + $0x38] sm:$0xff]
        %v1126 = vld [vmem:[#allocation2 + $0x40] sm:$0xff]
        %v1127 = vld [vmem:[#allocation2 + $0x48] sm:$0xff]
        %v1128 = vld [vmem:[#allocation2 + $0x50] sm:$0xff]
        %v1129 = vld [vmem:[#allocation2 + $0x58] sm:$0xff]
        %v1130 = vld [vmem:[#allocation2 + $0x60] sm:$0xff]
        %v1131 = vld [vmem:[#allocation2 + $0x68] sm:$0xff]
        %v1132 = vld [vmem:[#allocation2 + $0x70] sm:$0xff]
        %v1133 = vld [vmem:[#allocation2 + $0x78] sm:$0xff]
        %v1134 = vld [vmem:[#allocation2 + $0x80] sm:$0xff]
        %v1135 = vld [vmem:[#allocation2 + $0x88] sm:$0xff]
        %v1136 = vld [vmem:[#allocation2 + $0x90] sm:$0xff]
        %v1137 = vld [vmem:[#allocation2 + $0x98] sm:$0xff]
        %v1138 = vld [vmem:[#allocation2 + $0xa0] sm:$0xff]
        %v1139 = vld [vmem:[#allocation2 + $0xa8] sm:$0xff]
        %v1140 = vld [vmem:[#allocation2 + $0xb0] sm:$0xff]
        %v1141 = vld [vmem:[#allocation2 + $0xb8] sm:$0xff]
        %v1142 = vld [vmem:[#allocation2 + $0xc0] sm:$0xff]
        %v1143 = vld [vmem:[#allocation2 + $0xc8] sm:$0xff]
        %v1144 = vld [vmem:[#allocation2 + $0xd0] sm:$0xff]
        %v1145 = vld [vmem:[#allocation2 + $0xd8] sm:$0xff]
        %v1146 = vld [vmem:[#allocation2 + $0xe0] sm:$0xff]
        %v1147 = vld [vmem:[#allocation2 + $0xe8] sm:$0xff]
        %v1148 = vld [vmem:[#allocation2 + $0xf0] sm:$0xff]
        %v1149 = vld [vmem:[#allocation2 + $0xf8] sm:$0xff]
        %v1150 = vld [vmem:[#allocation2 + $0x100] sm:$0xff]
        %v1151 = vld [vmem:[#allocation2 + $0x108] sm:$0xff]
        %v1152 = vld [vmem:[#allocation2 + $0x110] sm:$0xff]
        %v1153 = vld [vmem:[#allocation2 + $0x118] sm:$0xff]
        %v1154 = vld [vmem:[#allocation2 + $0x120] sm:$0xff]
        %v1155 = vld [vmem:[#allocation2 + $0x128] sm:$0xff]
        %v1156 = vld [vmem:[#allocation2 + $0x130] sm:$0xff]
        %v1157 = vld [vmem:[#allocation2 + $0x138] sm:$0xff]
        %v1158 = vld [vmem:[#allocation2 + $0x140] sm:$0xff]
        %v1159 = vld [vmem:[#allocation2 + $0x148] sm:$0xff]
        %v1160 = vld [vmem:[#allocation2 + $0x150] sm:$0xff]
        %v1161 = vld [vmem:[#allocation2 + $0x158] sm:$0xff]
        %v1162 = vld [vmem:[#allocation2 + $0x160] sm:$0xff]
        %v1163 = vld [vmem:[#allocation2 + $0x168] sm:$0xff]
        %v1164 = vld [vmem:[#allocation2 + $0x170] sm:$0xff]
        %v1165 = vld [vmem:[#allocation2 + $0x178] sm:$0xff]
        %v1166 = vld [vmem:[#allocation2 + $0x180] sm:$0xff]
        %v1167 = vld [vmem:[#allocation2 + $0x188] sm:$0xff]
        %v1168 = vld [vmem:[#allocation2 + $0x190] sm:$0xff]
        %v1169 = vld [vmem:[#allocation2 + $0x198] sm:$0xff]
        %v1170 = vld [vmem:[#allocation2 + $0x1a0] sm:$0xff]
        %v1171 = vld [vmem:[#allocation2 + $0x1a8] sm:$0xff]
        %v1172 = vld [vmem:[#allocation2 + $0x1b0] sm:$0xff]
        %v1173 = vld [vmem:[#allocation2 + $0x1b8] sm:$0xff]
        %v1174 = vld [vmem:[#allocation2 + $0x1c0] sm:$0xff]
        %v1175 = vld [vmem:[#allocation2 + $0x1c8] sm:$0xff]
        %v1176 = vld [vmem:[#allocation2 + $0x1d0] sm:$0xff]
        %v1177 = vld [vmem:[#allocation2 + $0x1d8] sm:$0xff]
        %v1178 = vld [vmem:[#allocation2 + $0x1e0] sm:$0xff]
        %v1179 = vld [vmem:[#allocation2 + $0x1e8] sm:$0xff]
        %v1180 = vld [vmem:[#allocation2 + $0x1f0] sm:$0xff]
        %v1181 = vld [vmem:[#allocation2 + $0x1f8] sm:$0xff]
        %v1182 = vld [vmem:[%s4] sm:$0xff]
        %v1183 = vld [vmem:[%s4 + $0x8] sm:$0xff]
        %1185 = vset.pattern.permute.xlu0 0
        %1186 = vperm.xlu0 %1185, %v1182
        %v1187 = vpop.permute.xlu0 %1186
        %1190 = vset.pattern.permute.xlu0 0
        %1191 = vperm.xlu0 %1190, %v1183
        %v1192 = vpop.permute.xlu0 %1191
        %v1196 = vunpack.c.l.b16 %v1116
        %v1197 = vunpack.c.l.b16 %v1117
        %v1198 = vpack.c.b16 %v1197, %v1196
        %v1264 = vunpack.c.l.b16 %v1118
        %v1265 = vunpack.c.h.b16 %v1118
        %v1266 = vunpack.c.l.b16 %v1119
        %v1267 = vunpack.c.h.b16 %v1119
        %v1268 = vunpack.c.l.b16 %v1120
        %v1269 = vunpack.c.h.b16 %v1120
        %v1270 = vunpack.c.l.b16 %v1121
        %v1271 = vunpack.c.h.b16 %v1121
        %v1272 = vunpack.c.l.b16 %v1122
        %v1273 = vunpack.c.h.b16 %v1122
        %v1274 = vunpack.c.l.b16 %v1123
        %v1275 = vunpack.c.h.b16 %v1123
        %v1276 = vunpack.c.l.b16 %v1124
        %v1277 = vunpack.c.h.b16 %v1124
        %v1278 = vunpack.c.l.b16 %v1125
        %v1279 = vunpack.c.h.b16 %v1125
        %v1280 = vunpack.c.l.b16 %v1126
        %v1281 = vunpack.c.h.b16 %v1126
        %v1282 = vunpack.c.l.b16 %v1127
        %v1283 = vunpack.c.h.b16 %v1127
        %v1284 = vunpack.c.l.b16 %v1128
        %v1285 = vunpack.c.h.b16 %v1128
        %v1286 = vunpack.c.l.b16 %v1129
        %v1287 = vunpack.c.h.b16 %v1129
        %v1288 = vunpack.c.l.b16 %v1130
        %v1289 = vunpack.c.h.b16 %v1130
        %v1290 = vunpack.c.l.b16 %v1131
        %v1291 = vunpack.c.h.b16 %v1131
        %v1292 = vunpack.c.l.b16 %v1132
        %v1293 = vunpack.c.h.b16 %v1132
        %v1294 = vunpack.c.l.b16 %v1133
        %v1295 = vunpack.c.h.b16 %v1133
        %v1296 = vunpack.c.l.b16 %v1134
        %v1297 = vunpack.c.h.b16 %v1134
        %v1298 = vunpack.c.l.b16 %v1135
        %v1299 = vunpack.c.h.b16 %v1135
        %v1300 = vunpack.c.l.b16 %v1136
        %v1301 = vunpack.c.h.b16 %v1136
        %v1302 = vunpack.c.l.b16 %v1137
        %v1303 = vunpack.c.h.b16 %v1137
        %v1304 = vunpack.c.l.b16 %v1138
        %v1305 = vunpack.c.h.b16 %v1138
        %v1306 = vunpack.c.l.b16 %v1139
        %v1307 = vunpack.c.h.b16 %v1139
        %v1308 = vunpack.c.l.b16 %v1140
        %v1309 = vunpack.c.h.b16 %v1140
        %v1310 = vunpack.c.l.b16 %v1141
        %v1311 = vunpack.c.h.b16 %v1141
        %v1312 = vunpack.c.l.b16 %v1142
        %v1313 = vunpack.c.h.b16 %v1142
        %v1314 = vunpack.c.l.b16 %v1143
        %v1315 = vunpack.c.h.b16 %v1143
        %v1316 = vunpack.c.l.b16 %v1144
        %v1317 = vunpack.c.h.b16 %v1144
        %v1318 = vunpack.c.l.b16 %v1145
        %v1319 = vunpack.c.h.b16 %v1145
        %v1320 = vunpack.c.l.b16 %v1146
        %v1321 = vunpack.c.h.b16 %v1146
        %v1322 = vunpack.c.l.b16 %v1147
        %v1323 = vunpack.c.h.b16 %v1147
        %v1324 = vunpack.c.l.b16 %v1148
        %v1325 = vunpack.c.h.b16 %v1148
        %v1326 = vunpack.c.l.b16 %v1149
        %v1327 = vunpack.c.h.b16 %v1149
        %v1328 = vunpack.c.l.b16 %v1150
        %v1329 = vunpack.c.h.b16 %v1150
        %v1330 = vunpack.c.l.b16 %v1151
        %v1331 = vunpack.c.h.b16 %v1151
        %v1332 = vunpack.c.l.b16 %v1152
        %v1333 = vunpack.c.h.b16 %v1152
        %v1334 = vunpack.c.l.b16 %v1153
        %v1335 = vunpack.c.h.b16 %v1153
        %v1336 = vunpack.c.l.b16 %v1154
        %v1337 = vunpack.c.h.b16 %v1154
        %v1338 = vunpack.c.l.b16 %v1155
        %v1339 = vunpack.c.h.b16 %v1155
        %v1340 = vunpack.c.l.b16 %v1156
        %v1341 = vunpack.c.h.b16 %v1156
        %v1342 = vunpack.c.l.b16 %v1157
        %v1343 = vunpack.c.h.b16 %v1157
        %v1344 = vunpack.c.l.b16 %v1158
        %v1345 = vunpack.c.h.b16 %v1158
        %v1346 = vunpack.c.l.b16 %v1159
        %v1347 = vunpack.c.h.b16 %v1159
        %v1348 = vunpack.c.l.b16 %v1160
        %v1349 = vunpack.c.h.b16 %v1160
        %v1350 = vunpack.c.l.b16 %v1161
        %v1351 = vunpack.c.h.b16 %v1161
        %v1352 = vunpack.c.l.b16 %v1162
        %v1353 = vunpack.c.h.b16 %v1162
        %v1354 = vunpack.c.l.b16 %v1163
        %v1355 = vunpack.c.h.b16 %v1163
        %v1356 = vunpack.c.l.b16 %v1164
        %v1357 = vunpack.c.h.b16 %v1164
        %v1358 = vunpack.c.l.b16 %v1165
        %v1359 = vunpack.c.h.b16 %v1165
        %v1360 = vunpack.c.l.b16 %v1166
        %v1361 = vunpack.c.h.b16 %v1166
        %v1362 = vunpack.c.l.b16 %v1167
        %v1363 = vunpack.c.h.b16 %v1167
        %v1364 = vunpack.c.l.b16 %v1168
        %v1365 = vunpack.c.h.b16 %v1168
        %v1366 = vunpack.c.l.b16 %v1169
        %v1367 = vunpack.c.h.b16 %v1169
        %v1368 = vunpack.c.l.b16 %v1170
        %v1369 = vunpack.c.h.b16 %v1170
        %v1370 = vunpack.c.l.b16 %v1171
        %v1371 = vunpack.c.h.b16 %v1171
        %v1372 = vunpack.c.l.b16 %v1172
        %v1373 = vunpack.c.h.b16 %v1172
        %v1374 = vunpack.c.l.b16 %v1173
        %v1375 = vunpack.c.h.b16 %v1173
        %v1376 = vunpack.c.l.b16 %v1174
        %v1377 = vunpack.c.h.b16 %v1174
        %v1378 = vunpack.c.l.b16 %v1175
        %v1379 = vunpack.c.h.b16 %v1175
        %v1380 = vunpack.c.l.b16 %v1176
        %v1381 = vunpack.c.h.b16 %v1176
        %v1382 = vunpack.c.l.b16 %v1177
        %v1383 = vunpack.c.h.b16 %v1177
        %v1384 = vunpack.c.l.b16 %v1178
        %v1385 = vunpack.c.h.b16 %v1178
        %v1386 = vunpack.c.l.b16 %v1179
        %v1387 = vunpack.c.h.b16 %v1179
        %v1388 = vunpack.c.l.b16 %v1180
        %v1389 = vunpack.c.h.b16 %v1180
        %v1390 = vunpack.c.l.b16 %v1181
        %v1391 = vunpack.c.h.b16 %v1181
        %v1392 = vpack.c.b16 %v1272, %v1264
        %v1393 = vpack.c.b16 %v1273, %v1265
        %v1394 = vpack.c.b16 %v1274, %v1266
        %v1395 = vpack.c.b16 %v1275, %v1267
        %v1396 = vpack.c.b16 %v1276, %v1268
        %v1397 = vpack.c.b16 %v1277, %v1269
        %v1398 = vpack.c.b16 %v1278, %v1270
        %v1399 = vpack.c.b16 %v1279, %v1271
        %v1400 = vpack.c.b16 %v1288, %v1280
        %v1401 = vpack.c.b16 %v1289, %v1281
        %v1402 = vpack.c.b16 %v1290, %v1282
        %v1403 = vpack.c.b16 %v1291, %v1283
        %v1404 = vpack.c.b16 %v1292, %v1284
        %v1405 = vpack.c.b16 %v1293, %v1285
        %v1406 = vpack.c.b16 %v1294, %v1286
        %v1407 = vpack.c.b16 %v1295, %v1287
        %v1408 = vpack.c.b16 %v1304, %v1296
        %v1409 = vpack.c.b16 %v1305, %v1297
        %v1410 = vpack.c.b16 %v1306, %v1298
        %v1411 = vpack.c.b16 %v1307, %v1299
        %v1412 = vpack.c.b16 %v1308, %v1300
        %v1413 = vpack.c.b16 %v1309, %v1301
        %v1414 = vpack.c.b16 %v1310, %v1302
        %v1415 = vpack.c.b16 %v1311, %v1303
        %v1416 = vpack.c.b16 %v1320, %v1312
        %v1417 = vpack.c.b16 %v1321, %v1313
        %v1418 = vpack.c.b16 %v1322, %v1314
        %v1419 = vpack.c.b16 %v1323, %v1315
        %v1420 = vpack.c.b16 %v1324, %v1316
        %v1421 = vpack.c.b16 %v1325, %v1317
        %v1422 = vpack.c.b16 %v1326, %v1318
        %v1423 = vpack.c.b16 %v1327, %v1319
        %v1424 = vpack.c.b16 %v1336, %v1328
        %v1425 = vpack.c.b16 %v1337, %v1329
        %v1426 = vpack.c.b16 %v1338, %v1330
        %v1427 = vpack.c.b16 %v1339, %v1331
        %v1428 = vpack.c.b16 %v1340, %v1332
        %v1429 = vpack.c.b16 %v1341, %v1333
        %v1430 = vpack.c.b16 %v1342, %v1334
        %v1431 = vpack.c.b16 %v1343, %v1335
        %v1432 = vpack.c.b16 %v1352, %v1344
        %v1433 = vpack.c.b16 %v1353, %v1345
        %v1434 = vpack.c.b16 %v1354, %v1346
        %v1435 = vpack.c.b16 %v1355, %v1347
        %v1436 = vpack.c.b16 %v1356, %v1348
        %v1437 = vpack.c.b16 %v1357, %v1349
        %v1438 = vpack.c.b16 %v1358, %v1350
        %v1439 = vpack.c.b16 %v1359, %v1351
        %v1440 = vpack.c.b16 %v1368, %v1360
        %v1441 = vpack.c.b16 %v1369, %v1361
        %v1442 = vpack.c.b16 %v1370, %v1362
        %v1443 = vpack.c.b16 %v1371, %v1363
        %v1444 = vpack.c.b16 %v1372, %v1364
        %v1445 = vpack.c.b16 %v1373, %v1365
        %v1446 = vpack.c.b16 %v1374, %v1366
        %v1447 = vpack.c.b16 %v1375, %v1367
        %v1448 = vpack.c.b16 %v1384, %v1376
        %v1449 = vpack.c.b16 %v1385, %v1377
        %v1450 = vpack.c.b16 %v1386, %v1378
        %v1451 = vpack.c.b16 %v1387, %v1379
        %v1452 = vpack.c.b16 %v1388, %v1380
        %v1453 = vpack.c.b16 %v1389, %v1381
        %v1454 = vpack.c.b16 %v1390, %v1382
        %v1455 = vpack.c.b16 %v1391, %v1383
        %1520 = vmatprep.subr.bf16.mxu0 %v1449
        %1521 = vmatpush1.bf16.msra.mxu0 %v1448
        %1522 = vmatprep.subr.bf16.mxu0 %v1441
        %1523 = vmatpush1.bf16.msra.mxu0 %v1440
        %1524 = vmatprep.subr.bf16.mxu0 %v1433
        %1525 = vmatpush1.bf16.msra.mxu0 %v1432
        %1526 = vmatprep.subr.bf16.mxu0 %v1425
        %1527 = vmatpush1.bf16.msra.mxu0 %v1424
        %1528 = vmatprep.subr.bf16.mxu0 %v1417
        %1529 = vmatpush1.bf16.msra.mxu0 %v1416
        %1530 = vmatprep.subr.bf16.mxu0 %v1409
        %1531 = vmatpush1.bf16.msra.mxu0 %v1408
        %1532 = vmatprep.subr.bf16.mxu0 %v1401
        %1533 = vmatpush1.bf16.msra.mxu0 %v1400
        %1534 = vmatprep.subr.bf16.mxu0 %v1393
        %1535 = vmatpush1.bf16.msra.mxu0 %v1392
        %1536 = vmatprep.subr.bf16.mxu0 0
        %1537 = vmatpush2.bf16.msra.mxu0 0
        %1538 = vmatprep.subr.bf16.mxu0 0
        %1539 = vmatpush2.bf16.msra.mxu0 0
        %1540 = vmatprep.subr.bf16.mxu0 0
        %1541 = vmatpush2.bf16.msra.mxu0 0
        %1542 = vmatprep.subr.bf16.mxu0 0
        %1543 = vmatpush2.bf16.msra.mxu0 0
        %1544 = vmatprep.subr.bf16.mxu0 0
        %1545 = vmatpush2.bf16.msra.mxu0 0
        %1546 = vmatprep.subr.bf16.mxu0 0
        %1547 = vmatpush2.bf16.msra.mxu0 0
        %1548 = vmatprep.subr.bf16.mxu0 0
        %1549 = vmatpush2.bf16.msra.mxu0 0
        %1550 = vmatprep.subr.bf16.mxu0 0
        %1551 = vmatpush2.bf16.msra.mxu0 0
        %1552 = vmatprep.mubr.bf16.mxu0 0
        %1553 = vmatmul.mubr.bf16.gmra.mxu0 %v1198
        %v1554 = vpop.f32.mrf.mxu0
        %v1555 = vadd.f32 %v1187, %v1554
        %v1556 = vpop.f32.mrf.mxu0
        %v1557 = vadd.f32 %v1187, %v1556
        %v1558 = vpop.f32.mrf.mxu0
        %v1559 = vadd.f32 %v1192, %v1558
        %v1560 = vpop.f32.mrf.mxu0
        %v1561 = vadd.f32 %v1192, %v1560
        %1562 = vdwg.mxu0
        %1563 = vmatprep.subr.bf16.mxu0 %v1451
        %1564 = vmatpush1.bf16.msra.mxu0 %v1450
        %1565 = vmatprep.subr.bf16.mxu0 %v1443
        %1566 = vmatpush1.bf16.msra.mxu0 %v1442
        %1567 = vmatprep.subr.bf16.mxu0 %v1435
        %1568 = vmatpush1.bf16.msra.mxu0 %v1434
        %1569 = vmatprep.subr.bf16.mxu0 %v1427
        %1570 = vmatpush1.bf16.msra.mxu0 %v1426
        %1571 = vmatprep.subr.bf16.mxu0 %v1419
        %1572 = vmatpush1.bf16.msra.mxu0 %v1418
        %1573 = vmatprep.subr.bf16.mxu0 %v1411
        %1574 = vmatpush1.bf16.msra.mxu0 %v1410
        %1575 = vmatprep.subr.bf16.mxu0 %v1403
        %1576 = vmatpush1.bf16.msra.mxu0 %v1402
        %1577 = vmatprep.subr.bf16.mxu0 %v1395
        %1578 = vmatpush1.bf16.msra.mxu0 %v1394
        %1579 = vmatprep.subr.bf16.mxu0 0
        %1580 = vmatpush2.bf16.msra.mxu0 0
        %1581 = vmatprep.subr.bf16.mxu0 0
        %1582 = vmatpush2.bf16.msra.mxu0 0
        %1583 = vmatprep.subr.bf16.mxu0 0
        %1584 = vmatpush2.bf16.msra.mxu0 0
        %1585 = vmatprep.subr.bf16.mxu0 0
        %1586 = vmatpush2.bf16.msra.mxu0 0
        %1587 = vmatprep.subr.bf16.mxu0 0
        %1588 = vmatpush2.bf16.msra.mxu0 0
        %1589 = vmatprep.subr.bf16.mxu0 0
        %1590 = vmatpush2.bf16.msra.mxu0 0
        %1591 = vmatprep.subr.bf16.mxu0 0
        %1592 = vmatpush2.bf16.msra.mxu0 0
        %1593 = vmatprep.subr.bf16.mxu0 0
        %1594 = vmatpush2.bf16.msra.mxu0 0
        %1595 = vmatprep.mubr.bf16.mxu0 0
        %1596 = vmatmul.mubr.bf16.gmra.mxu0 %v1198
        %v1597 = vpop.f32.mrf.mxu0
        %v1598 = vadd.f32 %v1187, %v1597
        %v1599 = vpop.f32.mrf.mxu0
        %v1600 = vadd.f32 %v1187, %v1599
        %v1601 = vpop.f32.mrf.mxu0
        %v1602 = vadd.f32 %v1192, %v1601
        %v1603 = vpop.f32.mrf.mxu0
        %v1604 = vadd.f32 %v1192, %v1603
        %1605 = vdwg.mxu0
        %1606 = vmatprep.subr.bf16.mxu0 %v1453
        %1607 = vmatpush1.bf16.msra.mxu0 %v1452
        %1608 = vmatprep.subr.bf16.mxu0 %v1445
        %1609 = vmatpush1.bf16.msra.mxu0 %v1444
        %1610 = vmatprep.subr.bf16.mxu0 %v1437
        %1611 = vmatpush1.bf16.msra.mxu0 %v1436
        %1612 = vmatprep.subr.bf16.mxu0 %v1429
        %1613 = vmatpush1.bf16.msra.mxu0 %v1428
        %1614 = vmatprep.subr.bf16.mxu0 %v1421
        %1615 = vmatpush1.bf16.msra.mxu0 %v1420
        %1616 = vmatprep.subr.bf16.mxu0 %v1413
        %1617 = vmatpush1.bf16.msra.mxu0 %v1412
        %1618 = vmatprep.subr.bf16.mxu0 %v1405
        %1619 = vmatpush1.bf16.msra.mxu0 %v1404
        %1620 = vmatprep.subr.bf16.mxu0 %v1397
        %1621 = vmatpush1.bf16.msra.mxu0 %v1396
        %1622 = vmatprep.subr.bf16.mxu0 0
        %1623 = vmatpush2.bf16.msra.mxu0 0
        %1624 = vmatprep.subr.bf16.mxu0 0
        %1625 = vmatpush2.bf16.msra.mxu0 0
        %1626 = vmatprep.subr.bf16.mxu0 0
        %1627 = vmatpush2.bf16.msra.mxu0 0
        %1628 = vmatprep.subr.bf16.mxu0 0
        %1629 = vmatpush2.bf16.msra.mxu0 0
        %1630 = vmatprep.subr.bf16.mxu0 0
        %1631 = vmatpush2.bf16.msra.mxu0 0
        %1632 = vmatprep.subr.bf16.mxu0 0
        %1633 = vmatpush2.bf16.msra.mxu0 0
        %1634 = vmatprep.subr.bf16.mxu0 0
        %1635 = vmatpush2.bf16.msra.mxu0 0
        %1636 = vmatprep.subr.bf16.mxu0 0
        %1637 = vmatpush2.bf16.msra.mxu0 0
        %1638 = vmatprep.mubr.bf16.mxu0 0
        %1639 = vmatmul.mubr.bf16.gmra.mxu0 %v1198
        %v1640 = vpop.f32.mrf.mxu0
        %v1641 = vadd.f32 %v1187, %v1640
        %v1642 = vpop.f32.mrf.mxu0
        %v1643 = vadd.f32 %v1187, %v1642
        %v1644 = vpop.f32.mrf.mxu0
        %v1645 = vadd.f32 %v1192, %v1644
        %v1646 = vpop.f32.mrf.mxu0
        %v1647 = vadd.f32 %v1192, %v1646
        %1648 = vdwg.mxu0
        %1649 = vmatprep.subr.bf16.mxu0 %v1455
        %1650 = vmatpush1.bf16.msra.mxu0 %v1454
        %1651 = vmatprep.subr.bf16.mxu0 %v1447
        %1652 = vmatpush1.bf16.msra.mxu0 %v1446
        %1653 = vmatprep.subr.bf16.mxu0 %v1439
        %1654 = vmatpush1.bf16.msra.mxu0 %v1438
        %1655 = vmatprep.subr.bf16.mxu0 %v1431
        %1656 = vmatpush1.bf16.msra.mxu0 %v1430
        %1657 = vmatprep.subr.bf16.mxu0 %v1423
        %1658 = vmatpush1.bf16.msra.mxu0 %v1422
        %1659 = vmatprep.subr.bf16.mxu0 %v1415
        %1660 = vmatpush1.bf16.msra.mxu0 %v1414
        %1661 = vmatprep.subr.bf16.mxu0 %v1407
        %1662 = vmatpush1.bf16.msra.mxu0 %v1406
        %1663 = vmatprep.subr.bf16.mxu0 %v1399
        %1664 = vmatpush1.bf16.msra.mxu0 %v1398
        %1665 = vmatprep.subr.bf16.mxu0 0
        %1666 = vmatpush2.bf16.msra.mxu0 0
        %1667 = vmatprep.subr.bf16.mxu0 0
        %1668 = vmatpush2.bf16.msra.mxu0 0
        %1669 = vmatprep.subr.bf16.mxu0 0
        %1670 = vmatpush2.bf16.msra.mxu0 0
        %1671 = vmatprep.subr.bf16.mxu0 0
        %1672 = vmatpush2.bf16.msra.mxu0 0
        %1673 = vmatprep.subr.bf16.mxu0 0
        %1674 = vmatpush2.bf16.msra.mxu0 0
        %1675 = vmatprep.subr.bf16.mxu0 0
        %1676 = vmatpush2.bf16.msra.mxu0 0
        %1677 = vmatprep.subr.bf16.mxu0 0
        %1678 = vmatpush2.bf16.msra.mxu0 0
        %1679 = vmatprep.subr.bf16.mxu0 0
        %1680 = vmatpush2.bf16.msra.mxu0 0
        %1681 = vmatprep.mubr.bf16.mxu0 0
        %1682 = vmatmul.mubr.bf16.gmra.mxu0 %v1198
        %v1683 = vpop.f32.mrf.mxu0
        %v1684 = vadd.f32 %v1187, %v1683
        %v1685 = vpop.f32.mrf.mxu0
        %v1686 = vadd.f32 %v1187, %v1685
        %v1687 = vpop.f32.mrf.mxu0
        %v1688 = vadd.f32 %v1192, %v1687
        %v1689 = vpop.f32.mrf.mxu0
        %v1690 = vadd.f32 %v1192, %v1689
        %1691 = vdwg.mxu0
        %s1692 = sld [smem:[#allocation3]]
        %vm1693 = vcmp.ge.f32.partialorder %v1555, 0.0
        %vm1694 = vcmp.ge.f32.partialorder %v1557, 0.0
        %vm1695 = vcmp.ge.f32.partialorder %v1598, 0.0
        %vm1696 = vcmp.ge.f32.partialorder %v1600, 0.0
        %vm1697 = vcmp.ge.f32.partialorder %v1641, 0.0
        %vm1698 = vcmp.ge.f32.partialorder %v1643, 0.0
        %vm1699 = vcmp.ge.f32.partialorder %v1684, 0.0
        %vm1700 = vcmp.ge.f32.partialorder %v1686, 0.0
        %vm1701 = vcmp.ge.f32.partialorder %v1559, 0.0
        %vm1702 = vcmp.ge.f32.partialorder %v1561, 0.0
        %vm1703 = vcmp.ge.f32.partialorder %v1602, 0.0
        %vm1704 = vcmp.ge.f32.partialorder %v1604, 0.0
        %vm1705 = vcmp.ge.f32.partialorder %v1645, 0.0
        %vm1706 = vcmp.ge.f32.partialorder %v1647, 0.0
        %vm1707 = vcmp.ge.f32.partialorder %v1688, 0.0
        %vm1708 = vcmp.ge.f32.partialorder %v1690, 0.0
        %v1709 = vstv %s1692
        %v1710 = vmul.f32 %v1709, %v1555
        %v1711 = vmul.f32 %v1709, %v1557
        %v1712 = vmul.f32 %v1709, %v1598
        %v1713 = vmul.f32 %v1709, %v1600
        %v1714 = vmul.f32 %v1709, %v1641
        %v1715 = vmul.f32 %v1709, %v1643
        %v1716 = vmul.f32 %v1709, %v1684
        %v1717 = vmul.f32 %v1709, %v1686
        %v1718 = vmul.f32 %v1709, %v1559
        %v1719 = vmul.f32 %v1709, %v1561
        %v1720 = vmul.f32 %v1709, %v1602
        %v1721 = vmul.f32 %v1709, %v1604
        %v1722 = vmul.f32 %v1709, %v1645
        %v1723 = vmul.f32 %v1709, %v1647
        %v1724 = vmul.f32 %v1709, %v1688
        %v1725 = vmul.f32 %v1709, %v1690
        %v1726 = vsel %vm1693, %v1555, %v1710
        %v1727 = vsel %vm1694, %v1557, %v1711
        %v1728 = vsel %vm1695, %v1598, %v1712
        %v1729 = vsel %vm1696, %v1600, %v1713
        %v1730 = vsel %vm1697, %v1641, %v1714
        %v1731 = vsel %vm1698, %v1643, %v1715
        %v1732 = vsel %vm1699, %v1684, %v1716
        %v1733 = vsel %vm1700, %v1686, %v1717
        %v1734 = vsel %vm1701, %v1559, %v1718
        %v1735 = vsel %vm1702, %v1561, %v1719
        %v1736 = vsel %vm1703, %v1602, %v1720
        %v1737 = vsel %vm1704, %v1604, %v1721
        %v1738 = vsel %vm1705, %v1645, %v1722
        %v1739 = vsel %vm1706, %v1647, %v1723
        %v1740 = vsel %vm1707, %v1688, %v1724
        %v1741 = vsel %vm1708, %v1690, %v1725
        %v1742 = vld [vmem:[%s492] sm:$0xff]
        %vm1743 = vcmp.gt.f32.partialorder %v1742, 0.0
        %v1744 = vsel %vm1743, 1, 0
        %v1745 = vlaneseq
        %v1746 = vshrl.u32 %v1745, 7
        %v1747 = vsub.s32 0, %v1746
        %v1748 = vrot.slane %v1744, %v1747
        %v1749 = vlaneseq
        %v1750 = vshrl.u32 %v1749, 7
        %v1751 = vsub.s32 1, %v1750
        %v1752 = vrot.slane %v1744, %v1751
        %v1753 = vlaneseq
        %v1754 = vshrl.u32 %v1753, 7
        %v1755 = vsub.s32 2, %v1754
        %v1756 = vrot.slane %v1744, %v1755
        %v1757 = vlaneseq
        %v1758 = vshrl.u32 %v1757, 7
        %v1759 = vsub.s32 3, %v1758
        %v1760 = vrot.slane %v1744, %v1759
        %v1761 = vlaneseq
        %v1762 = vshrl.u32 %v1761, 7
        %v1763 = vsub.s32 4, %v1762
        %v1764 = vrot.slane %v1744, %v1763
        %v1765 = vlaneseq
        %v1766 = vshrl.u32 %v1765, 7
        %v1767 = vsub.s32 5, %v1766
        %v1768 = vrot.slane %v1744, %v1767
        %v1769 = vlaneseq
        %v1770 = vshrl.u32 %v1769, 7
        %v1771 = vsub.s32 6, %v1770
        %v1772 = vrot.slane %v1744, %v1771
        %v1773 = vlaneseq
        %v1774 = vshrl.u32 %v1773, 7
        %v1775 = vsub.s32 7, %v1774
        %v1776 = vrot.slane %v1744, %v1775
        %vm1777 = vcmp.eq.s32.totalorder %v1748, 1
        %vm1778 = vcmp.eq.s32.totalorder %v1752, 1
        %vm1779 = vcmp.eq.s32.totalorder %v1756, 1
        %vm1780 = vcmp.eq.s32.totalorder %v1760, 1
        %vm1781 = vcmp.eq.s32.totalorder %v1764, 1
        %vm1782 = vcmp.eq.s32.totalorder %v1768, 1
        %vm1783 = vcmp.eq.s32.totalorder %v1772, 1
        %vm1784 = vcmp.eq.s32.totalorder %v1776, 1
        %v1785 = vsel %vm1777, %v1726, 0.0
        %v1786 = vsel %vm1778, %v1727, 0.0
        %v1787 = vsel %vm1779, %v1728, 0.0
        %v1788 = vsel %vm1780, %v1729, 0.0
        %v1789 = vsel %vm1781, %v1730, 0.0
        %v1790 = vsel %vm1782, %v1731, 0.0
        %v1791 = vsel %vm1783, %v1732, 0.0
        %v1792 = vsel %vm1784, %v1733, 0.0
        %v1793 = vsel %vm1777, %v1734, 0.0
        %v1794 = vsel %vm1778, %v1735, 0.0
        %v1795 = vsel %vm1779, %v1736, 0.0
        %v1796 = vsel %vm1780, %v1737, 0.0
        %v1797 = vsel %vm1781, %v1738, 0.0
        %v1798 = vsel %vm1782, %v1739, 0.0
        %v1799 = vsel %vm1783, %v1740, 0.0
        %v1800 = vsel %vm1784, %v1741, 0.0
        %1801 = vst [vmem:[%s479] sm:$0xff] %v1785
        %1802 = vst [vmem:[%s479 + $0x8] sm:$0xff] %v1786
        %1803 = vst [vmem:[%s479 + $0x10] sm:$0xff] %v1787
        %1804 = vst [vmem:[%s479 + $0x18] sm:$0xff] %v1788
        %1805 = vst [vmem:[%s479 + $0x20] sm:$0xff] %v1789
        %1806 = vst [vmem:[%s479 + $0x28] sm:$0xff] %v1790
        %1807 = vst [vmem:[%s479 + $0x30] sm:$0xff] %v1791
        %1808 = vst [vmem:[%s479 + $0x38] sm:$0xff] %v1792
        %1809 = vst [vmem:[%s479 + $0x40] sm:$0xff] %v1793
        %1810 = vst [vmem:[%s479 + $0x48] sm:$0xff] %v1794
        %1811 = vst [vmem:[%s479 + $0x50] sm:$0xff] %v1795
        %1812 = vst [vmem:[%s479 + $0x58] sm:$0xff] %v1796
        %1813 = vst [vmem:[%s479 + $0x60] sm:$0xff] %v1797
        %1814 = vst [vmem:[%s479 + $0x68] sm:$0xff] %v1798
        %1815 = vst [vmem:[%s479 + $0x70] sm:$0xff] %v1799
        %1816 = vst [vmem:[%s479 + $0x78] sm:$0xff] %v1800
        %s1817 = sand.u32 %s210, 1
        %s1818 = sand.u32 %s210, 1
        %s1819 = smul.addr %s1818, 128
        %s1820 = scalar_lea.vmem [#allocation7], %s1819
        // Predicated region
        $region154: #{encoder_block_forward.7} parent=140 // pred_check
          %p1821 = pneg %p220
        $region155: #{encoder_block_forward.7} parent=140 // pred_check_branch
          %1823 = sbr.rel (%p1821) target = $region157
        $region156: #{encoder_block_forward.7} parent=140 // pred_region
          %s1824 = smul.u32 8, %s19
          %s1825 = smul.addr %s1824, 8
          %s1826 = scalar_lea.vmem %s7, %s1825
          // Predicated region
          $region158: #{encoder_block_forward.7} parent=156 // pred_check
            _
          $region159: #{encoder_block_forward.7} parent=156 // pred_check_branch
            %1828 = sbr.rel (0) target = $region161
          $region160: #{encoder_block_forward.7} parent=156 // pred_region
            // Predicated region
            $region162: #{encoder_block_forward.7} parent=160 // pred_check
              _
            $region163: #{encoder_block_forward.7} parent=160 // pred_check_branch
              %1830 = sbr.rel (0) target = $region165
            $region164: #{encoder_block_forward.7} parent=160 // pred_region
              loop: start=0, step=1, limit=1
              $region166: #{encoder_block_forward.7} parent=164 // loop_pre_header
                _
              $region167: #{encoder_block_forward.7} parent=164 // loop_header
                %s1832 = sphi 0, %s1836
                %p1833 = scmp.ge.s32.totalorder %s1832, 1
                %s1837 = sphi %s1820, %s1820
                %s1838 = sphi %s1826, %s1826
              $region168: #{encoder_block_forward.7} parent=164 // loop_header_branch
                %1835 = sbr.rel (%p1833) target = $region172
              $region169: #{encoder_block_forward.7} parent=164 // loop_body
                %v1839 = vld [vmem:[%s1837] sm:$0xff]
                %1840 = vst [vmem:[%s1838] sm:$0xff] %v1839
                %v1841 = vld [vmem:[%s1837 + $0x8] sm:$0xff]
                %1842 = vst [vmem:[%s1838 + $0x8] sm:$0xff] %v1841
                %v1843 = vld [vmem:[%s1837 + $0x10] sm:$0xff]
                %1844 = vst [vmem:[%s1838 + $0x10] sm:$0xff] %v1843
                %v1845 = vld [vmem:[%s1837 + $0x18] sm:$0xff]
                %1846 = vst [vmem:[%s1838 + $0x18] sm:$0xff] %v1845
                %v1847 = vld [vmem:[%s1837 + $0x20] sm:$0xff]
                %1848 = vst [vmem:[%s1838 + $0x20] sm:$0xff] %v1847
                %v1849 = vld [vmem:[%s1837 + $0x28] sm:$0xff]
                %1850 = vst [vmem:[%s1838 + $0x28] sm:$0xff] %v1849
                %v1851 = vld [vmem:[%s1837 + $0x30] sm:$0xff]
                %1852 = vst [vmem:[%s1838 + $0x30] sm:$0xff] %v1851
                %v1853 = vld [vmem:[%s1837 + $0x38] sm:$0xff]
                %1854 = vst [vmem:[%s1838 + $0x38] sm:$0xff] %v1853
                %v1855 = vld [vmem:[%s1837 + $0x40] sm:$0xff]
                %1856 = vst [vmem:[%s1838 + $0x80] sm:$0xff] %v1855
                %v1857 = vld [vmem:[%s1837 + $0x48] sm:$0xff]
                %1858 = vst [vmem:[%s1838 + $0x88] sm:$0xff] %v1857
                %v1859 = vld [vmem:[%s1837 + $0x50] sm:$0xff]
                %1860 = vst [vmem:[%s1838 + $0x90] sm:$0xff] %v1859
                %v1861 = vld [vmem:[%s1837 + $0x58] sm:$0xff]
                %1862 = vst [vmem:[%s1838 + $0x98] sm:$0xff] %v1861
                %v1863 = vld [vmem:[%s1837 + $0x60] sm:$0xff]
                %1864 = vst [vmem:[%s1838 + $0xa0] sm:$0xff] %v1863
                %v1865 = vld [vmem:[%s1837 + $0x68] sm:$0xff]
                %1866 = vst [vmem:[%s1838 + $0xa8] sm:$0xff] %v1865
                %v1867 = vld [vmem:[%s1837 + $0x70] sm:$0xff]
                %1868 = vst [vmem:[%s1838 + $0xb0] sm:$0xff] %v1867
                %v1869 = vld [vmem:[%s1837 + $0x78] sm:$0xff]
                %1870 = vst [vmem:[%s1838 + $0xb8] sm:$0xff] %v1869
              $region170: #{encoder_block_forward.7} parent=164 // loop_footer
                %s1836 = sadd.s32 1, %s1832
              $region171: #{encoder_block_forward.7} parent=164 // loop_footer_branch
                %1831 = sbr.rel target = $region167
              $region172: #{encoder_block_forward.7} parent=164 // loop_exit
                _
            $region165: #{encoder_block_forward.7} parent=160 // pred_fallthru
              _
            // Predicated region
            $region173: #{encoder_block_forward.7} parent=160 // pred_check
              _
            $region174: #{encoder_block_forward.7} parent=160 // pred_check_branch
              %1872 = sbr.rel target = $region176
            $region175: #{encoder_block_forward.7} parent=160 // pred_region
              _
            $region176: #{encoder_block_forward.7} parent=160 // pred_fallthru
              _
          $region161: #{encoder_block_forward.7} parent=156 // pred_fallthru
            _
          %1873 = vnop
        $region157: #{encoder_block_forward.7} parent=140 // pred_fallthru
          _
      $region141: #{encoder_block_forward.7} parent=5 // pred_fallthru
        _
      %p1874 = scmp.le.s32.totalorder 2, %s14
      // Predicated region
      $region177: #{encoder_block_forward.7} parent=5 // pred_check
        %p1875 = pneg %p1874
      $region178: #{encoder_block_forward.7} parent=5 // pred_check_branch
        %1877 = sbr.rel (%p1875) target = $region180
      $region179: #{encoder_block_forward.7} parent=5 // pred_region
        %s1878 = ssub.s32 %s14, 2
        // Predicated region
        $region181: #{encoder_block_forward.7} parent=179 // pred_check
          %p1879 = pneg %p226
        $region182: #{encoder_block_forward.7} parent=179 // pred_check_branch
          %1881 = sbr.rel (%p1879) target = $region184
        $region183: #{encoder_block_forward.7} parent=179 // pred_region
          %s1882 = sand.u32 %s211, 1
          %s1883 = sand.u32 %s211, 1
          %s1884 = smul.addr %s1883, 128
          %s1885 = scalar_lea.vmem [#allocation7], %s1884
        $region184: #{encoder_block_forward.7} parent=179 // pred_fallthru
          _
      $region180: #{encoder_block_forward.7} parent=5 // pred_fallthru
        _
    $region6: #{encoder_block_forward.7} parent=1 // loop_footer
      %s18 = sadd.s32 1, %s14
    $region7: #{encoder_block_forward.7} parent=1 // loop_footer_branch
      %13 = sbr.rel target = $region3
    $region8: #{encoder_block_forward.7} parent=1 // loop_exit
      _

// kernel: encoder_block_forward.4
$region0: #{encoder_block_forward.4}
  #allocation0 [shape = 'u32[]', space=smem, size = 0x4, offset = 0x4, fixed_abs, tag = 'smem constant byte address 0x4 - core index']
  #allocation1 [shape = 'u32[144,128]{1,0:T(1,128)}', space=vmem, size = 0x12000, scoped, tag = 'internal scratch']
  #allocation2 [shape = 'bf16[432,1024]{1,0:T(8,128)(2,1)}', space=vmem, size = 0xd8000, scoped, tag = 'scratch operand']
  #allocation3 [shape = 'f32[1]{0:T(128)S(6)}', space=smem, size = 0x200, scoped, tag = 'scoped memory for encoder_block_forward.4']
  %s0 = inlined_call_operand.vmem [shape: bf16[16,2048], index: 0, kind: input, shape index: {}, may-alias: {0,1,2}]
  %s1 = inlined_call_operand.vmem [shape: bf16[16,2048], index: 1, kind: input, shape index: {}, may-alias: {0,1,2}]
  %s2 = inlined_call_operand.vmem [shape: bf16[16,2048], index: 2, kind: input, shape index: {}, may-alias: {0,1,2}]
  %s3 = inlined_call_operand.vmem [shape: bf16[16,432], index: 3, kind: input, shape index: {}]
  %s4 = inlined_call_operand.vmem [shape: f32[16,1], index: 4, kind: input, shape index: {}]
  %s5 = inlined_call_operand.vmem [shape: f32[1,2048], index: 5, kind: input, shape index: {}]
  %s6 = inlined_call_operand.<no memory space> [shape: f32[1], index: 6, kind: input, shape index: {}]
  %s7 = inlined_call_operand.vmem [shape: bf16[16,2048], index: 7, kind: output, shape index: {}]
  %s8 = sld [smem:[#allocation0]]
  $region185: #{encoder_block_forward.4} parent=0
    _
  %s10 = ssub.s32 1, %s8
  %s11 = scalar_select 0, %s10, %s8
  %12 = sst [smem:[#allocation3]] %s6
  $region1: #{encoder_block_forward.4} parent=0
    #allocation4 [shape = 'u8[8192]{0}', space=vmem, size = 0x2000, scoped, tag = 'input window, operand 0']
    #allocation5 [shape = 'u8[65536]{0}', space=vmem, size = 0x10000, scoped, tag = 'input window, operand 1']
    #allocation6 [shape = 'u8[8192]{0}', space=vmem, size = 0x2000, scoped, tag = 'input window, operand 2']
    #allocation7 [shape = 'u8[65536]{0}', space=vmem, size = 0x10000, scoped, tag = 'output window, operand 0']
    loop: start=0, step=1, limit=4
    $region2: #{encoder_block_forward.4} parent=1 // loop_pre_header
      _
    $region3: #{encoder_block_forward.4} parent=1 // loop_header
      %s14 = sphi 0, %s18
      %p15 = scmp.ge.s32.totalorder %s14, 4
      %s32 = sphi 0, %s34
      %s35 = sphi 0, %s32
      %s36 = sphi 0, %s35
      %s52 = sphi 0, %s36
      %s58 = sphi 0, %s60
      %s61 = sphi 0, %s58
      %s62 = sphi 0, %s61
      %s78 = sphi 0, %s62
      %s92 = sphi 0, %s94
      %s95 = sphi 0, %s92
      %s96 = sphi 0, %s95
      %s112 = sphi 0, %s96
      %s116 = sphi 0, %s116
      %s118 = sphi 0, %s116
      %s119 = sphi 0, %s118
      %s133 = sphi 0, %s119
      %s137 = sphi 0, %s137
      %s139 = sphi 0, %s137
      %s140 = sphi 0, %s139
      %s154 = sphi 0, %s140
      %s160 = sphi 0, %s162
      %s163 = sphi 0, %s160
      %s164 = sphi 0, %s163
      %s180 = sphi 0, %s164
      %s184 = sphi 0, %s184
      %s186 = sphi 0, %s184
      %s187 = sphi 0, %s186
      %s201 = sphi 0, %s187
      %s207 = sphi 0, %s209
      %s210 = sphi 0, %s207
      %s211 = sphi 0, %s210
      %s227 = sphi 0, %s211
    $region4: #{encoder_block_forward.4} parent=1 // loop_header_branch
      %17 = sbr.rel (%p15) target = $region8
    $region5: #{encoder_block_forward.4} parent=1 // loop_body
      %s19 = ssub.s32 %s14, 1
      %s20 = ssub.s32 %s14, 2
      %s21 = sadd.s32 %s14, 1
      %s22 = smul.u32 %s14, 8
      %s23 = ssub.s32 %s22, 1
      %p24 = scmp.gt.s32.totalorder %s23, 0
      %s25 = scalar_select %p24, %s23, 0
      %s26 = smul.u32 %s21, 8
      %s27 = ssub.s32 %s26, 1
      %p28 = scmp.gt.s32.totalorder %s27, 0
      %s29 = scalar_select %p28, %s27, 0
      %s30 = ssub.s32 %s25, %s29
      %p31 = scmp.eq.s32.totalorder %s30, 0
      %s33 = sadd.s32 %s32, 1
      %s34 = scalar_select %p31, %s32, %s33
      %p37 = pneg %p31
      %p38 = scmp.eq.s32.totalorder %s14, 1
      %p39 = por %p37, %p38
      %p40 = scmp.ne.s32.totalorder %s32, %s35
      %p41 = scmp.eq.s32.totalorder %s14, 0
      %p42 = por %p40, %p41
      %p43 = scmp.ne.s32.totalorder %s32, %s35
      %p44 = scmp.eq.s32.totalorder %s19, 1
      %p45 = por %p43, %p44
      %p46 = scmp.ne.s32.totalorder %s35, %s36
      %p47 = scmp.eq.s32.totalorder %s19, 0
      %p48 = por %p46, %p47
      %p49 = scmp.ne.s32.totalorder %s35, %s36
      %p50 = scmp.eq.s32.totalorder %s20, 1
      %p51 = por %p49, %p50
      %p53 = scmp.ne.s32.totalorder %s36, %s52
      %p54 = scmp.eq.s32.totalorder %s20, 0
      %p55 = por %p53, %p54
      %s56 = ssub.s32 %s14, %s21
      %p57 = scmp.eq.s32.totalorder %s56, 0
      %s59 = sadd.s32 %s58, 1
      %s60 = scalar_select %p57, %s58, %s59
      %p63 = pneg %p57
      %p64 = scmp.eq.s32.totalorder %s14, 1
      %p65 = por %p63, %p64
      %p66 = scmp.ne.s32.totalorder %s58, %s61
      %p67 = scmp.eq.s32.totalorder %s14, 0
      %p68 = por %p66, %p67
      %p69 = scmp.ne.s32.totalorder %s58, %s61
      %p70 = scmp.eq.s32.totalorder %s19, 1
      %p71 = por %p69, %p70
      %p72 = scmp.ne.s32.totalorder %s61, %s62
      %p73 = scmp.eq.s32.totalorder %s19, 0
      %p74 = por %p72, %p73
      %p75 = scmp.ne.s32.totalorder %s61, %s62
      %p76 = scmp.eq.s32.totalorder %s20, 1
      %p77 = por %p75, %p76
      %p79 = scmp.ne.s32.totalorder %s62, %s78
      %p80 = scmp.eq.s32.totalorder %s20, 0
      %p81 = por %p79, %p80
      %s82 = sadd.s32 %s14, 1
      %s83 = smul.u32 %s82, 8
      %p84 = scmp.lt.s32.totalorder %s83, 15
      %s85 = scalar_select %p84, %s83, 15
      %s86 = sadd.s32 %s21, 1
      %s87 = smul.u32 %s86, 8
      %p88 = scmp.lt.s32.totalorder %s87, 15
      %s89 = scalar_select %p88, %s87, 15
      %s90 = ssub.s32 %s85, %s89
      %p91 = scmp.eq.s32.totalorder %s90, 0
      %s93 = sadd.s32 %s92, 1
      %s94 = scalar_select %p91, %s92, %s93
      %p97 = pneg %p91
      %p98 = scmp.eq.s32.totalorder %s14, 1
      %p99 = por %p97, %p98
      %p100 = scmp.ne.s32.totalorder %s92, %s95
      %p101 = scmp.eq.s32.totalorder %s14, 0
      %p102 = por %p100, %p101
      %p103 = scmp.ne.s32.totalorder %s92, %s95
      %p104 = scmp.eq.s32.totalorder %s19, 1
      %p105 = por %p103, %p104
      %p106 = scmp.ne.s32.totalorder %s95, %s96
      %p107 = scmp.eq.s32.totalorder %s19, 0
      %p108 = por %p106, %p107
      %p109 = scmp.ne.s32.totalorder %s95, %s96
      %p110 = scmp.eq.s32.totalorder %s20, 1
      %p111 = por %p109, %p110
      %p113 = scmp.ne.s32.totalorder %s96, %s112
      %p114 = scmp.eq.s32.totalorder %s20, 0
      %p115 = por %p113, %p114
      %s117 = sadd.s32 %s116, 1
      %p120 = scmp.eq.s32.totalorder %s14, 1
      %p121 = scmp.ne.s32.totalorder %s116, %s118
      %p122 = scmp.eq.s32.totalorder %s14, 0
      %p123 = por %p121, %p122
      %p124 = scmp.ne.s32.totalorder %s116, %s118
      %p125 = scmp.eq.s32.totalorder %s19, 1
      %p126 = por %p124, %p125
      %p127 = scmp.ne.s32.totalorder %s118, %s119
      %p128 = scmp.eq.s32.totalorder %s19, 0
      %p129 = por %p127, %p128
      %p130 = scmp.ne.s32.totalorder %s118, %s119
      %p131 = scmp.eq.s32.totalorder %s20, 1
      %p132 = por %p130, %p131
      %p134 = scmp.ne.s32.totalorder %s119, %s133
      %p135 = scmp.eq.s32.totalorder %s20, 0
      %p136 = por %p134, %p135
      %s138 = sadd.s32 %s137, 1
      %p141 = scmp.eq.s32.totalorder %s14, 1
      %p142 = scmp.ne.s32.totalorder %s137, %s139
      %p143 = scmp.eq.s32.totalorder %s14, 0
      %p144 = por %p142, %p143
      %p145 = scmp.ne.s32.totalorder %s137, %s139
      %p146 = scmp.eq.s32.totalorder %s19, 1
      %p147 = por %p145, %p146
      %p148 = scmp.ne.s32.totalorder %s139, %s140
      %p149 = scmp.eq.s32.totalorder %s19, 0
      %p150 = por %p148, %p149
      %p151 = scmp.ne.s32.totalorder %s139, %s140
      %p152 = scmp.eq.s32.totalorder %s20, 1
      %p153 = por %p151, %p152
      %p155 = scmp.ne.s32.totalorder %s140, %s154
      %p156 = scmp.eq.s32.totalorder %s20, 0
      %p157 = por %p155, %p156
      %s158 = ssub.s32 %s14, %s21
      %p159 = scmp.eq.s32.totalorder %s158, 0
      %s161 = sadd.s32 %s160, 1
      %s162 = scalar_select %p159, %s160, %s161
      %p165 = pneg %p159
      %p166 = scmp.eq.s32.totalorder %s14, 1
      %p167 = por %p165, %p166
      %p168 = scmp.ne.s32.totalorder %s160, %s163
      %p169 = scmp.eq.s32.totalorder %s14, 0
      %p170 = por %p168, %p169
      %p171 = scmp.ne.s32.totalorder %s160, %s163
      %p172 = scmp.eq.s32.totalorder %s19, 1
      %p173 = por %p171, %p172
      %p174 = scmp.ne.s32.totalorder %s163, %s164
      %p175 = scmp.eq.s32.totalorder %s19, 0
      %p176 = por %p174, %p175
      %p177 = scmp.ne.s32.totalorder %s163, %s164
      %p178 = scmp.eq.s32.totalorder %s20, 1
      %p179 = por %p177, %p178
      %p181 = scmp.ne.s32.totalorder %s164, %s180
      %p182 = scmp.eq.s32.totalorder %s20, 0
      %p183 = por %p181, %p182
      %s185 = sadd.s32 %s184, 1
      %p188 = scmp.eq.s32.totalorder %s14, 1
      %p189 = scmp.ne.s32.totalorder %s184, %s186
      %p190 = scmp.eq.s32.totalorder %s14, 0
      %p191 = por %p189, %p190
      %p192 = scmp.ne.s32.totalorder %s184, %s186
      %p193 = scmp.eq.s32.totalorder %s19, 1
      %p194 = por %p192, %p193
      %p195 = scmp.ne.s32.totalorder %s186, %s187
      %p196 = scmp.eq.s32.totalorder %s19, 0
      %p197 = por %p195, %p196
      %p198 = scmp.ne.s32.totalorder %s186, %s187
      %p199 = scmp.eq.s32.totalorder %s20, 1
      %p200 = por %p198, %p199
      %p202 = scmp.ne.s32.totalorder %s187, %s201
      %p203 = scmp.eq.s32.totalorder %s20, 0
      %p204 = por %p202, %p203
      %s205 = ssub.s32 %s14, %s21
      %p206 = scmp.eq.s32.totalorder %s205, 0
      %s208 = sadd.s32 %s207, 1
      %s209 = scalar_select %p206, %s207, %s208
      %p212 = pneg %p206
      %p213 = scmp.eq.s32.totalorder %s14, 1
      %p214 = por %p212, %p213
      %p215 = scmp.ne.s32.totalorder %s207, %s210
      %p216 = scmp.eq.s32.totalorder %s14, 0
      %p217 = por %p215, %p216
      %p218 = scmp.ne.s32.totalorder %s207, %s210
      %p219 = scmp.eq.s32.totalorder %s19, 1
      %p220 = por %p218, %p219
      %p221 = scmp.ne.s32.totalorder %s210, %s211
      %p222 = scmp.eq.s32.totalorder %s19, 0
      %p223 = por %p221, %p222
      %p224 = scmp.ne.s32.totalorder %s210, %s211
      %p225 = scmp.eq.s32.totalorder %s20, 1
      %p226 = por %p224, %p225
      %p228 = scmp.ne.s32.totalorder %s211, %s227
      %p229 = scmp.eq.s32.totalorder %s20, 0
      %p230 = por %p228, %p229
      %p231 = scmp.le.s32.totalorder 1, %s14
      %p232 = scmp.lt.s32.totalorder %s14, 3
      %p233 = pnand %p231, %p232
      %p234 = pneg %p233
      // Predicated region
      $region9: #{encoder_block_forward.4} parent=5 // pred_check
        _
      $region10: #{encoder_block_forward.4} parent=5 // pred_check_branch
        %236 = sbr.rel (%p233) target = $region12
      $region11: #{encoder_block_forward.4} parent=5 // pred_region
        %s237 = ssub.s32 %s14, 1
        // Predicated region
        $region13: #{encoder_block_forward.4} parent=11 // pred_check
          %p238 = pneg %p129
        $region14: #{encoder_block_forward.4} parent=11 // pred_check_branch
          %240 = sbr.rel (%p238) target = $region16
        $region15: #{encoder_block_forward.4} parent=11 // pred_region
          _
        $region16: #{encoder_block_forward.4} parent=11 // pred_fallthru
          _
        // Predicated region
        $region17: #{encoder_block_forward.4} parent=11 // pred_check
          %p241 = pneg %p150
        $region18: #{encoder_block_forward.4} parent=11 // pred_check_branch
          %243 = sbr.rel (%p241) target = $region20
        $region19: #{encoder_block_forward.4} parent=11 // pred_region
          _
        $region20: #{encoder_block_forward.4} parent=11 // pred_fallthru
          _
        // Predicated region
        $region21: #{encoder_block_forward.4} parent=11 // pred_check
          %p244 = pneg %p197
        $region22: #{encoder_block_forward.4} parent=11 // pred_check_branch
          %246 = sbr.rel (%p244) target = $region24
        $region23: #{encoder_block_forward.4} parent=11 // pred_region
          _
        $region24: #{encoder_block_forward.4} parent=11 // pred_fallthru
          _
      $region12: #{encoder_block_forward.4} parent=5 // pred_fallthru
        _
      %p247 = scmp.lt.s32.totalorder %s14, 2
      // Predicated region
      $region25: #{encoder_block_forward.4} parent=5 // pred_check
        %p248 = pneg %p247
      $region26: #{encoder_block_forward.4} parent=5 // pred_check_branch
        %250 = sbr.rel (%p248) target = $region28
      $region27: #{encoder_block_forward.4} parent=5 // pred_region
        // Predicated region
        $region29: #{encoder_block_forward.4} parent=27 // pred_check
          %p251 = pneg %p42
        $region30: #{encoder_block_forward.4} parent=27 // pred_check_branch
          %253 = sbr.rel (%p251) target = $region32
        $region31: #{encoder_block_forward.4} parent=27 // pred_region
          %s254 = sand.u32 %s32, 1
          %s255 = sand.u32 %s32, 1
          %s256 = smul.addr %s255, 8
          %s257 = scalar_lea.vmem [#allocation4], %s256
          %s258 = smul.u32 %s14, 8
          %s259 = ssub.s32 %s258, 1
          %p260 = scmp.gt.s32.totalorder %s259, 0
          %s261 = scalar_select %p260, %s259, 0
          %s262 = smul.addr %s261, 4
          %s263 = scalar_lea.vmem %s0, %s262
          // Predicated region
          $region33: #{encoder_block_forward.4} parent=31 // pred_check
            _
          $region34: #{encoder_block_forward.4} parent=31 // pred_check_branch
            %265 = sbr.rel (0) target = $region36
          $region35: #{encoder_block_forward.4} parent=31 // pred_region
            // Predicated region
            $region37: #{encoder_block_forward.4} parent=35 // pred_check
              _
            $region38: #{encoder_block_forward.4} parent=35 // pred_check_branch
              %267 = sbr.rel target = $region40
            $region39: #{encoder_block_forward.4} parent=35 // pred_region
              // Predicated region
              $region52: #{encoder_block_forward.4} parent=39 // pred_check
                _
              $region53: #{encoder_block_forward.4} parent=39 // pred_check_branch
                %285 = sbr.rel (0) target = $region55
              $region54: #{encoder_block_forward.4} parent=39 // pred_region
                loop: start=0, step=1, limit=1
                $region56: #{encoder_block_forward.4} parent=54 // loop_pre_header
                  _
                $region57: #{encoder_block_forward.4} parent=54 // loop_header
                  %s287 = sphi 0, %s291
                  %p288 = scmp.ge.s32.totalorder %s287, 1
                  %s292 = sphi %s263, %s263
                  %s293 = sphi %s257, %s257
                $region58: #{encoder_block_forward.4} parent=54 // loop_header_branch
                  %290 = sbr.rel (%p288) target = $region62
                $region59: #{encoder_block_forward.4} parent=54 // loop_body
                  _
                $region60: #{encoder_block_forward.4} parent=54 // loop_footer
                  %s291 = sadd.s32 1, %s287
                $region61: #{encoder_block_forward.4} parent=54 // loop_footer_branch
                  %286 = sbr.rel target = $region57
                $region62: #{encoder_block_forward.4} parent=54 // loop_exit
                  _
                %s295 = ssub.s32 16, 1
                loop: start=0, step=1, limit=1
                $region63: #{encoder_block_forward.4} parent=54 // loop_pre_header
                  _
                $region64: #{encoder_block_forward.4} parent=54 // loop_header
                  %s297 = sphi 0, %s301
                  %p298 = scmp.ge.s32.totalorder %s297, 1
                  %s302 = sphi %s263, %s263
                  %s303 = sphi %s257, %s257
                $region65: #{encoder_block_forward.4} parent=54 // loop_header_branch
                  %300 = sbr.rel (%p298) target = $region69
                $region66: #{encoder_block_forward.4} parent=54 // loop_body
                  %v304 = vld [vmem:[%s302] sm:%s295]
                  %305 = vst [vmem:[%s303] sm:%s295] %v304
                  %v306 = vld [vmem:[%s302 + $0x40] sm:%s295]
                  %307 = vst [vmem:[%s303 + $0x4] sm:%s295] %v306
                $region67: #{encoder_block_forward.4} parent=54 // loop_footer
                  %s301 = sadd.s32 1, %s297
                $region68: #{encoder_block_forward.4} parent=54 // loop_footer_branch
                  %296 = sbr.rel target = $region64
                $region69: #{encoder_block_forward.4} parent=54 // loop_exit
                  _
              $region55: #{encoder_block_forward.4} parent=39 // pred_fallthru
                _
            $region40: #{encoder_block_forward.4} parent=35 // pred_fallthru
              _
            // Predicated region
            $region41: #{encoder_block_forward.4} parent=35 // pred_check
              _
            $region42: #{encoder_block_forward.4} parent=35 // pred_check_branch
              %269 = sbr.rel (0) target = $region44
            $region43: #{encoder_block_forward.4} parent=35 // pred_region
              %s271 = ssub.s32 16, 1
              loop: start=0, step=1, limit=1
              $region45: #{encoder_block_forward.4} parent=43 // loop_pre_header
                _
              $region46: #{encoder_block_forward.4} parent=43 // loop_header
                %s273 = sphi 0, %s277
                %p274 = scmp.ge.s32.totalorder %s273, 1
                %s278 = sphi %s263, %s263
                %s279 = sphi %s257, %s257
              $region47: #{encoder_block_forward.4} parent=43 // loop_header_branch
                %276 = sbr.rel (%p274) target = $region51
              $region48: #{encoder_block_forward.4} parent=43 // loop_body
                %v280 = vld [vmem:[%s278] sm:%s271]
                %281 = vst [vmem:[%s279] sm:%s271] %v280
                %v282 = vld [vmem:[%s278 + $0x40] sm:%s271]
                %283 = vst [vmem:[%s279 + $0x4] sm:%s271] %v282
              $region49: #{encoder_block_forward.4} parent=43 // loop_footer
                %s277 = sadd.s32 1, %s273
              $region50: #{encoder_block_forward.4} parent=43 // loop_footer_branch
                %272 = sbr.rel target = $region46
              $region51: #{encoder_block_forward.4} parent=43 // loop_exit
                _
            $region44: #{encoder_block_forward.4} parent=35 // pred_fallthru
              _
          $region36: #{encoder_block_forward.4} parent=31 // pred_fallthru
            _
          %308 = vnop
        $region32: #{encoder_block_forward.4} parent=27 // pred_fallthru
          _
        // Predicated region
        $region70: #{encoder_block_forward.4} parent=27 // pred_check
          %p309 = pneg %p68
        $region71: #{encoder_block_forward.4} parent=27 // pred_check_branch
          %311 = sbr.rel (%p309) target = $region73
        $region72: #{encoder_block_forward.4} parent=27 // pred_region
          %s312 = sand.u32 %s58, 1
          %s313 = sand.u32 %s58, 1
          %s314 = smul.addr %s313, 64
          %s315 = scalar_lea.vmem [#allocation5], %s314
          %s316 = smul.u32 8, %s14
          %s317 = smul.addr %s316, 4
          %s318 = scalar_lea.vmem %s1, %s317
          // Predicated region
          $region74: #{encoder_block_forward.4} parent=72 // pred_check
            _
          $region75: #{encoder_block_forward.4} parent=72 // pred_check_branch
            %320 = sbr.rel (0) target = $region77
          $region76: #{encoder_block_forward.4} parent=72 // pred_region
            // Predicated region
            $region78: #{encoder_block_forward.4} parent=76 // pred_check
              _
            $region79: #{encoder_block_forward.4} parent=76 // pred_check_branch
              %322 = sbr.rel (0) target = $region81
            $region80: #{encoder_block_forward.4} parent=76 // pred_region
              loop: start=0, step=1, limit=1
              $region82: #{encoder_block_forward.4} parent=80 // loop_pre_header
                _
              $region83: #{encoder_block_forward.4} parent=80 // loop_header
                %s324 = sphi 0, %s328
                %p325 = scmp.ge.s32.totalorder %s324, 1
                %s329 = sphi %s318, %s318
                %s330 = sphi %s315, %s315
              $region84: #{encoder_block_forward.4} parent=80 // loop_header_branch
                %327 = sbr.rel (%p325) target = $region88
              $region85: #{encoder_block_forward.4} parent=80 // loop_body
                %v331 = vld [vmem:[%s329] sm:$0xff]
                %332 = vst [vmem:[%s330] sm:$0xff] %v331
                %v333 = vld [vmem:[%s329 + $0x8] sm:$0xff]
                %334 = vst [vmem:[%s330 + $0x8] sm:$0xff] %v333
                %v335 = vld [vmem:[%s329 + $0x10] sm:$0xff]
                %336 = vst [vmem:[%s330 + $0x10] sm:$0xff] %v335
                %v337 = vld [vmem:[%s329 + $0x18] sm:$0xff]
                %338 = vst [vmem:[%s330 + $0x18] sm:$0xff] %v337
                %v339 = vld [vmem:[%s329 + $0x40] sm:$0xff]
                %340 = vst [vmem:[%s330 + $0x20] sm:$0xff] %v339
                %v341 = vld [vmem:[%s329 + $0x48] sm:$0xff]
                %342 = vst [vmem:[%s330 + $0x28] sm:$0xff] %v341
                %v343 = vld [vmem:[%s329 + $0x50] sm:$0xff]
                %344 = vst [vmem:[%s330 + $0x30] sm:$0xff] %v343
                %v345 = vld [vmem:[%s329 + $0x58] sm:$0xff]
                %346 = vst [vmem:[%s330 + $0x38] sm:$0xff] %v345
              $region86: #{encoder_block_forward.4} parent=80 // loop_footer
                %s328 = sadd.s32 1, %s324
              $region87: #{encoder_block_forward.4} parent=80 // loop_footer_branch
                %323 = sbr.rel target = $region83
              $region88: #{encoder_block_forward.4} parent=80 // loop_exit
                _
            $region81: #{encoder_block_forward.4} parent=76 // pred_fallthru
              _
            // Predicated region
            $region89: #{encoder_block_forward.4} parent=76 // pred_check
              _
            $region90: #{encoder_block_forward.4} parent=76 // pred_check_branch
              %348 = sbr.rel target = $region92
            $region91: #{encoder_block_forward.4} parent=76 // pred_region
              _
            $region92: #{encoder_block_forward.4} parent=76 // pred_fallthru
              _
          $region77: #{encoder_block_forward.4} parent=72 // pred_fallthru
            _
          %349 = vnop
        $region73: #{encoder_block_forward.4} parent=27 // pred_fallthru
          _
        // Predicated region
        $region93: #{encoder_block_forward.4} parent=27 // pred_check
          %p350 = pneg %p102
        $region94: #{encoder_block_forward.4} parent=27 // pred_check_branch
          %352 = sbr.rel (%p350) target = $region96
        $region95: #{encoder_block_forward.4} parent=27 // pred_region
          %s353 = sand.u32 %s92, 1
          %s354 = sand.u32 %s92, 1
          %s355 = smul.addr %s354, 8
          %s356 = scalar_lea.vmem [#allocation6], %s355
          %s357 = sadd.s32 %s14, 1
          %s358 = smul.u32 %s357, 8
          %p359 = scmp.lt.s32.totalorder %s358, 15
          %s360 = scalar_select %p359, %s358, 15
          %s361 = smul.addr %s360, 4
          %s362 = scalar_lea.vmem %s2, %s361
          // Predicated region
          $region97: #{encoder_block_forward.4} parent=95 // pred_check
            _
          $region98: #{encoder_block_forward.4} parent=95 // pred_check_branch
            %364 = sbr.rel (0) target = $region100
          $region99: #{encoder_block_forward.4} parent=95 // pred_region
            // Predicated region
            $region101: #{encoder_block_forward.4} parent=99 // pred_check
              _
            $region102: #{encoder_block_forward.4} parent=99 // pred_check_branch
              %366 = sbr.rel target = $region104
            $region103: #{encoder_block_forward.4} parent=99 // pred_region
              // Predicated region
              $region116: #{encoder_block_forward.4} parent=103 // pred_check
                _
              $region117: #{encoder_block_forward.4} parent=103 // pred_check_branch
                %384 = sbr.rel (0) target = $region119
              $region118: #{encoder_block_forward.4} parent=103 // pred_region
                loop: start=0, step=1, limit=1
                $region120: #{encoder_block_forward.4} parent=118 // loop_pre_header
                  _
                $region121: #{encoder_block_forward.4} parent=118 // loop_header
                  %s386 = sphi 0, %s390
                  %p387 = scmp.ge.s32.totalorder %s386, 1
                  %s391 = sphi %s362, %s362
                  %s392 = sphi %s356, %s356
                $region122: #{encoder_block_forward.4} parent=118 // loop_header_branch
                  %389 = sbr.rel (%p387) target = $region126
                $region123: #{encoder_block_forward.4} parent=118 // loop_body
                  _
                $region124: #{encoder_block_forward.4} parent=118 // loop_footer
                  %s390 = sadd.s32 1, %s386
                $region125: #{encoder_block_forward.4} parent=118 // loop_footer_branch
                  %385 = sbr.rel target = $region121
                $region126: #{encoder_block_forward.4} parent=118 // loop_exit
                  _
                %s394 = ssub.s32 16, 1
                loop: start=0, step=1, limit=1
                $region127: #{encoder_block_forward.4} parent=118 // loop_pre_header
                  _
                $region128: #{encoder_block_forward.4} parent=118 // loop_header
                  %s396 = sphi 0, %s400
                  %p397 = scmp.ge.s32.totalorder %s396, 1
                  %s401 = sphi %s362, %s362
                  %s402 = sphi %s356, %s356
                $region129: #{encoder_block_forward.4} parent=118 // loop_header_branch
                  %399 = sbr.rel (%p397) target = $region133
                $region130: #{encoder_block_forward.4} parent=118 // loop_body
                  %v403 = vld [vmem:[%s401] sm:%s394]
                  %404 = vst [vmem:[%s402] sm:%s394] %v403
                  %v405 = vld [vmem:[%s401 + $0x40] sm:%s394]
                  %406 = vst [vmem:[%s402 + $0x4] sm:%s394] %v405
                $region131: #{encoder_block_forward.4} parent=118 // loop_footer
                  %s400 = sadd.s32 1, %s396
                $region132: #{encoder_block_forward.4} parent=118 // loop_footer_branch
                  %395 = sbr.rel target = $region128
                $region133: #{encoder_block_forward.4} parent=118 // loop_exit
                  _
              $region119: #{encoder_block_forward.4} parent=103 // pred_fallthru
                _
            $region104: #{encoder_block_forward.4} parent=99 // pred_fallthru
              _
            // Predicated region
            $region105: #{encoder_block_forward.4} parent=99 // pred_check
              _
            $region106: #{encoder_block_forward.4} parent=99 // pred_check_branch
              %368 = sbr.rel (0) target = $region108
            $region107: #{encoder_block_forward.4} parent=99 // pred_region
              %s370 = ssub.s32 16, 1
              loop: start=0, step=1, limit=1
              $region109: #{encoder_block_forward.4} parent=107 // loop_pre_header
                _
              $region110: #{encoder_block_forward.4} parent=107 // loop_header
                %s372 = sphi 0, %s376
                %p373 = scmp.ge.s32.totalorder %s372, 1
                %s377 = sphi %s362, %s362
                %s378 = sphi %s356, %s356
              $region111: #{encoder_block_forward.4} parent=107 // loop_header_branch
                %375 = sbr.rel (%p373) target = $region115
              $region112: #{encoder_block_forward.4} parent=107 // loop_body
                %v379 = vld [vmem:[%s377] sm:%s370]
                %380 = vst [vmem:[%s378] sm:%s370] %v379
                %v381 = vld [vmem:[%s377 + $0x40] sm:%s370]
                %382 = vst [vmem:[%s378 + $0x4] sm:%s370] %v381
              $region113: #{encoder_block_forward.4} parent=107 // loop_footer
                %s376 = sadd.s32 1, %s372
              $region114: #{encoder_block_forward.4} parent=107 // loop_footer_branch
                %371 = sbr.rel target = $region110
              $region115: #{encoder_block_forward.4} parent=107 // loop_exit
                _
            $region108: #{encoder_block_forward.4} parent=99 // pred_fallthru
              _
          $region100: #{encoder_block_forward.4} parent=95 // pred_fallthru
            _
          %407 = vnop
        $region96: #{encoder_block_forward.4} parent=27 // pred_fallthru
          _
        // Predicated region
        $region134: #{encoder_block_forward.4} parent=27 // pred_check
          %p408 = pneg %p170
        $region135: #{encoder_block_forward.4} parent=27 // pred_check_branch
          %410 = sbr.rel (%p408) target = $region137
        $region136: #{encoder_block_forward.4} parent=27 // pred_region
          %s411 = smul.u32 8, %s14
          %p412 = scmp.lt.s32.totalorder %s411, 15
          %s413 = scalar_select %p412, %s411, 15
          %s414 = scalar_lea.vmem %s5, %s413
          %s415 = smul.u32 8, %s14
        $region137: #{encoder_block_forward.4} parent=27 // pred_fallthru
          _
      $region28: #{encoder_block_forward.4} parent=5 // pred_fallthru
        _
      %p416 = scmp.le.s32.totalorder 1, %s14
      %p417 = scmp.lt.s32.totalorder %s14, 3
      %p418 = pnand %p416, %p417
      %p419 = pneg %p418
      // Predicated region
      $region138: #{encoder_block_forward.4} parent=5 // pred_check
        _
      $region139: #{encoder_block_forward.4} parent=5 // pred_check_branch
        %421 = sbr.rel (%p418) target = $region141
      $region140: #{encoder_block_forward.4} parent=5 // pred_region
        %s422 = ssub.s32 %s14, 1
        %s423 = sand.u32 %s35, 1
        %s424 = sand.u32 %s35, 1
        %s425 = smul.addr %s424, 8
        %s426 = scalar_lea.vmem [#allocation4], %s425
        // Predicated region
        $region142: #{encoder_block_forward.4} parent=140 // pred_check
          %p427 = pneg %p48
        $region143: #{encoder_block_forward.4} parent=140 // pred_check_branch
          %429 = sbr.rel (%p427) target = $region145
        $region144: #{encoder_block_forward.4} parent=140 // pred_region
          _
        $region145: #{encoder_block_forward.4} parent=140 // pred_fallthru
          _
        %s430 = sand.u32 %s61, 1
        %s431 = sand.u32 %s61, 1
        %s432 = smul.addr %s431, 64
        %s433 = scalar_lea.vmem [#allocation5], %s432
        // Predicated region
        $region146: #{encoder_block_forward.4} parent=140 // pred_check
          %p434 = pneg %p74
        $region147: #{encoder_block_forward.4} parent=140 // pred_check_branch
          %436 = sbr.rel (%p434) target = $region149
        $region148: #{encoder_block_forward.4} parent=140 // pred_region
          _
        $region149: #{encoder_block_forward.4} parent=140 // pred_fallthru
          _
        %s437 = sand.u32 %s95, 1
        %s438 = sand.u32 %s95, 1
        %s439 = smul.addr %s438, 8
        %s440 = scalar_lea.vmem [#allocation6], %s439
        // Predicated region
        $region150: #{encoder_block_forward.4} parent=140 // pred_check
          %p441 = pneg %p108
        $region151: #{encoder_block_forward.4} parent=140 // pred_check_branch
          %443 = sbr.rel (%p441) target = $region153
        $region152: #{encoder_block_forward.4} parent=140 // pred_region
          _
        $region153: #{encoder_block_forward.4} parent=140 // pred_fallthru
          _
        %s444 = sand.u32 %s35, 1
        %s445 = sand.u32 %s35, 1
        %s446 = smul.addr %s445, 8
        %s447 = scalar_lea.vmem [#allocation4], %s446
        %p448 = pneg %p48
        %p449 = pneg %p45
        %s450 = sand.u32 %s61, 1
        %s451 = sand.u32 %s61, 1
        %s452 = smul.addr %s451, 64
        %s453 = scalar_lea.vmem [#allocation5], %s452
        %p454 = pneg %p74
        %p455 = pneg %p71
        %s456 = sand.u32 %s95, 1
        %s457 = sand.u32 %s95, 1
        %s458 = smul.addr %s457, 8
        %s459 = scalar_lea.vmem [#allocation6], %s458
        %p460 = pneg %p108
        %p461 = pneg %p105
        %p462 = pneg %p129
        %p463 = pneg %p126
        %p464 = pneg %p150
        %p465 = pneg %p147
        %s466 = smul.u32 8, %s19
        %p467 = scmp.lt.s32.totalorder %s466, 15
        %s468 = scalar_select %p467, %s466, 15
        %s469 = scalar_lea.vmem %s5, %s468
        %p470 = pneg %p176
        %p471 = pneg %p173
        %p472 = pneg %p197
        %p473 = pneg %p194
        %p474 = pneg %p223
        %p475 = pneg %p220
        %s476 = sand.u32 %s210, 1
        %s477 = sand.u32 %s210, 1
        %s478 = smul.addr %s477, 64
        %s479 = scalar_lea.vmem [#allocation7], %s478
        %s480 = smul.u32 %s19, 8
        %s481 = ssub.s32 %s480, 1
        %p482 = scmp.gt.s32.totalorder %s481, 0
        %s483 = scalar_select %p482, %s481, 0
        %s484 = smul.u32 8, %s19
        %s485 = sadd.s32 %s19, 1
        %s486 = smul.u32 %s485, 8
        %p487 = scmp.lt.s32.totalorder %s486, 15
        %s488 = scalar_select %p487, %s486, 15
        %s489 = smul.u32 8, %s19
        %p490 = scmp.lt.s32.totalorder %s489, 15
        %s491 = scalar_select %p490, %s489, 15
        %s492 = scalar_lea.vmem %s5, %s491
        %s493 = smul.u32 8, %s19
        %s494 = smul.u32 8, %s19
        %v496 = vld [vmem:[%s426] sm:$0xf]
        %v497 = vld [vmem:[%s426 + $0x4] sm:$0xf]
        %500 = vrot.lane.b32.xlu0 %v496, 111
        %v501 = vpop.permute.xlu0 %500
        %502 = vrot.lane.b32.xlu0 %v497, 111
        %v503 = vpop.permute.xlu0 %502
        %vm506 = vcmask 904192
        %507 = vst.msk [vmem:[#allocation2] sm:$0xf] %vm506, %v501
        %508 = vst.msk [vmem:[#allocation2 + $0x20] sm:$0xf] %vm506, %v503
        %v509 = vld [vmem:[%s433] sm:$0xff]
        %v510 = vld [vmem:[%s433 + $0x8] sm:$0xff]
        %v511 = vld [vmem:[%s433 + $0x10] sm:$0xff]
        %v512 = vld [vmem:[%s433 + $0x18] sm:$0xff]
        %v513 = vld [vmem:[%s433 + $0x20] sm:$0xff]
        %v514 = vld [vmem:[%s433 + $0x28] sm:$0xff]
        %v515 = vld [vmem:[%s433 + $0x30] sm:$0xff]
        %v516 = vld [vmem:[%s433 + $0x38] sm:$0xff]
        %525 = vrot.lane.b32.xlu0 %v509, 111
        %v526 = vpop.permute.xlu0 %525
        %527 = vrot.lane.b32.xlu0 %v510, 111
        %v528 = vpop.permute.xlu0 %527
        %529 = vrot.lane.b32.xlu0 %v511, 111
        %v530 = vpop.permute.xlu0 %529
        %531 = vrot.lane.b32.xlu0 %v512, 111
        %v532 = vpop.permute.xlu0 %531
        %533 = vrot.lane.b32.xlu0 %v513, 111
        %v534 = vpop.permute.xlu0 %533
        %535 = vrot.lane.b32.xlu0 %v514, 111
        %v536 = vpop.permute.xlu0 %535
        %537 = vrot.lane.b32.xlu0 %v515, 111
        %v538 = vpop.permute.xlu0 %537
        %539 = vrot.lane.b32.xlu0 %v516, 111
        %v540 = vpop.permute.xlu0 %539
        %v541 = vrot.slane %v526, 4
        %v542 = vrot.slane %v528, 4
        %v543 = vrot.slane %v530, 4
        %v544 = vrot.slane %v532, 4
        %v545 = vrot.slane %v534, 4
        %v546 = vrot.slane %v536, 4
        %v547 = vrot.slane %v538, 4
        %v548 = vrot.slane %v540, 4
        %vm549 = vcmask 908288
        %v550 = vsel %vm549, %v541, %v526
        %vm551 = vcmask 1043456
        %v552 = vsel %vm551, %v541, %v542
        %v553 = vsel %vm549, %v552, %v528
        %v554 = vsel %vm551, %v542, %v543
        %v555 = vsel %vm549, %v554, %v530
        %v556 = vsel %vm551, %v543, %v544
        %v557 = vsel %vm549, %v556, %v532
        %v558 = vsel %vm549, %v545, %v534
        %v559 = vsel %vm551, %v545, %v546
        %v560 = vsel %vm549, %v559, %v536
        %v561 = vsel %vm551, %v546, %v547
        %v562 = vsel %vm549, %v561, %v538
        %v563 = vsel %vm551, %v547, %v548
        %v564 = vsel %vm549, %v563, %v540
        %vm573 = vcmask 1044344
        %vm574 = vcmask 1047556
        %vm575 = vmor %vm574, %vm573
        %576 = vst.msk [vmem:[#allocation2] sm:$0xff] %vm575, %v550
        %577 = vst [vmem:[#allocation2 + $0x8] sm:$0xff] %v553
        %578 = vst [vmem:[#allocation2 + $0x10] sm:$0xff] %v555
        %579 = vst [vmem:[#allocation2 + $0x18] sm:$0xff] %v557
        %580 = vst.msk [vmem:[#allocation2 + $0x20] sm:$0xff] %vm575, %v558
        %581 = vst [vmem:[#allocation2 + $0x28] sm:$0xff] %v560
        %582 = vst [vmem:[#allocation2 + $0x30] sm:$0xff] %v562
        %583 = vst [vmem:[#allocation2 + $0x38] sm:$0xff] %v564
        %v584 = vld [vmem:[%s426] sm:$0xf]
        %v585 = vld [vmem:[%s426 + $0x4] sm:$0xf]
        %588 = vrot.lane.b32.xlu0 %v584, 110
        %v589 = vpop.permute.xlu0 %588
        %590 = vrot.lane.b32.xlu0 %v585, 110
        %v591 = vpop.permute.xlu0 %590
        %vm594 = vcmask 896000
        %595 = vst.msk [vmem:[#allocation2 + $0x40] sm:$0xf] %vm594, %v589
        %596 = vst.msk [vmem:[#allocation2 + $0x60] sm:$0xf] %vm594, %v591
        %v597 = vld [vmem:[%s433] sm:$0xff]
        %v598 = vld [vmem:[%s433 + $0x8] sm:$0xff]
        %v599 = vld [vmem:[%s433 + $0x10] sm:$0xff]
        %v600 = vld [vmem:[%s433 + $0x18] sm:$0xff]
        %v601 = vld [vmem:[%s433 + $0x20] sm:$0xff]
        %v602 = vld [vmem:[%s433 + $0x28] sm:$0xff]
        %v603 = vld [vmem:[%s433 + $0x30] sm:$0xff]
        %v604 = vld [vmem:[%s433 + $0x38] sm:$0xff]
        %613 = vrot.lane.b32.xlu0 %v597, 110
        %v614 = vpop.permute.xlu0 %613
        %615 = vrot.lane.b32.xlu0 %v598, 110
        %v616 = vpop.permute.xlu0 %615
        %617 = vrot.lane.b32.xlu0 %v599, 110
        %v618 = vpop.permute.xlu0 %617
        %619 = vrot.lane.b32.xlu0 %v600, 110
        %v620 = vpop.permute.xlu0 %619
        %621 = vrot.lane.b32.xlu0 %v601, 110
        %v622 = vpop.permute.xlu0 %621
        %623 = vrot.lane.b32.xlu0 %v602, 110
        %v624 = vpop.permute.xlu0 %623
        %625 = vrot.lane.b32.xlu0 %v603, 110
        %v626 = vpop.permute.xlu0 %625
        %627 = vrot.lane.b32.xlu0 %v604, 110
        %v628 = vpop.permute.xlu0 %627
        %v629 = vrot.slane %v614, 4
        %v630 = vrot.slane %v616, 4
        %v631 = vrot.slane %v618, 4
        %v632 = vrot.slane %v620, 4
        %v633 = vrot.slane %v622, 4
        %v634 = vrot.slane %v624, 4
        %v635 = vrot.slane %v626, 4
        %v636 = vrot.slane %v628, 4
        %vm637 = vcmask 900096
        %v638 = vsel %vm637, %v629, %v614
        %v639 = vsel %vm551, %v629, %v630
        %v640 = vsel %vm637, %v639, %v616
        %v641 = vsel %vm551, %v630, %v631
        %v642 = vsel %vm637, %v641, %v618
        %v643 = vsel %vm551, %v631, %v632
        %v644 = vsel %vm637, %v643, %v620
        %v645 = vsel %vm637, %v633, %v622
        %v646 = vsel %vm551, %v633, %v634
        %v647 = vsel %vm637, %v646, %v624
        %v648 = vsel %vm551, %v634, %v635
        %v649 = vsel %vm637, %v648, %v626
        %v650 = vsel %vm551, %v635, %v636
        %v651 = vsel %vm637, %v650, %v628
        %vm660 = vcmask 1044336
        %vm661 = vmor %vm574, %vm660
        %662 = vst.msk [vmem:[#allocation2 + $0x40] sm:$0xff] %vm661, %v638
        %663 = vst [vmem:[#allocation2 + $0x48] sm:$0xff] %v640
        %664 = vst [vmem:[#allocation2 + $0x50] sm:$0xff] %v642
        %665 = vst [vmem:[#allocation2 + $0x58] sm:$0xff] %v644
        %666 = vst.msk [vmem:[#allocation2 + $0x60] sm:$0xff] %vm661, %v645
        %667 = vst [vmem:[#allocation2 + $0x68] sm:$0xff] %v647
        %668 = vst [vmem:[#allocation2 + $0x70] sm:$0xff] %v649
        %669 = vst [vmem:[#allocation2 + $0x78] sm:$0xff] %v651
        %v670 = vld [vmem:[%s426] sm:$0xf]
        %v671 = vld [vmem:[%s426 + $0x4] sm:$0xf]
        %674 = vrot.lane.b32.xlu0 %v670, 109
        %v675 = vpop.permute.xlu0 %674
        %676 = vrot.lane.b32.xlu0 %v671, 109
        %v677 = vpop.permute.xlu0 %676
        %vm680 = vcmask 887808
        %681 = vst.msk [vmem:[#allocation2 + $0x80] sm:$0xf] %vm680, %v675
        %682 = vst.msk [vmem:[#allocation2 + $0xa0] sm:$0xf] %vm680, %v677
        %v683 = vld [vmem:[%s433] sm:$0xff]
        %v684 = vld [vmem:[%s433 + $0x8] sm:$0xff]
        %v685 = vld [vmem:[%s433 + $0x10] sm:$0xff]
        %v686 = vld [vmem:[%s433 + $0x18] sm:$0xff]
        %v687 = vld [vmem:[%s433 + $0x20] sm:$0xff]
        %v688 = vld [vmem:[%s433 + $0x28] sm:$0xff]
        %v689 = vld [vmem:[%s433 + $0x30] sm:$0xff]
        %v690 = vld [vmem:[%s433 + $0x38] sm:$0xff]
        %699 = vrot.lane.b32.xlu0 %v683, 109
        %v700 = vpop.permute.xlu0 %699
        %701 = vrot.lane.b32.xlu0 %v684, 109
        %v702 = vpop.permute.xlu0 %701
        %703 = vrot.lane.b32.xlu0 %v685, 109
        %v704 = vpop.permute.xlu0 %703
        %705 = vrot.lane.b32.xlu0 %v686, 109
        %v706 = vpop.permute.xlu0 %705
        %707 = vrot.lane.b32.xlu0 %v687, 109
        %v708 = vpop.permute.xlu0 %707
        %709 = vrot.lane.b32.xlu0 %v688, 109
        %v710 = vpop.permute.xlu0 %709
        %711 = vrot.lane.b32.xlu0 %v689, 109
        %v712 = vpop.permute.xlu0 %711
        %713 = vrot.lane.b32.xlu0 %v690, 109
        %v714 = vpop.permute.xlu0 %713
        %v715 = vrot.slane %v700, 4
        %v716 = vrot.slane %v702, 4
        %v717 = vrot.slane %v704, 4
        %v718 = vrot.slane %v706, 4
        %v719 = vrot.slane %v708, 4
        %v720 = vrot.slane %v710, 4
        %v721 = vrot.slane %v712, 4
        %v722 = vrot.slane %v714, 4
        %vm723 = vcmask 891904
        %v724 = vsel %vm723, %v715, %v700
        %v725 = vsel %vm551, %v715, %v716
        %v726 = vsel %vm723, %v725, %v702
        %v727 = vsel %vm551, %v716, %v717
        %v728 = vsel %vm723, %v727, %v704
        %v729 = vsel %vm551, %v717, %v718
        %v730 = vsel %vm723, %v729, %v706
        %v731 = vsel %vm723, %v719, %v708
        %v732 = vsel %vm551, %v719, %v720
        %v733 = vsel %vm723, %v732, %v710
        %v734 = vsel %vm551, %v720, %v721
        %v735 = vsel %vm723, %v734, %v712
        %v736 = vsel %vm551, %v721, %v722
        %v737 = vsel %vm723, %v736, %v714
        %vm746 = vcmask 1044328
        %vm747 = vmor %vm574, %vm746
        %748 = vst.msk [vmem:[#allocation2 + $0x80] sm:$0xff] %vm747, %v724
        %749 = vst [vmem:[#allocation2 + $0x88] sm:$0xff] %v726
        %750 = vst [vmem:[#allocation2 + $0x90] sm:$0xff] %v728
        %751 = vst [vmem:[#allocation2 + $0x98] sm:$0xff] %v730
        %752 = vst.msk [vmem:[#allocation2 + $0xa0] sm:$0xff] %vm747, %v731
        %753 = vst [vmem:[#allocation2 + $0xa8] sm:$0xff] %v733
        %754 = vst [vmem:[#allocation2 + $0xb0] sm:$0xff] %v735
        %755 = vst [vmem:[#allocation2 + $0xb8] sm:$0xff] %v737
        %v756 = vld [vmem:[%s426] sm:$0xf]
        %v757 = vld [vmem:[%s426 + $0x4] sm:$0xf]
        %760 = vrot.lane.b32.xlu0 %v756, 101
        %v761 = vpop.permute.xlu0 %760
        %762 = vrot.lane.b32.xlu0 %v757, 101
        %v763 = vpop.permute.xlu0 %762
        %vm766 = vcmask 822272
        %767 = vst.msk [vmem:[#allocation2 + $0xc0] sm:$0xf] %vm766, %v761
        %768 = vst.msk [vmem:[#allocation2 + $0xe0] sm:$0xf] %vm766, %v763
        %v769 = vld [vmem:[%s433] sm:$0xff]
        %v770 = vld [vmem:[%s433 + $0x8] sm:$0xff]
        %v771 = vld [vmem:[%s433 + $0x10] sm:$0xff]
        %v772 = vld [vmem:[%s433 + $0x18] sm:$0xff]
        %v773 = vld [vmem:[%s433 + $0x20] sm:$0xff]
        %v774 = vld [vmem:[%s433 + $0x28] sm:$0xff]
        %v775 = vld [vmem:[%s433 + $0x30] sm:$0xff]
        %v776 = vld [vmem:[%s433 + $0x38] sm:$0xff]
        %785 = vrot.lane.b32.xlu0 %v769, 101
        %v786 = vpop.permute.xlu0 %785
        %787 = vrot.lane.b32.xlu0 %v770, 101
        %v788 = vpop.permute.xlu0 %787
        %789 = vrot.lane.b32.xlu0 %v771, 101
        %v790 = vpop.permute.xlu0 %789
        %791 = vrot.lane.b32.xlu0 %v772, 101
        %v792 = vpop.permute.xlu0 %791
        %793 = vrot.lane.b32.xlu0 %v773, 101
        %v794 = vpop.permute.xlu0 %793
        %795 = vrot.lane.b32.xlu0 %v774, 101
        %v796 = vpop.permute.xlu0 %795
        %797 = vrot.lane.b32.xlu0 %v775, 101
        %v798 = vpop.permute.xlu0 %797
        %799 = vrot.lane.b32.xlu0 %v776, 101
        %v800 = vpop.permute.xlu0 %799
        %v801 = vrot.slane %v786, 4
        %v802 = vrot.slane %v788, 4
        %v803 = vrot.slane %v790, 4
        %v804 = vrot.slane %v792, 4
        %v805 = vrot.slane %v794, 4
        %v806 = vrot.slane %v796, 4
        %v807 = vrot.slane %v798, 4
        %v808 = vrot.slane %v800, 4
        %vm809 = vcmask 826368
        %v810 = vsel %vm809, %v801, %v786
        %v811 = vsel %vm551, %v801, %v802
        %v812 = vsel %vm809, %v811, %v788
        %v813 = vsel %vm551, %v802, %v803
        %v814 = vsel %vm809, %v813, %v790
        %v815 = vsel %vm551, %v803, %v804
        %v816 = vsel %vm809, %v815, %v792
        %v817 = vsel %vm809, %v805, %v794
        %v818 = vsel %vm551, %v805, %v806
        %v819 = vsel %vm809, %v818, %v796
        %v820 = vsel %vm551, %v806, %v807
        %v821 = vsel %vm809, %v820, %v798
        %v822 = vsel %vm551, %v807, %v808
        %v823 = vsel %vm809, %v822, %v800
        %vm832 = vcmask 1044264
        %vm833 = vmor %vm574, %vm832
        %834 = vst.msk [vmem:[#allocation2 + $0xc0] sm:$0xff] %vm833, %v810
        %835 = vst [vmem:[#allocation2 + $0xc8] sm:$0xff] %v812
        %836 = vst [vmem:[#allocation2 + $0xd0] sm:$0xff] %v814
        %837 = vst [vmem:[#allocation2 + $0xd8] sm:$0xff] %v816
        %838 = vst.msk [vmem:[#allocation2 + $0xe0] sm:$0xff] %vm833, %v817
        %839 = vst [vmem:[#allocation2 + $0xe8] sm:$0xff] %v819
        %840 = vst [vmem:[#allocation2 + $0xf0] sm:$0xff] %v821
        %841 = vst [vmem:[#allocation2 + $0xf8] sm:$0xff] %v823
        %v842 = vld [vmem:[%s426] sm:$0xf]
        %v843 = vld [vmem:[%s426 + $0x4] sm:$0xf]
        %846 = vrot.lane.b32.xlu0 %v842, 100
        %v847 = vpop.permute.xlu0 %846
        %848 = vrot.lane.b32.xlu0 %v843, 100
        %v849 = vpop.permute.xlu0 %848
        %vm852 = vcmask 814080
        %853 = vst.msk [vmem:[#allocation2 + $0x100] sm:$0xf] %vm852, %v847
        %854 = vst.msk [vmem:[#allocation2 + $0x120] sm:$0xf] %vm852, %v849
        %v855 = vld [vmem:[%s433] sm:$0xff]
        %v856 = vld [vmem:[%s433 + $0x8] sm:$0xff]
        %v857 = vld [vmem:[%s433 + $0x10] sm:$0xff]
        %v858 = vld [vmem:[%s433 + $0x18] sm:$0xff]
        %v859 = vld [vmem:[%s433 + $0x20] sm:$0xff]
        %v860 = vld [vmem:[%s433 + $0x28] sm:$0xff]
        %v861 = vld [vmem:[%s433 + $0x30] sm:$0xff]
        %v862 = vld [vmem:[%s433 + $0x38] sm:$0xff]
        %871 = vrot.lane.b32.xlu0 %v855, 100
        %v872 = vpop.permute.xlu0 %871
        %873 = vrot.lane.b32.xlu0 %v856, 100
        %v874 = vpop.permute.xlu0 %873
        %875 = vrot.lane.b32.xlu0 %v857, 100
        %v876 = vpop.permute.xlu0 %875
        %877 = vrot.lane.b32.xlu0 %v858, 100
        %v878 = vpop.permute.xlu0 %877
        %879 = vrot.lane.b32.xlu0 %v859, 100
        %v880 = vpop.permute.xlu0 %879
        %881 = vrot.lane.b32.xlu0 %v860, 100
        %v882 = vpop.permute.xlu0 %881
        %883 = vrot.lane.b32.xlu0 %v861, 100
        %v884 = vpop.permute.xlu0 %883
        %885 = vrot.lane.b32.xlu0 %v862, 100
        %v886 = vpop.permute.xlu0 %885
        %v887 = vrot.slane %v872, 4
        %v888 = vrot.slane %v874, 4
        %v889 = vrot.slane %v876, 4
        %v890 = vrot.slane %v878, 4
        %v891 = vrot.slane %v880, 4
        %v892 = vrot.slane %v882, 4
        %v893 = vrot.slane %v884, 4
        %v894 = vrot.slane %v886, 4
        %vm895 = vcmask 818176
        %v896 = vsel %vm895, %v887, %v872
        %v897 = vsel %vm551, %v887, %v888
        %v898 = vsel %vm895, %v897, %v874
        %v899 = vsel %vm551, %v888, %v889
        %v900 = vsel %vm895, %v899, %v876
        %v901 = vsel %vm551, %v889, %v890
        %v902 = vsel %vm895, %v901, %v878
        %v903 = vsel %vm895, %v891, %v880
        %v904 = vsel %vm551, %v891, %v892
        %v905 = vsel %vm895, %v904, %v882
        %v906 = vsel %vm551, %v892, %v893
        %v907 = vsel %vm895, %v906, %v884
        %v908 = vsel %vm551, %v893, %v894
        %v909 = vsel %vm895, %v908, %v886
        %vm918 = vcmask 1044256
        %vm919 = vmor %vm574, %vm918
        %920 = vst.msk [vmem:[#allocation2 + $0x100] sm:$0xff] %vm919, %v896
        %921 = vst [vmem:[#allocation2 + $0x108] sm:$0xff] %v898
        %922 = vst [vmem:[#allocation2 + $0x110] sm:$0xff] %v900
        %923 = vst [vmem:[#allocation2 + $0x118] sm:$0xff] %v902
        %924 = vst.msk [vmem:[#allocation2 + $0x120] sm:$0xff] %vm919, %v903
        %925 = vst [vmem:[#allocation2 + $0x128] sm:$0xff] %v905
        %926 = vst [vmem:[#allocation2 + $0x130] sm:$0xff] %v907
        %927 = vst [vmem:[#allocation2 + $0x138] sm:$0xff] %v909
        %v928 = vld [vmem:[%s426] sm:$0xf]
        %v929 = vld [vmem:[%s426 + $0x4] sm:$0xf]
        %932 = vrot.lane.b32.xlu0 %v928, 99
        %v933 = vpop.permute.xlu0 %932
        %934 = vrot.lane.b32.xlu0 %v929, 99
        %v935 = vpop.permute.xlu0 %934
        %vm938 = vcmask 805888
        %939 = vst.msk [vmem:[#allocation2 + $0x140] sm:$0xf] %vm938, %v933
        %940 = vst.msk [vmem:[#allocation2 + $0x160] sm:$0xf] %vm938, %v935
        %v941 = vld [vmem:[%s433] sm:$0xff]
        %v942 = vld [vmem:[%s433 + $0x8] sm:$0xff]
        %v943 = vld [vmem:[%s433 + $0x10] sm:$0xff]
        %v944 = vld [vmem:[%s433 + $0x18] sm:$0xff]
        %v945 = vld [vmem:[%s433 + $0x20] sm:$0xff]
        %v946 = vld [vmem:[%s433 + $0x28] sm:$0xff]
        %v947 = vld [vmem:[%s433 + $0x30] sm:$0xff]
        %v948 = vld [vmem:[%s433 + $0x38] sm:$0xff]
        %957 = vrot.lane.b32.xlu0 %v941, 99
        %v958 = vpop.permute.xlu0 %957
        %959 = vrot.lane.b32.xlu0 %v942, 99
        %v960 = vpop.permute.xlu0 %959
        %961 = vrot.lane.b32.xlu0 %v943, 99
        %v962 = vpop.permute.xlu0 %961
        %963 = vrot.lane.b32.xlu0 %v944, 99
        %v964 = vpop.permute.xlu0 %963
        %965 = vrot.lane.b32.xlu0 %v945, 99
        %v966 = vpop.permute.xlu0 %965
        %967 = vrot.lane.b32.xlu0 %v946, 99
        %v968 = vpop.permute.xlu0 %967
        %969 = vrot.lane.b32.xlu0 %v947, 99
        %v970 = vpop.permute.xlu0 %969
        %971 = vrot.lane.b32.xlu0 %v948, 99
        %v972 = vpop.permute.xlu0 %971
        %v973 = vrot.slane %v958, 4
        %v974 = vrot.slane %v960, 4
        %v975 = vrot.slane %v962, 4
        %v976 = vrot.slane %v964, 4
        %v977 = vrot.slane %v966, 4
        %v978 = vrot.slane %v968, 4
        %v979 = vrot.slane %v970, 4
        %v980 = vrot.slane %v972, 4
        %vm981 = vcmask 809984
        %v982 = vsel %vm981, %v973, %v958
        %v983 = vsel %vm551, %v973, %v974
        %v984 = vsel %vm981, %v983, %v960
        %v985 = vsel %vm551, %v974, %v975
        %v986 = vsel %vm981, %v985, %v962
        %v987 = vsel %vm551, %v975, %v976
        %v988 = vsel %vm981, %v987, %v964
        %v989 = vsel %vm981, %v977, %v966
        %v990 = vsel %vm551, %v977, %v978
        %v991 = vsel %vm981, %v990, %v968
        %v992 = vsel %vm551, %v978, %v979
        %v993 = vsel %vm981, %v992, %v970
        %v994 = vsel %vm551, %v979, %v980
        %v995 = vsel %vm981, %v994, %v972
        %vm1004 = vcmask 1044248
        %vm1005 = vmor %vm574, %vm1004
        %1006 = vst.msk [vmem:[#allocation2 + $0x140] sm:$0xff] %vm1005, %v982
        %1007 = vst [vmem:[#allocation2 + $0x148] sm:$0xff] %v984
        %1008 = vst [vmem:[#allocation2 + $0x150] sm:$0xff] %v986
        %1009 = vst [vmem:[#allocation2 + $0x158] sm:$0xff] %v988
        %1010 = vst.msk [vmem:[#allocation2 + $0x160] sm:$0xff] %vm1005, %v989
        %1011 = vst [vmem:[#allocation2 + $0x168] sm:$0xff] %v991
        %1012 = vst [vmem:[#allocation2 + $0x170] sm:$0xff] %v993
        %1013 = vst [vmem:[#allocation2 + $0x178] sm:$0xff] %v995
        %v1014 = vld [vmem:[%s426] sm:$0xf]
        %v1015 = vld [vmem:[%s426 + $0x4] sm:$0xf]
        %1018 = vrot.lane.b32.xlu0 %v1014, 91
        %v1019 = vpop.permute.xlu0 %1018
        %1020 = vrot.lane.b32.xlu0 %v1015, 91
        %v1021 = vpop.permute.xlu0 %1020
        %vm1024 = vcmask 740352
        %1025 = vst.msk [vmem:[#allocation2 + $0x180] sm:$0xf] %vm1024, %v1019
        %1026 = vst.msk [vmem:[#allocation2 + $0x1a0] sm:$0xf] %vm1024, %v1021
        %v1027 = vld [vmem:[%s433] sm:$0xff]
        %v1028 = vld [vmem:[%s433 + $0x8] sm:$0xff]
        %v1029 = vld [vmem:[%s433 + $0x10] sm:$0xff]
        %v1030 = vld [vmem:[%s433 + $0x18] sm:$0xff]
        %v1031 = vld [vmem:[%s433 + $0x20] sm:$0xff]
        %v1032 = vld [vmem:[%s433 + $0x28] sm:$0xff]
        %v1033 = vld [vmem:[%s433 + $0x30] sm:$0xff]
        %v1034 = vld [vmem:[%s433 + $0x38] sm:$0xff]
        %1043 = vrot.lane.b32.xlu0 %v1027, 91
        %v1044 = vpop.permute.xlu0 %1043
        %1045 = vrot.lane.b32.xlu0 %v1028, 91
        %v1046 = vpop.permute.xlu0 %1045
        %1047 = vrot.lane.b32.xlu0 %v1029, 91
        %v1048 = vpop.permute.xlu0 %1047
        %1049 = vrot.lane.b32.xlu0 %v1030, 91
        %v1050 = vpop.permute.xlu0 %1049
        %1051 = vrot.lane.b32.xlu0 %v1031, 91
        %v1052 = vpop.permute.xlu0 %1051
        %1053 = vrot.lane.b32.xlu0 %v1032, 91
        %v1054 = vpop.permute.xlu0 %1053
        %1055 = vrot.lane.b32.xlu0 %v1033, 91
        %v1056 = vpop.permute.xlu0 %1055
        %1057 = vrot.lane.b32.xlu0 %v1034, 91
        %v1058 = vpop.permute.xlu0 %1057
        %v1059 = vrot.slane %v1044, 4
        %v1060 = vrot.slane %v1046, 4
        %v1061 = vrot.slane %v1048, 4
        %v1062 = vrot.slane %v1050, 4
        %v1063 = vrot.slane %v1052, 4
        %v1064 = vrot.slane %v1054, 4
        %v1065 = vrot.slane %v1056, 4
        %v1066 = vrot.slane %v1058, 4
        %vm1067 = vcmask 744448
        %v1068 = vsel %vm1067, %v1059, %v1044
        %v1069 = vsel %vm551, %v1059, %v1060
        %v1070 = vsel %vm1067, %v1069, %v1046
        %v1071 = vsel %vm551, %v1060, %v1061
        %v1072 = vsel %vm1067, %v1071, %v1048
        %v1073 = vsel %vm551, %v1061, %v1062
        %v1074 = vsel %vm1067, %v1073, %v1050
        %v1075 = vsel %vm1067, %v1063, %v1052
        %v1076 = vsel %vm551, %v1063, %v1064
        %v1077 = vsel %vm1067, %v1076, %v1054
        %v1078 = vsel %vm551, %v1064, %v1065
        %v1079 = vsel %vm1067, %v1078, %v1056
        %v1080 = vsel %vm551, %v1065, %v1066
        %v1081 = vsel %vm1067, %v1080, %v1058
        %vm1090 = vcmask 1044184
        %vm1091 = vmor %vm574, %vm1090
        %1092 = vst.msk [vmem:[#allocation2 + $0x180] sm:$0xff] %vm1091, %v1068
        %1093 = vst [vmem:[#allocation2 + $0x188] sm:$0xff] %v1070
        %1094 = vst [vmem:[#allocation2 + $0x190] sm:$0xff] %v1072
        %1095 = vst [vmem:[#allocation2 + $0x198] sm:$0xff] %v1074
        %1096 = vst.msk [vmem:[#allocation2 + $0x1a0] sm:$0xff] %vm1091, %v1075
        %1097 = vst [vmem:[#allocation2 + $0x1a8] sm:$0xff] %v1077
        %1098 = vst [vmem:[#allocation2 + $0x1b0] sm:$0xff] %v1079
        %1099 = vst [vmem:[#allocation2 + $0x1b8] sm:$0xff] %v1081
        %v1100 = vld [vmem:[%s426] sm:$0xf]
        %v1101 = vld [vmem:[%s426 + $0x4] sm:$0xf]
        %1104 = vrot.lane.b32.xlu0 %v1100, 90
        %v1105 = vpop.permute.xlu0 %1104
        %1106 = vrot.lane.b32.xlu0 %v1101, 90
        %v1107 = vpop.permute.xlu0 %1106
        %vm1110 = vcmask 732160
        %1111 = vst.msk [vmem:[#allocation2 + $0x1c0] sm:$0xf] %vm1110, %v1105
        %1112 = vst.msk [vmem:[#allocation2 + $0x1e0] sm:$0xf] %vm1110, %v1107
        %v1113 = vld [vmem:[%s433] sm:$0xff]
        %v1114 = vld [vmem:[%s433 + $0x8] sm:$0xff]
        %v1115 = vld [vmem:[%s433 + $0x10] sm:$0xff]
        %v1116 = vld [vmem:[%s433 + $0x18] sm:$0xff]
        %v1117 = vld [vmem:[%s433 + $0x20] sm:$0xff]
        %v1118 = vld [vmem:[%s433 + $0x28] sm:$0xff]
        %v1119 = vld [vmem:[%s433 + $0x30] sm:$0xff]
        %v1120 = vld [vmem:[%s433 + $0x38] sm:$0xff]
        %1129 = vrot.lane.b32.xlu0 %v1113, 90
        %v1130 = vpop.permute.xlu0 %1129
        %1131 = vrot.lane.b32.xlu0 %v1114, 90
        %v1132 = vpop.permute.xlu0 %1131
        %1133 = vrot.lane.b32.xlu0 %v1115, 90
        %v1134 = vpop.permute.xlu0 %1133
        %1135 = vrot.lane.b32.xlu0 %v1116, 90
        %v1136 = vpop.permute.xlu0 %1135
        %1137 = vrot.lane.b32.xlu0 %v1117, 90
        %v1138 = vpop.permute.xlu0 %1137
        %1139 = vrot.lane.b32.xlu0 %v1118, 90
        %v1140 = vpop.permute.xlu0 %1139
        %1141 = vrot.lane.b32.xlu0 %v1119, 90
        %v1142 = vpop.permute.xlu0 %1141
        %1143 = vrot.lane.b32.xlu0 %v1120, 90
        %v1144 = vpop.permute.xlu0 %1143
        %v1145 = vrot.slane %v1130, 4
        %v1146 = vrot.slane %v1132, 4
        %v1147 = vrot.slane %v1134, 4
        %v1148 = vrot.slane %v1136, 4
        %v1149 = vrot.slane %v1138, 4
        %v1150 = vrot.slane %v1140, 4
        %v1151 = vrot.slane %v1142, 4
        %v1152 = vrot.slane %v1144, 4
        %vm1153 = vcmask 736256
        %v1154 = vsel %vm1153, %v1145, %v1130
        %v1155 = vsel %vm551, %v1145, %v1146
        %v1156 = vsel %vm1153, %v1155, %v1132
        %v1157 = vsel %vm551, %v1146, %v1147
        %v1158 = vsel %vm1153, %v1157, %v1134
        %v1159 = vsel %vm551, %v1147, %v1148
        %v1160 = vsel %vm1153, %v1159, %v1136
        %v1161 = vsel %vm1153, %v1149, %v1138
        %v1162 = vsel %vm551, %v1149, %v1150
        %v1163 = vsel %vm1153, %v1162, %v1140
        %v1164 = vsel %vm551, %v1150, %v1151
        %v1165 = vsel %vm1153, %v1164, %v1142
        %v1166 = vsel %vm551, %v1151, %v1152
        %v1167 = vsel %vm1153, %v1166, %v1144
        %vm1176 = vcmask 1044176
        %vm1177 = vmor %vm574, %vm1176
        %1178 = vst.msk [vmem:[#allocation2 + $0x1c0] sm:$0xff] %vm1177, %v1154
        %1179 = vst [vmem:[#allocation2 + $0x1c8] sm:$0xff] %v1156
        %1180 = vst [vmem:[#allocation2 + $0x1d0] sm:$0xff] %v1158
        %1181 = vst [vmem:[#allocation2 + $0x1d8] sm:$0xff] %v1160
        %1182 = vst.msk [vmem:[#allocation2 + $0x1e0] sm:$0xff] %vm1177, %v1161
        %1183 = vst [vmem:[#allocation2 + $0x1e8] sm:$0xff] %v1163
        %1184 = vst [vmem:[#allocation2 + $0x1f0] sm:$0xff] %v1165
        %1185 = vst [vmem:[#allocation2 + $0x1f8] sm:$0xff] %v1167
        %v1186 = vld [vmem:[%s426] sm:$0xf]
        %v1187 = vld [vmem:[%s426 + $0x4] sm:$0xf]
        %1190 = vrot.lane.b32.xlu0 %v1186, 89
        %v1191 = vpop.permute.xlu0 %1190
        %1192 = vrot.lane.b32.xlu0 %v1187, 89
        %v1193 = vpop.permute.xlu0 %1192
        %vm1196 = vcmask 723968
        %1197 = vst.msk [vmem:[#allocation2 + $0x200] sm:$0xf] %vm1196, %v1191
        %1198 = vst.msk [vmem:[#allocation2 + $0x220] sm:$0xf] %vm1196, %v1193
        %v1199 = vld [vmem:[%s433] sm:$0xff]
        %v1200 = vld [vmem:[%s433 + $0x8] sm:$0xff]
        %v1201 = vld [vmem:[%s433 + $0x10] sm:$0xff]
        %v1202 = vld [vmem:[%s433 + $0x18] sm:$0xff]
        %v1203 = vld [vmem:[%s433 + $0x20] sm:$0xff]
        %v1204 = vld [vmem:[%s433 + $0x28] sm:$0xff]
        %v1205 = vld [vmem:[%s433 + $0x30] sm:$0xff]
        %v1206 = vld [vmem:[%s433 + $0x38] sm:$0xff]
        %1215 = vrot.lane.b32.xlu0 %v1199, 89
        %v1216 = vpop.permute.xlu0 %1215
        %1217 = vrot.lane.b32.xlu0 %v1200, 89
        %v1218 = vpop.permute.xlu0 %1217
        %1219 = vrot.lane.b32.xlu0 %v1201, 89
        %v1220 = vpop.permute.xlu0 %1219
        %1221 = vrot.lane.b32.xlu0 %v1202, 89
        %v1222 = vpop.permute.xlu0 %1221
        %1223 = vrot.lane.b32.xlu0 %v1203, 89
        %v1224 = vpop.permute.xlu0 %1223
        %1225 = vrot.lane.b32.xlu0 %v1204, 89
        %v1226 = vpop.permute.xlu0 %1225
        %1227 = vrot.lane.b32.xlu0 %v1205, 89
        %v1228 = vpop.permute.xlu0 %1227
        %1229 = vrot.lane.b32.xlu0 %v1206, 89
        %v1230 = vpop.permute.xlu0 %1229
        %v1231 = vrot.slane %v1216, 4
        %v1232 = vrot.slane %v1218, 4
        %v1233 = vrot.slane %v1220, 4
        %v1234 = vrot.slane %v1222, 4
        %v1235 = vrot.slane %v1224, 4
        %v1236 = vrot.slane %v1226, 4
        %v1237 = vrot.slane %v1228, 4
        %v1238 = vrot.slane %v1230, 4
        %vm1239 = vcmask 728064
        %v1240 = vsel %vm1239, %v1231, %v1216
        %v1241 = vsel %vm551, %v1231, %v1232
        %v1242 = vsel %vm1239, %v1241, %v1218
        %v1243 = vsel %vm551, %v1232, %v1233
        %v1244 = vsel %vm1239, %v1243, %v1220
        %v1245 = vsel %vm551, %v1233, %v1234
        %v1246 = vsel %vm1239, %v1245, %v1222
        %v1247 = vsel %vm1239, %v1235, %v1224
        %v1248 = vsel %vm551, %v1235, %v1236
        %v1249 = vsel %vm1239, %v1248, %v1226
        %v1250 = vsel %vm551, %v1236, %v1237
        %v1251 = vsel %vm1239, %v1250, %v1228
        %v1252 = vsel %vm551, %v1237, %v1238
        %v1253 = vsel %vm1239, %v1252, %v1230
        %vm1262 = vcmask 1044168
        %vm1263 = vmor %vm574, %vm1262
        %1264 = vst.msk [vmem:[#allocation2 + $0x200] sm:$0xff] %vm1263, %v1240
        %1265 = vst [vmem:[#allocation2 + $0x208] sm:$0xff] %v1242
        %1266 = vst [vmem:[#allocation2 + $0x210] sm:$0xff] %v1244
        %1267 = vst [vmem:[#allocation2 + $0x218] sm:$0xff] %v1246
        %1268 = vst.msk [vmem:[#allocation2 + $0x220] sm:$0xff] %vm1263, %v1247
        %1269 = vst [vmem:[#allocation2 + $0x228] sm:$0xff] %v1249
        %1270 = vst [vmem:[#allocation2 + $0x230] sm:$0xff] %v1251
        %1271 = vst [vmem:[#allocation2 + $0x238] sm:$0xff] %v1253
        %v1272 = vld [vmem:[%s426] sm:$0xf]
        %v1273 = vld [vmem:[%s426 + $0x4] sm:$0xf]
        %1276 = vrot.lane.b32.xlu0 %v1272, 11
        %v1277 = vpop.permute.xlu0 %1276
        %1278 = vrot.lane.b32.xlu0 %v1273, 11
        %v1279 = vpop.permute.xlu0 %1278
        %vm1282 = vcmask 84992
        %1283 = vst.msk [vmem:[#allocation2 + $0x240] sm:$0xf] %vm1282, %v1277
        %1284 = vst.msk [vmem:[#allocation2 + $0x260] sm:$0xf] %vm1282, %v1279
        %v1285 = vld [vmem:[%s433] sm:$0xff]
        %v1286 = vld [vmem:[%s433 + $0x8] sm:$0xff]
        %v1287 = vld [vmem:[%s433 + $0x10] sm:$0xff]
        %v1288 = vld [vmem:[%s433 + $0x18] sm:$0xff]
        %v1289 = vld [vmem:[%s433 + $0x20] sm:$0xff]
        %v1290 = vld [vmem:[%s433 + $0x28] sm:$0xff]
        %v1291 = vld [vmem:[%s433 + $0x30] sm:$0xff]
        %v1292 = vld [vmem:[%s433 + $0x38] sm:$0xff]
        %1301 = vrot.lane.b32.xlu0 %v1285, 11
        %v1302 = vpop.permute.xlu0 %1301
        %1303 = vrot.lane.b32.xlu0 %v1286, 11
        %v1304 = vpop.permute.xlu0 %1303
        %1305 = vrot.lane.b32.xlu0 %v1287, 11
        %v1306 = vpop.permute.xlu0 %1305
        %1307 = vrot.lane.b32.xlu0 %v1288, 11
        %v1308 = vpop.permute.xlu0 %1307
        %1309 = vrot.lane.b32.xlu0 %v1289, 11
        %v1310 = vpop.permute.xlu0 %1309
        %1311 = vrot.lane.b32.xlu0 %v1290, 11
        %v1312 = vpop.permute.xlu0 %1311
        %1313 = vrot.lane.b32.xlu0 %v1291, 11
        %v1314 = vpop.permute.xlu0 %1313
        %1315 = vrot.lane.b32.xlu0 %v1292, 11
        %v1316 = vpop.permute.xlu0 %1315
        %v1317 = vrot.slane %v1302, 4
        %v1318 = vrot.slane %v1304, 4
        %v1319 = vrot.slane %v1306, 4
        %v1320 = vrot.slane %v1308, 4
        %v1321 = vrot.slane %v1310, 4
        %v1322 = vrot.slane %v1312, 4
        %v1323 = vrot.slane %v1314, 4
        %v1324 = vrot.slane %v1316, 4
        %vm1325 = vcmask 89088
        %v1326 = vsel %vm1325, %v1317, %v1302
        %v1327 = vsel %vm551, %v1317, %v1318
        %v1328 = vsel %vm1325, %v1327, %v1304
        %v1329 = vsel %vm551, %v1318, %v1319
        %v1330 = vsel %vm1325, %v1329, %v1306
        %v1331 = vsel %vm551, %v1319, %v1320
        %v1332 = vsel %vm1325, %v1331, %v1308
        %v1333 = vsel %vm1325, %v1321, %v1310
        %v1334 = vsel %vm551, %v1321, %v1322
        %v1335 = vsel %vm1325, %v1334, %v1312
        %v1336 = vsel %vm551, %v1322, %v1323
        %v1337 = vsel %vm1325, %v1336, %v1314
        %v1338 = vsel %vm551, %v1323, %v1324
        %v1339 = vsel %vm1325, %v1338, %v1316
        %vm1348 = vcmask 1043544
        %vm1349 = vmor %vm574, %vm1348
        %1350 = vst.msk [vmem:[#allocation2 + $0x240] sm:$0xff] %vm1349, %v1326
        %1351 = vst [vmem:[#allocation2 + $0x248] sm:$0xff] %v1328
        %1352 = vst [vmem:[#allocation2 + $0x250] sm:$0xff] %v1330
        %1353 = vst [vmem:[#allocation2 + $0x258] sm:$0xff] %v1332
        %1354 = vst.msk [vmem:[#allocation2 + $0x260] sm:$0xff] %vm1349, %v1333
        %1355 = vst [vmem:[#allocation2 + $0x268] sm:$0xff] %v1335
        %1356 = vst [vmem:[#allocation2 + $0x270] sm:$0xff] %v1337
        %1357 = vst [vmem:[#allocation2 + $0x278] sm:$0xff] %v1339
        %v1358 = vld [vmem:[%s426] sm:$0xf]
        %v1359 = vld [vmem:[%s426 + $0x4] sm:$0xf]
        %1362 = vrot.lane.b32.xlu0 %v1358, 10
        %v1363 = vpop.permute.xlu0 %1362
        %1364 = vrot.lane.b32.xlu0 %v1359, 10
        %v1365 = vpop.permute.xlu0 %1364
        %vm1368 = vcmask 76800
        %1369 = vst.msk [vmem:[#allocation2 + $0x280] sm:$0xf] %vm1368, %v1363
        %1370 = vst.msk [vmem:[#allocation2 + $0x2a0] sm:$0xf] %vm1368, %v1365
        %v1371 = vld [vmem:[%s433] sm:$0xff]
        %v1372 = vld [vmem:[%s433 + $0x8] sm:$0xff]
        %v1373 = vld [vmem:[%s433 + $0x10] sm:$0xff]
        %v1374 = vld [vmem:[%s433 + $0x18] sm:$0xff]
        %v1375 = vld [vmem:[%s433 + $0x20] sm:$0xff]
        %v1376 = vld [vmem:[%s433 + $0x28] sm:$0xff]
        %v1377 = vld [vmem:[%s433 + $0x30] sm:$0xff]
        %v1378 = vld [vmem:[%s433 + $0x38] sm:$0xff]
        %1387 = vrot.lane.b32.xlu0 %v1371, 10
        %v1388 = vpop.permute.xlu0 %1387
        %1389 = vrot.lane.b32.xlu0 %v1372, 10
        %v1390 = vpop.permute.xlu0 %1389
        %1391 = vrot.lane.b32.xlu0 %v1373, 10
        %v1392 = vpop.permute.xlu0 %1391
        %1393 = vrot.lane.b32.xlu0 %v1374, 10
        %v1394 = vpop.permute.xlu0 %1393
        %1395 = vrot.lane.b32.xlu0 %v1375, 10
        %v1396 = vpop.permute.xlu0 %1395
        %1397 = vrot.lane.b32.xlu0 %v1376, 10
        %v1398 = vpop.permute.xlu0 %1397
        %1399 = vrot.lane.b32.xlu0 %v1377, 10
        %v1400 = vpop.permute.xlu0 %1399
        %1401 = vrot.lane.b32.xlu0 %v1378, 10
        %v1402 = vpop.permute.xlu0 %1401
        %v1403 = vrot.slane %v1388, 4
        %v1404 = vrot.slane %v1390, 4
        %v1405 = vrot.slane %v1392, 4
        %v1406 = vrot.slane %v1394, 4
        %v1407 = vrot.slane %v1396, 4
        %v1408 = vrot.slane %v1398, 4
        %v1409 = vrot.slane %v1400, 4
        %v1410 = vrot.slane %v1402, 4
        %vm1411 = vcmask 80896
        %v1412 = vsel %vm1411, %v1403, %v1388
        %v1413 = vsel %vm551, %v1403, %v1404
        %v1414 = vsel %vm1411, %v1413, %v1390
        %v1415 = vsel %vm551, %v1404, %v1405
        %v1416 = vsel %vm1411, %v1415, %v1392
        %v1417 = vsel %vm551, %v1405, %v1406
        %v1418 = vsel %vm1411, %v1417, %v1394
        %v1419 = vsel %vm1411, %v1407, %v1396
        %v1420 = vsel %vm551, %v1407, %v1408
        %v1421 = vsel %vm1411, %v1420, %v1398
        %v1422 = vsel %vm551, %v1408, %v1409
        %v1423 = vsel %vm1411, %v1422, %v1400
        %v1424 = vsel %vm551, %v1409, %v1410
        %v1425 = vsel %vm1411, %v1424, %v1402
        %vm1434 = vcmask 1043536
        %vm1435 = vmor %vm574, %vm1434
        %1436 = vst.msk [vmem:[#allocation2 + $0x280] sm:$0xff] %vm1435, %v1412
        %1437 = vst [vmem:[#allocation2 + $0x288] sm:$0xff] %v1414
        %1438 = vst [vmem:[#allocation2 + $0x290] sm:$0xff] %v1416
        %1439 = vst [vmem:[#allocation2 + $0x298] sm:$0xff] %v1418
        %1440 = vst.msk [vmem:[#allocation2 + $0x2a0] sm:$0xff] %vm1435, %v1419
        %1441 = vst [vmem:[#allocation2 + $0x2a8] sm:$0xff] %v1421
        %1442 = vst [vmem:[#allocation2 + $0x2b0] sm:$0xff] %v1423
        %1443 = vst [vmem:[#allocation2 + $0x2b8] sm:$0xff] %v1425
        %v1444 = vld [vmem:[%s426] sm:$0xf]
        %v1445 = vld [vmem:[%s426 + $0x4] sm:$0xf]
        %1448 = vrot.lane.b32.xlu0 %v1444, 9
        %v1449 = vpop.permute.xlu0 %1448
        %1450 = vrot.lane.b32.xlu0 %v1445, 9
        %v1451 = vpop.permute.xlu0 %1450
        %vm1454 = vcmask 68608
        %1455 = vst.msk [vmem:[#allocation2 + $0x2c0] sm:$0xf] %vm1454, %v1449
        %1456 = vst.msk [vmem:[#allocation2 + $0x2e0] sm:$0xf] %vm1454, %v1451
        %v1457 = vld [vmem:[%s433] sm:$0xff]
        %v1458 = vld [vmem:[%s433 + $0x8] sm:$0xff]
        %v1459 = vld [vmem:[%s433 + $0x10] sm:$0xff]
        %v1460 = vld [vmem:[%s433 + $0x18] sm:$0xff]
        %v1461 = vld [vmem:[%s433 + $0x20] sm:$0xff]
        %v1462 = vld [vmem:[%s433 + $0x28] sm:$0xff]
        %v1463 = vld [vmem:[%s433 + $0x30] sm:$0xff]
        %v1464 = vld [vmem:[%s433 + $0x38] sm:$0xff]
        %1473 = vrot.lane.b32.xlu0 %v1457, 9
        %v1474 = vpop.permute.xlu0 %1473
        %1475 = vrot.lane.b32.xlu0 %v1458, 9
        %v1476 = vpop.permute.xlu0 %1475
        %1477 = vrot.lane.b32.xlu0 %v1459, 9
        %v1478 = vpop.permute.xlu0 %1477
        %1479 = vrot.lane.b32.xlu0 %v1460, 9
        %v1480 = vpop.permute.xlu0 %1479
        %1481 = vrot.lane.b32.xlu0 %v1461, 9
        %v1482 = vpop.permute.xlu0 %1481
        %1483 = vrot.lane.b32.xlu0 %v1462, 9
        %v1484 = vpop.permute.xlu0 %1483
        %1485 = vrot.lane.b32.xlu0 %v1463, 9
        %v1486 = vpop.permute.xlu0 %1485
        %1487 = vrot.lane.b32.xlu0 %v1464, 9
        %v1488 = vpop.permute.xlu0 %1487
        %v1489 = vrot.slane %v1474, 4
        %v1490 = vrot.slane %v1476, 4
        %v1491 = vrot.slane %v1478, 4
        %v1492 = vrot.slane %v1480, 4
        %v1493 = vrot.slane %v1482, 4
        %v1494 = vrot.slane %v1484, 4
        %v1495 = vrot.slane %v1486, 4
        %v1496 = vrot.slane %v1488, 4
        %vm1497 = vcmask 72704
        %v1498 = vsel %vm1497, %v1489, %v1474
        %v1499 = vsel %vm551, %v1489, %v1490
        %v1500 = vsel %vm1497, %v1499, %v1476
        %v1501 = vsel %vm551, %v1490, %v1491
        %v1502 = vsel %vm1497, %v1501, %v1478
        %v1503 = vsel %vm551, %v1491, %v1492
        %v1504 = vsel %vm1497, %v1503, %v1480
        %v1505 = vsel %vm1497, %v1493, %v1482
        %v1506 = vsel %vm551, %v1493, %v1494
        %v1507 = vsel %vm1497, %v1506, %v1484
        %v1508 = vsel %vm551, %v1494, %v1495
        %v1509 = vsel %vm1497, %v1508, %v1486
        %v1510 = vsel %vm551, %v1495, %v1496
        %v1511 = vsel %vm1497, %v1510, %v1488
        %vm1520 = vcmask 1043528
        %vm1521 = vmor %vm574, %vm1520
        %1522 = vst.msk [vmem:[#allocation2 + $0x2c0] sm:$0xff] %vm1521, %v1498
        %1523 = vst [vmem:[#allocation2 + $0x2c8] sm:$0xff] %v1500
        %1524 = vst [vmem:[#allocation2 + $0x2d0] sm:$0xff] %v1502
        %1525 = vst [vmem:[#allocation2 + $0x2d8] sm:$0xff] %v1504
        %1526 = vst.msk [vmem:[#allocation2 + $0x2e0] sm:$0xff] %vm1521, %v1505
        %1527 = vst [vmem:[#allocation2 + $0x2e8] sm:$0xff] %v1507
        %1528 = vst [vmem:[#allocation2 + $0x2f0] sm:$0xff] %v1509
        %1529 = vst [vmem:[#allocation2 + $0x2f8] sm:$0xff] %v1511
        %v1530 = vld [vmem:[%s426] sm:$0xf]
        %v1531 = vld [vmem:[%s426 + $0x4] sm:$0xf]
        %1534 = vrot.lane.b32.xlu0 %v1530, 1
        %v1535 = vpop.permute.xlu0 %1534
        %1536 = vrot.lane.b32.xlu0 %v1531, 1
        %v1537 = vpop.permute.xlu0 %1536
        %vm1540 = vcmask 3072
        %1541 = vst.msk [vmem:[#allocation2 + $0x300] sm:$0xf] %vm1540, %v1535
        %1542 = vst.msk [vmem:[#allocation2 + $0x320] sm:$0xf] %vm1540, %v1537
        %v1543 = vld [vmem:[%s433] sm:$0xff]
        %v1544 = vld [vmem:[%s433 + $0x8] sm:$0xff]
        %v1545 = vld [vmem:[%s433 + $0x10] sm:$0xff]
        %v1546 = vld [vmem:[%s433 + $0x18] sm:$0xff]
        %v1547 = vld [vmem:[%s433 + $0x20] sm:$0xff]
        %v1548 = vld [vmem:[%s433 + $0x28] sm:$0xff]
        %v1549 = vld [vmem:[%s433 + $0x30] sm:$0xff]
        %v1550 = vld [vmem:[%s433 + $0x38] sm:$0xff]
        %1559 = vrot.lane.b32.xlu0 %v1543, 1
        %v1560 = vpop.permute.xlu0 %1559
        %1561 = vrot.lane.b32.xlu0 %v1544, 1
        %v1562 = vpop.permute.xlu0 %1561
        %1563 = vrot.lane.b32.xlu0 %v1545, 1
        %v1564 = vpop.permute.xlu0 %1563
        %1565 = vrot.lane.b32.xlu0 %v1546, 1
        %v1566 = vpop.permute.xlu0 %1565
        %1567 = vrot.lane.b32.xlu0 %v1547, 1
        %v1568 = vpop.permute.xlu0 %1567
        %1569 = vrot.lane.b32.xlu0 %v1548, 1
        %v1570 = vpop.permute.xlu0 %1569
        %1571 = vrot.lane.b32.xlu0 %v1549, 1
        %v1572 = vpop.permute.xlu0 %1571
        %1573 = vrot.lane.b32.xlu0 %v1550, 1
        %v1574 = vpop.permute.xlu0 %1573
        %v1575 = vrot.slane %v1560, 4
        %v1576 = vrot.slane %v1562, 4
        %v1577 = vrot.slane %v1564, 4
        %v1578 = vrot.slane %v1566, 4
        %v1579 = vrot.slane %v1568, 4
        %v1580 = vrot.slane %v1570, 4
        %v1581 = vrot.slane %v1572, 4
        %v1582 = vrot.slane %v1574, 4
        %vm1583 = vcmask 7168
        %v1584 = vsel %vm1583, %v1575, %v1560
        %v1585 = vsel %vm551, %v1575, %v1576
        %v1586 = vsel %vm1583, %v1585, %v1562
        %v1587 = vsel %vm551, %v1576, %v1577
        %v1588 = vsel %vm1583, %v1587, %v1564
        %v1589 = vsel %vm551, %v1577, %v1578
        %v1590 = vsel %vm1583, %v1589, %v1566
        %v1591 = vsel %vm1583, %v1579, %v1568
        %v1592 = vsel %vm551, %v1579, %v1580
        %v1593 = vsel %vm1583, %v1592, %v1570
        %v1594 = vsel %vm551, %v1580, %v1581
        %v1595 = vsel %vm1583, %v1594, %v1572
        %v1596 = vsel %vm551, %v1581, %v1582
        %v1597 = vsel %vm1583, %v1596, %v1574
        %vm1606 = vcmask 1043464
        %vm1607 = vmor %vm574, %vm1606
        %1608 = vst.msk [vmem:[#allocation2 + $0x300] sm:$0xff] %vm1607, %v1584
        %1609 = vst [vmem:[#allocation2 + $0x308] sm:$0xff] %v1586
        %1610 = vst [vmem:[#allocation2 + $0x310] sm:$0xff] %v1588
        %1611 = vst [vmem:[#allocation2 + $0x318] sm:$0xff] %v1590
        %1612 = vst.msk [vmem:[#allocation2 + $0x320] sm:$0xff] %vm1607, %v1591
        %1613 = vst [vmem:[#allocation2 + $0x328] sm:$0xff] %v1593
        %1614 = vst [vmem:[#allocation2 + $0x330] sm:$0xff] %v1595
        %1615 = vst [vmem:[#allocation2 + $0x338] sm:$0xff] %v1597
        %v1616 = vld [vmem:[%s433] sm:$0xff]
        %v1617 = vld [vmem:[%s433 + $0x8] sm:$0xff]
        %v1618 = vld [vmem:[%s433 + $0x10] sm:$0xff]
        %v1619 = vld [vmem:[%s433 + $0x18] sm:$0xff]
        %v1620 = vld [vmem:[%s433 + $0x20] sm:$0xff]
        %v1621 = vld [vmem:[%s433 + $0x28] sm:$0xff]
        %v1622 = vld [vmem:[%s433 + $0x30] sm:$0xff]
        %v1623 = vld [vmem:[%s433 + $0x38] sm:$0xff]
        %1624 = vst [vmem:[#allocation2 + $0x340] sm:$0xff] %v1616
        %1625 = vst [vmem:[#allocation2 + $0x348] sm:$0xff] %v1617
        %1626 = vst [vmem:[#allocation2 + $0x350] sm:$0xff] %v1618
        %1627 = vst [vmem:[#allocation2 + $0x358] sm:$0xff] %v1619
        %1628 = vst [vmem:[#allocation2 + $0x360] sm:$0xff] %v1620
        %1629 = vst [vmem:[#allocation2 + $0x368] sm:$0xff] %v1621
        %1630 = vst [vmem:[#allocation2 + $0x370] sm:$0xff] %v1622
        %1631 = vst [vmem:[#allocation2 + $0x378] sm:$0xff] %v1623
        %v1632 = vld [vmem:[%s433] sm:$0xff]
        %v1633 = vld [vmem:[%s433 + $0x8] sm:$0xff]
        %v1634 = vld [vmem:[%s433 + $0x10] sm:$0xff]
        %v1635 = vld [vmem:[%s433 + $0x18] sm:$0xff]
        %v1636 = vld [vmem:[%s433 + $0x20] sm:$0xff]
        %v1637 = vld [vmem:[%s433 + $0x28] sm:$0xff]
        %v1638 = vld [vmem:[%s433 + $0x30] sm:$0xff]
        %v1639 = vld [vmem:[%s433 + $0x38] sm:$0xff]
        %1648 = vrot.lane.b32.xlu0 %v1632, 127
        %v1649 = vpop.permute.xlu0 %1648
        %1650 = vrot.lane.b32.xlu0 %v1633, 127
        %v1651 = vpop.permute.xlu0 %1650
        %1652 = vrot.lane.b32.xlu0 %v1634, 127
        %v1653 = vpop.permute.xlu0 %1652
        %1654 = vrot.lane.b32.xlu0 %v1635, 127
        %v1655 = vpop.permute.xlu0 %1654
        %1656 = vrot.lane.b32.xlu0 %v1636, 127
        %v1657 = vpop.permute.xlu0 %1656
        %1658 = vrot.lane.b32.xlu0 %v1637, 127
        %v1659 = vpop.permute.xlu0 %1658
        %1660 = vrot.lane.b32.xlu0 %v1638, 127
        %v1661 = vpop.permute.xlu0 %1660
        %1662 = vrot.lane.b32.xlu0 %v1639, 127
        %v1663 = vpop.permute.xlu0 %1662
        %v1664 = vrot.slane %v1649, 4
        %v1665 = vrot.slane %v1651, 4
        %v1666 = vrot.slane %v1653, 4
        %v1667 = vrot.slane %v1655, 4
        %v1668 = vrot.slane %v1657, 4
        %v1669 = vrot.slane %v1659, 4
        %v1670 = vrot.slane %v1661, 4
        %v1671 = vrot.slane %v1663, 4
        %v1672 = vsel %vm551, %v1664, %v1665
        %vm1673 = vcmask 1039360
        %v1674 = vsel %vm1673, %v1649, %v1672
        %v1675 = vsel %vm551, %v1665, %v1666
        %v1676 = vsel %vm1673, %v1651, %v1675
        %v1677 = vsel %vm551, %v1666, %v1667
        %v1678 = vsel %vm1673, %v1653, %v1677
        %v1679 = vsel %vm1673, %v1655, %v1667
        %v1680 = vsel %vm551, %v1668, %v1669
        %v1681 = vsel %vm1673, %v1657, %v1680
        %v1682 = vsel %vm551, %v1669, %v1670
        %v1683 = vsel %vm1673, %v1659, %v1682
        %v1684 = vsel %vm551, %v1670, %v1671
        %v1685 = vsel %vm1673, %v1661, %v1684
        %v1686 = vsel %vm1673, %v1663, %v1671
        %1695 = vst [vmem:[#allocation2 + $0x380] sm:$0xff] %v1674
        %1696 = vst [vmem:[#allocation2 + $0x388] sm:$0xff] %v1676
        %1697 = vst [vmem:[#allocation2 + $0x390] sm:$0xff] %v1678
        %vm1698 = vcmask 1043456
        %vm1699 = vcmask 1039364
        %vm1700 = vmor %vm1699, %vm1698
        %1701 = vst.msk [vmem:[#allocation2 + $0x398] sm:$0xff] %vm1700, %v1679
        %1702 = vst [vmem:[#allocation2 + $0x3a0] sm:$0xff] %v1681
        %1703 = vst [vmem:[#allocation2 + $0x3a8] sm:$0xff] %v1683
        %1704 = vst [vmem:[#allocation2 + $0x3b0] sm:$0xff] %v1685
        %1705 = vst.msk [vmem:[#allocation2 + $0x3b8] sm:$0xff] %vm1700, %v1686
        %v1706 = vld [vmem:[%s440] sm:$0xf]
        %v1707 = vld [vmem:[%s440 + $0x4] sm:$0xf]
        %1710 = vrot.lane.b32.xlu0 %v1706, 127
        %v1711 = vpop.permute.xlu0 %1710
        %1712 = vrot.lane.b32.xlu0 %v1707, 127
        %v1713 = vpop.permute.xlu0 %1712
        %vm1716 = vcmask 1044472
        %1717 = vst.msk [vmem:[#allocation2 + $0x39c] sm:$0xf] %vm1716, %v1711
        %1718 = vst.msk [vmem:[#allocation2 + $0x3bc] sm:$0xf] %vm1716, %v1713
        %v1719 = vld [vmem:[%s433] sm:$0xff]
        %v1720 = vld [vmem:[%s433 + $0x8] sm:$0xff]
        %v1721 = vld [vmem:[%s433 + $0x10] sm:$0xff]
        %v1722 = vld [vmem:[%s433 + $0x18] sm:$0xff]
        %v1723 = vld [vmem:[%s433 + $0x20] sm:$0xff]
        %v1724 = vld [vmem:[%s433 + $0x28] sm:$0xff]
        %v1725 = vld [vmem:[%s433 + $0x30] sm:$0xff]
        %v1726 = vld [vmem:[%s433 + $0x38] sm:$0xff]
        %1735 = vrot.lane.b32.xlu0 %v1719, 119
        %v1736 = vpop.permute.xlu0 %1735
        %1737 = vrot.lane.b32.xlu0 %v1720, 119
        %v1738 = vpop.permute.xlu0 %1737
        %1739 = vrot.lane.b32.xlu0 %v1721, 119
        %v1740 = vpop.permute.xlu0 %1739
        %1741 = vrot.lane.b32.xlu0 %v1722, 119
        %v1742 = vpop.permute.xlu0 %1741
        %1743 = vrot.lane.b32.xlu0 %v1723, 119
        %v1744 = vpop.permute.xlu0 %1743
        %1745 = vrot.lane.b32.xlu0 %v1724, 119
        %v1746 = vpop.permute.xlu0 %1745
        %1747 = vrot.lane.b32.xlu0 %v1725, 119
        %v1748 = vpop.permute.xlu0 %1747
        %1749 = vrot.lane.b32.xlu0 %v1726, 119
        %v1750 = vpop.permute.xlu0 %1749
        %v1751 = vrot.slane %v1736, 4
        %v1752 = vrot.slane %v1738, 4
        %v1753 = vrot.slane %v1740, 4
        %v1754 = vrot.slane %v1742, 4
        %v1755 = vrot.slane %v1744, 4
        %v1756 = vrot.slane %v1746, 4
        %v1757 = vrot.slane %v1748, 4
        %v1758 = vrot.slane %v1750, 4
        %v1759 = vsel %vm551, %v1751, %v1752
        %vm1760 = vcmask 973824
        %v1761 = vsel %vm1760, %v1736, %v1759
        %v1762 = vsel %vm551, %v1752, %v1753
        %v1763 = vsel %vm1760, %v1738, %v1762
        %v1764 = vsel %vm551, %v1753, %v1754
        %v1765 = vsel %vm1760, %v1740, %v1764
        %v1766 = vsel %vm1760, %v1742, %v1754
        %v1767 = vsel %vm551, %v1755, %v1756
        %v1768 = vsel %vm1760, %v1744, %v1767
        %v1769 = vsel %vm551, %v1756, %v1757
        %v1770 = vsel %vm1760, %v1746, %v1769
        %v1771 = vsel %vm551, %v1757, %v1758
        %v1772 = vsel %vm1760, %v1748, %v1771
        %v1773 = vsel %vm1760, %v1750, %v1758
        %1782 = vst [vmem:[#allocation2 + $0x3c0] sm:$0xff] %v1761
        %1783 = vst [vmem:[#allocation2 + $0x3c8] sm:$0xff] %v1763
        %1784 = vst [vmem:[#allocation2 + $0x3d0] sm:$0xff] %v1765
        %vm1785 = vcmask 973828
        %vm1786 = vmor %vm1785, %vm1698
        %1787 = vst.msk [vmem:[#allocation2 + $0x3d8] sm:$0xff] %vm1786, %v1766
        %1788 = vst [vmem:[#allocation2 + $0x3e0] sm:$0xff] %v1768
        %1789 = vst [vmem:[#allocation2 + $0x3e8] sm:$0xff] %v1770
        %1790 = vst [vmem:[#allocation2 + $0x3f0] sm:$0xff] %v1772
        %1791 = vst.msk [vmem:[#allocation2 + $0x3f8] sm:$0xff] %vm1786, %v1773
        %v1792 = vld [vmem:[%s440] sm:$0xf]
        %v1793 = vld [vmem:[%s440 + $0x4] sm:$0xf]
        %1796 = vrot.lane.b32.xlu0 %v1792, 119
        %v1797 = vpop.permute.xlu0 %1796
        %1798 = vrot.lane.b32.xlu0 %v1793, 119
        %v1799 = vpop.permute.xlu0 %1798
        %vm1802 = vcmask 1044408
        %1803 = vst.msk [vmem:[#allocation2 + $0x3dc] sm:$0xf] %vm1802, %v1797
        %1804 = vst.msk [vmem:[#allocation2 + $0x3fc] sm:$0xf] %vm1802, %v1799
        %v1805 = vld [vmem:[%s433] sm:$0xff]
        %v1806 = vld [vmem:[%s433 + $0x8] sm:$0xff]
        %v1807 = vld [vmem:[%s433 + $0x10] sm:$0xff]
        %v1808 = vld [vmem:[%s433 + $0x18] sm:$0xff]
        %v1809 = vld [vmem:[%s433 + $0x20] sm:$0xff]
        %v1810 = vld [vmem:[%s433 + $0x28] sm:$0xff]
        %v1811 = vld [vmem:[%s433 + $0x30] sm:$0xff]
        %v1812 = vld [vmem:[%s433 + $0x38] sm:$0xff]
        %1821 = vrot.lane.b32.xlu0 %v1805, 118
        %v1822 = vpop.permute.xlu0 %1821
        %1823 = vrot.lane.b32.xlu0 %v1806, 118
        %v1824 = vpop.permute.xlu0 %1823
        %1825 = vrot.lane.b32.xlu0 %v1807, 118
        %v1826 = vpop.permute.xlu0 %1825
        %1827 = vrot.lane.b32.xlu0 %v1808, 118
        %v1828 = vpop.permute.xlu0 %1827
        %1829 = vrot.lane.b32.xlu0 %v1809, 118
        %v1830 = vpop.permute.xlu0 %1829
        %1831 = vrot.lane.b32.xlu0 %v1810, 118
        %v1832 = vpop.permute.xlu0 %1831
        %1833 = vrot.lane.b32.xlu0 %v1811, 118
        %v1834 = vpop.permute.xlu0 %1833
        %1835 = vrot.lane.b32.xlu0 %v1812, 118
        %v1836 = vpop.permute.xlu0 %1835
        %v1837 = vrot.slane %v1822, 4
        %v1838 = vrot.slane %v1824, 4
        %v1839 = vrot.slane %v1826, 4
        %v1840 = vrot.slane %v1828, 4
        %v1841 = vrot.slane %v1830, 4
        %v1842 = vrot.slane %v1832, 4
        %v1843 = vrot.slane %v1834, 4
        %v1844 = vrot.slane %v1836, 4
        %v1845 = vsel %vm551, %v1837, %v1838
        %vm1846 = vcmask 965632
        %v1847 = vsel %vm1846, %v1822, %v1845
        %v1848 = vsel %vm551, %v1838, %v1839
        %v1849 = vsel %vm1846, %v1824, %v1848
        %v1850 = vsel %vm551, %v1839, %v1840
        %v1851 = vsel %vm1846, %v1826, %v1850
        %v1852 = vsel %vm1846, %v1828, %v1840
        %v1853 = vsel %vm551, %v1841, %v1842
        %v1854 = vsel %vm1846, %v1830, %v1853
        %v1855 = vsel %vm551, %v1842, %v1843
        %v1856 = vsel %vm1846, %v1832, %v1855
        %v1857 = vsel %vm551, %v1843, %v1844
        %v1858 = vsel %vm1846, %v1834, %v1857
        %v1859 = vsel %vm1846, %v1836, %v1844
        %1868 = vst [vmem:[#allocation2 + $0x400] sm:$0xff] %v1847
        %1869 = vst [vmem:[#allocation2 + $0x408] sm:$0xff] %v1849
        %1870 = vst [vmem:[#allocation2 + $0x410] sm:$0xff] %v1851
        %vm1871 = vcmask 965636
        %vm1872 = vmor %vm1871, %vm1698
        %1873 = vst.msk [vmem:[#allocation2 + $0x418] sm:$0xff] %vm1872, %v1852
        %1874 = vst [vmem:[#allocation2 + $0x420] sm:$0xff] %v1854
        %1875 = vst [vmem:[#allocation2 + $0x428] sm:$0xff] %v1856
        %1876 = vst [vmem:[#allocation2 + $0x430] sm:$0xff] %v1858
        %1877 = vst.msk [vmem:[#allocation2 + $0x438] sm:$0xff] %vm1872, %v1859
        %v1878 = vld [vmem:[%s440] sm:$0xf]
        %v1879 = vld [vmem:[%s440 + $0x4] sm:$0xf]
        %1882 = vrot.lane.b32.xlu0 %v1878, 118
        %v1883 = vpop.permute.xlu0 %1882
        %1884 = vrot.lane.b32.xlu0 %v1879, 118
        %v1885 = vpop.permute.xlu0 %1884
        %vm1888 = vcmask 1044400
        %1889 = vst.msk [vmem:[#allocation2 + $0x41c] sm:$0xf] %vm1888, %v1883
        %1890 = vst.msk [vmem:[#allocation2 + $0x43c] sm:$0xf] %vm1888, %v1885
        %v1891 = vld [vmem:[%s433] sm:$0xff]
        %v1892 = vld [vmem:[%s433 + $0x8] sm:$0xff]
        %v1893 = vld [vmem:[%s433 + $0x10] sm:$0xff]
        %v1894 = vld [vmem:[%s433 + $0x18] sm:$0xff]
        %v1895 = vld [vmem:[%s433 + $0x20] sm:$0xff]
        %v1896 = vld [vmem:[%s433 + $0x28] sm:$0xff]
        %v1897 = vld [vmem:[%s433 + $0x30] sm:$0xff]
        %v1898 = vld [vmem:[%s433 + $0x38] sm:$0xff]
        %1907 = vrot.lane.b32.xlu0 %v1891, 117
        %v1908 = vpop.permute.xlu0 %1907
        %1909 = vrot.lane.b32.xlu0 %v1892, 117
        %v1910 = vpop.permute.xlu0 %1909
        %1911 = vrot.lane.b32.xlu0 %v1893, 117
        %v1912 = vpop.permute.xlu0 %1911
        %1913 = vrot.lane.b32.xlu0 %v1894, 117
        %v1914 = vpop.permute.xlu0 %1913
        %1915 = vrot.lane.b32.xlu0 %v1895, 117
        %v1916 = vpop.permute.xlu0 %1915
        %1917 = vrot.lane.b32.xlu0 %v1896, 117
        %v1918 = vpop.permute.xlu0 %1917
        %1919 = vrot.lane.b32.xlu0 %v1897, 117
        %v1920 = vpop.permute.xlu0 %1919
        %1921 = vrot.lane.b32.xlu0 %v1898, 117
        %v1922 = vpop.permute.xlu0 %1921
        %v1923 = vrot.slane %v1908, 4
        %v1924 = vrot.slane %v1910, 4
        %v1925 = vrot.slane %v1912, 4
        %v1926 = vrot.slane %v1914, 4
        %v1927 = vrot.slane %v1916, 4
        %v1928 = vrot.slane %v1918, 4
        %v1929 = vrot.slane %v1920, 4
        %v1930 = vrot.slane %v1922, 4
        %v1931 = vsel %vm551, %v1923, %v1924
        %vm1932 = vcmask 957440
        %v1933 = vsel %vm1932, %v1908, %v1931
        %v1934 = vsel %vm551, %v1924, %v1925
        %v1935 = vsel %vm1932, %v1910, %v1934
        %v1936 = vsel %vm551, %v1925, %v1926
        %v1937 = vsel %vm1932, %v1912, %v1936
        %v1938 = vsel %vm1932, %v1914, %v1926
        %v1939 = vsel %vm551, %v1927, %v1928
        %v1940 = vsel %vm1932, %v1916, %v1939
        %v1941 = vsel %vm551, %v1928, %v1929
        %v1942 = vsel %vm1932, %v1918, %v1941
        %v1943 = vsel %vm551, %v1929, %v1930
        %v1944 = vsel %vm1932, %v1920, %v1943
        %v1945 = vsel %vm1932, %v1922, %v1930
        %1954 = vst [vmem:[#allocation2 + $0x440] sm:$0xff] %v1933
        %1955 = vst [vmem:[#allocation2 + $0x448] sm:$0xff] %v1935
        %1956 = vst [vmem:[#allocation2 + $0x450] sm:$0xff] %v1937
        %vm1957 = vcmask 957444
        %vm1958 = vmor %vm1957, %vm1698
        %1959 = vst.msk [vmem:[#allocation2 + $0x458] sm:$0xff] %vm1958, %v1938
        %1960 = vst [vmem:[#allocation2 + $0x460] sm:$0xff] %v1940
        %1961 = vst [vmem:[#allocation2 + $0x468] sm:$0xff] %v1942
        %1962 = vst [vmem:[#allocation2 + $0x470] sm:$0xff] %v1944
        %1963 = vst.msk [vmem:[#allocation2 + $0x478] sm:$0xff] %vm1958, %v1945
        %v1964 = vld [vmem:[%s440] sm:$0xf]
        %v1965 = vld [vmem:[%s440 + $0x4] sm:$0xf]
        %1968 = vrot.lane.b32.xlu0 %v1964, 117
        %v1969 = vpop.permute.xlu0 %1968
        %1970 = vrot.lane.b32.xlu0 %v1965, 117
        %v1971 = vpop.permute.xlu0 %1970
        %vm1974 = vcmask 1044392
        %1975 = vst.msk [vmem:[#allocation2 + $0x45c] sm:$0xf] %vm1974, %v1969
        %1976 = vst.msk [vmem:[#allocation2 + $0x47c] sm:$0xf] %vm1974, %v1971
        %v1977 = vld [vmem:[%s433] sm:$0xff]
        %v1978 = vld [vmem:[%s433 + $0x8] sm:$0xff]
        %v1979 = vld [vmem:[%s433 + $0x10] sm:$0xff]
        %v1980 = vld [vmem:[%s433 + $0x18] sm:$0xff]
        %v1981 = vld [vmem:[%s433 + $0x20] sm:$0xff]
        %v1982 = vld [vmem:[%s433 + $0x28] sm:$0xff]
        %v1983 = vld [vmem:[%s433 + $0x30] sm:$0xff]
        %v1984 = vld [vmem:[%s433 + $0x38] sm:$0xff]
        %1993 = vrot.lane.b32.xlu0 %v1977, 39
        %v1994 = vpop.permute.xlu0 %1993
        %1995 = vrot.lane.b32.xlu0 %v1978, 39
        %v1996 = vpop.permute.xlu0 %1995
        %1997 = vrot.lane.b32.xlu0 %v1979, 39
        %v1998 = vpop.permute.xlu0 %1997
        %1999 = vrot.lane.b32.xlu0 %v1980, 39
        %v2000 = vpop.permute.xlu0 %1999
        %2001 = vrot.lane.b32.xlu0 %v1981, 39
        %v2002 = vpop.permute.xlu0 %2001
        %2003 = vrot.lane.b32.xlu0 %v1982, 39
        %v2004 = vpop.permute.xlu0 %2003
        %2005 = vrot.lane.b32.xlu0 %v1983, 39
        %v2006 = vpop.permute.xlu0 %2005
        %2007 = vrot.lane.b32.xlu0 %v1984, 39
        %v2008 = vpop.permute.xlu0 %2007
        %v2009 = vrot.slane %v1994, 4
        %v2010 = vrot.slane %v1996, 4
        %v2011 = vrot.slane %v1998, 4
        %v2012 = vrot.slane %v2000, 4
        %v2013 = vrot.slane %v2002, 4
        %v2014 = vrot.slane %v2004, 4
        %v2015 = vrot.slane %v2006, 4
        %v2016 = vrot.slane %v2008, 4
        %v2017 = vsel %vm551, %v2009, %v2010
        %vm2018 = vcmask 318464
        %v2019 = vsel %vm2018, %v1994, %v2017
        %v2020 = vsel %vm551, %v2010, %v2011
        %v2021 = vsel %vm2018, %v1996, %v2020
        %v2022 = vsel %vm551, %v2011, %v2012
        %v2023 = vsel %vm2018, %v1998, %v2022
        %v2024 = vsel %vm2018, %v2000, %v2012
        %v2025 = vsel %vm551, %v2013, %v2014
        %v2026 = vsel %vm2018, %v2002, %v2025
        %v2027 = vsel %vm551, %v2014, %v2015
        %v2028 = vsel %vm2018, %v2004, %v2027
        %v2029 = vsel %vm551, %v2015, %v2016
        %v2030 = vsel %vm2018, %v2006, %v2029
        %v2031 = vsel %vm2018, %v2008, %v2016
        %2040 = vst [vmem:[#allocation2 + $0x480] sm:$0xff] %v2019
        %2041 = vst [vmem:[#allocation2 + $0x488] sm:$0xff] %v2021
        %2042 = vst [vmem:[#allocation2 + $0x490] sm:$0xff] %v2023
        %vm2043 = vcmask 318468
        %vm2044 = vmor %vm2043, %vm1698
        %2045 = vst.msk [vmem:[#allocation2 + $0x498] sm:$0xff] %vm2044, %v2024
        %2046 = vst [vmem:[#allocation2 + $0x4a0] sm:$0xff] %v2026
        %2047 = vst [vmem:[#allocation2 + $0x4a8] sm:$0xff] %v2028
        %2048 = vst [vmem:[#allocation2 + $0x4b0] sm:$0xff] %v2030
        %2049 = vst.msk [vmem:[#allocation2 + $0x4b8] sm:$0xff] %vm2044, %v2031
        %v2050 = vld [vmem:[%s440] sm:$0xf]
        %v2051 = vld [vmem:[%s440 + $0x4] sm:$0xf]
        %2054 = vrot.lane.b32.xlu0 %v2050, 39
        %v2055 = vpop.permute.xlu0 %2054
        %2056 = vrot.lane.b32.xlu0 %v2051, 39
        %v2057 = vpop.permute.xlu0 %2056
        %vm2060 = vcmask 1043768
        %2061 = vst.msk [vmem:[#allocation2 + $0x49c] sm:$0xf] %vm2060, %v2055
        %2062 = vst.msk [vmem:[#allocation2 + $0x4bc] sm:$0xf] %vm2060, %v2057
        %v2063 = vld [vmem:[%s433] sm:$0xff]
        %v2064 = vld [vmem:[%s433 + $0x8] sm:$0xff]
        %v2065 = vld [vmem:[%s433 + $0x10] sm:$0xff]
        %v2066 = vld [vmem:[%s433 + $0x18] sm:$0xff]
        %v2067 = vld [vmem:[%s433 + $0x20] sm:$0xff]
        %v2068 = vld [vmem:[%s433 + $0x28] sm:$0xff]
        %v2069 = vld [vmem:[%s433 + $0x30] sm:$0xff]
        %v2070 = vld [vmem:[%s433 + $0x38] sm:$0xff]
        %2079 = vrot.lane.b32.xlu0 %v2063, 38
        %v2080 = vpop.permute.xlu0 %2079
        %2081 = vrot.lane.b32.xlu0 %v2064, 38
        %v2082 = vpop.permute.xlu0 %2081
        %2083 = vrot.lane.b32.xlu0 %v2065, 38
        %v2084 = vpop.permute.xlu0 %2083
        %2085 = vrot.lane.b32.xlu0 %v2066, 38
        %v2086 = vpop.permute.xlu0 %2085
        %2087 = vrot.lane.b32.xlu0 %v2067, 38
        %v2088 = vpop.permute.xlu0 %2087
        %2089 = vrot.lane.b32.xlu0 %v2068, 38
        %v2090 = vpop.permute.xlu0 %2089
        %2091 = vrot.lane.b32.xlu0 %v2069, 38
        %v2092 = vpop.permute.xlu0 %2091
        %2093 = vrot.lane.b32.xlu0 %v2070, 38
        %v2094 = vpop.permute.xlu0 %2093
        %v2095 = vrot.slane %v2080, 4
        %v2096 = vrot.slane %v2082, 4
        %v2097 = vrot.slane %v2084, 4
        %v2098 = vrot.slane %v2086, 4
        %v2099 = vrot.slane %v2088, 4
        %v2100 = vrot.slane %v2090, 4
        %v2101 = vrot.slane %v2092, 4
        %v2102 = vrot.slane %v2094, 4
        %v2103 = vsel %vm551, %v2095, %v2096
        %vm2104 = vcmask 310272
        %v2105 = vsel %vm2104, %v2080, %v2103
        %v2106 = vsel %vm551, %v2096, %v2097
        %v2107 = vsel %vm2104, %v2082, %v2106
        %v2108 = vsel %vm551, %v2097, %v2098
        %v2109 = vsel %vm2104, %v2084, %v2108
        %v2110 = vsel %vm2104, %v2086, %v2098
        %v2111 = vsel %vm551, %v2099, %v2100
        %v2112 = vsel %vm2104, %v2088, %v2111
        %v2113 = vsel %vm551, %v2100, %v2101
        %v2114 = vsel %vm2104, %v2090, %v2113
        %v2115 = vsel %vm551, %v2101, %v2102
        %v2116 = vsel %vm2104, %v2092, %v2115
        %v2117 = vsel %vm2104, %v2094, %v2102
        %2126 = vst [vmem:[#allocation2 + $0x4c0] sm:$0xff] %v2105
        %2127 = vst [vmem:[#allocation2 + $0x4c8] sm:$0xff] %v2107
        %2128 = vst [vmem:[#allocation2 + $0x4d0] sm:$0xff] %v2109
        %vm2129 = vcmask 310276
        %vm2130 = vmor %vm2129, %vm1698
        %2131 = vst.msk [vmem:[#allocation2 + $0x4d8] sm:$0xff] %vm2130, %v2110
        %2132 = vst [vmem:[#allocation2 + $0x4e0] sm:$0xff] %v2112
        %2133 = vst [vmem:[#allocation2 + $0x4e8] sm:$0xff] %v2114
        %2134 = vst [vmem:[#allocation2 + $0x4f0] sm:$0xff] %v2116
        %2135 = vst.msk [vmem:[#allocation2 + $0x4f8] sm:$0xff] %vm2130, %v2117
        %v2136 = vld [vmem:[%s440] sm:$0xf]
        %v2137 = vld [vmem:[%s440 + $0x4] sm:$0xf]
        %2140 = vrot.lane.b32.xlu0 %v2136, 38
        %v2141 = vpop.permute.xlu0 %2140
        %2142 = vrot.lane.b32.xlu0 %v2137, 38
        %v2143 = vpop.permute.xlu0 %2142
        %vm2146 = vcmask 1043760
        %2147 = vst.msk [vmem:[#allocation2 + $0x4dc] sm:$0xf] %vm2146, %v2141
        %2148 = vst.msk [vmem:[#allocation2 + $0x4fc] sm:$0xf] %vm2146, %v2143
        %v2149 = vld [vmem:[%s433] sm:$0xff]
        %v2150 = vld [vmem:[%s433 + $0x8] sm:$0xff]
        %v2151 = vld [vmem:[%s433 + $0x10] sm:$0xff]
        %v2152 = vld [vmem:[%s433 + $0x18] sm:$0xff]
        %v2153 = vld [vmem:[%s433 + $0x20] sm:$0xff]
        %v2154 = vld [vmem:[%s433 + $0x28] sm:$0xff]
        %v2155 = vld [vmem:[%s433 + $0x30] sm:$0xff]
        %v2156 = vld [vmem:[%s433 + $0x38] sm:$0xff]
        %2165 = vrot.lane.b32.xlu0 %v2149, 37
        %v2166 = vpop.permute.xlu0 %2165
        %2167 = vrot.lane.b32.xlu0 %v2150, 37
        %v2168 = vpop.permute.xlu0 %2167
        %2169 = vrot.lane.b32.xlu0 %v2151, 37
        %v2170 = vpop.permute.xlu0 %2169
        %2171 = vrot.lane.b32.xlu0 %v2152, 37
        %v2172 = vpop.permute.xlu0 %2171
        %2173 = vrot.lane.b32.xlu0 %v2153, 37
        %v2174 = vpop.permute.xlu0 %2173
        %2175 = vrot.lane.b32.xlu0 %v2154, 37
        %v2176 = vpop.permute.xlu0 %2175
        %2177 = vrot.lane.b32.xlu0 %v2155, 37
        %v2178 = vpop.permute.xlu0 %2177
        %2179 = vrot.lane.b32.xlu0 %v2156, 37
        %v2180 = vpop.permute.xlu0 %2179
        %v2181 = vrot.slane %v2166, 4
        %v2182 = vrot.slane %v2168, 4
        %v2183 = vrot.slane %v2170, 4
        %v2184 = vrot.slane %v2172, 4
        %v2185 = vrot.slane %v2174, 4
        %v2186 = vrot.slane %v2176, 4
        %v2187 = vrot.slane %v2178, 4
        %v2188 = vrot.slane %v2180, 4
        %v2189 = vsel %vm551, %v2181, %v2182
        %vm2190 = vcmask 302080
        %v2191 = vsel %vm2190, %v2166, %v2189
        %v2192 = vsel %vm551, %v2182, %v2183
        %v2193 = vsel %vm2190, %v2168, %v2192
        %v2194 = vsel %vm551, %v2183, %v2184
        %v2195 = vsel %vm2190, %v2170, %v2194
        %v2196 = vsel %vm2190, %v2172, %v2184
        %v2197 = vsel %vm551, %v2185, %v2186
        %v2198 = vsel %vm2190, %v2174, %v2197
        %v2199 = vsel %vm551, %v2186, %v2187
        %v2200 = vsel %vm2190, %v2176, %v2199
        %v2201 = vsel %vm551, %v2187, %v2188
        %v2202 = vsel %vm2190, %v2178, %v2201
        %v2203 = vsel %vm2190, %v2180, %v2188
        %2212 = vst [vmem:[#allocation2 + $0x500] sm:$0xff] %v2191
        %2213 = vst [vmem:[#allocation2 + $0x508] sm:$0xff] %v2193
        %2214 = vst [vmem:[#allocation2 + $0x510] sm:$0xff] %v2195
        %vm2215 = vcmask 302084
        %vm2216 = vmor %vm2215, %vm1698
        %2217 = vst.msk [vmem:[#allocation2 + $0x518] sm:$0xff] %vm2216, %v2196
        %2218 = vst [vmem:[#allocation2 + $0x520] sm:$0xff] %v2198
        %2219 = vst [vmem:[#allocation2 + $0x528] sm:$0xff] %v2200
        %2220 = vst [vmem:[#allocation2 + $0x530] sm:$0xff] %v2202
        %2221 = vst.msk [vmem:[#allocation2 + $0x538] sm:$0xff] %vm2216, %v2203
        %v2222 = vld [vmem:[%s440] sm:$0xf]
        %v2223 = vld [vmem:[%s440 + $0x4] sm:$0xf]
        %2226 = vrot.lane.b32.xlu0 %v2222, 37
        %v2227 = vpop.permute.xlu0 %2226
        %2228 = vrot.lane.b32.xlu0 %v2223, 37
        %v2229 = vpop.permute.xlu0 %2228
        %vm2232 = vcmask 1043752
        %2233 = vst.msk [vmem:[#allocation2 + $0x51c] sm:$0xf] %vm2232, %v2227
        %2234 = vst.msk [vmem:[#allocation2 + $0x53c] sm:$0xf] %vm2232, %v2229
        %v2235 = vld [vmem:[%s433] sm:$0xff]
        %v2236 = vld [vmem:[%s433 + $0x8] sm:$0xff]
        %v2237 = vld [vmem:[%s433 + $0x10] sm:$0xff]
        %v2238 = vld [vmem:[%s433 + $0x18] sm:$0xff]
        %v2239 = vld [vmem:[%s433 + $0x20] sm:$0xff]
        %v2240 = vld [vmem:[%s433 + $0x28] sm:$0xff]
        %v2241 = vld [vmem:[%s433 + $0x30] sm:$0xff]
        %v2242 = vld [vmem:[%s433 + $0x38] sm:$0xff]
        %2251 = vrot.lane.b32.xlu0 %v2235, 29
        %v2252 = vpop.permute.xlu0 %2251
        %2253 = vrot.lane.b32.xlu0 %v2236, 29
        %v2254 = vpop.permute.xlu0 %2253
        %2255 = vrot.lane.b32.xlu0 %v2237, 29
        %v2256 = vpop.permute.xlu0 %2255
        %2257 = vrot.lane.b32.xlu0 %v2238, 29
        %v2258 = vpop.permute.xlu0 %2257
        %2259 = vrot.lane.b32.xlu0 %v2239, 29
        %v2260 = vpop.permute.xlu0 %2259
        %2261 = vrot.lane.b32.xlu0 %v2240, 29
        %v2262 = vpop.permute.xlu0 %2261
        %2263 = vrot.lane.b32.xlu0 %v2241, 29
        %v2264 = vpop.permute.xlu0 %2263
        %2265 = vrot.lane.b32.xlu0 %v2242, 29
        %v2266 = vpop.permute.xlu0 %2265
        %v2267 = vrot.slane %v2252, 4
        %v2268 = vrot.slane %v2254, 4
        %v2269 = vrot.slane %v2256, 4
        %v2270 = vrot.slane %v2258, 4
        %v2271 = vrot.slane %v2260, 4
        %v2272 = vrot.slane %v2262, 4
        %v2273 = vrot.slane %v2264, 4
        %v2274 = vrot.slane %v2266, 4
        %v2275 = vsel %vm551, %v2267, %v2268
        %vm2276 = vcmask 236544
        %v2277 = vsel %vm2276, %v2252, %v2275
        %v2278 = vsel %vm551, %v2268, %v2269
        %v2279 = vsel %vm2276, %v2254, %v2278
        %v2280 = vsel %vm551, %v2269, %v2270
        %v2281 = vsel %vm2276, %v2256, %v2280
        %v2282 = vsel %vm2276, %v2258, %v2270
        %v2283 = vsel %vm551, %v2271, %v2272
        %v2284 = vsel %vm2276, %v2260, %v2283
        %v2285 = vsel %vm551, %v2272, %v2273
        %v2286 = vsel %vm2276, %v2262, %v2285
        %v2287 = vsel %vm551, %v2273, %v2274
        %v2288 = vsel %vm2276, %v2264, %v2287
        %v2289 = vsel %vm2276, %v2266, %v2274
        %2298 = vst [vmem:[#allocation2 + $0x540] sm:$0xff] %v2277
        %2299 = vst [vmem:[#allocation2 + $0x548] sm:$0xff] %v2279
        %2300 = vst [vmem:[#allocation2 + $0x550] sm:$0xff] %v2281
        %vm2301 = vcmask 236548
        %vm2302 = vmor %vm2301, %vm1698
        %2303 = vst.msk [vmem:[#allocation2 + $0x558] sm:$0xff] %vm2302, %v2282
        %2304 = vst [vmem:[#allocation2 + $0x560] sm:$0xff] %v2284
        %2305 = vst [vmem:[#allocation2 + $0x568] sm:$0xff] %v2286
        %2306 = vst [vmem:[#allocation2 + $0x570] sm:$0xff] %v2288
        %2307 = vst.msk [vmem:[#allocation2 + $0x578] sm:$0xff] %vm2302, %v2289
        %v2308 = vld [vmem:[%s440] sm:$0xf]
        %v2309 = vld [vmem:[%s440 + $0x4] sm:$0xf]
        %2312 = vrot.lane.b32.xlu0 %v2308, 29
        %v2313 = vpop.permute.xlu0 %2312
        %2314 = vrot.lane.b32.xlu0 %v2309, 29
        %v2315 = vpop.permute.xlu0 %2314
        %vm2318 = vcmask 1043688
        %2319 = vst.msk [vmem:[#allocation2 + $0x55c] sm:$0xf] %vm2318, %v2313
        %2320 = vst.msk [vmem:[#allocation2 + $0x57c] sm:$0xf] %vm2318, %v2315
        %v2321 = vld [vmem:[%s433] sm:$0xff]
        %v2322 = vld [vmem:[%s433 + $0x8] sm:$0xff]
        %v2323 = vld [vmem:[%s433 + $0x10] sm:$0xff]
        %v2324 = vld [vmem:[%s433 + $0x18] sm:$0xff]
        %v2325 = vld [vmem:[%s433 + $0x20] sm:$0xff]
        %v2326 = vld [vmem:[%s433 + $0x28] sm:$0xff]
        %v2327 = vld [vmem:[%s433 + $0x30] sm:$0xff]
        %v2328 = vld [vmem:[%s433 + $0x38] sm:$0xff]
        %2337 = vrot.lane.b32.xlu0 %v2321, 28
        %v2338 = vpop.permute.xlu0 %2337
        %2339 = vrot.lane.b32.xlu0 %v2322, 28
        %v2340 = vpop.permute.xlu0 %2339
        %2341 = vrot.lane.b32.xlu0 %v2323, 28
        %v2342 = vpop.permute.xlu0 %2341
        %2343 = vrot.lane.b32.xlu0 %v2324, 28
        %v2344 = vpop.permute.xlu0 %2343
        %2345 = vrot.lane.b32.xlu0 %v2325, 28
        %v2346 = vpop.permute.xlu0 %2345
        %2347 = vrot.lane.b32.xlu0 %v2326, 28
        %v2348 = vpop.permute.xlu0 %2347
        %2349 = vrot.lane.b32.xlu0 %v2327, 28
        %v2350 = vpop.permute.xlu0 %2349
        %2351 = vrot.lane.b32.xlu0 %v2328, 28
        %v2352 = vpop.permute.xlu0 %2351
        %v2353 = vrot.slane %v2338, 4
        %v2354 = vrot.slane %v2340, 4
        %v2355 = vrot.slane %v2342, 4
        %v2356 = vrot.slane %v2344, 4
        %v2357 = vrot.slane %v2346, 4
        %v2358 = vrot.slane %v2348, 4
        %v2359 = vrot.slane %v2350, 4
        %v2360 = vrot.slane %v2352, 4
        %v2361 = vsel %vm551, %v2353, %v2354
        %vm2362 = vcmask 228352
        %v2363 = vsel %vm2362, %v2338, %v2361
        %v2364 = vsel %vm551, %v2354, %v2355
        %v2365 = vsel %vm2362, %v2340, %v2364
        %v2366 = vsel %vm551, %v2355, %v2356
        %v2367 = vsel %vm2362, %v2342, %v2366
        %v2368 = vsel %vm2362, %v2344, %v2356
        %v2369 = vsel %vm551, %v2357, %v2358
        %v2370 = vsel %vm2362, %v2346, %v2369
        %v2371 = vsel %vm551, %v2358, %v2359
        %v2372 = vsel %vm2362, %v2348, %v2371
        %v2373 = vsel %vm551, %v2359, %v2360
        %v2374 = vsel %vm2362, %v2350, %v2373
        %v2375 = vsel %vm2362, %v2352, %v2360
        %2384 = vst [vmem:[#allocation2 + $0x580] sm:$0xff] %v2363
        %2385 = vst [vmem:[#allocation2 + $0x588] sm:$0xff] %v2365
        %2386 = vst [vmem:[#allocation2 + $0x590] sm:$0xff] %v2367
        %vm2387 = vcmask 228356
        %vm2388 = vmor %vm2387, %vm1698
        %2389 = vst.msk [vmem:[#allocation2 + $0x598] sm:$0xff] %vm2388, %v2368
        %2390 = vst [vmem:[#allocation2 + $0x5a0] sm:$0xff] %v2370
        %2391 = vst [vmem:[#allocation2 + $0x5a8] sm:$0xff] %v2372
        %2392 = vst [vmem:[#allocation2 + $0x5b0] sm:$0xff] %v2374
        %2393 = vst.msk [vmem:[#allocation2 + $0x5b8] sm:$0xff] %vm2388, %v2375
        %v2394 = vld [vmem:[%s440] sm:$0xf]
        %v2395 = vld [vmem:[%s440 + $0x4] sm:$0xf]
        %2398 = vrot.lane.b32.xlu0 %v2394, 28
        %v2399 = vpop.permute.xlu0 %2398
        %2400 = vrot.lane.b32.xlu0 %v2395, 28
        %v2401 = vpop.permute.xlu0 %2400
        %vm2404 = vcmask 1043680
        %2405 = vst.msk [vmem:[#allocation2 + $0x59c] sm:$0xf] %vm2404, %v2399
        %2406 = vst.msk [vmem:[#allocation2 + $0x5bc] sm:$0xf] %vm2404, %v2401
        %v2407 = vld [vmem:[%s433] sm:$0xff]
        %v2408 = vld [vmem:[%s433 + $0x8] sm:$0xff]
        %v2409 = vld [vmem:[%s433 + $0x10] sm:$0xff]
        %v2410 = vld [vmem:[%s433 + $0x18] sm:$0xff]
        %v2411 = vld [vmem:[%s433 + $0x20] sm:$0xff]
        %v2412 = vld [vmem:[%s433 + $0x28] sm:$0xff]
        %v2413 = vld [vmem:[%s433 + $0x30] sm:$0xff]
        %v2414 = vld [vmem:[%s433 + $0x38] sm:$0xff]
        %2423 = vrot.lane.b32.xlu0 %v2407, 27
        %v2424 = vpop.permute.xlu0 %2423
        %2425 = vrot.lane.b32.xlu0 %v2408, 27
        %v2426 = vpop.permute.xlu0 %2425
        %2427 = vrot.lane.b32.xlu0 %v2409, 27
        %v2428 = vpop.permute.xlu0 %2427
        %2429 = vrot.lane.b32.xlu0 %v2410, 27
        %v2430 = vpop.permute.xlu0 %2429
        %2431 = vrot.lane.b32.xlu0 %v2411, 27
        %v2432 = vpop.permute.xlu0 %2431
        %2433 = vrot.lane.b32.xlu0 %v2412, 27
        %v2434 = vpop.permute.xlu0 %2433
        %2435 = vrot.lane.b32.xlu0 %v2413, 27
        %v2436 = vpop.permute.xlu0 %2435
        %2437 = vrot.lane.b32.xlu0 %v2414, 27
        %v2438 = vpop.permute.xlu0 %2437
        %v2439 = vrot.slane %v2424, 4
        %v2440 = vrot.slane %v2426, 4
        %v2441 = vrot.slane %v2428, 4
        %v2442 = vrot.slane %v2430, 4
        %v2443 = vrot.slane %v2432, 4
        %v2444 = vrot.slane %v2434, 4
        %v2445 = vrot.slane %v2436, 4
        %v2446 = vrot.slane %v2438, 4
        %v2447 = vsel %vm551, %v2439, %v2440
        %vm2448 = vcmask 220160
        %v2449 = vsel %vm2448, %v2424, %v2447
        %v2450 = vsel %vm551, %v2440, %v2441
        %v2451 = vsel %vm2448, %v2426, %v2450
        %v2452 = vsel %vm551, %v2441, %v2442
        %v2453 = vsel %vm2448, %v2428, %v2452
        %v2454 = vsel %vm2448, %v2430, %v2442
        %v2455 = vsel %vm551, %v2443, %v2444
        %v2456 = vsel %vm2448, %v2432, %v2455
        %v2457 = vsel %vm551, %v2444, %v2445
        %v2458 = vsel %vm2448, %v2434, %v2457
        %v2459 = vsel %vm551, %v2445, %v2446
        %v2460 = vsel %vm2448, %v2436, %v2459
        %v2461 = vsel %vm2448, %v2438, %v2446
        %2470 = vst [vmem:[#allocation2 + $0x5c0] sm:$0xff] %v2449
        %2471 = vst [vmem:[#allocation2 + $0x5c8] sm:$0xff] %v2451
        %2472 = vst [vmem:[#allocation2 + $0x5d0] sm:$0xff] %v2453
        %vm2473 = vcmask 220164
        %vm2474 = vmor %vm2473, %vm1698
        %2475 = vst.msk [vmem:[#allocation2 + $0x5d8] sm:$0xff] %vm2474, %v2454
        %2476 = vst [vmem:[#allocation2 + $0x5e0] sm:$0xff] %v2456
        %2477 = vst [vmem:[#allocation2 + $0x5e8] sm:$0xff] %v2458
        %2478 = vst [vmem:[#allocation2 + $0x5f0] sm:$0xff] %v2460
        %2479 = vst.msk [vmem:[#allocation2 + $0x5f8] sm:$0xff] %vm2474, %v2461
        %v2480 = vld [vmem:[%s440] sm:$0xf]
        %v2481 = vld [vmem:[%s440 + $0x4] sm:$0xf]
        %2484 = vrot.lane.b32.xlu0 %v2480, 27
        %v2485 = vpop.permute.xlu0 %2484
        %2486 = vrot.lane.b32.xlu0 %v2481, 27
        %v2487 = vpop.permute.xlu0 %2486
        %vm2490 = vcmask 1043672
        %2491 = vst.msk [vmem:[#allocation2 + $0x5dc] sm:$0xf] %vm2490, %v2485
        %2492 = vst.msk [vmem:[#allocation2 + $0x5fc] sm:$0xf] %vm2490, %v2487
        %v2493 = vld [vmem:[%s433] sm:$0xff]
        %v2494 = vld [vmem:[%s433 + $0x8] sm:$0xff]
        %v2495 = vld [vmem:[%s433 + $0x10] sm:$0xff]
        %v2496 = vld [vmem:[%s433 + $0x18] sm:$0xff]
        %v2497 = vld [vmem:[%s433 + $0x20] sm:$0xff]
        %v2498 = vld [vmem:[%s433 + $0x28] sm:$0xff]
        %v2499 = vld [vmem:[%s433 + $0x30] sm:$0xff]
        %v2500 = vld [vmem:[%s433 + $0x38] sm:$0xff]
        %2509 = vrot.lane.b32.xlu0 %v2493, 19
        %v2510 = vpop.permute.xlu0 %2509
        %2511 = vrot.lane.b32.xlu0 %v2494, 19
        %v2512 = vpop.permute.xlu0 %2511
        %2513 = vrot.lane.b32.xlu0 %v2495, 19
        %v2514 = vpop.permute.xlu0 %2513
        %2515 = vrot.lane.b32.xlu0 %v2496, 19
        %v2516 = vpop.permute.xlu0 %2515
        %2517 = vrot.lane.b32.xlu0 %v2497, 19
        %v2518 = vpop.permute.xlu0 %2517
        %2519 = vrot.lane.b32.xlu0 %v2498, 19
        %v2520 = vpop.permute.xlu0 %2519
        %2521 = vrot.lane.b32.xlu0 %v2499, 19
        %v2522 = vpop.permute.xlu0 %2521
        %2523 = vrot.lane.b32.xlu0 %v2500, 19
        %v2524 = vpop.permute.xlu0 %2523
        %v2525 = vrot.slane %v2510, 4
        %v2526 = vrot.slane %v2512, 4
        %v2527 = vrot.slane %v2514, 4
        %v2528 = vrot.slane %v2516, 4
        %v2529 = vrot.slane %v2518, 4
        %v2530 = vrot.slane %v2520, 4
        %v2531 = vrot.slane %v2522, 4
        %v2532 = vrot.slane %v2524, 4
        %v2533 = vsel %vm551, %v2525, %v2526
        %vm2534 = vcmask 154624
        %v2535 = vsel %vm2534, %v2510, %v2533
        %v2536 = vsel %vm551, %v2526, %v2527
        %v2537 = vsel %vm2534, %v2512, %v2536
        %v2538 = vsel %vm551, %v2527, %v2528
        %v2539 = vsel %vm2534, %v2514, %v2538
        %v2540 = vsel %vm2534, %v2516, %v2528
        %v2541 = vsel %vm551, %v2529, %v2530
        %v2542 = vsel %vm2534, %v2518, %v2541
        %v2543 = vsel %vm551, %v2530, %v2531
        %v2544 = vsel %vm2534, %v2520, %v2543
        %v2545 = vsel %vm551, %v2531, %v2532
        %v2546 = vsel %vm2534, %v2522, %v2545
        %v2547 = vsel %vm2534, %v2524, %v2532
        %2556 = vst [vmem:[#allocation2 + $0x600] sm:$0xff] %v2535
        %2557 = vst [vmem:[#allocation2 + $0x608] sm:$0xff] %v2537
        %2558 = vst [vmem:[#allocation2 + $0x610] sm:$0xff] %v2539
        %vm2559 = vcmask 154628
        %vm2560 = vmor %vm2559, %vm1698
        %2561 = vst.msk [vmem:[#allocation2 + $0x618] sm:$0xff] %vm2560, %v2540
        %2562 = vst [vmem:[#allocation2 + $0x620] sm:$0xff] %v2542
        %2563 = vst [vmem:[#allocation2 + $0x628] sm:$0xff] %v2544
        %2564 = vst [vmem:[#allocation2 + $0x630] sm:$0xff] %v2546
        %2565 = vst.msk [vmem:[#allocation2 + $0x638] sm:$0xff] %vm2560, %v2547
        %v2566 = vld [vmem:[%s440] sm:$0xf]
        %v2567 = vld [vmem:[%s440 + $0x4] sm:$0xf]
        %2570 = vrot.lane.b32.xlu0 %v2566, 19
        %v2571 = vpop.permute.xlu0 %2570
        %2572 = vrot.lane.b32.xlu0 %v2567, 19
        %v2573 = vpop.permute.xlu0 %2572
        %vm2576 = vcmask 1043608
        %2577 = vst.msk [vmem:[#allocation2 + $0x61c] sm:$0xf] %vm2576, %v2571
        %2578 = vst.msk [vmem:[#allocation2 + $0x63c] sm:$0xf] %vm2576, %v2573
        %v2579 = vld [vmem:[%s433] sm:$0xff]
        %v2580 = vld [vmem:[%s433 + $0x8] sm:$0xff]
        %v2581 = vld [vmem:[%s433 + $0x10] sm:$0xff]
        %v2582 = vld [vmem:[%s433 + $0x18] sm:$0xff]
        %v2583 = vld [vmem:[%s433 + $0x20] sm:$0xff]
        %v2584 = vld [vmem:[%s433 + $0x28] sm:$0xff]
        %v2585 = vld [vmem:[%s433 + $0x30] sm:$0xff]
        %v2586 = vld [vmem:[%s433 + $0x38] sm:$0xff]
        %2595 = vrot.lane.b32.xlu0 %v2579, 18
        %v2596 = vpop.permute.xlu0 %2595
        %2597 = vrot.lane.b32.xlu0 %v2580, 18
        %v2598 = vpop.permute.xlu0 %2597
        %2599 = vrot.lane.b32.xlu0 %v2581, 18
        %v2600 = vpop.permute.xlu0 %2599
        %2601 = vrot.lane.b32.xlu0 %v2582, 18
        %v2602 = vpop.permute.xlu0 %2601
        %2603 = vrot.lane.b32.xlu0 %v2583, 18
        %v2604 = vpop.permute.xlu0 %2603
        %2605 = vrot.lane.b32.xlu0 %v2584, 18
        %v2606 = vpop.permute.xlu0 %2605
        %2607 = vrot.lane.b32.xlu0 %v2585, 18
        %v2608 = vpop.permute.xlu0 %2607
        %2609 = vrot.lane.b32.xlu0 %v2586, 18
        %v2610 = vpop.permute.xlu0 %2609
        %v2611 = vrot.slane %v2596, 4
        %v2612 = vrot.slane %v2598, 4
        %v2613 = vrot.slane %v2600, 4
        %v2614 = vrot.slane %v2602, 4
        %v2615 = vrot.slane %v2604, 4
        %v2616 = vrot.slane %v2606, 4
        %v2617 = vrot.slane %v2608, 4
        %v2618 = vrot.slane %v2610, 4
        %v2619 = vsel %vm551, %v2611, %v2612
        %vm2620 = vcmask 146432
        %v2621 = vsel %vm2620, %v2596, %v2619
        %v2622 = vsel %vm551, %v2612, %v2613
        %v2623 = vsel %vm2620, %v2598, %v2622
        %v2624 = vsel %vm551, %v2613, %v2614
        %v2625 = vsel %vm2620, %v2600, %v2624
        %v2626 = vsel %vm2620, %v2602, %v2614
        %v2627 = vsel %vm551, %v2615, %v2616
        %v2628 = vsel %vm2620, %v2604, %v2627
        %v2629 = vsel %vm551, %v2616, %v2617
        %v2630 = vsel %vm2620, %v2606, %v2629
        %v2631 = vsel %vm551, %v2617, %v2618
        %v2632 = vsel %vm2620, %v2608, %v2631
        %v2633 = vsel %vm2620, %v2610, %v2618
        %2642 = vst [vmem:[#allocation2 + $0x640] sm:$0xff] %v2621
        %2643 = vst [vmem:[#allocation2 + $0x648] sm:$0xff] %v2623
        %2644 = vst [vmem:[#allocation2 + $0x650] sm:$0xff] %v2625
        %vm2645 = vcmask 146436
        %vm2646 = vmor %vm2645, %vm1698
        %2647 = vst.msk [vmem:[#allocation2 + $0x658] sm:$0xff] %vm2646, %v2626
        %2648 = vst [vmem:[#allocation2 + $0x660] sm:$0xff] %v2628
        %2649 = vst [vmem:[#allocation2 + $0x668] sm:$0xff] %v2630
        %2650 = vst [vmem:[#allocation2 + $0x670] sm:$0xff] %v2632
        %2651 = vst.msk [vmem:[#allocation2 + $0x678] sm:$0xff] %vm2646, %v2633
        %v2652 = vld [vmem:[%s440] sm:$0xf]
        %v2653 = vld [vmem:[%s440 + $0x4] sm:$0xf]
        %2656 = vrot.lane.b32.xlu0 %v2652, 18
        %v2657 = vpop.permute.xlu0 %2656
        %2658 = vrot.lane.b32.xlu0 %v2653, 18
        %v2659 = vpop.permute.xlu0 %2658
        %vm2662 = vcmask 1043600
        %2663 = vst.msk [vmem:[#allocation2 + $0x65c] sm:$0xf] %vm2662, %v2657
        %2664 = vst.msk [vmem:[#allocation2 + $0x67c] sm:$0xf] %vm2662, %v2659
        %v2665 = vld [vmem:[%s433] sm:$0xff]
        %v2666 = vld [vmem:[%s433 + $0x8] sm:$0xff]
        %v2667 = vld [vmem:[%s433 + $0x10] sm:$0xff]
        %v2668 = vld [vmem:[%s433 + $0x18] sm:$0xff]
        %v2669 = vld [vmem:[%s433 + $0x20] sm:$0xff]
        %v2670 = vld [vmem:[%s433 + $0x28] sm:$0xff]
        %v2671 = vld [vmem:[%s433 + $0x30] sm:$0xff]
        %v2672 = vld [vmem:[%s433 + $0x38] sm:$0xff]
        %2681 = vrot.lane.b32.xlu0 %v2665, 17
        %v2682 = vpop.permute.xlu0 %2681
        %2683 = vrot.lane.b32.xlu0 %v2666, 17
        %v2684 = vpop.permute.xlu0 %2683
        %2685 = vrot.lane.b32.xlu0 %v2667, 17
        %v2686 = vpop.permute.xlu0 %2685
        %2687 = vrot.lane.b32.xlu0 %v2668, 17
        %v2688 = vpop.permute.xlu0 %2687
        %2689 = vrot.lane.b32.xlu0 %v2669, 17
        %v2690 = vpop.permute.xlu0 %2689
        %2691 = vrot.lane.b32.xlu0 %v2670, 17
        %v2692 = vpop.permute.xlu0 %2691
        %2693 = vrot.lane.b32.xlu0 %v2671, 17
        %v2694 = vpop.permute.xlu0 %2693
        %2695 = vrot.lane.b32.xlu0 %v2672, 17
        %v2696 = vpop.permute.xlu0 %2695
        %v2697 = vrot.slane %v2682, 4
        %v2698 = vrot.slane %v2684, 4
        %v2699 = vrot.slane %v2686, 4
        %v2700 = vrot.slane %v2688, 4
        %v2701 = vrot.slane %v2690, 4
        %v2702 = vrot.slane %v2692, 4
        %v2703 = vrot.slane %v2694, 4
        %v2704 = vrot.slane %v2696, 4
        %v2705 = vsel %vm551, %v2697, %v2698
        %vm2706 = vcmask 138240
        %v2707 = vsel %vm2706, %v2682, %v2705
        %v2708 = vsel %vm551, %v2698, %v2699
        %v2709 = vsel %vm2706, %v2684, %v2708
        %v2710 = vsel %vm551, %v2699, %v2700
        %v2711 = vsel %vm2706, %v2686, %v2710
        %v2712 = vsel %vm2706, %v2688, %v2700
        %v2713 = vsel %vm551, %v2701, %v2702
        %v2714 = vsel %vm2706, %v2690, %v2713
        %v2715 = vsel %vm551, %v2702, %v2703
        %v2716 = vsel %vm2706, %v2692, %v2715
        %v2717 = vsel %vm551, %v2703, %v2704
        %v2718 = vsel %vm2706, %v2694, %v2717
        %v2719 = vsel %vm2706, %v2696, %v2704
        %2728 = vst [vmem:[#allocation2 + $0x680] sm:$0xff] %v2707
        %2729 = vst [vmem:[#allocation2 + $0x688] sm:$0xff] %v2709
        %2730 = vst [vmem:[#allocation2 + $0x690] sm:$0xff] %v2711
        %vm2731 = vcmask 138244
        %vm2732 = vmor %vm2731, %vm1698
        %2733 = vst.msk [vmem:[#allocation2 + $0x698] sm:$0xff] %vm2732, %v2712
        %2734 = vst [vmem:[#allocation2 + $0x6a0] sm:$0xff] %v2714
        %2735 = vst [vmem:[#allocation2 + $0x6a8] sm:$0xff] %v2716
        %2736 = vst [vmem:[#allocation2 + $0x6b0] sm:$0xff] %v2718
        %2737 = vst.msk [vmem:[#allocation2 + $0x6b8] sm:$0xff] %vm2732, %v2719
        %v2738 = vld [vmem:[%s440] sm:$0xf]
        %v2739 = vld [vmem:[%s440 + $0x4] sm:$0xf]
        %2742 = vrot.lane.b32.xlu0 %v2738, 17
        %v2743 = vpop.permute.xlu0 %2742
        %2744 = vrot.lane.b32.xlu0 %v2739, 17
        %v2745 = vpop.permute.xlu0 %2744
        %vm2748 = vcmask 1043592
        %2749 = vst.msk [vmem:[#allocation2 + $0x69c] sm:$0xf] %vm2748, %v2743
        %2750 = vst.msk [vmem:[#allocation2 + $0x6bc] sm:$0xf] %vm2748, %v2745
        %v2751 = vld [vmem:[%s3] sm:$0xff]
        %v2752 = vld [vmem:[%s3 + $0x8] sm:$0xff]
        %v2753 = vld [vmem:[%s3 + $0x10] sm:$0xff]
        %v2754 = vld [vmem:[%s3 + $0x18] sm:$0xff]
        %v2755 = vld [vmem:[#allocation2] sm:$0xff]
        %v2756 = vld [vmem:[#allocation2 + $0x8] sm:$0xff]
        %v2757 = vld [vmem:[#allocation2 + $0x10] sm:$0xff]
        %v2758 = vld [vmem:[#allocation2 + $0x18] sm:$0xff]
        %v2759 = vld [vmem:[#allocation2 + $0x20] sm:$0xff]
        %v2760 = vld [vmem:[#allocation2 + $0x28] sm:$0xff]
        %v2761 = vld [vmem:[#allocation2 + $0x30] sm:$0xff]
        %v2762 = vld [vmem:[#allocation2 + $0x38] sm:$0xff]
        %v2763 = vld [vmem:[#allocation2 + $0x40] sm:$0xff]
        %v2764 = vld [vmem:[#allocation2 + $0x48] sm:$0xff]
        %v2765 = vld [vmem:[#allocation2 + $0x50] sm:$0xff]
        %v2766 = vld [vmem:[#allocation2 + $0x58] sm:$0xff]
        %v2767 = vld [vmem:[#allocation2 + $0x60] sm:$0xff]
        %v2768 = vld [vmem:[#allocation2 + $0x68] sm:$0xff]
        %v2769 = vld [vmem:[#allocation2 + $0x70] sm:$0xff]
        %v2770 = vld [vmem:[#allocation2 + $0x78] sm:$0xff]
        %v2771 = vld [vmem:[#allocation2 + $0x80] sm:$0xff]
        %v2772 = vld [vmem:[#allocation2 + $0x88] sm:$0xff]
        %v2773 = vld [vmem:[#allocation2 + $0x90] sm:$0xff]
        %v2774 = vld [vmem:[#allocation2 + $0x98] sm:$0xff]
        %v2775 = vld [vmem:[#allocation2 + $0xa0] sm:$0xff]
        %v2776 = vld [vmem:[#allocation2 + $0xa8] sm:$0xff]
        %v2777 = vld [vmem:[#allocation2 + $0xb0] sm:$0xff]
        %v2778 = vld [vmem:[#allocation2 + $0xb8] sm:$0xff]
        %v2779 = vld [vmem:[#allocation2 + $0xc0] sm:$0xff]
        %v2780 = vld [vmem:[#allocation2 + $0xc8] sm:$0xff]
        %v2781 = vld [vmem:[#allocation2 + $0xd0] sm:$0xff]
        %v2782 = vld [vmem:[#allocation2 + $0xd8] sm:$0xff]
        %v2783 = vld [vmem:[#allocation2 + $0xe0] sm:$0xff]
        %v2784 = vld [vmem:[#allocation2 + $0xe8] sm:$0xff]
        %v2785 = vld [vmem:[#allocation2 + $0xf0] sm:$0xff]
        %v2786 = vld [vmem:[#allocation2 + $0xf8] sm:$0xff]
        %v2787 = vld [vmem:[#allocation2 + $0x100] sm:$0xff]
        %v2788 = vld [vmem:[#allocation2 + $0x108] sm:$0xff]
        %v2789 = vld [vmem:[#allocation2 + $0x110] sm:$0xff]
        %v2790 = vld [vmem:[#allocation2 + $0x118] sm:$0xff]
        %v2791 = vld [vmem:[#allocation2 + $0x120] sm:$0xff]
        %v2792 = vld [vmem:[#allocation2 + $0x128] sm:$0xff]
        %v2793 = vld [vmem:[#allocation2 + $0x130] sm:$0xff]
        %v2794 = vld [vmem:[#allocation2 + $0x138] sm:$0xff]
        %v2795 = vld [vmem:[#allocation2 + $0x140] sm:$0xff]
        %v2796 = vld [vmem:[#allocation2 + $0x148] sm:$0xff]
        %v2797 = vld [vmem:[#allocation2 + $0x150] sm:$0xff]
        %v2798 = vld [vmem:[#allocation2 + $0x158] sm:$0xff]
        %v2799 = vld [vmem:[#allocation2 + $0x160] sm:$0xff]
        %v2800 = vld [vmem:[#allocation2 + $0x168] sm:$0xff]
        %v2801 = vld [vmem:[#allocation2 + $0x170] sm:$0xff]
        %v2802 = vld [vmem:[#allocation2 + $0x178] sm:$0xff]
        %v2803 = vld [vmem:[#allocation2 + $0x180] sm:$0xff]
        %v2804 = vld [vmem:[#allocation2 + $0x188] sm:$0xff]
        %v2805 = vld [vmem:[#allocation2 + $0x190] sm:$0xff]
        %v2806 = vld [vmem:[#allocation2 + $0x198] sm:$0xff]
        %v2807 = vld [vmem:[#allocation2 + $0x1a0] sm:$0xff]
        %v2808 = vld [vmem:[#allocation2 + $0x1a8] sm:$0xff]
        %v2809 = vld [vmem:[#allocation2 + $0x1b0] sm:$0xff]
        %v2810 = vld [vmem:[#allocation2 + $0x1b8] sm:$0xff]
        %v2811 = vld [vmem:[#allocation2 + $0x1c0] sm:$0xff]
        %v2812 = vld [vmem:[#allocation2 + $0x1c8] sm:$0xff]
        %v2813 = vld [vmem:[#allocation2 + $0x1d0] sm:$0xff]
        %v2814 = vld [vmem:[#allocation2 + $0x1d8] sm:$0xff]
        %v2815 = vld [vmem:[#allocation2 + $0x1e0] sm:$0xff]
        %v2816 = vld [vmem:[#allocation2 + $0x1e8] sm:$0xff]
        %v2817 = vld [vmem:[#allocation2 + $0x1f0] sm:$0xff]
        %v2818 = vld [vmem:[#allocation2 + $0x1f8] sm:$0xff]
        %v2819 = vld [vmem:[#allocation2 + $0x200] sm:$0xff]
        %v2820 = vld [vmem:[#allocation2 + $0x208] sm:$0xff]
        %v2821 = vld [vmem:[#allocation2 + $0x210] sm:$0xff]
        %v2822 = vld [vmem:[#allocation2 + $0x218] sm:$0xff]
        %v2823 = vld [vmem:[#allocation2 + $0x220] sm:$0xff]
        %v2824 = vld [vmem:[#allocation2 + $0x228] sm:$0xff]
        %v2825 = vld [vmem:[#allocation2 + $0x230] sm:$0xff]
        %v2826 = vld [vmem:[#allocation2 + $0x238] sm:$0xff]
        %v2827 = vld [vmem:[#allocation2 + $0x240] sm:$0xff]
        %v2828 = vld [vmem:[#allocation2 + $0x248] sm:$0xff]
        %v2829 = vld [vmem:[#allocation2 + $0x250] sm:$0xff]
        %v2830 = vld [vmem:[#allocation2 + $0x258] sm:$0xff]
        %v2831 = vld [vmem:[#allocation2 + $0x260] sm:$0xff]
        %v2832 = vld [vmem:[#allocation2 + $0x268] sm:$0xff]
        %v2833 = vld [vmem:[#allocation2 + $0x270] sm:$0xff]
        %v2834 = vld [vmem:[#allocation2 + $0x278] sm:$0xff]
        %v2835 = vld [vmem:[#allocation2 + $0x280] sm:$0xff]
        %v2836 = vld [vmem:[#allocation2 + $0x288] sm:$0xff]
        %v2837 = vld [vmem:[#allocation2 + $0x290] sm:$0xff]
        %v2838 = vld [vmem:[#allocation2 + $0x298] sm:$0xff]
        %v2839 = vld [vmem:[#allocation2 + $0x2a0] sm:$0xff]
        %v2840 = vld [vmem:[#allocation2 + $0x2a8] sm:$0xff]
        %v2841 = vld [vmem:[#allocation2 + $0x2b0] sm:$0xff]
        %v2842 = vld [vmem:[#allocation2 + $0x2b8] sm:$0xff]
        %v2843 = vld [vmem:[#allocation2 + $0x2c0] sm:$0xff]
        %v2844 = vld [vmem:[#allocation2 + $0x2c8] sm:$0xff]
        %v2845 = vld [vmem:[#allocation2 + $0x2d0] sm:$0xff]
        %v2846 = vld [vmem:[#allocation2 + $0x2d8] sm:$0xff]
        %v2847 = vld [vmem:[#allocation2 + $0x2e0] sm:$0xff]
        %v2848 = vld [vmem:[#allocation2 + $0x2e8] sm:$0xff]
        %v2849 = vld [vmem:[#allocation2 + $0x2f0] sm:$0xff]
        %v2850 = vld [vmem:[#allocation2 + $0x2f8] sm:$0xff]
        %v2851 = vld [vmem:[#allocation2 + $0x300] sm:$0xff]
        %v2852 = vld [vmem:[#allocation2 + $0x308] sm:$0xff]
        %v2853 = vld [vmem:[#allocation2 + $0x310] sm:$0xff]
        %v2854 = vld [vmem:[#allocation2 + $0x318] sm:$0xff]
        %v2855 = vld [vmem:[#allocation2 + $0x320] sm:$0xff]
        %v2856 = vld [vmem:[#allocation2 + $0x328] sm:$0xff]
        %v2857 = vld [vmem:[#allocation2 + $0x330] sm:$0xff]
        %v2858 = vld [vmem:[#allocation2 + $0x338] sm:$0xff]
        %v2859 = vld [vmem:[#allocation2 + $0x340] sm:$0xff]
        %v2860 = vld [vmem:[#allocation2 + $0x348] sm:$0xff]
        %v2861 = vld [vmem:[#allocation2 + $0x350] sm:$0xff]
        %v2862 = vld [vmem:[#allocation2 + $0x358] sm:$0xff]
        %v2863 = vld [vmem:[#allocation2 + $0x360] sm:$0xff]
        %v2864 = vld [vmem:[#allocation2 + $0x368] sm:$0xff]
        %v2865 = vld [vmem:[#allocation2 + $0x370] sm:$0xff]
        %v2866 = vld [vmem:[#allocation2 + $0x378] sm:$0xff]
        %v2867 = vld [vmem:[#allocation2 + $0x380] sm:$0xff]
        %v2868 = vld [vmem:[#allocation2 + $0x388] sm:$0xff]
        %v2869 = vld [vmem:[#allocation2 + $0x390] sm:$0xff]
        %v2870 = vld [vmem:[#allocation2 + $0x398] sm:$0xff]
        %v2871 = vld [vmem:[#allocation2 + $0x3a0] sm:$0xff]
        %v2872 = vld [vmem:[#allocation2 + $0x3a8] sm:$0xff]
        %v2873 = vld [vmem:[#allocation2 + $0x3b0] sm:$0xff]
        %v2874 = vld [vmem:[#allocation2 + $0x3b8] sm:$0xff]
        %v2875 = vld [vmem:[#allocation2 + $0x3c0] sm:$0xff]
        %v2876 = vld [vmem:[#allocation2 + $0x3c8] sm:$0xff]
        %v2877 = vld [vmem:[#allocation2 + $0x3d0] sm:$0xff]
        %v2878 = vld [vmem:[#allocation2 + $0x3d8] sm:$0xff]
        %v2879 = vld [vmem:[#allocation2 + $0x3e0] sm:$0xff]
        %v2880 = vld [vmem:[#allocation2 + $0x3e8] sm:$0xff]
        %v2881 = vld [vmem:[#allocation2 + $0x3f0] sm:$0xff]
        %v2882 = vld [vmem:[#allocation2 + $0x3f8] sm:$0xff]
        %v2883 = vld [vmem:[#allocation2 + $0x400] sm:$0xff]
        %v2884 = vld [vmem:[#allocation2 + $0x408] sm:$0xff]
        %v2885 = vld [vmem:[#allocation2 + $0x410] sm:$0xff]
        %v2886 = vld [vmem:[#allocation2 + $0x418] sm:$0xff]
        %v2887 = vld [vmem:[#allocation2 + $0x420] sm:$0xff]
        %v2888 = vld [vmem:[#allocation2 + $0x428] sm:$0xff]
        %v2889 = vld [vmem:[#allocation2 + $0x430] sm:$0xff]
        %v2890 = vld [vmem:[#allocation2 + $0x438] sm:$0xff]
        %v2891 = vld [vmem:[#allocation2 + $0x440] sm:$0xff]
        %v2892 = vld [vmem:[#allocation2 + $0x448] sm:$0xff]
        %v2893 = vld [vmem:[#allocation2 + $0x450] sm:$0xff]
        %v2894 = vld [vmem:[#allocation2 + $0x458] sm:$0xff]
        %v2895 = vld [vmem:[#allocation2 + $0x460] sm:$0xff]
        %v2896 = vld [vmem:[#allocation2 + $0x468] sm:$0xff]
        %v2897 = vld [vmem:[#allocation2 + $0x470] sm:$0xff]
        %v2898 = vld [vmem:[#allocation2 + $0x478] sm:$0xff]
        %v2899 = vld [vmem:[#allocation2 + $0x480] sm:$0xff]
        %v2900 = vld [vmem:[#allocation2 + $0x488] sm:$0xff]
        %v2901 = vld [vmem:[#allocation2 + $0x490] sm:$0xff]
        %v2902 = vld [vmem:[#allocation2 + $0x498] sm:$0xff]
        %v2903 = vld [vmem:[#allocation2 + $0x4a0] sm:$0xff]
        %v2904 = vld [vmem:[#allocation2 + $0x4a8] sm:$0xff]
        %v2905 = vld [vmem:[#allocation2 + $0x4b0] sm:$0xff]
        %v2906 = vld [vmem:[#allocation2 + $0x4b8] sm:$0xff]
        %v2907 = vld [vmem:[#allocation2 + $0x4c0] sm:$0xff]
        %v2908 = vld [vmem:[#allocation2 + $0x4c8] sm:$0xff]
        %v2909 = vld [vmem:[#allocation2 + $0x4d0] sm:$0xff]
        %v2910 = vld [vmem:[#allocation2 + $0x4d8] sm:$0xff]
        %v2911 = vld [vmem:[#allocation2 + $0x4e0] sm:$0xff]
        %v2912 = vld [vmem:[#allocation2 + $0x4e8] sm:$0xff]
        %v2913 = vld [vmem:[#allocation2 + $0x4f0] sm:$0xff]
        %v2914 = vld [vmem:[#allocation2 + $0x4f8] sm:$0xff]
        %v2915 = vld [vmem:[#allocation2 + $0x500] sm:$0xff]
        %v2916 = vld [vmem:[#allocation2 + $0x508] sm:$0xff]
        %v2917 = vld [vmem:[#allocation2 + $0x510] sm:$0xff]
        %v2918 = vld [vmem:[#allocation2 + $0x518] sm:$0xff]
        %v2919 = vld [vmem:[#allocation2 + $0x520] sm:$0xff]
        %v2920 = vld [vmem:[#allocation2 + $0x528] sm:$0xff]
        %v2921 = vld [vmem:[#allocation2 + $0x530] sm:$0xff]
        %v2922 = vld [vmem:[#allocation2 + $0x538] sm:$0xff]
        %v2923 = vld [vmem:[#allocation2 + $0x540] sm:$0xff]
        %v2924 = vld [vmem:[#allocation2 + $0x548] sm:$0xff]
        %v2925 = vld [vmem:[#allocation2 + $0x550] sm:$0xff]
        %v2926 = vld [vmem:[#allocation2 + $0x558] sm:$0xff]
        %v2927 = vld [vmem:[#allocation2 + $0x560] sm:$0xff]
        %v2928 = vld [vmem:[#allocation2 + $0x568] sm:$0xff]
        %v2929 = vld [vmem:[#allocation2 + $0x570] sm:$0xff]
        %v2930 = vld [vmem:[#allocation2 + $0x578] sm:$0xff]
        %v2931 = vld [vmem:[#allocation2 + $0x580] sm:$0xff]
        %v2932 = vld [vmem:[#allocation2 + $0x588] sm:$0xff]
        %v2933 = vld [vmem:[#allocation2 + $0x590] sm:$0xff]
        %v2934 = vld [vmem:[#allocation2 + $0x598] sm:$0xff]
        %v2935 = vld [vmem:[#allocation2 + $0x5a0] sm:$0xff]
        %v2936 = vld [vmem:[#allocation2 + $0x5a8] sm:$0xff]
        %v2937 = vld [vmem:[#allocation2 + $0x5b0] sm:$0xff]
        %v2938 = vld [vmem:[#allocation2 + $0x5b8] sm:$0xff]
        %v2939 = vld [vmem:[#allocation2 + $0x5c0] sm:$0xff]
        %v2940 = vld [vmem:[#allocation2 + $0x5c8] sm:$0xff]
        %v2941 = vld [vmem:[#allocation2 + $0x5d0] sm:$0xff]
        %v2942 = vld [vmem:[#allocation2 + $0x5d8] sm:$0xff]
        %v2943 = vld [vmem:[#allocation2 + $0x5e0] sm:$0xff]
        %v2944 = vld [vmem:[#allocation2 + $0x5e8] sm:$0xff]
        %v2945 = vld [vmem:[#allocation2 + $0x5f0] sm:$0xff]
        %v2946 = vld [vmem:[#allocation2 + $0x5f8] sm:$0xff]
        %v2947 = vld [vmem:[#allocation2 + $0x600] sm:$0xff]
        %v2948 = vld [vmem:[#allocation2 + $0x608] sm:$0xff]
        %v2949 = vld [vmem:[#allocation2 + $0x610] sm:$0xff]
        %v2950 = vld [vmem:[#allocation2 + $0x618] sm:$0xff]
        %v2951 = vld [vmem:[#allocation2 + $0x620] sm:$0xff]
        %v2952 = vld [vmem:[#allocation2 + $0x628] sm:$0xff]
        %v2953 = vld [vmem:[#allocation2 + $0x630] sm:$0xff]
        %v2954 = vld [vmem:[#allocation2 + $0x638] sm:$0xff]
        %v2955 = vld [vmem:[#allocation2 + $0x640] sm:$0xff]
        %v2956 = vld [vmem:[#allocation2 + $0x648] sm:$0xff]
        %v2957 = vld [vmem:[#allocation2 + $0x650] sm:$0xff]
        %v2958 = vld [vmem:[#allocation2 + $0x658] sm:$0xff]
        %v2959 = vld [vmem:[#allocation2 + $0x660] sm:$0xff]
        %v2960 = vld [vmem:[#allocation2 + $0x668] sm:$0xff]
        %v2961 = vld [vmem:[#allocation2 + $0x670] sm:$0xff]
        %v2962 = vld [vmem:[#allocation2 + $0x678] sm:$0xff]
        %v2963 = vld [vmem:[#allocation2 + $0x680] sm:$0xff]
        %v2964 = vld [vmem:[#allocation2 + $0x688] sm:$0xff]
        %v2965 = vld [vmem:[#allocation2 + $0x690] sm:$0xff]
        %v2966 = vld [vmem:[#allocation2 + $0x698] sm:$0xff]
        %v2967 = vld [vmem:[#allocation2 + $0x6a0] sm:$0xff]
        %v2968 = vld [vmem:[#allocation2 + $0x6a8] sm:$0xff]
        %v2969 = vld [vmem:[#allocation2 + $0x6b0] sm:$0xff]
        %v2970 = vld [vmem:[#allocation2 + $0x6b8] sm:$0xff]
        %v2971 = vld [vmem:[%s4] sm:$0xff]
        %v2972 = vld [vmem:[%s4 + $0x8] sm:$0xff]
        %2974 = vset.pattern.permute.xlu0 0
        %2975 = vperm.xlu0 %2974, %v2971
        %v2976 = vpop.permute.xlu0 %2975
        %2979 = vset.pattern.permute.xlu0 0
        %2980 = vperm.xlu0 %2979, %v2972
        %v2981 = vpop.permute.xlu0 %2980
        %v2987 = vunpack.c.l.b16 %v2751
        %v2988 = vunpack.c.h.b16 %v2751
        %v2989 = vunpack.c.l.b16 %v2752
        %v2990 = vunpack.c.h.b16 %v2752
        %v2991 = vunpack.c.l.b16 %v2753
        %v2992 = vunpack.c.h.b16 %v2753
        %v2993 = vunpack.c.l.b16 %v2754
        %v2994 = vunpack.c.h.b16 %v2754
        %v2995 = vpack.c.b16 %v2991, %v2987
        %v2996 = vpack.c.b16 %v2992, %v2988
        %v2997 = vpack.c.b16 %v2993, %v2989
        %v2998 = vpack.c.b16 %v2994, %v2990
        %v3218 = vunpack.c.l.b16 %v2755
        %v3219 = vunpack.c.h.b16 %v2755
        %v3220 = vunpack.c.l.b16 %v2756
        %v3221 = vunpack.c.h.b16 %v2756
        %v3222 = vunpack.c.l.b16 %v2757
        %v3223 = vunpack.c.h.b16 %v2757
        %v3224 = vunpack.c.l.b16 %v2758
        %v3225 = vunpack.c.h.b16 %v2758
        %v3226 = vunpack.c.l.b16 %v2759
        %v3227 = vunpack.c.h.b16 %v2759
        %v3228 = vunpack.c.l.b16 %v2760
        %v3229 = vunpack.c.h.b16 %v2760
        %v3230 = vunpack.c.l.b16 %v2761
        %v3231 = vunpack.c.h.b16 %v2761
        %v3232 = vunpack.c.l.b16 %v2762
        %v3233 = vunpack.c.h.b16 %v2762
        %v3234 = vunpack.c.l.b16 %v2763
        %v3235 = vunpack.c.h.b16 %v2763
        %v3236 = vunpack.c.l.b16 %v2764
        %v3237 = vunpack.c.h.b16 %v2764
        %v3238 = vunpack.c.l.b16 %v2765
        %v3239 = vunpack.c.h.b16 %v2765
        %v3240 = vunpack.c.l.b16 %v2766
        %v3241 = vunpack.c.h.b16 %v2766
        %v3242 = vunpack.c.l.b16 %v2767
        %v3243 = vunpack.c.h.b16 %v2767
        %v3244 = vunpack.c.l.b16 %v2768
        %v3245 = vunpack.c.h.b16 %v2768
        %v3246 = vunpack.c.l.b16 %v2769
        %v3247 = vunpack.c.h.b16 %v2769
        %v3248 = vunpack.c.l.b16 %v2770
        %v3249 = vunpack.c.h.b16 %v2770
        %v3250 = vunpack.c.l.b16 %v2771
        %v3251 = vunpack.c.h.b16 %v2771
        %v3252 = vunpack.c.l.b16 %v2772
        %v3253 = vunpack.c.h.b16 %v2772
        %v3254 = vunpack.c.l.b16 %v2773
        %v3255 = vunpack.c.h.b16 %v2773
        %v3256 = vunpack.c.l.b16 %v2774
        %v3257 = vunpack.c.h.b16 %v2774
        %v3258 = vunpack.c.l.b16 %v2775
        %v3259 = vunpack.c.h.b16 %v2775
        %v3260 = vunpack.c.l.b16 %v2776
        %v3261 = vunpack.c.h.b16 %v2776
        %v3262 = vunpack.c.l.b16 %v2777
        %v3263 = vunpack.c.h.b16 %v2777
        %v3264 = vunpack.c.l.b16 %v2778
        %v3265 = vunpack.c.h.b16 %v2778
        %v3266 = vunpack.c.l.b16 %v2779
        %v3267 = vunpack.c.h.b16 %v2779
        %v3268 = vunpack.c.l.b16 %v2780
        %v3269 = vunpack.c.h.b16 %v2780
        %v3270 = vunpack.c.l.b16 %v2781
        %v3271 = vunpack.c.h.b16 %v2781
        %v3272 = vunpack.c.l.b16 %v2782
        %v3273 = vunpack.c.h.b16 %v2782
        %v3274 = vunpack.c.l.b16 %v2783
        %v3275 = vunpack.c.h.b16 %v2783
        %v3276 = vunpack.c.l.b16 %v2784
        %v3277 = vunpack.c.h.b16 %v2784
        %v3278 = vunpack.c.l.b16 %v2785
        %v3279 = vunpack.c.h.b16 %v2785
        %v3280 = vunpack.c.l.b16 %v2786
        %v3281 = vunpack.c.h.b16 %v2786
        %v3282 = vunpack.c.l.b16 %v2787
        %v3283 = vunpack.c.h.b16 %v2787
        %v3284 = vunpack.c.l.b16 %v2788
        %v3285 = vunpack.c.h.b16 %v2788
        %v3286 = vunpack.c.l.b16 %v2789
        %v3287 = vunpack.c.h.b16 %v2789
        %v3288 = vunpack.c.l.b16 %v2790
        %v3289 = vunpack.c.h.b16 %v2790
        %v3290 = vunpack.c.l.b16 %v2791
        %v3291 = vunpack.c.h.b16 %v2791
        %v3292 = vunpack.c.l.b16 %v2792
        %v3293 = vunpack.c.h.b16 %v2792
        %v3294 = vunpack.c.l.b16 %v2793
        %v3295 = vunpack.c.h.b16 %v2793
        %v3296 = vunpack.c.l.b16 %v2794
        %v3297 = vunpack.c.h.b16 %v2794
        %v3298 = vunpack.c.l.b16 %v2795
        %v3299 = vunpack.c.h.b16 %v2795
        %v3300 = vunpack.c.l.b16 %v2796
        %v3301 = vunpack.c.h.b16 %v2796
        %v3302 = vunpack.c.l.b16 %v2797
        %v3303 = vunpack.c.h.b16 %v2797
        %v3304 = vunpack.c.l.b16 %v2798
        %v3305 = vunpack.c.h.b16 %v2798
        %v3306 = vunpack.c.l.b16 %v2799
        %v3307 = vunpack.c.h.b16 %v2799
        %v3308 = vunpack.c.l.b16 %v2800
        %v3309 = vunpack.c.h.b16 %v2800
        %v3310 = vunpack.c.l.b16 %v2801
        %v3311 = vunpack.c.h.b16 %v2801
        %v3312 = vunpack.c.l.b16 %v2802
        %v3313 = vunpack.c.h.b16 %v2802
        %v3314 = vunpack.c.l.b16 %v2803
        %v3315 = vunpack.c.h.b16 %v2803
        %v3316 = vunpack.c.l.b16 %v2804
        %v3317 = vunpack.c.h.b16 %v2804
        %v3318 = vunpack.c.l.b16 %v2805
        %v3319 = vunpack.c.h.b16 %v2805
        %v3320 = vunpack.c.l.b16 %v2806
        %v3321 = vunpack.c.h.b16 %v2806
        %v3322 = vunpack.c.l.b16 %v2807
        %v3323 = vunpack.c.h.b16 %v2807
        %v3324 = vunpack.c.l.b16 %v2808
        %v3325 = vunpack.c.h.b16 %v2808
        %v3326 = vunpack.c.l.b16 %v2809
        %v3327 = vunpack.c.h.b16 %v2809
        %v3328 = vunpack.c.l.b16 %v2810
        %v3329 = vunpack.c.h.b16 %v2810
        %v3330 = vunpack.c.l.b16 %v2811
        %v3331 = vunpack.c.h.b16 %v2811
        %v3332 = vunpack.c.l.b16 %v2812
        %v3333 = vunpack.c.h.b16 %v2812
        %v3334 = vunpack.c.l.b16 %v2813
        %v3335 = vunpack.c.h.b16 %v2813
        %v3336 = vunpack.c.l.b16 %v2814
        %v3337 = vunpack.c.h.b16 %v2814
        %v3338 = vunpack.c.l.b16 %v2815
        %v3339 = vunpack.c.h.b16 %v2815
        %v3340 = vunpack.c.l.b16 %v2816
        %v3341 = vunpack.c.h.b16 %v2816
        %v3342 = vunpack.c.l.b16 %v2817
        %v3343 = vunpack.c.h.b16 %v2817
        %v3344 = vunpack.c.l.b16 %v2818
        %v3345 = vunpack.c.h.b16 %v2818
        %v3346 = vunpack.c.l.b16 %v2819
        %v3347 = vunpack.c.h.b16 %v2819
        %v3348 = vunpack.c.l.b16 %v2820
        %v3349 = vunpack.c.h.b16 %v2820
        %v3350 = vunpack.c.l.b16 %v2821
        %v3351 = vunpack.c.h.b16 %v2821
        %v3352 = vunpack.c.l.b16 %v2822
        %v3353 = vunpack.c.h.b16 %v2822
        %v3354 = vunpack.c.l.b16 %v2823
        %v3355 = vunpack.c.h.b16 %v2823
        %v3356 = vunpack.c.l.b16 %v2824
        %v3357 = vunpack.c.h.b16 %v2824
        %v3358 = vunpack.c.l.b16 %v2825
        %v3359 = vunpack.c.h.b16 %v2825
        %v3360 = vunpack.c.l.b16 %v2826
        %v3361 = vunpack.c.h.b16 %v2826
        %v3362 = vunpack.c.l.b16 %v2827
        %v3363 = vunpack.c.h.b16 %v2827
        %v3364 = vunpack.c.l.b16 %v2828
        %v3365 = vunpack.c.h.b16 %v2828
        %v3366 = vunpack.c.l.b16 %v2829
        %v3367 = vunpack.c.h.b16 %v2829
        %v3368 = vunpack.c.l.b16 %v2830
        %v3369 = vunpack.c.h.b16 %v2830
        %v3370 = vunpack.c.l.b16 %v2831
        %v3371 = vunpack.c.h.b16 %v2831
        %v3372 = vunpack.c.l.b16 %v2832
        %v3373 = vunpack.c.h.b16 %v2832
        %v3374 = vunpack.c.l.b16 %v2833
        %v3375 = vunpack.c.h.b16 %v2833
        %v3376 = vunpack.c.l.b16 %v2834
        %v3377 = vunpack.c.h.b16 %v2834
        %v3378 = vunpack.c.l.b16 %v2835
        %v3379 = vunpack.c.h.b16 %v2835
        %v3380 = vunpack.c.l.b16 %v2836
        %v3381 = vunpack.c.h.b16 %v2836
        %v3382 = vunpack.c.l.b16 %v2837
        %v3383 = vunpack.c.h.b16 %v2837
        %v3384 = vunpack.c.l.b16 %v2838
        %v3385 = vunpack.c.h.b16 %v2838
        %v3386 = vunpack.c.l.b16 %v2839
        %v3387 = vunpack.c.h.b16 %v2839
        %v3388 = vunpack.c.l.b16 %v2840
        %v3389 = vunpack.c.h.b16 %v2840
        %v3390 = vunpack.c.l.b16 %v2841
        %v3391 = vunpack.c.h.b16 %v2841
        %v3392 = vunpack.c.l.b16 %v2842
        %v3393 = vunpack.c.h.b16 %v2842
        %v3394 = vunpack.c.l.b16 %v2843
        %v3395 = vunpack.c.h.b16 %v2843
        %v3396 = vunpack.c.l.b16 %v2844
        %v3397 = vunpack.c.h.b16 %v2844
        %v3398 = vunpack.c.l.b16 %v2845
        %v3399 = vunpack.c.h.b16 %v2845
        %v3400 = vunpack.c.l.b16 %v2846
        %v3401 = vunpack.c.h.b16 %v2846
        %v3402 = vunpack.c.l.b16 %v2847
        %v3403 = vunpack.c.h.b16 %v2847
        %v3404 = vunpack.c.l.b16 %v2848
        %v3405 = vunpack.c.h.b16 %v2848
        %v3406 = vunpack.c.l.b16 %v2849
        %v3407 = vunpack.c.h.b16 %v2849
        %v3408 = vunpack.c.l.b16 %v2850
        %v3409 = vunpack.c.h.b16 %v2850
        %v3410 = vunpack.c.l.b16 %v2851
        %v3411 = vunpack.c.h.b16 %v2851
        %v3412 = vunpack.c.l.b16 %v2852
        %v3413 = vunpack.c.h.b16 %v2852
        %v3414 = vunpack.c.l.b16 %v2853
        %v3415 = vunpack.c.h.b16 %v2853
        %v3416 = vunpack.c.l.b16 %v2854
        %v3417 = vunpack.c.h.b16 %v2854
        %v3418 = vunpack.c.l.b16 %v2855
        %v3419 = vunpack.c.h.b16 %v2855
        %v3420 = vunpack.c.l.b16 %v2856
        %v3421 = vunpack.c.h.b16 %v2856
        %v3422 = vunpack.c.l.b16 %v2857
        %v3423 = vunpack.c.h.b16 %v2857
        %v3424 = vunpack.c.l.b16 %v2858
        %v3425 = vunpack.c.h.b16 %v2858
        %v3426 = vunpack.c.l.b16 %v2859
        %v3427 = vunpack.c.h.b16 %v2859
        %v3428 = vunpack.c.l.b16 %v2860
        %v3429 = vunpack.c.h.b16 %v2860
        %v3430 = vunpack.c.l.b16 %v2861
        %v3431 = vunpack.c.h.b16 %v2861
        %v3432 = vunpack.c.l.b16 %v2862
        %v3433 = vunpack.c.h.b16 %v2862
        %v3434 = vunpack.c.l.b16 %v2863
        %v3435 = vunpack.c.h.b16 %v2863
        %v3436 = vunpack.c.l.b16 %v2864
        %v3437 = vunpack.c.h.b16 %v2864
        %v3438 = vunpack.c.l.b16 %v2865
        %v3439 = vunpack.c.h.b16 %v2865
        %v3440 = vunpack.c.l.b16 %v2866
        %v3441 = vunpack.c.h.b16 %v2866
        %v3442 = vunpack.c.l.b16 %v2867
        %v3443 = vunpack.c.h.b16 %v2867
        %v3444 = vunpack.c.l.b16 %v2868
        %v3445 = vunpack.c.h.b16 %v2868
        %v3446 = vunpack.c.l.b16 %v2869
        %v3447 = vunpack.c.h.b16 %v2869
        %v3448 = vunpack.c.l.b16 %v2870
        %v3449 = vunpack.c.h.b16 %v2870
        %v3450 = vunpack.c.l.b16 %v2871
        %v3451 = vunpack.c.h.b16 %v2871
        %v3452 = vunpack.c.l.b16 %v2872
        %v3453 = vunpack.c.h.b16 %v2872
        %v3454 = vunpack.c.l.b16 %v2873
        %v3455 = vunpack.c.h.b16 %v2873
        %v3456 = vunpack.c.l.b16 %v2874
        %v3457 = vunpack.c.h.b16 %v2874
        %v3458 = vunpack.c.l.b16 %v2875
        %v3459 = vunpack.c.h.b16 %v2875
        %v3460 = vunpack.c.l.b16 %v2876
        %v3461 = vunpack.c.h.b16 %v2876
        %v3462 = vunpack.c.l.b16 %v2877
        %v3463 = vunpack.c.h.b16 %v2877
        %v3464 = vunpack.c.l.b16 %v2878
        %v3465 = vunpack.c.h.b16 %v2878
        %v3466 = vunpack.c.l.b16 %v2879
        %v3467 = vunpack.c.h.b16 %v2879
        %v3468 = vunpack.c.l.b16 %v2880
        %v3469 = vunpack.c.h.b16 %v2880
        %v3470 = vunpack.c.l.b16 %v2881
        %v3471 = vunpack.c.h.b16 %v2881
        %v3472 = vunpack.c.l.b16 %v2882
        %v3473 = vunpack.c.h.b16 %v2882
        %v3474 = vunpack.c.l.b16 %v2883
        %v3475 = vunpack.c.h.b16 %v2883
        %v3476 = vunpack.c.l.b16 %v2884
        %v3477 = vunpack.c.h.b16 %v2884
        %v3478 = vunpack.c.l.b16 %v2885
        %v3479 = vunpack.c.h.b16 %v2885
        %v3480 = vunpack.c.l.b16 %v2886
        %v3481 = vunpack.c.h.b16 %v2886
        %v3482 = vunpack.c.l.b16 %v2887
        %v3483 = vunpack.c.h.b16 %v2887
        %v3484 = vunpack.c.l.b16 %v2888
        %v3485 = vunpack.c.h.b16 %v2888
        %v3486 = vunpack.c.l.b16 %v2889
        %v3487 = vunpack.c.h.b16 %v2889
        %v3488 = vunpack.c.l.b16 %v2890
        %v3489 = vunpack.c.h.b16 %v2890
        %v3490 = vunpack.c.l.b16 %v2891
        %v3491 = vunpack.c.h.b16 %v2891
        %v3492 = vunpack.c.l.b16 %v2892
        %v3493 = vunpack.c.h.b16 %v2892
        %v3494 = vunpack.c.l.b16 %v2893
        %v3495 = vunpack.c.h.b16 %v2893
        %v3496 = vunpack.c.l.b16 %v2894
        %v3497 = vunpack.c.h.b16 %v2894
        %v3498 = vunpack.c.l.b16 %v2895
        %v3499 = vunpack.c.h.b16 %v2895
        %v3500 = vunpack.c.l.b16 %v2896
        %v3501 = vunpack.c.h.b16 %v2896
        %v3502 = vunpack.c.l.b16 %v2897
        %v3503 = vunpack.c.h.b16 %v2897
        %v3504 = vunpack.c.l.b16 %v2898
        %v3505 = vunpack.c.h.b16 %v2898
        %v3506 = vunpack.c.l.b16 %v2899
        %v3507 = vunpack.c.h.b16 %v2899
        %v3508 = vunpack.c.l.b16 %v2900
        %v3509 = vunpack.c.h.b16 %v2900
        %v3510 = vunpack.c.l.b16 %v2901
        %v3511 = vunpack.c.h.b16 %v2901
        %v3512 = vunpack.c.l.b16 %v2902
        %v3513 = vunpack.c.h.b16 %v2902
        %v3514 = vunpack.c.l.b16 %v2903
        %v3515 = vunpack.c.h.b16 %v2903
        %v3516 = vunpack.c.l.b16 %v2904
        %v3517 = vunpack.c.h.b16 %v2904
        %v3518 = vunpack.c.l.b16 %v2905
        %v3519 = vunpack.c.h.b16 %v2905
        %v3520 = vunpack.c.l.b16 %v2906
        %v3521 = vunpack.c.h.b16 %v2906
        %v3522 = vunpack.c.l.b16 %v2907
        %v3523 = vunpack.c.h.b16 %v2907
        %v3524 = vunpack.c.l.b16 %v2908
        %v3525 = vunpack.c.h.b16 %v2908
        %v3526 = vunpack.c.l.b16 %v2909
        %v3527 = vunpack.c.h.b16 %v2909
        %v3528 = vunpack.c.l.b16 %v2910
        %v3529 = vunpack.c.h.b16 %v2910
        %v3530 = vunpack.c.l.b16 %v2911
        %v3531 = vunpack.c.h.b16 %v2911
        %v3532 = vunpack.c.l.b16 %v2912
        %v3533 = vunpack.c.h.b16 %v2912
        %v3534 = vunpack.c.l.b16 %v2913
        %v3535 = vunpack.c.h.b16 %v2913
        %v3536 = vunpack.c.l.b16 %v2914
        %v3537 = vunpack.c.h.b16 %v2914
        %v3538 = vunpack.c.l.b16 %v2915
        %v3539 = vunpack.c.h.b16 %v2915
        %v3540 = vunpack.c.l.b16 %v2916
        %v3541 = vunpack.c.h.b16 %v2916
        %v3542 = vunpack.c.l.b16 %v2917
        %v3543 = vunpack.c.h.b16 %v2917
        %v3544 = vunpack.c.l.b16 %v2918
        %v3545 = vunpack.c.h.b16 %v2918
        %v3546 = vunpack.c.l.b16 %v2919
        %v3547 = vunpack.c.h.b16 %v2919
        %v3548 = vunpack.c.l.b16 %v2920
        %v3549 = vunpack.c.h.b16 %v2920
        %v3550 = vunpack.c.l.b16 %v2921
        %v3551 = vunpack.c.h.b16 %v2921
        %v3552 = vunpack.c.l.b16 %v2922
        %v3553 = vunpack.c.h.b16 %v2922
        %v3554 = vunpack.c.l.b16 %v2923
        %v3555 = vunpack.c.h.b16 %v2923
        %v3556 = vunpack.c.l.b16 %v2924
        %v3557 = vunpack.c.h.b16 %v2924
        %v3558 = vunpack.c.l.b16 %v2925
        %v3559 = vunpack.c.h.b16 %v2925
        %v3560 = vunpack.c.l.b16 %v2926
        %v3561 = vunpack.c.h.b16 %v2926
        %v3562 = vunpack.c.l.b16 %v2927
        %v3563 = vunpack.c.h.b16 %v2927
        %v3564 = vunpack.c.l.b16 %v2928
        %v3565 = vunpack.c.h.b16 %v2928
        %v3566 = vunpack.c.l.b16 %v2929
        %v3567 = vunpack.c.h.b16 %v2929
        %v3568 = vunpack.c.l.b16 %v2930
        %v3569 = vunpack.c.h.b16 %v2930
        %v3570 = vunpack.c.l.b16 %v2931
        %v3571 = vunpack.c.h.b16 %v2931
        %v3572 = vunpack.c.l.b16 %v2932
        %v3573 = vunpack.c.h.b16 %v2932
        %v3574 = vunpack.c.l.b16 %v2933
        %v3575 = vunpack.c.h.b16 %v2933
        %v3576 = vunpack.c.l.b16 %v2934
        %v3577 = vunpack.c.h.b16 %v2934
        %v3578 = vunpack.c.l.b16 %v2935
        %v3579 = vunpack.c.h.b16 %v2935
        %v3580 = vunpack.c.l.b16 %v2936
        %v3581 = vunpack.c.h.b16 %v2936
        %v3582 = vunpack.c.l.b16 %v2937
        %v3583 = vunpack.c.h.b16 %v2937
        %v3584 = vunpack.c.l.b16 %v2938
        %v3585 = vunpack.c.h.b16 %v2938
        %v3586 = vunpack.c.l.b16 %v2939
        %v3587 = vunpack.c.h.b16 %v2939
        %v3588 = vunpack.c.l.b16 %v2940
        %v3589 = vunpack.c.h.b16 %v2940
        %v3590 = vunpack.c.l.b16 %v2941
        %v3591 = vunpack.c.h.b16 %v2941
        %v3592 = vunpack.c.l.b16 %v2942
        %v3593 = vunpack.c.h.b16 %v2942
        %v3594 = vunpack.c.l.b16 %v2943
        %v3595 = vunpack.c.h.b16 %v2943
        %v3596 = vunpack.c.l.b16 %v2944
        %v3597 = vunpack.c.h.b16 %v2944
        %v3598 = vunpack.c.l.b16 %v2945
        %v3599 = vunpack.c.h.b16 %v2945
        %v3600 = vunpack.c.l.b16 %v2946
        %v3601 = vunpack.c.h.b16 %v2946
        %v3602 = vunpack.c.l.b16 %v2947
        %v3603 = vunpack.c.h.b16 %v2947
        %v3604 = vunpack.c.l.b16 %v2948
        %v3605 = vunpack.c.h.b16 %v2948
        %v3606 = vunpack.c.l.b16 %v2949
        %v3607 = vunpack.c.h.b16 %v2949
        %v3608 = vunpack.c.l.b16 %v2950
        %v3609 = vunpack.c.h.b16 %v2950
        %v3610 = vunpack.c.l.b16 %v2951
        %v3611 = vunpack.c.h.b16 %v2951
        %v3612 = vunpack.c.l.b16 %v2952
        %v3613 = vunpack.c.h.b16 %v2952
        %v3614 = vunpack.c.l.b16 %v2953
        %v3615 = vunpack.c.h.b16 %v2953
        %v3616 = vunpack.c.l.b16 %v2954
        %v3617 = vunpack.c.h.b16 %v2954
        %v3618 = vunpack.c.l.b16 %v2955
        %v3619 = vunpack.c.h.b16 %v2955
        %v3620 = vunpack.c.l.b16 %v2956
        %v3621 = vunpack.c.h.b16 %v2956
        %v3622 = vunpack.c.l.b16 %v2957
        %v3623 = vunpack.c.h.b16 %v2957
        %v3624 = vunpack.c.l.b16 %v2958
        %v3625 = vunpack.c.h.b16 %v2958
        %v3626 = vunpack.c.l.b16 %v2959
        %v3627 = vunpack.c.h.b16 %v2959
        %v3628 = vunpack.c.l.b16 %v2960
        %v3629 = vunpack.c.h.b16 %v2960
        %v3630 = vunpack.c.l.b16 %v2961
        %v3631 = vunpack.c.h.b16 %v2961
        %v3632 = vunpack.c.l.b16 %v2962
        %v3633 = vunpack.c.h.b16 %v2962
        %v3634 = vunpack.c.l.b16 %v2963
        %v3635 = vunpack.c.h.b16 %v2963
        %v3636 = vunpack.c.l.b16 %v2964
        %v3637 = vunpack.c.h.b16 %v2964
        %v3638 = vunpack.c.l.b16 %v2965
        %v3639 = vunpack.c.h.b16 %v2965
        %v3640 = vunpack.c.l.b16 %v2966
        %v3641 = vunpack.c.h.b16 %v2966
        %v3642 = vunpack.c.l.b16 %v2967
        %v3643 = vunpack.c.h.b16 %v2967
        %v3644 = vunpack.c.l.b16 %v2968
        %v3645 = vunpack.c.h.b16 %v2968
        %v3646 = vunpack.c.l.b16 %v2969
        %v3647 = vunpack.c.h.b16 %v2969
        %v3648 = vunpack.c.l.b16 %v2970
        %v3649 = vunpack.c.h.b16 %v2970
        %v3650 = vpack.c.b16 %v3226, %v3218
        %v3651 = vpack.c.b16 %v3227, %v3219
        %v3652 = vpack.c.b16 %v3228, %v3220
        %v3653 = vpack.c.b16 %v3229, %v3221
        %v3654 = vpack.c.b16 %v3230, %v3222
        %v3655 = vpack.c.b16 %v3231, %v3223
        %v3656 = vpack.c.b16 %v3232, %v3224
        %v3657 = vpack.c.b16 %v3233, %v3225
        %v3658 = vpack.c.b16 %v3242, %v3234
        %v3659 = vpack.c.b16 %v3243, %v3235
        %v3660 = vpack.c.b16 %v3244, %v3236
        %v3661 = vpack.c.b16 %v3245, %v3237
        %v3662 = vpack.c.b16 %v3246, %v3238
        %v3663 = vpack.c.b16 %v3247, %v3239
        %v3664 = vpack.c.b16 %v3248, %v3240
        %v3665 = vpack.c.b16 %v3249, %v3241
        %v3666 = vpack.c.b16 %v3258, %v3250
        %v3667 = vpack.c.b16 %v3259, %v3251
        %v3668 = vpack.c.b16 %v3260, %v3252
        %v3669 = vpack.c.b16 %v3261, %v3253
        %v3670 = vpack.c.b16 %v3262, %v3254
        %v3671 = vpack.c.b16 %v3263, %v3255
        %v3672 = vpack.c.b16 %v3264, %v3256
        %v3673 = vpack.c.b16 %v3265, %v3257
        %v3674 = vpack.c.b16 %v3274, %v3266
        %v3675 = vpack.c.b16 %v3275, %v3267
        %v3676 = vpack.c.b16 %v3276, %v3268
        %v3677 = vpack.c.b16 %v3277, %v3269
        %v3678 = vpack.c.b16 %v3278, %v3270
        %v3679 = vpack.c.b16 %v3279, %v3271
        %v3680 = vpack.c.b16 %v3280, %v3272
        %v3681 = vpack.c.b16 %v3281, %v3273
        %v3682 = vpack.c.b16 %v3290, %v3282
        %v3683 = vpack.c.b16 %v3291, %v3283
        %v3684 = vpack.c.b16 %v3292, %v3284
        %v3685 = vpack.c.b16 %v3293, %v3285
        %v3686 = vpack.c.b16 %v3294, %v3286
        %v3687 = vpack.c.b16 %v3295, %v3287
        %v3688 = vpack.c.b16 %v3296, %v3288
        %v3689 = vpack.c.b16 %v3297, %v3289
        %v3690 = vpack.c.b16 %v3306, %v3298
        %v3691 = vpack.c.b16 %v3307, %v3299
        %v3692 = vpack.c.b16 %v3308, %v3300
        %v3693 = vpack.c.b16 %v3309, %v3301
        %v3694 = vpack.c.b16 %v3310, %v3302
        %v3695 = vpack.c.b16 %v3311, %v3303
        %v3696 = vpack.c.b16 %v3312, %v3304
        %v3697 = vpack.c.b16 %v3313, %v3305
        %v3698 = vpack.c.b16 %v3322, %v3314
        %v3699 = vpack.c.b16 %v3323, %v3315
        %v3700 = vpack.c.b16 %v3324, %v3316
        %v3701 = vpack.c.b16 %v3325, %v3317
        %v3702 = vpack.c.b16 %v3326, %v3318
        %v3703 = vpack.c.b16 %v3327, %v3319
        %v3704 = vpack.c.b16 %v3328, %v3320
        %v3705 = vpack.c.b16 %v3329, %v3321
        %v3706 = vpack.c.b16 %v3338, %v3330
        %v3707 = vpack.c.b16 %v3339, %v3331
        %v3708 = vpack.c.b16 %v3340, %v3332
        %v3709 = vpack.c.b16 %v3341, %v3333
        %v3710 = vpack.c.b16 %v3342, %v3334
        %v3711 = vpack.c.b16 %v3343, %v3335
        %v3712 = vpack.c.b16 %v3344, %v3336
        %v3713 = vpack.c.b16 %v3345, %v3337
        %v3714 = vpack.c.b16 %v3354, %v3346
        %v3715 = vpack.c.b16 %v3355, %v3347
        %v3716 = vpack.c.b16 %v3356, %v3348
        %v3717 = vpack.c.b16 %v3357, %v3349
        %v3718 = vpack.c.b16 %v3358, %v3350
        %v3719 = vpack.c.b16 %v3359, %v3351
        %v3720 = vpack.c.b16 %v3360, %v3352
        %v3721 = vpack.c.b16 %v3361, %v3353
        %v3722 = vpack.c.b16 %v3370, %v3362
        %v3723 = vpack.c.b16 %v3371, %v3363
        %v3724 = vpack.c.b16 %v3372, %v3364
        %v3725 = vpack.c.b16 %v3373, %v3365
        %v3726 = vpack.c.b16 %v3374, %v3366
        %v3727 = vpack.c.b16 %v3375, %v3367
        %v3728 = vpack.c.b16 %v3376, %v3368
        %v3729 = vpack.c.b16 %v3377, %v3369
        %v3730 = vpack.c.b16 %v3386, %v3378
        %v3731 = vpack.c.b16 %v3387, %v3379
        %v3732 = vpack.c.b16 %v3388, %v3380
        %v3733 = vpack.c.b16 %v3389, %v3381
        %v3734 = vpack.c.b16 %v3390, %v3382
        %v3735 = vpack.c.b16 %v3391, %v3383
        %v3736 = vpack.c.b16 %v3392, %v3384
        %v3737 = vpack.c.b16 %v3393, %v3385
        %v3738 = vpack.c.b16 %v3402, %v3394
        %v3739 = vpack.c.b16 %v3403, %v3395
        %v3740 = vpack.c.b16 %v3404, %v3396
        %v3741 = vpack.c.b16 %v3405, %v3397
        %v3742 = vpack.c.b16 %v3406, %v3398
        %v3743 = vpack.c.b16 %v3407, %v3399
        %v3744 = vpack.c.b16 %v3408, %v3400
        %v3745 = vpack.c.b16 %v3409, %v3401
        %v3746 = vpack.c.b16 %v3418, %v3410
        %v3747 = vpack.c.b16 %v3419, %v3411
        %v3748 = vpack.c.b16 %v3420, %v3412
        %v3749 = vpack.c.b16 %v3421, %v3413
        %v3750 = vpack.c.b16 %v3422, %v3414
        %v3751 = vpack.c.b16 %v3423, %v3415
        %v3752 = vpack.c.b16 %v3424, %v3416
        %v3753 = vpack.c.b16 %v3425, %v3417
        %v3754 = vpack.c.b16 %v3434, %v3426
        %v3755 = vpack.c.b16 %v3435, %v3427
        %v3756 = vpack.c.b16 %v3436, %v3428
        %v3757 = vpack.c.b16 %v3437, %v3429
        %v3758 = vpack.c.b16 %v3438, %v3430
        %v3759 = vpack.c.b16 %v3439, %v3431
        %v3760 = vpack.c.b16 %v3440, %v3432
        %v3761 = vpack.c.b16 %v3441, %v3433
        %v3762 = vpack.c.b16 %v3450, %v3442
        %v3763 = vpack.c.b16 %v3451, %v3443
        %v3764 = vpack.c.b16 %v3452, %v3444
        %v3765 = vpack.c.b16 %v3453, %v3445
        %v3766 = vpack.c.b16 %v3454, %v3446
        %v3767 = vpack.c.b16 %v3455, %v3447
        %v3768 = vpack.c.b16 %v3456, %v3448
        %v3769 = vpack.c.b16 %v3457, %v3449
        %v3770 = vpack.c.b16 %v3466, %v3458
        %v3771 = vpack.c.b16 %v3467, %v3459
        %v3772 = vpack.c.b16 %v3468, %v3460
        %v3773 = vpack.c.b16 %v3469, %v3461
        %v3774 = vpack.c.b16 %v3470, %v3462
        %v3775 = vpack.c.b16 %v3471, %v3463
        %v3776 = vpack.c.b16 %v3472, %v3464
        %v3777 = vpack.c.b16 %v3473, %v3465
        %v3778 = vpack.c.b16 %v3482, %v3474
        %v3779 = vpack.c.b16 %v3483, %v3475
        %v3780 = vpack.c.b16 %v3484, %v3476
        %v3781 = vpack.c.b16 %v3485, %v3477
        %v3782 = vpack.c.b16 %v3486, %v3478
        %v3783 = vpack.c.b16 %v3487, %v3479
        %v3784 = vpack.c.b16 %v3488, %v3480
        %v3785 = vpack.c.b16 %v3489, %v3481
        %v3786 = vpack.c.b16 %v3498, %v3490
        %v3787 = vpack.c.b16 %v3499, %v3491
        %v3788 = vpack.c.b16 %v3500, %v3492
        %v3789 = vpack.c.b16 %v3501, %v3493
        %v3790 = vpack.c.b16 %v3502, %v3494
        %v3791 = vpack.c.b16 %v3503, %v3495
        %v3792 = vpack.c.b16 %v3504, %v3496
        %v3793 = vpack.c.b16 %v3505, %v3497
        %v3794 = vpack.c.b16 %v3514, %v3506
        %v3795 = vpack.c.b16 %v3515, %v3507
        %v3796 = vpack.c.b16 %v3516, %v3508
        %v3797 = vpack.c.b16 %v3517, %v3509
        %v3798 = vpack.c.b16 %v3518, %v3510
        %v3799 = vpack.c.b16 %v3519, %v3511
        %v3800 = vpack.c.b16 %v3520, %v3512
        %v3801 = vpack.c.b16 %v3521, %v3513
        %v3802 = vpack.c.b16 %v3530, %v3522
        %v3803 = vpack.c.b16 %v3531, %v3523
        %v3804 = vpack.c.b16 %v3532, %v3524
        %v3805 = vpack.c.b16 %v3533, %v3525
        %v3806 = vpack.c.b16 %v3534, %v3526
        %v3807 = vpack.c.b16 %v3535, %v3527
        %v3808 = vpack.c.b16 %v3536, %v3528
        %v3809 = vpack.c.b16 %v3537, %v3529
        %v3810 = vpack.c.b16 %v3546, %v3538
        %v3811 = vpack.c.b16 %v3547, %v3539
        %v3812 = vpack.c.b16 %v3548, %v3540
        %v3813 = vpack.c.b16 %v3549, %v3541
        %v3814 = vpack.c.b16 %v3550, %v3542
        %v3815 = vpack.c.b16 %v3551, %v3543
        %v3816 = vpack.c.b16 %v3552, %v3544
        %v3817 = vpack.c.b16 %v3553, %v3545
        %v3818 = vpack.c.b16 %v3562, %v3554
        %v3819 = vpack.c.b16 %v3563, %v3555
        %v3820 = vpack.c.b16 %v3564, %v3556
        %v3821 = vpack.c.b16 %v3565, %v3557
        %v3822 = vpack.c.b16 %v3566, %v3558
        %v3823 = vpack.c.b16 %v3567, %v3559
        %v3824 = vpack.c.b16 %v3568, %v3560
        %v3825 = vpack.c.b16 %v3569, %v3561
        %v3826 = vpack.c.b16 %v3578, %v3570
        %v3827 = vpack.c.b16 %v3579, %v3571
        %v3828 = vpack.c.b16 %v3580, %v3572
        %v3829 = vpack.c.b16 %v3581, %v3573
        %v3830 = vpack.c.b16 %v3582, %v3574
        %v3831 = vpack.c.b16 %v3583, %v3575
        %v3832 = vpack.c.b16 %v3584, %v3576
        %v3833 = vpack.c.b16 %v3585, %v3577
        %v3834 = vpack.c.b16 %v3594, %v3586
        %v3835 = vpack.c.b16 %v3595, %v3587
        %v3836 = vpack.c.b16 %v3596, %v3588
        %v3837 = vpack.c.b16 %v3597, %v3589
        %v3838 = vpack.c.b16 %v3598, %v3590
        %v3839 = vpack.c.b16 %v3599, %v3591
        %v3840 = vpack.c.b16 %v3600, %v3592
        %v3841 = vpack.c.b16 %v3601, %v3593
        %v3842 = vpack.c.b16 %v3610, %v3602
        %v3843 = vpack.c.b16 %v3611, %v3603
        %v3844 = vpack.c.b16 %v3612, %v3604
        %v3845 = vpack.c.b16 %v3613, %v3605
        %v3846 = vpack.c.b16 %v3614, %v3606
        %v3847 = vpack.c.b16 %v3615, %v3607
        %v3848 = vpack.c.b16 %v3616, %v3608
        %v3849 = vpack.c.b16 %v3617, %v3609
        %v3850 = vpack.c.b16 %v3626, %v3618
        %v3851 = vpack.c.b16 %v3627, %v3619
        %v3852 = vpack.c.b16 %v3628, %v3620
        %v3853 = vpack.c.b16 %v3629, %v3621
        %v3854 = vpack.c.b16 %v3630, %v3622
        %v3855 = vpack.c.b16 %v3631, %v3623
        %v3856 = vpack.c.b16 %v3632, %v3624
        %v3857 = vpack.c.b16 %v3633, %v3625
        %v3858 = vpack.c.b16 %v3642, %v3634
        %v3859 = vpack.c.b16 %v3643, %v3635
        %v3860 = vpack.c.b16 %v3644, %v3636
        %v3861 = vpack.c.b16 %v3645, %v3637
        %v3862 = vpack.c.b16 %v3646, %v3638
        %v3863 = vpack.c.b16 %v3647, %v3639
        %v3864 = vpack.c.b16 %v3648, %v3640
        %v3865 = vpack.c.b16 %v3649, %v3641
        %vm4082 = vcmask 392192
        %v4084 = vsel %vm4082, %v2998, 0
        %4086 = vmatprep.subr.bf16.mxu0 %v3707
        %4087 = vmatpush1.bf16.msra.mxu0 %v3706
        %4088 = vmatprep.subr.bf16.mxu0 %v3699
        %4089 = vmatpush1.bf16.msra.mxu0 %v3698
        %4090 = vmatprep.subr.bf16.mxu0 %v3691
        %4091 = vmatpush1.bf16.msra.mxu0 %v3690
        %4092 = vmatprep.subr.bf16.mxu0 %v3683
        %4093 = vmatpush1.bf16.msra.mxu0 %v3682
        %4094 = vmatprep.subr.bf16.mxu0 %v3675
        %4095 = vmatpush1.bf16.msra.mxu0 %v3674
        %4096 = vmatprep.subr.bf16.mxu0 %v3667
        %4097 = vmatpush1.bf16.msra.mxu0 %v3666
        %4098 = vmatprep.subr.bf16.mxu0 %v3659
        %4099 = vmatpush1.bf16.msra.mxu0 %v3658
        %4100 = vmatprep.subr.bf16.mxu0 %v3651
        %4101 = vmatpush1.bf16.msra.mxu0 %v3650
        %4102 = vmatprep.subr.bf16.mxu0 %v3771
        %4103 = vmatpush2.bf16.msra.mxu0 %v3770
        %4104 = vmatprep.subr.bf16.mxu0 %v3763
        %4105 = vmatpush2.bf16.msra.mxu0 %v3762
        %4106 = vmatprep.subr.bf16.mxu0 %v3755
        %4107 = vmatpush2.bf16.msra.mxu0 %v3754
        %4108 = vmatprep.subr.bf16.mxu0 %v3747
        %4109 = vmatpush2.bf16.msra.mxu0 %v3746
        %4110 = vmatprep.subr.bf16.mxu0 %v3739
        %4111 = vmatpush2.bf16.msra.mxu0 %v3738
        %4112 = vmatprep.subr.bf16.mxu0 %v3731
        %4113 = vmatpush2.bf16.msra.mxu0 %v3730
        %4114 = vmatprep.subr.bf16.mxu0 %v3723
        %4115 = vmatpush2.bf16.msra.mxu0 %v3722
        %4116 = vmatprep.subr.bf16.mxu0 %v3715
        %4117 = vmatpush2.bf16.msra.mxu0 %v3714
        %4118 = vmatprep.mubr.bf16.mxu0 %v2996
        %4119 = vmatmul.mubr.bf16.gmra.mxu0 %v2995
        %v4120 = vpop.f32.mrf.mxu0
        %v4121 = vadd.f32 %v2976, %v4120
        %v4122 = vpop.f32.mrf.mxu0
        %v4123 = vadd.f32 %v2976, %v4122
        %v4124 = vpop.f32.mrf.mxu0
        %v4125 = vadd.f32 %v2981, %v4124
        %v4126 = vpop.f32.mrf.mxu0
        %v4127 = vadd.f32 %v2981, %v4126
        %4128 = vdwg.mxu0
        %4129 = vmatprep.subr.bf16.mxu0 %v3835
        %4130 = vmatpush1.bf16.msra.mxu0 %v3834
        %4131 = vmatprep.subr.bf16.mxu0 %v3827
        %4132 = vmatpush1.bf16.msra.mxu0 %v3826
        %4133 = vmatprep.subr.bf16.mxu0 %v3819
        %4134 = vmatpush1.bf16.msra.mxu0 %v3818
        %4135 = vmatprep.subr.bf16.mxu0 %v3811
        %4136 = vmatpush1.bf16.msra.mxu0 %v3810
        %4137 = vmatprep.subr.bf16.mxu0 %v3803
        %4138 = vmatpush1.bf16.msra.mxu0 %v3802
        %4139 = vmatprep.subr.bf16.mxu0 %v3795
        %4140 = vmatpush1.bf16.msra.mxu0 %v3794
        %4141 = vmatprep.subr.bf16.mxu0 %v3787
        %4142 = vmatpush1.bf16.msra.mxu0 %v3786
        %4143 = vmatprep.subr.bf16.mxu0 %v3779
        %4144 = vmatpush1.bf16.msra.mxu0 %v3778
        %4145 = vmatprep.subr.bf16.mxu0 0
        %4146 = vmatpush2.bf16.msra.mxu0 0
        %4147 = vmatprep.subr.bf16.mxu0 0
        %4148 = vmatpush2.bf16.msra.mxu0 0
        %4149 = vmatprep.subr.bf16.mxu0 0
        %4150 = vmatpush2.bf16.msra.mxu0 0
        %4151 = vmatprep.subr.bf16.mxu0 0
        %4152 = vmatpush2.bf16.msra.mxu0 0
        %4153 = vmatprep.subr.bf16.mxu0 0
        %4154 = vmatpush2.bf16.msra.mxu0 0
        %4155 = vmatprep.subr.bf16.mxu0 %v3859
        %4156 = vmatpush2.bf16.msra.mxu0 %v3858
        %4157 = vmatprep.subr.bf16.mxu0 %v3851
        %4158 = vmatpush2.bf16.msra.mxu0 %v3850
        %4159 = vmatprep.subr.bf16.mxu0 %v3843
        %4160 = vmatpush2.bf16.msra.mxu0 %v3842
        %4161 = vmatprep.mubr.bf16.mxu0 %v4084
        %4162 = vmatmul.mubr.bf16.gmra.mxu0 %v2997
        %v4163 = vpop.f32.mrf.mxu0
        %v4164 = vadd.f32 %v4121, %v4163
        %v4165 = vpop.f32.mrf.mxu0
        %v4166 = vadd.f32 %v4123, %v4165
        %v4167 = vpop.f32.mrf.mxu0
        %v4168 = vadd.f32 %v4125, %v4167
        %v4169 = vpop.f32.mrf.mxu0
        %v4170 = vadd.f32 %v4127, %v4169
        %4171 = vdwg.mxu0
        %4172 = vmatprep.subr.bf16.mxu0 %v3709
        %4173 = vmatpush1.bf16.msra.mxu0 %v3708
        %4174 = vmatprep.subr.bf16.mxu0 %v3701
        %4175 = vmatpush1.bf16.msra.mxu0 %v3700
        %4176 = vmatprep.subr.bf16.mxu0 %v3693
        %4177 = vmatpush1.bf16.msra.mxu0 %v3692
        %4178 = vmatprep.subr.bf16.mxu0 %v3685
        %4179 = vmatpush1.bf16.msra.mxu0 %v3684
        %4180 = vmatprep.subr.bf16.mxu0 %v3677
        %4181 = vmatpush1.bf16.msra.mxu0 %v3676
        %4182 = vmatprep.subr.bf16.mxu0 %v3669
        %4183 = vmatpush1.bf16.msra.mxu0 %v3668
        %4184 = vmatprep.subr.bf16.mxu0 %v3661
        %4185 = vmatpush1.bf16.msra.mxu0 %v3660
        %4186 = vmatprep.subr.bf16.mxu0 %v3653
        %4187 = vmatpush1.bf16.msra.mxu0 %v3652
        %4188 = vmatprep.subr.bf16.mxu0 %v3773
        %4189 = vmatpush2.bf16.msra.mxu0 %v3772
        %4190 = vmatprep.subr.bf16.mxu0 %v3765
        %4191 = vmatpush2.bf16.msra.mxu0 %v3764
        %4192 = vmatprep.subr.bf16.mxu0 %v3757
        %4193 = vmatpush2.bf16.msra.mxu0 %v3756
        %4194 = vmatprep.subr.bf16.mxu0 %v3749
        %4195 = vmatpush2.bf16.msra.mxu0 %v3748
        %4196 = vmatprep.subr.bf16.mxu0 %v3741
        %4197 = vmatpush2.bf16.msra.mxu0 %v3740
        %4198 = vmatprep.subr.bf16.mxu0 %v3733
        %4199 = vmatpush2.bf16.msra.mxu0 %v3732
        %4200 = vmatprep.subr.bf16.mxu0 %v3725
        %4201 = vmatpush2.bf16.msra.mxu0 %v3724
        %4202 = vmatprep.subr.bf16.mxu0 %v3717
        %4203 = vmatpush2.bf16.msra.mxu0 %v3716
        %4204 = vmatprep.mubr.bf16.mxu0 %v2996
        %4205 = vmatmul.mubr.bf16.gmra.mxu0 %v2995
        %v4206 = vpop.f32.mrf.mxu0
        %v4207 = vadd.f32 %v2976, %v4206
        %v4208 = vpop.f32.mrf.mxu0
        %v4209 = vadd.f32 %v2976, %v4208
        %v4210 = vpop.f32.mrf.mxu0
        %v4211 = vadd.f32 %v2981, %v4210
        %v4212 = vpop.f32.mrf.mxu0
        %v4213 = vadd.f32 %v2981, %v4212
        %4214 = vdwg.mxu0
        %4215 = vmatprep.subr.bf16.mxu0 %v3837
        %4216 = vmatpush1.bf16.msra.mxu0 %v3836
        %4217 = vmatprep.subr.bf16.mxu0 %v3829
        %4218 = vmatpush1.bf16.msra.mxu0 %v3828
        %4219 = vmatprep.subr.bf16.mxu0 %v3821
        %4220 = vmatpush1.bf16.msra.mxu0 %v3820
        %4221 = vmatprep.subr.bf16.mxu0 %v3813
        %4222 = vmatpush1.bf16.msra.mxu0 %v3812
        %4223 = vmatprep.subr.bf16.mxu0 %v3805
        %4224 = vmatpush1.bf16.msra.mxu0 %v3804
        %4225 = vmatprep.subr.bf16.mxu0 %v3797
        %4226 = vmatpush1.bf16.msra.mxu0 %v3796
        %4227 = vmatprep.subr.bf16.mxu0 %v3789
        %4228 = vmatpush1.bf16.msra.mxu0 %v3788
        %4229 = vmatprep.subr.bf16.mxu0 %v3781
        %4230 = vmatpush1.bf16.msra.mxu0 %v3780
        %4231 = vmatprep.subr.bf16.mxu0 0
        %4232 = vmatpush2.bf16.msra.mxu0 0
        %4233 = vmatprep.subr.bf16.mxu0 0
        %4234 = vmatpush2.bf16.msra.mxu0 0
        %4235 = vmatprep.subr.bf16.mxu0 0
        %4236 = vmatpush2.bf16.msra.mxu0 0
        %4237 = vmatprep.subr.bf16.mxu0 0
        %4238 = vmatpush2.bf16.msra.mxu0 0
        %4239 = vmatprep.subr.bf16.mxu0 0
        %4240 = vmatpush2.bf16.msra.mxu0 0
        %4241 = vmatprep.subr.bf16.mxu0 %v3861
        %4242 = vmatpush2.bf16.msra.mxu0 %v3860
        %4243 = vmatprep.subr.bf16.mxu0 %v3853
        %4244 = vmatpush2.bf16.msra.mxu0 %v3852
        %4245 = vmatprep.subr.bf16.mxu0 %v3845
        %4246 = vmatpush2.bf16.msra.mxu0 %v3844
        %4247 = vmatprep.mubr.bf16.mxu0 %v4084
        %4248 = vmatmul.mubr.bf16.gmra.mxu0 %v2997
        %v4249 = vpop.f32.mrf.mxu0
        %v4250 = vadd.f32 %v4207, %v4249
        %v4251 = vpop.f32.mrf.mxu0
        %v4252 = vadd.f32 %v4209, %v4251
        %v4253 = vpop.f32.mrf.mxu0
        %v4254 = vadd.f32 %v4211, %v4253
        %v4255 = vpop.f32.mrf.mxu0
        %v4256 = vadd.f32 %v4213, %v4255
        %4257 = vdwg.mxu0
        %4258 = vmatprep.subr.bf16.mxu0 %v3711
        %4259 = vmatpush1.bf16.msra.mxu0 %v3710
        %4260 = vmatprep.subr.bf16.mxu0 %v3703
        %4261 = vmatpush1.bf16.msra.mxu0 %v3702
        %4262 = vmatprep.subr.bf16.mxu0 %v3695
        %4263 = vmatpush1.bf16.msra.mxu0 %v3694
        %4264 = vmatprep.subr.bf16.mxu0 %v3687
        %4265 = vmatpush1.bf16.msra.mxu0 %v3686
        %4266 = vmatprep.subr.bf16.mxu0 %v3679
        %4267 = vmatpush1.bf16.msra.mxu0 %v3678
        %4268 = vmatprep.subr.bf16.mxu0 %v3671
        %4269 = vmatpush1.bf16.msra.mxu0 %v3670
        %4270 = vmatprep.subr.bf16.mxu0 %v3663
        %4271 = vmatpush1.bf16.msra.mxu0 %v3662
        %4272 = vmatprep.subr.bf16.mxu0 %v3655
        %4273 = vmatpush1.bf16.msra.mxu0 %v3654
        %4274 = vmatprep.subr.bf16.mxu0 %v3775
        %4275 = vmatpush2.bf16.msra.mxu0 %v3774
        %4276 = vmatprep.subr.bf16.mxu0 %v3767
        %4277 = vmatpush2.bf16.msra.mxu0 %v3766
        %4278 = vmatprep.subr.bf16.mxu0 %v3759
        %4279 = vmatpush2.bf16.msra.mxu0 %v3758
        %4280 = vmatprep.subr.bf16.mxu0 %v3751
        %4281 = vmatpush2.bf16.msra.mxu0 %v3750
        %4282 = vmatprep.subr.bf16.mxu0 %v3743
        %4283 = vmatpush2.bf16.msra.mxu0 %v3742
        %4284 = vmatprep.subr.bf16.mxu0 %v3735
        %4285 = vmatpush2.bf16.msra.mxu0 %v3734
        %4286 = vmatprep.subr.bf16.mxu0 %v3727
        %4287 = vmatpush2.bf16.msra.mxu0 %v3726
        %4288 = vmatprep.subr.bf16.mxu0 %v3719
        %4289 = vmatpush2.bf16.msra.mxu0 %v3718
        %4290 = vmatprep.mubr.bf16.mxu0 %v2996
        %4291 = vmatmul.mubr.bf16.gmra.mxu0 %v2995
        %v4292 = vpop.f32.mrf.mxu0
        %v4293 = vadd.f32 %v2976, %v4292
        %v4294 = vpop.f32.mrf.mxu0
        %v4295 = vadd.f32 %v2976, %v4294
        %v4296 = vpop.f32.mrf.mxu0
        %v4297 = vadd.f32 %v2981, %v4296
        %v4298 = vpop.f32.mrf.mxu0
        %v4299 = vadd.f32 %v2981, %v4298
        %4300 = vdwg.mxu0
        %4301 = vmatprep.subr.bf16.mxu0 %v3839
        %4302 = vmatpush1.bf16.msra.mxu0 %v3838
        %4303 = vmatprep.subr.bf16.mxu0 %v3831
        %4304 = vmatpush1.bf16.msra.mxu0 %v3830
        %4305 = vmatprep.subr.bf16.mxu0 %v3823
        %4306 = vmatpush1.bf16.msra.mxu0 %v3822
        %4307 = vmatprep.subr.bf16.mxu0 %v3815
        %4308 = vmatpush1.bf16.msra.mxu0 %v3814
        %4309 = vmatprep.subr.bf16.mxu0 %v3807
        %4310 = vmatpush1.bf16.msra.mxu0 %v3806
        %4311 = vmatprep.subr.bf16.mxu0 %v3799
        %4312 = vmatpush1.bf16.msra.mxu0 %v3798
        %4313 = vmatprep.subr.bf16.mxu0 %v3791
        %4314 = vmatpush1.bf16.msra.mxu0 %v3790
        %4315 = vmatprep.subr.bf16.mxu0 %v3783
        %4316 = vmatpush1.bf16.msra.mxu0 %v3782
        %4317 = vmatprep.subr.bf16.mxu0 0
        %4318 = vmatpush2.bf16.msra.mxu0 0
        %4319 = vmatprep.subr.bf16.mxu0 0
        %4320 = vmatpush2.bf16.msra.mxu0 0
        %4321 = vmatprep.subr.bf16.mxu0 0
        %4322 = vmatpush2.bf16.msra.mxu0 0
        %4323 = vmatprep.subr.bf16.mxu0 0
        %4324 = vmatpush2.bf16.msra.mxu0 0
        %4325 = vmatprep.subr.bf16.mxu0 0
        %4326 = vmatpush2.bf16.msra.mxu0 0
        %4327 = vmatprep.subr.bf16.mxu0 %v3863
        %4328 = vmatpush2.bf16.msra.mxu0 %v3862
        %4329 = vmatprep.subr.bf16.mxu0 %v3855
        %4330 = vmatpush2.bf16.msra.mxu0 %v3854
        %4331 = vmatprep.subr.bf16.mxu0 %v3847
        %4332 = vmatpush2.bf16.msra.mxu0 %v3846
        %4333 = vmatprep.mubr.bf16.mxu0 %v4084
        %4334 = vmatmul.mubr.bf16.gmra.mxu0 %v2997
        %v4335 = vpop.f32.mrf.mxu0
        %v4336 = vadd.f32 %v4293, %v4335
        %v4337 = vpop.f32.mrf.mxu0
        %v4338 = vadd.f32 %v4295, %v4337
        %v4339 = vpop.f32.mrf.mxu0
        %v4340 = vadd.f32 %v4297, %v4339
        %v4341 = vpop.f32.mrf.mxu0
        %v4342 = vadd.f32 %v4299, %v4341
        %4343 = vdwg.mxu0
        %4344 = vmatprep.subr.bf16.mxu0 %v3713
        %4345 = vmatpush1.bf16.msra.mxu0 %v3712
        %4346 = vmatprep.subr.bf16.mxu0 %v3705
        %4347 = vmatpush1.bf16.msra.mxu0 %v3704
        %4348 = vmatprep.subr.bf16.mxu0 %v3697
        %4349 = vmatpush1.bf16.msra.mxu0 %v3696
        %4350 = vmatprep.subr.bf16.mxu0 %v3689
        %4351 = vmatpush1.bf16.msra.mxu0 %v3688
        %4352 = vmatprep.subr.bf16.mxu0 %v3681
        %4353 = vmatpush1.bf16.msra.mxu0 %v3680
        %4354 = vmatprep.subr.bf16.mxu0 %v3673
        %4355 = vmatpush1.bf16.msra.mxu0 %v3672
        %4356 = vmatprep.subr.bf16.mxu0 %v3665
        %4357 = vmatpush1.bf16.msra.mxu0 %v3664
        %4358 = vmatprep.subr.bf16.mxu0 %v3657
        %4359 = vmatpush1.bf16.msra.mxu0 %v3656
        %4360 = vmatprep.subr.bf16.mxu0 %v3777
        %4361 = vmatpush2.bf16.msra.mxu0 %v3776
        %4362 = vmatprep.subr.bf16.mxu0 %v3769
        %4363 = vmatpush2.bf16.msra.mxu0 %v3768
        %4364 = vmatprep.subr.bf16.mxu0 %v3761
        %4365 = vmatpush2.bf16.msra.mxu0 %v3760
        %4366 = vmatprep.subr.bf16.mxu0 %v3753
        %4367 = vmatpush2.bf16.msra.mxu0 %v3752
        %4368 = vmatprep.subr.bf16.mxu0 %v3745
        %4369 = vmatpush2.bf16.msra.mxu0 %v3744
        %4370 = vmatprep.subr.bf16.mxu0 %v3737
        %4371 = vmatpush2.bf16.msra.mxu0 %v3736
        %4372 = vmatprep.subr.bf16.mxu0 %v3729
        %4373 = vmatpush2.bf16.msra.mxu0 %v3728
        %4374 = vmatprep.subr.bf16.mxu0 %v3721
        %4375 = vmatpush2.bf16.msra.mxu0 %v3720
        %4376 = vmatprep.mubr.bf16.mxu0 %v2996
        %4377 = vmatmul.mubr.bf16.gmra.mxu0 %v2995
        %v4378 = vpop.f32.mrf.mxu0
        %v4379 = vadd.f32 %v2976, %v4378
        %v4380 = vpop.f32.mrf.mxu0
        %v4381 = vadd.f32 %v2976, %v4380
        %v4382 = vpop.f32.mrf.mxu0
        %v4383 = vadd.f32 %v2981, %v4382
        %v4384 = vpop.f32.mrf.mxu0
        %v4385 = vadd.f32 %v2981, %v4384
        %4386 = vdwg.mxu0
        %4387 = vmatprep.subr.bf16.mxu0 %v3841
        %4388 = vmatpush1.bf16.msra.mxu0 %v3840
        %4389 = vmatprep.subr.bf16.mxu0 %v3833
        %4390 = vmatpush1.bf16.msra.mxu0 %v3832
        %4391 = vmatprep.subr.bf16.mxu0 %v3825
        %4392 = vmatpush1.bf16.msra.mxu0 %v3824
        %4393 = vmatprep.subr.bf16.mxu0 %v3817
        %4394 = vmatpush1.bf16.msra.mxu0 %v3816
        %4395 = vmatprep.subr.bf16.mxu0 %v3809
        %4396 = vmatpush1.bf16.msra.mxu0 %v3808
        %4397 = vmatprep.subr.bf16.mxu0 %v3801
        %4398 = vmatpush1.bf16.msra.mxu0 %v3800
        %4399 = vmatprep.subr.bf16.mxu0 %v3793
        %4400 = vmatpush1.bf16.msra.mxu0 %v3792
        %4401 = vmatprep.subr.bf16.mxu0 %v3785
        %4402 = vmatpush1.bf16.msra.mxu0 %v3784
        %4403 = vmatprep.subr.bf16.mxu0 0
        %4404 = vmatpush2.bf16.msra.mxu0 0
        %4405 = vmatprep.subr.bf16.mxu0 0
        %4406 = vmatpush2.bf16.msra.mxu0 0
        %4407 = vmatprep.subr.bf16.mxu0 0
        %4408 = vmatpush2.bf16.msra.mxu0 0
        %4409 = vmatprep.subr.bf16.mxu0 0
        %4410 = vmatpush2.bf16.msra.mxu0 0
        %4411 = vmatprep.subr.bf16.mxu0 0
        %4412 = vmatpush2.bf16.msra.mxu0 0
        %4413 = vmatprep.subr.bf16.mxu0 %v3865
        %4414 = vmatpush2.bf16.msra.mxu0 %v3864
        %4415 = vmatprep.subr.bf16.mxu0 %v3857
        %4416 = vmatpush2.bf16.msra.mxu0 %v3856
        %4417 = vmatprep.subr.bf16.mxu0 %v3849
        %4418 = vmatpush2.bf16.msra.mxu0 %v3848
        %4419 = vmatprep.mubr.bf16.mxu0 %v4084
        %4420 = vmatmul.mubr.bf16.gmra.mxu0 %v2997
        %v4421 = vpop.f32.mrf.mxu0
        %v4422 = vadd.f32 %v4379, %v4421
        %v4423 = vpop.f32.mrf.mxu0
        %v4424 = vadd.f32 %v4381, %v4423
        %v4425 = vpop.f32.mrf.mxu0
        %v4426 = vadd.f32 %v4383, %v4425
        %v4427 = vpop.f32.mrf.mxu0
        %v4428 = vadd.f32 %v4385, %v4427
        %4429 = vdwg.mxu0
        %s4430 = sld [smem:[#allocation3]]
        %vm4431 = vcmp.ge.f32.partialorder %v4164, 0.0
        %vm4432 = vcmp.ge.f32.partialorder %v4166, 0.0
        %vm4433 = vcmp.ge.f32.partialorder %v4250, 0.0
        %vm4434 = vcmp.ge.f32.partialorder %v4252, 0.0
        %vm4435 = vcmp.ge.f32.partialorder %v4336, 0.0
        %vm4436 = vcmp.ge.f32.partialorder %v4338, 0.0
        %vm4437 = vcmp.ge.f32.partialorder %v4422, 0.0
        %vm4438 = vcmp.ge.f32.partialorder %v4424, 0.0
        %vm4439 = vcmp.ge.f32.partialorder %v4168, 0.0
        %vm4440 = vcmp.ge.f32.partialorder %v4170, 0.0
        %vm4441 = vcmp.ge.f32.partialorder %v4254, 0.0
        %vm4442 = vcmp.ge.f32.partialorder %v4256, 0.0
        %vm4443 = vcmp.ge.f32.partialorder %v4340, 0.0
        %vm4444 = vcmp.ge.f32.partialorder %v4342, 0.0
        %vm4445 = vcmp.ge.f32.partialorder %v4426, 0.0
        %vm4446 = vcmp.ge.f32.partialorder %v4428, 0.0
        %v4447 = vstv %s4430
        %v4448 = vmul.f32 %v4447, %v4164
        %v4449 = vmul.f32 %v4447, %v4166
        %v4450 = vmul.f32 %v4447, %v4250
        %v4451 = vmul.f32 %v4447, %v4252
        %v4452 = vmul.f32 %v4447, %v4336
        %v4453 = vmul.f32 %v4447, %v4338
        %v4454 = vmul.f32 %v4447, %v4422
        %v4455 = vmul.f32 %v4447, %v4424
        %v4456 = vmul.f32 %v4447, %v4168
        %v4457 = vmul.f32 %v4447, %v4170
        %v4458 = vmul.f32 %v4447, %v4254
        %v4459 = vmul.f32 %v4447, %v4256
        %v4460 = vmul.f32 %v4447, %v4340
        %v4461 = vmul.f32 %v4447, %v4342
        %v4462 = vmul.f32 %v4447, %v4426
        %v4463 = vmul.f32 %v4447, %v4428
        %v4464 = vsel %vm4431, %v4164, %v4448
        %v4465 = vsel %vm4432, %v4166, %v4449
        %v4466 = vsel %vm4433, %v4250, %v4450
        %v4467 = vsel %vm4434, %v4252, %v4451
        %v4468 = vsel %vm4435, %v4336, %v4452
        %v4469 = vsel %vm4436, %v4338, %v4453
        %v4470 = vsel %vm4437, %v4422, %v4454
        %v4471 = vsel %vm4438, %v4424, %v4455
        %v4472 = vsel %vm4439, %v4168, %v4456
        %v4473 = vsel %vm4440, %v4170, %v4457
        %v4474 = vsel %vm4441, %v4254, %v4458
        %v4475 = vsel %vm4442, %v4256, %v4459
        %v4476 = vsel %vm4443, %v4340, %v4460
        %v4477 = vsel %vm4444, %v4342, %v4461
        %v4478 = vsel %vm4445, %v4426, %v4462
        %v4479 = vsel %vm4446, %v4428, %v4463
        %v4480 = vld [vmem:[%s492] sm:$0xff]
        %vm4481 = vcmp.gt.f32.partialorder %v4480, 0.0
        %v4482 = vsel %vm4481, 1, 0
        %v4483 = vlaneseq
        %v4484 = vshrl.u32 %v4483, 7
        %v4485 = vsub.s32 0, %v4484
        %v4486 = vrot.slane %v4482, %v4485
        %v4487 = vlaneseq
        %v4488 = vshrl.u32 %v4487, 7
        %v4489 = vsub.s32 1, %v4488
        %v4490 = vrot.slane %v4482, %v4489
        %v4491 = vlaneseq
        %v4492 = vshrl.u32 %v4491, 7
        %v4493 = vsub.s32 2, %v4492
        %v4494 = vrot.slane %v4482, %v4493
        %v4495 = vlaneseq
        %v4496 = vshrl.u32 %v4495, 7
        %v4497 = vsub.s32 3, %v4496
        %v4498 = vrot.slane %v4482, %v4497
        %v4499 = vlaneseq
        %v4500 = vshrl.u32 %v4499, 7
        %v4501 = vsub.s32 4, %v4500
        %v4502 = vrot.slane %v4482, %v4501
        %v4503 = vlaneseq
        %v4504 = vshrl.u32 %v4503, 7
        %v4505 = vsub.s32 5, %v4504
        %v4506 = vrot.slane %v4482, %v4505
        %v4507 = vlaneseq
        %v4508 = vshrl.u32 %v4507, 7
        %v4509 = vsub.s32 6, %v4508
        %v4510 = vrot.slane %v4482, %v4509
        %v4511 = vlaneseq
        %v4512 = vshrl.u32 %v4511, 7
        %v4513 = vsub.s32 7, %v4512
        %v4514 = vrot.slane %v4482, %v4513
        %vm4515 = vcmp.eq.s32.totalorder %v4486, 1
        %vm4516 = vcmp.eq.s32.totalorder %v4490, 1
        %vm4517 = vcmp.eq.s32.totalorder %v4494, 1
        %vm4518 = vcmp.eq.s32.totalorder %v4498, 1
        %vm4519 = vcmp.eq.s32.totalorder %v4502, 1
        %vm4520 = vcmp.eq.s32.totalorder %v4506, 1
        %vm4521 = vcmp.eq.s32.totalorder %v4510, 1
        %vm4522 = vcmp.eq.s32.totalorder %v4514, 1
        %v4523 = vsel %vm4515, %v4464, 0.0
        %v4524 = vsel %vm4516, %v4465, 0.0
        %v4525 = vsel %vm4517, %v4466, 0.0
        %v4526 = vsel %vm4518, %v4467, 0.0
        %v4527 = vsel %vm4519, %v4468, 0.0
        %v4528 = vsel %vm4520, %v4469, 0.0
        %v4529 = vsel %vm4521, %v4470, 0.0
        %v4530 = vsel %vm4522, %v4471, 0.0
        %v4531 = vsel %vm4515, %v4472, 0.0
        %v4532 = vsel %vm4516, %v4473, 0.0
        %v4533 = vsel %vm4517, %v4474, 0.0
        %v4534 = vsel %vm4518, %v4475, 0.0
        %v4535 = vsel %vm4519, %v4476, 0.0
        %v4536 = vsel %vm4520, %v4477, 0.0
        %v4537 = vsel %vm4521, %v4478, 0.0
        %v4538 = vsel %vm4522, %v4479, 0.0
        %v4539 = vpack.c.bf16 %v4531, %v4523
        %v4540 = vpack.c.bf16 %v4532, %v4524
        %v4541 = vpack.c.bf16 %v4533, %v4525
        %v4542 = vpack.c.bf16 %v4534, %v4526
        %v4543 = vpack.c.bf16 %v4535, %v4527
        %v4544 = vpack.c.bf16 %v4536, %v4528
        %v4545 = vpack.c.bf16 %v4537, %v4529
        %v4546 = vpack.c.bf16 %v4538, %v4530
        %v4555 = vunpack.c.l.b16 %v4539
        %v4556 = vunpack.c.l.b16 %v4540
        %v4557 = vunpack.c.l.b16 %v4541
        %v4558 = vunpack.c.l.b16 %v4542
        %v4559 = vunpack.c.l.b16 %v4543
        %v4560 = vunpack.c.l.b16 %v4544
        %v4561 = vunpack.c.l.b16 %v4545
        %v4562 = vunpack.c.l.b16 %v4546
        %v4563 = vunpack.c.h.b16 %v4539
        %v4564 = vunpack.c.h.b16 %v4540
        %v4565 = vunpack.c.h.b16 %v4541
        %v4566 = vunpack.c.h.b16 %v4542
        %v4567 = vunpack.c.h.b16 %v4543
        %v4568 = vunpack.c.h.b16 %v4544
        %v4569 = vunpack.c.h.b16 %v4545
        %v4570 = vunpack.c.h.b16 %v4546
        %v4571 = vpack.c.b16 %v4556, %v4555
        %v4572 = vpack.c.b16 %v4558, %v4557
        %v4573 = vpack.c.b16 %v4560, %v4559
        %v4574 = vpack.c.b16 %v4562, %v4561
        %v4575 = vpack.c.b16 %v4564, %v4563
        %v4576 = vpack.c.b16 %v4566, %v4565
        %v4577 = vpack.c.b16 %v4568, %v4567
        %v4578 = vpack.c.b16 %v4570, %v4569
        %4587 = vst [vmem:[%s479] sm:$0xff] %v4571
        %4588 = vst [vmem:[%s479 + $0x8] sm:$0xff] %v4572
        %4589 = vst [vmem:[%s479 + $0x10] sm:$0xff] %v4573
        %4590 = vst [vmem:[%s479 + $0x18] sm:$0xff] %v4574
        %4591 = vst [vmem:[%s479 + $0x20] sm:$0xff] %v4575
        %4592 = vst [vmem:[%s479 + $0x28] sm:$0xff] %v4576
        %4593 = vst [vmem:[%s479 + $0x30] sm:$0xff] %v4577
        %4594 = vst [vmem:[%s479 + $0x38] sm:$0xff] %v4578
        %s4595 = sand.u32 %s210, 1
        %s4596 = sand.u32 %s210, 1
        %s4597 = smul.addr %s4596, 64
        %s4598 = scalar_lea.vmem [#allocation7], %s4597
        // Predicated region
        $region154: #{encoder_block_forward.4} parent=140 // pred_check
          %p4599 = pneg %p220
        $region155: #{encoder_block_forward.4} parent=140 // pred_check_branch
          %4601 = sbr.rel (%p4599) target = $region157
        $region156: #{encoder_block_forward.4} parent=140 // pred_region
          %s4602 = smul.u32 8, %s19
          %s4603 = smul.addr %s4602, 4
          %s4604 = scalar_lea.vmem %s7, %s4603
          // Predicated region
          $region158: #{encoder_block_forward.4} parent=156 // pred_check
            _
          $region159: #{encoder_block_forward.4} parent=156 // pred_check_branch
            %4606 = sbr.rel (0) target = $region161
          $region160: #{encoder_block_forward.4} parent=156 // pred_region
            // Predicated region
            $region162: #{encoder_block_forward.4} parent=160 // pred_check
              _
            $region163: #{encoder_block_forward.4} parent=160 // pred_check_branch
              %4608 = sbr.rel (0) target = $region165
            $region164: #{encoder_block_forward.4} parent=160 // pred_region
              loop: start=0, step=1, limit=1
              $region166: #{encoder_block_forward.4} parent=164 // loop_pre_header
                _
              $region167: #{encoder_block_forward.4} parent=164 // loop_header
                %s4610 = sphi 0, %s4614
                %p4611 = scmp.ge.s32.totalorder %s4610, 1
                %s4615 = sphi %s4598, %s4598
                %s4616 = sphi %s4604, %s4604
              $region168: #{encoder_block_forward.4} parent=164 // loop_header_branch
                %4613 = sbr.rel (%p4611) target = $region172
              $region169: #{encoder_block_forward.4} parent=164 // loop_body
                %v4617 = vld [vmem:[%s4615] sm:$0xff]
                %4618 = vst [vmem:[%s4616] sm:$0xff] %v4617
                %v4619 = vld [vmem:[%s4615 + $0x8] sm:$0xff]
                %4620 = vst [vmem:[%s4616 + $0x8] sm:$0xff] %v4619
                %v4621 = vld [vmem:[%s4615 + $0x10] sm:$0xff]
                %4622 = vst [vmem:[%s4616 + $0x10] sm:$0xff] %v4621
                %v4623 = vld [vmem:[%s4615 + $0x18] sm:$0xff]
                %4624 = vst [vmem:[%s4616 + $0x18] sm:$0xff] %v4623
                %v4625 = vld [vmem:[%s4615 + $0x20] sm:$0xff]
                %4626 = vst [vmem:[%s4616 + $0x40] sm:$0xff] %v4625
                %v4627 = vld [vmem:[%s4615 + $0x28] sm:$0xff]
                %4628 = vst [vmem:[%s4616 + $0x48] sm:$0xff] %v4627
                %v4629 = vld [vmem:[%s4615 + $0x30] sm:$0xff]
                %4630 = vst [vmem:[%s4616 + $0x50] sm:$0xff] %v4629
                %v4631 = vld [vmem:[%s4615 + $0x38] sm:$0xff]
                %4632 = vst [vmem:[%s4616 + $0x58] sm:$0xff] %v4631
              $region170: #{encoder_block_forward.4} parent=164 // loop_footer
                %s4614 = sadd.s32 1, %s4610
              $region171: #{encoder_block_forward.4} parent=164 // loop_footer_branch
                %4609 = sbr.rel target = $region167
              $region172: #{encoder_block_forward.4} parent=164 // loop_exit
                _
            $region165: #{encoder_block_forward.4} parent=160 // pred_fallthru
              _
            // Predicated region
            $region173: #{encoder_block_forward.4} parent=160 // pred_check
              _
            $region174: #{encoder_block_forward.4} parent=160 // pred_check_branch
              %4634 = sbr.rel target = $region176
            $region175: #{encoder_block_forward.4} parent=160 // pred_region
              _
            $region176: #{encoder_block_forward.4} parent=160 // pred_fallthru
              _
          $region161: #{encoder_block_forward.4} parent=156 // pred_fallthru
            _
          %4635 = vnop
        $region157: #{encoder_block_forward.4} parent=140 // pred_fallthru
          _
      $region141: #{encoder_block_forward.4} parent=5 // pred_fallthru
        _
      %p4636 = scmp.le.s32.totalorder 2, %s14
      // Predicated region
      $region177: #{encoder_block_forward.4} parent=5 // pred_check
        %p4637 = pneg %p4636
      $region178: #{encoder_block_forward.4} parent=5 // pred_check_branch
        %4639 = sbr.rel (%p4637) target = $region180
      $region179: #{encoder_block_forward.4} parent=5 // pred_region
        %s4640 = ssub.s32 %s14, 2
        // Predicated region
        $region181: #{encoder_block_forward.4} parent=179 // pred_check
          %p4641 = pneg %p226
        $region182: #{encoder_block_forward.4} parent=179 // pred_check_branch
          %4643 = sbr.rel (%p4641) target = $region184
        $region183: #{encoder_block_forward.4} parent=179 // pred_region
          %s4644 = sand.u32 %s211, 1
          %s4645 = sand.u32 %s211, 1
          %s4646 = smul.addr %s4645, 64
          %s4647 = scalar_lea.vmem [#allocation7], %s4646
        $region184: #{encoder_block_forward.4} parent=179 // pred_fallthru
          _
      $region180: #{encoder_block_forward.4} parent=5 // pred_fallthru
        _
    $region6: #{encoder_block_forward.4} parent=1 // loop_footer
      %s18 = sadd.s32 1, %s14
    $region7: #{encoder_block_forward.4} parent=1 // loop_footer_branch
      %13 = sbr.rel target = $region3
    $region8: #{encoder_block_forward.4} parent=1 // loop_exit
      _

</llo_original>
